<compile_context>
chip_gen: v7x
topology: tpu7x:2x2x1
jax: 0.10.0
libtpu: 0.0.40
codegen_flags: <defaults>
</compile_context>

<pallas_src>
import jax
import jax.numpy as jnp
from jax.experimental import pallas as pl
from jax.experimental.pallas import tpu as pltpu

F32 = jnp.float32
BF16 = jnp.bfloat16


# ----------------------------------------------------------------------------
# In-kernel helpers
# ----------------------------------------------------------------------------
def _relu(x):
    return jnp.maximum(x, 0.0)


def _mm(a_bf16, w_bf16):
    """bf16 MXU matmul with f32 accumulation.  Operands must already be bf16."""
    return jnp.dot(a_bf16, w_bf16, preferred_element_type=jnp.float32)


def _pad_hw(x, ph, pw):
    """Zero-pad spatial dims of an (H, W, C) bf16 array inside VMEM."""
    H, W, C = x.shape
    if pw:
        zw = jnp.zeros((H, pw, C), x.dtype)
        x = jnp.concatenate([zw, x, zw], axis=1)
    if ph:
        zh = jnp.zeros((ph, x.shape[1], C), x.dtype)
        x = jnp.concatenate([zh, x, zh], axis=0)
    return x


def _conv_taps(x_bf16, w_ref, bias_row, kh, kw, ph, pw):
    """'same' conv as a per-tap matmul accumulation (no im2col materialization).

    x_bf16   : (H, W, Cin) bf16 activation
    w_ref    : VMEM ref, (kh*kw*Cin, Cout) bf16, row order (ky, kx, cin)
    bias_row : (1, Cout) f32 or None
    returns  : (H*W, Cout) f32
    """
    H, W, C = x_bf16.shape
    xp = _pad_hw(x_bf16, ph, pw) if (ph or pw) else x_bf16
    acc = None
    for ky in range(kh):
        for kx in range(kw):
            tap = ky * kw + kx
            xs = xp[ky:ky + H, kx:kx + W, :].reshape(H * W, C)
            part = jnp.dot(xs, w_ref[tap * C:(tap + 1) * C, :],
                           preferred_element_type=jnp.float32)
            acc = part if acc is None else acc + part
    if bias_row is not None:
        acc = acc + bias_row
    return acc


# ----------------------------------------------------------------------------
# Kernel 1: BasicMotionEncoder (5 convs, lane-dense 128-ch motion-feature slab)
# ----------------------------------------------------------------------------
def _encoder_kernel(corr_ref, flowp_ref,
                    c1w, c1b, c2w, c2b, f1w, f1b, f2w, f2b,
                    cvw_cor, cvw_flo, cvb, fselw,
                    mf_ref):
    _, H, W, CP = corr_ref.shape
    FP = flowp_ref.shape[-1]
    HW = H * W
    corr = corr_ref[0].reshape(HW, CP)            # bf16
    flowp = flowp_ref[0].reshape(HW, FP)          # bf16 7x7x2 patches (centre tap = flow)

    # convc1 (1x1) + relu
    cor = _relu(_mm(corr, c1w[...]) + c1b[...])                              # (HW, 256)
    # convc2 (3x3) + relu  -- per-tap accumulation
    cor = _relu(_conv_taps(cor.astype(BF16).reshape(H, W, 256), c2w, c2b[...], 3, 3, 1, 1))
    # convf1 (7x7) + relu  -- taps pre-folded into K=98 in the wrapper (Cin=2 only)
    flo = _relu(_mm(flowp, f1w[...]) + f1b[...])                             # (HW, 128)
    # convf2 (3x3) + relu
    flo = _relu(_conv_taps(flo.astype(BF16).reshape(H, W, 128), f2w, f2b[...], 3, 3, 1, 1))
    # conv (3x3) on [cor | flo]: weight split along Cin, Cout padded 126->128 (zero cols)
    cv = (_conv_taps(cor.astype(BF16).reshape(H, W, 192), cvw_cor, None, 3, 3, 1, 1)
          + _conv_taps(flo.astype(BF16).reshape(H, W, 64), cvw_flo, None, 3, 3, 1, 1)
          + cvb[...])
    out = _relu(cv)                                                          # (HW, 128)
    # motion_features = cat([out, flow]) -- flow dropped into cols 126/127 via a tiny
    # centre-tap-select matmul (no lane splice, output stays full-lane dense).
    mf = out + _mm(flowp, fselw[...])
    mf_ref[0] = mf.reshape(H, W, -1).astype(mf_ref.dtype)


# ----------------------------------------------------------------------------
# Kernel 2: SepConvGRU, both directions fused (h stays in VMEM between passes)
# ----------------------------------------------------------------------------
def _gru_kernel(h_ref, inp_ref, mf_ref,
                zr1_w_h, zrq1_w_i, zrq1_w_m, q1_w_h, zr1_b, q1_b,
                zr2_w_h, zrq2_w_i, zrq2_w_m, q2_w_h, zr2_b, q2_b,
                o_ref):
    _, H, W, HD = h_ref.shape
    HW = H * W
    h = h_ref[0].reshape(HW, HD)                  # f32 GRU state
    inp = inp_ref[0]                              # (H, W, 128) bf16 (context)
    mf = mf_ref[0]                                # (H, W, 128) bf16 (motion features)

    def direction(h_flat, zr_w_h, zrq_w_i, zrq_w_m, q_w_h, zr_b, q_b, kh, kw, ph, pw):
        h_b = h_flat.astype(BF16).reshape(H, W, HD)
        # z/r fused along Cout; q's inp/mf parts stacked behind them (Cout = 3*HD),
        # so the inp and mf operands each hit the MXU exactly once per direction.
        acc_h = _conv_taps(h_b, zr_w_h, None, kh, kw, ph, pw)      # (HW, 2*HD)
        acc_i = _conv_taps(inp, zrq_w_i, None, kh, kw, ph, pw)     # (HW, 3*HD) [zr | q]
        acc_m = _conv_taps(mf, zrq_w_m, None, kh, kw, ph, pw)      # (HW, 3*HD) [zr | q]
        zr = jax.nn.sigmoid(acc_h + acc_i[:, :2 * HD] + acc_m[:, :2 * HD] + zr_b[...])
        z = zr[:, :HD]
        r = zr[:, HD:]
        rh = (r * h_flat).astype(BF16).reshape(H, W, HD)
        q = jnp.tanh(_conv_taps(rh, q_w_h, None, kh, kw, ph, pw)
                     + acc_i[:, 2 * HD:] + acc_m[:, 2 * HD:] + q_b[...])
        return (1.0 - z) * h_flat + z * q

    h = direction(h, zr1_w_h, zrq1_w_i, zrq1_w_m, q1_w_h, zr1_b, q1_b, 1, 5, 0, 2)
    h = direction(h, zr2_w_h, zrq2_w_i, zrq2_w_m, q2_w_h, zr2_b, q2_b, 5, 1, 2, 0)
    o_ref[0] = h.reshape(H, W, HD).astype(o_ref.dtype)


# ----------------------------------------------------------------------------
# Kernel 3: FlowHead + mask head (conv1's stacked along Cout, shared h operand)
# ----------------------------------------------------------------------------
def _heads_kernel(h_ref, hd1w, hd1b, fh2w, fh2b, mk2w, mk2b,
                  dflow_ref, mask_ref):
    _, H, W, HD = h_ref.shape
    h_b = h_ref[0].astype(BF16)                                   # (H, W, 128)
    # flow_head.conv1 (256) and mask[0] (256) fused: one 3x3 conv, Cout=512
    t = _relu(_conv_taps(h_b, hd1w, hd1b[...], 3, 3, 1, 1))       # (HW, 512)
    fh = t[:, :256].astype(BF16).reshape(H, W, 256)
    mk = t[:, 256:].astype(BF16)                                  # (HW, 256)
    # FlowHead.conv2 (3x3, 256->2), Cout zero-padded to 128 for a full-lane store
    df = _conv_taps(fh, fh2w, fh2b[...], 3, 3, 1, 1)              # (HW, 128)
    # mask tail: 1x1 (256->576), scaled by 0.25, emitted in bf16
    mask = (_mm(mk, mk2w[...]) + mk2b[...]) * 0.25                # (HW, 576)
    dflow_ref[0] = df.reshape(H, W, -1).astype(dflow_ref.dtype)
    mask_ref[0] = mask.reshape(H, W, -1).astype(mask_ref.dtype)


# ----------------------------------------------------------------------------
# pallas_call wrappers (grid over batch)
# ----------------------------------------------------------------------------
def _act_spec(H, W, C):
    return pl.BlockSpec((1, H, W, C), lambda b: (b, 0, 0, 0))


def _w_spec(w):
    # Weights/biases are 2D and grid-invariant.
    return pl.BlockSpec(w.shape, lambda b: (0, 0))


def _compiler_params():
    # Explicit VMEM budget: ~3/4 of physical capacity, clamped (defaults are only
    # 16/32 MiB scoped and would force spills / tiny effective tiles at real sizes).
    try:
        cap = int(getattr(pltpu.get_tpu_info(), "vmem_capacity_bytes", 64 << 20))
    except Exception:
        cap = 64 << 20
    limit = max(32 << 20, min(96 << 20, (cap * 3) // 4))
    return pltpu.CompilerParams(dimension_semantics=("parallel",),
                                vmem_limit_bytes=limit)


def _run_encoder(p, corr, flowp):
    B, H, W, CP = corr.shape
    ws = [p["c1_w"], p["c1_b"], p["c2_w"], p["c2_b"], p["f1_w"], p["f1_b"],
          p["f2_w"], p["f2_b"], p["cv_w_cor"], p["cv_w_flo"], p["cv_b"], p["fsel_w"]]
    return pl.pallas_call(
        _encoder_kernel,
        out_shape=jax.ShapeDtypeStruct((B, H, W, 128), BF16),
        grid=(B,),
        in_specs=[_act_spec(H, W, CP), _act_spec(H, W, flowp.shape[-1])]
                 + [_w_spec(w) for w in ws],
        out_specs=_act_spec(H, W, 128),
        compiler_params=_compiler_params(),
    )(corr, flowp, *ws)


def _run_gru(p, h, inp, mf):
    B, H, W, HD = h.shape
    ws = []
    for d in ("1", "2"):
        ws += [p[f"zr{d}_w_h"], p[f"zrq{d}_w_i"], p[f"zrq{d}_w_m"],
               p[f"q{d}_w_h"], p[f"zr{d}_b"], p[f"q{d}_b"]]
    return pl.pallas_call(
        _gru_kernel,
        out_shape=jax.ShapeDtypeStruct((B, H, W, HD), F32),
        grid=(B,),
        in_specs=[_act_spec(H, W, HD), _act_spec(H, W, inp.shape[-1]),
                  _act_spec(H, W, mf.shape[-1])] + [_w_spec(w) for w in ws],
        out_specs=_act_spec(H, W, HD),
        compiler_params=_compiler_params(),
    )(h, inp, mf, *ws)


def _run_heads(p, h):
    B, H, W, HD = h.shape
    ws = [p["hd1_w"], p["hd1_b"], p["fh2_w"], p["fh2_b"], p["mk2_w"], p["mk2_b"]]
    return pl.pallas_call(
        _heads_kernel,
        out_shape=(jax.ShapeDtypeStruct((B, H, W, 128), F32),
                   jax.ShapeDtypeStruct((B, H, W, 64 * 9), BF16)),
        grid=(B,),
        in_specs=[_act_spec(H, W, HD)] + [_w_spec(w) for w in ws],
        out_specs=(_act_spec(H, W, 128), _act_spec(H, W, 64 * 9)),
        compiler_params=_compiler_params(),
    )(h, *ws)


# ----------------------------------------------------------------------------
# Parameter init (deterministic, synthetic; weights stored in per-tap layout, bf16)
# ----------------------------------------------------------------------------
def init_params(key, corr_levels, corr_radius, hidden_dim=128):
    cor_planes = corr_levels * (2 * corr_radius + 1) ** 2
    keys = iter(jax.random.split(key, 64))
    p = {}
    HD = hidden_dim

    def wmat(rows, cout, fan_in):
        w = jax.random.normal(next(keys), (rows, cout), F32) / jnp.sqrt(float(fan_in))
        return w.astype(BF16)

    def bias(cout):
        return 0.01 * jax.random.normal(next(keys), (1, cout), F32)

    # --- BasicMotionEncoder ---
    p["c1_w"] = wmat(cor_planes, 256, cor_planes);   p["c1_b"] = bias(256)
    p["c2_w"] = wmat(9 * 256, 192, 9 * 256);         p["c2_b"] = bias(192)
    p["f1_w"] = wmat(49 * 2, 128, 49 * 2);           p["f1_b"] = bias(128)
    p["f2_w"] = wmat(9 * 128, 64, 9 * 128);          p["f2_b"] = bias(64)
    # conv (3x3, 256->126): split along Cin (cor/flo), Cout zero-padded 126->128
    fan = 9 * (192 + 64)
    p["cv_w_cor"] = jnp.pad(wmat(9 * 192, 126, fan), ((0, 0), (0, 2)))
    p["cv_w_flo"] = jnp.pad(wmat(9 * 64, 126, fan), ((0, 0), (0, 2)))
    p["cv_b"] = jnp.pad(bias(126), ((0, 0), (0, 2)))
    # centre-tap (ky=3,kx=3) select of the 7x7 flow patches into mf cols 126/127
    fsel = jnp.zeros((49 * 2, 128), F32).at[48, 126].set(1.0).at[49, 127].set(1.0)
    p["fsel_w"] = fsel.astype(BF16)

    # --- SepConvGRU (z/r stacked along Cout; q's inp/mf parts stacked behind z/r) ---
    fan = 5 * (HD + 128 + HD)
    for d in ("1", "2"):
        p[f"zr{d}_w_h"] = wmat(5 * HD, 2 * HD, fan)
        p[f"zrq{d}_w_i"] = wmat(5 * 128, 3 * HD, fan)
        p[f"zrq{d}_w_m"] = wmat(5 * HD, 3 * HD, fan)
        p[f"q{d}_w_h"] = wmat(5 * HD, HD, fan)
        p[f"zr{d}_b"] = bias(2 * HD)
        p[f"q{d}_b"] = bias(HD)

    # --- FlowHead.conv1 + mask.conv1 stacked (Cout=512); fh2 Cout padded 2->128 ---
    p["hd1_w"] = wmat(9 * HD, 512, 9 * HD);          p["hd1_b"] = bias(512)
    p["fh2_w"] = jnp.pad(wmat(9 * 256, 2, 9 * 256), ((0, 0), (0, 126)))
    p["fh2_b"] = jnp.pad(bias(2), ((0, 0), (0, 126)))
    p["mk2_w"] = wmat(256, 576, 256);                p["mk2_b"] = bias(576)
    return p


# ----------------------------------------------------------------------------
# Forward pass (mirrors BasicUpdateBlock.forward)
# ----------------------------------------------------------------------------
def _flow_patches_7x7(flow_nhwc):
    """(B,H,W,2) -> (B,H,W,98) 'same'-padded 7x7 patches, column order (ky, kx, c).

    Precomputed in XLA once per call so the kernel never builds 49 two-lane concats.
    """
    B, H, W, _ = flow_nhwc.shape
    fp = jnp.pad(flow_nhwc, ((0, 0), (3, 3), (3, 3), (0, 0)))
    cols = [fp[:, ky:ky + H, kx:kx + W, :] for ky in range(7) for kx in range(7)]
    return jnp.concatenate(cols, axis=-1)


def basic_update_block_nhwc(params, net, inp, corr, flow):
    """NHWC fast path (use this inside the RAFT iteration loop)."""
    inp_b = inp.astype(BF16)
    corr_b = corr.astype(BF16)
    flowp = _flow_patches_7x7(flow).astype(BF16)

    mf = _run_encoder(params, corr_b, flowp)          # (B,H,W,128) bf16
    h = _run_gru(params, net.astype(F32), inp_b, mf)  # (B,H,W,128) f32
    dflow128, mask = _run_heads(params, h)            # (B,H,W,128) f32, (B,H,W,576) bf16
    return h, mask, dflow128[..., :2]


def basic_update_block(params, net, inp, corr, flow):
    """NCHW adapter matching the PyTorch interface (transposes not hoisted here)."""
    to_nhwc = lambda t: jnp.transpose(t, (0, 2, 3, 1))
    to_nchw = lambda t: jnp.transpose(t, (0, 3, 1, 2))
    h, mask, df = basic_update_block_nhwc(params, to_nhwc(net), to_nhwc(inp),
                                          to_nhwc(corr), to_nhwc(flow))
    return to_nchw(h), to_nchw(mask), to_nchw(df)


# ----------------------------------------------------------------------------
if __name__ == "__main__":
    # Small RAFT-ish config: corr_levels=1, corr_radius=1 -> cor_planes = 9
    B, H, W = 2, 8, 8
    hidden_dim = 128
    corr_levels, corr_radius = 1, 1
    cor_planes = corr_levels * (2 * corr_radius + 1) ** 2

    key = jax.random.PRNGKey(0)
    k_par, k_net, k_inp, k_cor, k_flo = jax.random.split(key, 5)

    params = init_params(k_par, corr_levels, corr_radius, hidden_dim=hidden_dim)

    net = jax.random.normal(k_net, (B, hidden_dim, H, W), F32)
    inp = jax.random.normal(k_inp, (B, 128, H, W), F32)
    corr = jax.random.normal(k_cor, (B, cor_planes, H, W), F32)
    flow = 0.1 * jax.random.normal(k_flo, (B, 2, H, W), F32)

    new_net, mask, delta_flow = basic_update_block(params, net, inp, corr, flow)
    jax.block_until_ready((new_net, mask, delta_flow))

    assert new_net.shape == (B, hidden_dim, H, W)
    assert mask.shape == (B, 64 * 9, H, W)
    assert delta_flow.shape == (B, 2, H, W)
    assert bool(jnp.all(jnp.isfinite(new_net)))
    assert bool(jnp.all(jnp.isfinite(mask.astype(F32))))
    assert bool(jnp.all(jnp.isfinite(delta_flow)))

    print("KERNEL_OK")
</pallas_src>

<mosaic_0001>
module attributes {stable_mosaic.version = 11 : i64} {
  func.func @_encoder_kernel(%arg0: i32, %arg1: memref<1x8x8x9xbf16, #tpu.memory_space<vmem>>, %arg2: memref<1x8x8x98xbf16, #tpu.memory_space<vmem>>, %arg3: memref<9x256xbf16, #tpu.memory_space<vmem>>, %arg4: memref<1x256xf32, #tpu.memory_space<vmem>>, %arg5: memref<2304x192xbf16, #tpu.memory_space<vmem>>, %arg6: memref<1x192xf32, #tpu.memory_space<vmem>>, %arg7: memref<98x128xbf16, #tpu.memory_space<vmem>>, %arg8: memref<1x128xf32, #tpu.memory_space<vmem>>, %arg9: memref<1152x64xbf16, #tpu.memory_space<vmem>>, %arg10: memref<1x64xf32, #tpu.memory_space<vmem>>, %arg11: memref<1728x128xbf16, #tpu.memory_space<vmem>>, %arg12: memref<576x128xbf16, #tpu.memory_space<vmem>>, %arg13: memref<1x128xf32, #tpu.memory_space<vmem>>, %arg14: memref<98x128xbf16, #tpu.memory_space<vmem>>, %arg15: memref<1x8x8x128xbf16, #tpu.memory_space<vmem>>) attributes {dimension_semantics = [#tpu.dimension_semantics<parallel>], iteration_bounds = array<i64: 2>, scalar_prefetch = 0 : i64, scratch_operands = 0 : i64, tpu.core_type = #tpu.core_type<tc>, window_params = [{transform_indices = @transform_0, window_bounds = array<i64: 1, 8, 8, 9>}, {transform_indices = @transform_1, window_bounds = array<i64: 1, 8, 8, 98>}, {pipeline_mode = #tpu.pipeline_mode<synchronous>, transform_indices = @transform_2, window_bounds = array<i64: 9, 256>}, {pipeline_mode = #tpu.pipeline_mode<synchronous>, transform_indices = @transform_3, window_bounds = array<i64: 1, 256>}, {pipeline_mode = #tpu.pipeline_mode<synchronous>, transform_indices = @transform_4, window_bounds = array<i64: 2304, 192>}, {pipeline_mode = #tpu.pipeline_mode<synchronous>, transform_indices = @transform_5, window_bounds = array<i64: 1, 192>}, {pipeline_mode = #tpu.pipeline_mode<synchronous>, transform_indices = @transform_6, window_bounds = array<i64: 98, 128>}, {pipeline_mode = #tpu.pipeline_mode<synchronous>, transform_indices = @transform_7, window_bounds = array<i64: 1, 128>}, {pipeline_mode = #tpu.pipeline_mode<synchronous>, transform_indices = @transform_8, window_bounds = array<i64: 1152, 64>}, {pipeline_mode = #tpu.pipeline_mode<synchronous>, transform_indices = @transform_9, window_bounds = array<i64: 1, 64>}, {pipeline_mode = #tpu.pipeline_mode<synchronous>, transform_indices = @transform_10, window_bounds = array<i64: 1728, 128>}, {pipeline_mode = #tpu.pipeline_mode<synchronous>, transform_indices = @transform_11, window_bounds = array<i64: 576, 128>}, {pipeline_mode = #tpu.pipeline_mode<synchronous>, transform_indices = @transform_12, window_bounds = array<i64: 1, 128>}, {pipeline_mode = #tpu.pipeline_mode<synchronous>, transform_indices = @transform_13, window_bounds = array<i64: 98, 128>}, {transform_indices = @transform_14, window_bounds = array<i64: 1, 8, 8, 128>}]} {
    %c0 = arith.constant 0 : index
    %c0_0 = arith.constant 0 : index
    %c0_1 = arith.constant 0 : index
    %c0_2 = arith.constant 0 : index
    %0 = vector.load %arg1[%c0, %c0_0, %c0_1, %c0_2] : memref<1x8x8x9xbf16, #tpu.memory_space<vmem>>, vector<1x8x8x9xbf16>
    %1 = vector.shape_cast %0 : vector<1x8x8x9xbf16> to vector<8x8x9xbf16>
    %2 = vector.shape_cast %1 : vector<8x8x9xbf16> to vector<64x9xbf16>
    %c0_3 = arith.constant 0 : index
    %c0_4 = arith.constant 0 : index
    %c0_5 = arith.constant 0 : index
    %c0_6 = arith.constant 0 : index
    %3 = vector.load %arg2[%c0_3, %c0_4, %c0_5, %c0_6] : memref<1x8x8x98xbf16, #tpu.memory_space<vmem>>, vector<1x8x8x98xbf16>
    %4 = vector.shape_cast %3 : vector<1x8x8x98xbf16> to vector<8x8x98xbf16>
    %5 = vector.shape_cast %4 : vector<8x8x98xbf16> to vector<64x98xbf16>
    %c0_7 = arith.constant 0 : index
    %c0_8 = arith.constant 0 : index
    %6 = vector.load %arg3[%c0_7, %c0_8] : memref<9x256xbf16, #tpu.memory_space<vmem>>, vector<9x256xbf16>
    %cst = arith.constant dense<0.000000e+00> : vector<64x256xf32>
    %7 = tpu.matmul %2, %6, %cst {dimension_numbers = #tpu.dot_dimension_numbers<[1], [0], [0], [1], [0, 0, 1, 1], [], []>} : vector<64x9xbf16>, vector<9x256xbf16>, vector<64x256xf32> -> vector<64x256xf32>
    %c0_9 = arith.constant 0 : index
    %c0_10 = arith.constant 0 : index
    %8 = vector.load %arg4[%c0_9, %c0_10] : memref<1x256xf32, #tpu.memory_space<vmem>>, vector<1x256xf32>
    %9 = vector.broadcast %8 : vector<1x256xf32> to vector<64x256xf32>
    %10 = arith.addf %7, %9 : vector<64x256xf32>
    %cst_11 = arith.constant 0.000000e+00 : f32
    %11 = vector.broadcast %cst_11 : f32 to vector<64x256xf32>
    %12 = arith.maximumf %10, %11 : vector<64x256xf32>
    %13 = arith.truncf %12 : vector<64x256xf32> to vector<64x256xbf16>
    %14 = vector.shape_cast %13 : vector<64x256xbf16> to vector<8x8x256xbf16>
    %c0_12 = arith.constant 0 : index
    %c0_13 = arith.constant 0 : index
    %15 = vector.load %arg6[%c0_12, %c0_13] : memref<1x192xf32, #tpu.memory_space<vmem>>, vector<1x192xf32>
    %cst_14 = arith.constant 0.000000e+00 : bf16
    %16 = vector.broadcast %cst_14 : bf16 to vector<8x1x256xbf16>
    %17 = tpu.concatenate %16, %14, %16 in 1 : vector<8x1x256xbf16>, vector<8x8x256xbf16>, vector<8x1x256xbf16> -> vector<8x10x256xbf16>
    %cst_15 = arith.constant 0.000000e+00 : bf16
    %18 = vector.broadcast %cst_15 : bf16 to vector<1x10x256xbf16>
    %19 = tpu.concatenate %18, %17, %18 in 0 : vector<1x10x256xbf16>, vector<8x10x256xbf16>, vector<1x10x256xbf16> -> vector<10x10x256xbf16>
    %20 = vector.extract_strided_slice %19 {offsets = [0, 0, 0], sizes = [8, 8, 256], strides = [1, 1, 1]} : vector<10x10x256xbf16> to vector<8x8x256xbf16>
    %21 = vector.shape_cast %20 : vector<8x8x256xbf16> to vector<64x256xbf16>
    %c0_16 = arith.constant 0 : index
    %c0_17 = arith.constant 0 : index
    %22 = vector.load %arg5[%c0_16, %c0_17] : memref<2304x192xbf16, #tpu.memory_space<vmem>>, vector<256x192xbf16>
    %cst_18 = arith.constant dense<0.000000e+00> : vector<64x192xf32>
    %23 = tpu.matmul %21, %22, %cst_18 {dimension_numbers = #tpu.dot_dimension_numbers<[1], [0], [0], [1], [0, 0, 1, 1], [], []>} : vector<64x256xbf16>, vector<256x192xbf16>, vector<64x192xf32> -> vector<64x192xf32>
    %24 = vector.extract_strided_slice %19 {offsets = [0, 1, 0], sizes = [8, 8, 256], strides = [1, 1, 1]} : vector<10x10x256xbf16> to vector<8x8x256xbf16>
    %25 = vector.shape_cast %24 : vector<8x8x256xbf16> to vector<64x256xbf16>
    %c256 = arith.constant 256 : index
    %c0_19 = arith.constant 0 : index
    %26 = vector.load %arg5[%c256, %c0_19] : memref<2304x192xbf16, #tpu.memory_space<vmem>>, vector<256x192xbf16>
    %cst_20 = arith.constant dense<0.000000e+00> : vector<64x192xf32>
    %27 = tpu.matmul %25, %26, %cst_20 {dimension_numbers = #tpu.dot_dimension_numbers<[1], [0], [0], [1], [0, 0, 1, 1], [], []>} : vector<64x256xbf16>, vector<256x192xbf16>, vector<64x192xf32> -> vector<64x192xf32>
    %28 = arith.addf %23, %27 : vector<64x192xf32>
    %29 = vector.extract_strided_slice %19 {offsets = [0, 2, 0], sizes = [8, 8, 256], strides = [1, 1, 1]} : vector<10x10x256xbf16> to vector<8x8x256xbf16>
    %30 = vector.shape_cast %29 : vector<8x8x256xbf16> to vector<64x256xbf16>
    %c512 = arith.constant 512 : index
    %c0_21 = arith.constant 0 : index
    %31 = vector.load %arg5[%c512, %c0_21] : memref<2304x192xbf16, #tpu.memory_space<vmem>>, vector<256x192xbf16>
    %cst_22 = arith.constant dense<0.000000e+00> : vector<64x192xf32>
    %32 = tpu.matmul %30, %31, %cst_22 {dimension_numbers = #tpu.dot_dimension_numbers<[1], [0], [0], [1], [0, 0, 1, 1], [], []>} : vector<64x256xbf16>, vector<256x192xbf16>, vector<64x192xf32> -> vector<64x192xf32>
    %33 = arith.addf %28, %32 : vector<64x192xf32>
    %34 = vector.extract_strided_slice %19 {offsets = [1, 0, 0], sizes = [8, 8, 256], strides = [1, 1, 1]} : vector<10x10x256xbf16> to vector<8x8x256xbf16>
    %35 = vector.shape_cast %34 : vector<8x8x256xbf16> to vector<64x256xbf16>
    %c768 = arith.constant 768 : index
    %c0_23 = arith.constant 0 : index
    %36 = vector.load %arg5[%c768, %c0_23] : memref<2304x192xbf16, #tpu.memory_space<vmem>>, vector<256x192xbf16>
    %cst_24 = arith.constant dense<0.000000e+00> : vector<64x192xf32>
    %37 = tpu.matmul %35, %36, %cst_24 {dimension_numbers = #tpu.dot_dimension_numbers<[1], [0], [0], [1], [0, 0, 1, 1], [], []>} : vector<64x256xbf16>, vector<256x192xbf16>, vector<64x192xf32> -> vector<64x192xf32>
    %38 = arith.addf %33, %37 : vector<64x192xf32>
    %39 = vector.extract_strided_slice %19 {offsets = [1, 1, 0], sizes = [8, 8, 256], strides = [1, 1, 1]} : vector<10x10x256xbf16> to vector<8x8x256xbf16>
    %40 = vector.shape_cast %39 : vector<8x8x256xbf16> to vector<64x256xbf16>
    %c1024 = arith.constant 1024 : index
    %c0_25 = arith.constant 0 : index
    %41 = vector.load %arg5[%c1024, %c0_25] : memref<2304x192xbf16, #tpu.memory_space<vmem>>, vector<256x192xbf16>
    %cst_26 = arith.constant dense<0.000000e+00> : vector<64x192xf32>
    %42 = tpu.matmul %40, %41, %cst_26 {dimension_numbers = #tpu.dot_dimension_numbers<[1], [0], [0], [1], [0, 0, 1, 1], [], []>} : vector<64x256xbf16>, vector<256x192xbf16>, vector<64x192xf32> -> vector<64x192xf32>
    %43 = arith.addf %38, %42 : vector<64x192xf32>
    %44 = vector.extract_strided_slice %19 {offsets = [1, 2, 0], sizes = [8, 8, 256], strides = [1, 1, 1]} : vector<10x10x256xbf16> to vector<8x8x256xbf16>
    %45 = vector.shape_cast %44 : vector<8x8x256xbf16> to vector<64x256xbf16>
    %c1280 = arith.constant 1280 : index
    %c0_27 = arith.constant 0 : index
    %46 = vector.load %arg5[%c1280, %c0_27] : memref<2304x192xbf16, #tpu.memory_space<vmem>>, vector<256x192xbf16>
    %cst_28 = arith.constant dense<0.000000e+00> : vector<64x192xf32>
    %47 = tpu.matmul %45, %46, %cst_28 {dimension_numbers = #tpu.dot_dimension_numbers<[1], [0], [0], [1], [0, 0, 1, 1], [], []>} : vector<64x256xbf16>, vector<256x192xbf16>, vector<64x192xf32> -> vector<64x192xf32>
    %48 = arith.addf %43, %47 : vector<64x192xf32>
    %49 = vector.extract_strided_slice %19 {offsets = [2, 0, 0], sizes = [8, 8, 256], strides = [1, 1, 1]} : vector<10x10x256xbf16> to vector<8x8x256xbf16>
    %50 = vector.shape_cast %49 : vector<8x8x256xbf16> to vector<64x256xbf16>
    %c1536 = arith.constant 1536 : index
    %c0_29 = arith.constant 0 : index
    %51 = vector.load %arg5[%c1536, %c0_29] : memref<2304x192xbf16, #tpu.memory_space<vmem>>, vector<256x192xbf16>
    %cst_30 = arith.constant dense<0.000000e+00> : vector<64x192xf32>
    %52 = tpu.matmul %50, %51, %cst_30 {dimension_numbers = #tpu.dot_dimension_numbers<[1], [0], [0], [1], [0, 0, 1, 1], [], []>} : vector<64x256xbf16>, vector<256x192xbf16>, vector<64x192xf32> -> vector<64x192xf32>
    %53 = arith.addf %48, %52 : vector<64x192xf32>
    %54 = vector.extract_strided_slice %19 {offsets = [2, 1, 0], sizes = [8, 8, 256], strides = [1, 1, 1]} : vector<10x10x256xbf16> to vector<8x8x256xbf16>
    %55 = vector.shape_cast %54 : vector<8x8x256xbf16> to vector<64x256xbf16>
    %c1792 = arith.constant 1792 : index
    %c0_31 = arith.constant 0 : index
    %56 = vector.load %arg5[%c1792, %c0_31] : memref<2304x192xbf16, #tpu.memory_space<vmem>>, vector<256x192xbf16>
    %cst_32 = arith.constant dense<0.000000e+00> : vector<64x192xf32>
    %57 = tpu.matmul %55, %56, %cst_32 {dimension_numbers = #tpu.dot_dimension_numbers<[1], [0], [0], [1], [0, 0, 1, 1], [], []>} : vector<64x256xbf16>, vector<256x192xbf16>, vector<64x192xf32> -> vector<64x192xf32>
    %58 = arith.addf %53, %57 : vector<64x192xf32>
    %59 = vector.extract_strided_slice %19 {offsets = [2, 2, 0], sizes = [8, 8, 256], strides = [1, 1, 1]} : vector<10x10x256xbf16> to vector<8x8x256xbf16>
    %60 = vector.shape_cast %59 : vector<8x8x256xbf16> to vector<64x256xbf16>
    %c2048 = arith.constant 2048 : index
    %c0_33 = arith.constant 0 : index
    %61 = vector.load %arg5[%c2048, %c0_33] : memref<2304x192xbf16, #tpu.memory_space<vmem>>, vector<256x192xbf16>
    %cst_34 = arith.constant dense<0.000000e+00> : vector<64x192xf32>
    %62 = tpu.matmul %60, %61, %cst_34 {dimension_numbers = #tpu.dot_dimension_numbers<[1], [0], [0], [1], [0, 0, 1, 1], [], []>} : vector<64x256xbf16>, vector<256x192xbf16>, vector<64x192xf32> -> vector<64x192xf32>
    %63 = arith.addf %58, %62 : vector<64x192xf32>
    %64 = vector.broadcast %15 : vector<1x192xf32> to vector<64x192xf32>
    %65 = arith.addf %63, %64 : vector<64x192xf32>
    %cst_35 = arith.constant 0.000000e+00 : f32
    %66 = vector.broadcast %cst_35 : f32 to vector<64x192xf32>
    %67 = arith.maximumf %65, %66 : vector<64x192xf32>
    %c0_36 = arith.constant 0 : index
    %c0_37 = arith.constant 0 : index
    %68 = vector.load %arg7[%c0_36, %c0_37] : memref<98x128xbf16, #tpu.memory_space<vmem>>, vector<98x128xbf16>
    %cst_38 = arith.constant dense<0.000000e+00> : vector<64x128xf32>
    %69 = tpu.matmul %5, %68, %cst_38 {dimension_numbers = #tpu.dot_dimension_numbers<[1], [0], [0], [1], [0, 0, 1, 1], [], []>} : vector<64x98xbf16>, vector<98x128xbf16>, vector<64x128xf32> -> vector<64x128xf32>
    %c0_39 = arith.constant 0 : index
    %c0_40 = arith.constant 0 : index
    %70 = vector.load %arg8[%c0_39, %c0_40] : memref<1x128xf32, #tpu.memory_space<vmem>>, vector<1x128xf32>
    %71 = vector.broadcast %70 : vector<1x128xf32> to vector<64x128xf32>
    %72 = arith.addf %69, %71 : vector<64x128xf32>
    %cst_41 = arith.constant 0.000000e+00 : f32
    %73 = vector.broadcast %cst_41 : f32 to vector<64x128xf32>
    %74 = arith.maximumf %72, %73 : vector<64x128xf32>
    %75 = arith.truncf %74 : vector<64x128xf32> to vector<64x128xbf16>
    %76 = vector.shape_cast %75 : vector<64x128xbf16> to vector<8x8x128xbf16>
    %c0_42 = arith.constant 0 : index
    %c0_43 = arith.constant 0 : index
    %77 = vector.load %arg10[%c0_42, %c0_43] : memref<1x64xf32, #tpu.memory_space<vmem>>, vector<1x64xf32>
    %cst_44 = arith.constant 0.000000e+00 : bf16
    %78 = vector.broadcast %cst_44 : bf16 to vector<8x1x128xbf16>
    %79 = tpu.concatenate %78, %76, %78 in 1 : vector<8x1x128xbf16>, vector<8x8x128xbf16>, vector<8x1x128xbf16> -> vector<8x10x128xbf16>
    %cst_45 = arith.constant 0.000000e+00 : bf16
    %80 = vector.broadcast %cst_45 : bf16 to vector<1x10x128xbf16>
    %81 = tpu.concatenate %80, %79, %80 in 0 : vector<1x10x128xbf16>, vector<8x10x128xbf16>, vector<1x10x128xbf16> -> vector<10x10x128xbf16>
    %82 = vector.extract_strided_slice %81 {offsets = [0, 0, 0], sizes = [8, 8, 128], strides = [1, 1, 1]} : vector<10x10x128xbf16> to vector<8x8x128xbf16>
    %83 = vector.shape_cast %82 : vector<8x8x128xbf16> to vector<64x128xbf16>
    %c0_46 = arith.constant 0 : index
    %c0_47 = arith.constant 0 : index
    %84 = vector.load %arg9[%c0_46, %c0_47] : memref<1152x64xbf16, #tpu.memory_space<vmem>>, vector<128x64xbf16>
    %cst_48 = arith.constant dense<0.000000e+00> : vector<64x64xf32>
    %85 = tpu.matmul %83, %84, %cst_48 {dimension_numbers = #tpu.dot_dimension_numbers<[1], [0], [0], [1], [0, 0, 1, 1], [], []>} : vector<64x128xbf16>, vector<128x64xbf16>, vector<64x64xf32> -> vector<64x64xf32>
    %86 = vector.extract_strided_slice %81 {offsets = [0, 1, 0], sizes = [8, 8, 128], strides = [1, 1, 1]} : vector<10x10x128xbf16> to vector<8x8x128xbf16>
    %87 = vector.shape_cast %86 : vector<8x8x128xbf16> to vector<64x128xbf16>
    %c128 = arith.constant 128 : index
    %c0_49 = arith.constant 0 : index
    %88 = vector.load %arg9[%c128, %c0_49] : memref<1152x64xbf16, #tpu.memory_space<vmem>>, vector<128x64xbf16>
    %cst_50 = arith.constant dense<0.000000e+00> : vector<64x64xf32>
    %89 = tpu.matmul %87, %88, %cst_50 {dimension_numbers = #tpu.dot_dimension_numbers<[1], [0], [0], [1], [0, 0, 1, 1], [], []>} : vector<64x128xbf16>, vector<128x64xbf16>, vector<64x64xf32> -> vector<64x64xf32>
    %90 = arith.addf %85, %89 : vector<64x64xf32>
    %91 = vector.extract_strided_slice %81 {offsets = [0, 2, 0], sizes = [8, 8, 128], strides = [1, 1, 1]} : vector<10x10x128xbf16> to vector<8x8x128xbf16>
    %92 = vector.shape_cast %91 : vector<8x8x128xbf16> to vector<64x128xbf16>
    %c256_51 = arith.constant 256 : index
    %c0_52 = arith.constant 0 : index
    %93 = vector.load %arg9[%c256_51, %c0_52] : memref<1152x64xbf16, #tpu.memory_space<vmem>>, vector<128x64xbf16>
    %cst_53 = arith.constant dense<0.000000e+00> : vector<64x64xf32>
    %94 = tpu.matmul %92, %93, %cst_53 {dimension_numbers = #tpu.dot_dimension_numbers<[1], [0], [0], [1], [0, 0, 1, 1], [], []>} : vector<64x128xbf16>, vector<128x64xbf16>, vector<64x64xf32> -> vector<64x64xf32>
    %95 = arith.addf %90, %94 : vector<64x64xf32>
    %96 = vector.extract_strided_slice %81 {offsets = [1, 0, 0], sizes = [8, 8, 128], strides = [1, 1, 1]} : vector<10x10x128xbf16> to vector<8x8x128xbf16>
    %97 = vector.shape_cast %96 : vector<8x8x128xbf16> to vector<64x128xbf16>
    %c384 = arith.constant 384 : index
    %c0_54 = arith.constant 0 : index
    %98 = vector.load %arg9[%c384, %c0_54] : memref<1152x64xbf16, #tpu.memory_space<vmem>>, vector<128x64xbf16>
    %cst_55 = arith.constant dense<0.000000e+00> : vector<64x64xf32>
    %99 = tpu.matmul %97, %98, %cst_55 {dimension_numbers = #tpu.dot_dimension_numbers<[1], [0], [0], [1], [0, 0, 1, 1], [], []>} : vector<64x128xbf16>, vector<128x64xbf16>, vector<64x64xf32> -> vector<64x64xf32>
    %100 = arith.addf %95, %99 : vector<64x64xf32>
    %101 = vector.extract_strided_slice %81 {offsets = [1, 1, 0], sizes = [8, 8, 128], strides = [1, 1, 1]} : vector<10x10x128xbf16> to vector<8x8x128xbf16>
    %102 = vector.shape_cast %101 : vector<8x8x128xbf16> to vector<64x128xbf16>
    %c512_56 = arith.constant 512 : index
    %c0_57 = arith.constant 0 : index
    %103 = vector.load %arg9[%c512_56, %c0_57] : memref<1152x64xbf16, #tpu.memory_space<vmem>>, vector<128x64xbf16>
    %cst_58 = arith.constant dense<0.000000e+00> : vector<64x64xf32>
    %104 = tpu.matmul %102, %103, %cst_58 {dimension_numbers = #tpu.dot_dimension_numbers<[1], [0], [0], [1], [0, 0, 1, 1], [], []>} : vector<64x128xbf16>, vector<128x64xbf16>, vector<64x64xf32> -> vector<64x64xf32>
    %105 = arith.addf %100, %104 : vector<64x64xf32>
    %106 = vector.extract_strided_slice %81 {offsets = [1, 2, 0], sizes = [8, 8, 128], strides = [1, 1, 1]} : vector<10x10x128xbf16> to vector<8x8x128xbf16>
    %107 = vector.shape_cast %106 : vector<8x8x128xbf16> to vector<64x128xbf16>
    %c640 = arith.constant 640 : index
    %c0_59 = arith.constant 0 : index
    %108 = vector.load %arg9[%c640, %c0_59] : memref<1152x64xbf16, #tpu.memory_space<vmem>>, vector<128x64xbf16>
    %cst_60 = arith.constant dense<0.000000e+00> : vector<64x64xf32>
    %109 = tpu.matmul %107, %108, %cst_60 {dimension_numbers = #tpu.dot_dimension_numbers<[1], [0], [0], [1], [0, 0, 1, 1], [], []>} : vector<64x128xbf16>, vector<128x64xbf16>, vector<64x64xf32> -> vector<64x64xf32>
    %110 = arith.addf %105, %109 : vector<64x64xf32>
    %111 = vector.extract_strided_slice %81 {offsets = [2, 0, 0], sizes = [8, 8, 128], strides = [1, 1, 1]} : vector<10x10x128xbf16> to vector<8x8x128xbf16>
    %112 = vector.shape_cast %111 : vector<8x8x128xbf16> to vector<64x128xbf16>
    %c768_61 = arith.constant 768 : index
    %c0_62 = arith.constant 0 : index
    %113 = vector.load %arg9[%c768_61, %c0_62] : memref<1152x64xbf16, #tpu.memory_space<vmem>>, vector<128x64xbf16>
    %cst_63 = arith.constant dense<0.000000e+00> : vector<64x64xf32>
    %114 = tpu.matmul %112, %113, %cst_63 {dimension_numbers = #tpu.dot_dimension_numbers<[1], [0], [0], [1], [0, 0, 1, 1], [], []>} : vector<64x128xbf16>, vector<128x64xbf16>, vector<64x64xf32> -> vector<64x64xf32>
    %115 = arith.addf %110, %114 : vector<64x64xf32>
    %116 = vector.extract_strided_slice %81 {offsets = [2, 1, 0], sizes = [8, 8, 128], strides = [1, 1, 1]} : vector<10x10x128xbf16> to vector<8x8x128xbf16>
    %117 = vector.shape_cast %116 : vector<8x8x128xbf16> to vector<64x128xbf16>
    %c896 = arith.constant 896 : index
    %c0_64 = arith.constant 0 : index
    %118 = vector.load %arg9[%c896, %c0_64] : memref<1152x64xbf16, #tpu.memory_space<vmem>>, vector<128x64xbf16>
    %cst_65 = arith.constant dense<0.000000e+00> : vector<64x64xf32>
    %119 = tpu.matmul %117, %118, %cst_65 {dimension_numbers = #tpu.dot_dimension_numbers<[1], [0], [0], [1], [0, 0, 1, 1], [], []>} : vector<64x128xbf16>, vector<128x64xbf16>, vector<64x64xf32> -> vector<64x64xf32>
    %120 = arith.addf %115, %119 : vector<64x64xf32>
    %121 = vector.extract_strided_slice %81 {offsets = [2, 2, 0], sizes = [8, 8, 128], strides = [1, 1, 1]} : vector<10x10x128xbf16> to vector<8x8x128xbf16>
    %122 = vector.shape_cast %121 : vector<8x8x128xbf16> to vector<64x128xbf16>
    %c1024_66 = arith.constant 1024 : index
    %c0_67 = arith.constant 0 : index
    %123 = vector.load %arg9[%c1024_66, %c0_67] : memref<1152x64xbf16, #tpu.memory_space<vmem>>, vector<128x64xbf16>
    %cst_68 = arith.constant dense<0.000000e+00> : vector<64x64xf32>
    %124 = tpu.matmul %122, %123, %cst_68 {dimension_numbers = #tpu.dot_dimension_numbers<[1], [0], [0], [1], [0, 0, 1, 1], [], []>} : vector<64x128xbf16>, vector<128x64xbf16>, vector<64x64xf32> -> vector<64x64xf32>
    %125 = arith.addf %120, %124 : vector<64x64xf32>
    %126 = vector.broadcast %77 : vector<1x64xf32> to vector<64x64xf32>
    %127 = arith.addf %125, %126 : vector<64x64xf32>
    %cst_69 = arith.constant 0.000000e+00 : f32
    %128 = vector.broadcast %cst_69 : f32 to vector<64x64xf32>
    %129 = arith.maximumf %127, %128 : vector<64x64xf32>
    %130 = arith.truncf %67 : vector<64x192xf32> to vector<64x192xbf16>
    %131 = vector.shape_cast %130 : vector<64x192xbf16> to vector<8x8x192xbf16>
    %cst_70 = arith.constant 0.000000e+00 : bf16
    %132 = vector.broadcast %cst_70 : bf16 to vector<8x1x192xbf16>
    %133 = tpu.concatenate %132, %131, %132 in 1 : vector<8x1x192xbf16>, vector<8x8x192xbf16>, vector<8x1x192xbf16> -> vector<8x10x192xbf16>
    %cst_71 = arith.constant 0.000000e+00 : bf16
    %134 = vector.broadcast %cst_71 : bf16 to vector<1x10x192xbf16>
    %135 = tpu.concatenate %134, %133, %134 in 0 : vector<1x10x192xbf16>, vector<8x10x192xbf16>, vector<1x10x192xbf16> -> vector<10x10x192xbf16>
    %136 = vector.extract_strided_slice %135 {offsets = [0, 0, 0], sizes = [8, 8, 192], strides = [1, 1, 1]} : vector<10x10x192xbf16> to vector<8x8x192xbf16>
    %137 = vector.shape_cast %136 : vector<8x8x192xbf16> to vector<64x192xbf16>
    %c0_72 = arith.constant 0 : index
    %c0_73 = arith.constant 0 : index
    %138 = vector.load %arg11[%c0_72, %c0_73] : memref<1728x128xbf16, #tpu.memory_space<vmem>>, vector<192x128xbf16>
    %cst_74 = arith.constant dense<0.000000e+00> : vector<64x128xf32>
    %139 = tpu.matmul %137, %138, %cst_74 {dimension_numbers = #tpu.dot_dimension_numbers<[1], [0], [0], [1], [0, 0, 1, 1], [], []>} : vector<64x192xbf16>, vector<192x128xbf16>, vector<64x128xf32> -> vector<64x128xf32>
    %140 = vector.extract_strided_slice %135 {offsets = [0, 1, 0], sizes = [8, 8, 192], strides = [1, 1, 1]} : vector<10x10x192xbf16> to vector<8x8x192xbf16>
    %141 = vector.shape_cast %140 : vector<8x8x192xbf16> to vector<64x192xbf16>
    %c192 = arith.constant 192 : index
    %c0_75 = arith.constant 0 : index
    %142 = vector.load %arg11[%c192, %c0_75] : memref<1728x128xbf16, #tpu.memory_space<vmem>>, vector<192x128xbf16>
    %cst_76 = arith.constant dense<0.000000e+00> : vector<64x128xf32>
    %143 = tpu.matmul %141, %142, %cst_76 {dimension_numbers = #tpu.dot_dimension_numbers<[1], [0], [0], [1], [0, 0, 1, 1], [], []>} : vector<64x192xbf16>, vector<192x128xbf16>, vector<64x128xf32> -> vector<64x128xf32>
    %144 = arith.addf %139, %143 : vector<64x128xf32>
    %145 = vector.extract_strided_slice %135 {offsets = [0, 2, 0], sizes = [8, 8, 192], strides = [1, 1, 1]} : vector<10x10x192xbf16> to vector<8x8x192xbf16>
    %146 = vector.shape_cast %145 : vector<8x8x192xbf16> to vector<64x192xbf16>
    %c384_77 = arith.constant 384 : index
    %c0_78 = arith.constant 0 : index
    %147 = vector.load %arg11[%c384_77, %c0_78] : memref<1728x128xbf16, #tpu.memory_space<vmem>>, vector<192x128xbf16>
    %cst_79 = arith.constant dense<0.000000e+00> : vector<64x128xf32>
    %148 = tpu.matmul %146, %147, %cst_79 {dimension_numbers = #tpu.dot_dimension_numbers<[1], [0], [0], [1], [0, 0, 1, 1], [], []>} : vector<64x192xbf16>, vector<192x128xbf16>, vector<64x128xf32> -> vector<64x128xf32>
    %149 = arith.addf %144, %148 : vector<64x128xf32>
    %150 = vector.extract_strided_slice %135 {offsets = [1, 0, 0], sizes = [8, 8, 192], strides = [1, 1, 1]} : vector<10x10x192xbf16> to vector<8x8x192xbf16>
    %151 = vector.shape_cast %150 : vector<8x8x192xbf16> to vector<64x192xbf16>
    %c576 = arith.constant 576 : index
    %c0_80 = arith.constant 0 : index
    %152 = vector.load %arg11[%c576, %c0_80] : memref<1728x128xbf16, #tpu.memory_space<vmem>>, vector<192x128xbf16>
    %cst_81 = arith.constant dense<0.000000e+00> : vector<64x128xf32>
    %153 = tpu.matmul %151, %152, %cst_81 {dimension_numbers = #tpu.dot_dimension_numbers<[1], [0], [0], [1], [0, 0, 1, 1], [], []>} : vector<64x192xbf16>, vector<192x128xbf16>, vector<64x128xf32> -> vector<64x128xf32>
    %154 = arith.addf %149, %153 : vector<64x128xf32>
    %155 = vector.extract_strided_slice %135 {offsets = [1, 1, 0], sizes = [8, 8, 192], strides = [1, 1, 1]} : vector<10x10x192xbf16> to vector<8x8x192xbf16>
    %156 = vector.shape_cast %155 : vector<8x8x192xbf16> to vector<64x192xbf16>
    %c768_82 = arith.constant 768 : index
    %c0_83 = arith.constant 0 : index
    %157 = vector.load %arg11[%c768_82, %c0_83] : memref<1728x128xbf16, #tpu.memory_space<vmem>>, vector<192x128xbf16>
    %cst_84 = arith.constant dense<0.000000e+00> : vector<64x128xf32>
    %158 = tpu.matmul %156, %157, %cst_84 {dimension_numbers = #tpu.dot_dimension_numbers<[1], [0], [0], [1], [0, 0, 1, 1], [], []>} : vector<64x192xbf16>, vector<192x128xbf16>, vector<64x128xf32> -> vector<64x128xf32>
    %159 = arith.addf %154, %158 : vector<64x128xf32>
    %160 = vector.extract_strided_slice %135 {offsets = [1, 2, 0], sizes = [8, 8, 192], strides = [1, 1, 1]} : vector<10x10x192xbf16> to vector<8x8x192xbf16>
    %161 = vector.shape_cast %160 : vector<8x8x192xbf16> to vector<64x192xbf16>
    %c960 = arith.constant 960 : index
    %c0_85 = arith.constant 0 : index
    %162 = vector.load %arg11[%c960, %c0_85] : memref<1728x128xbf16, #tpu.memory_space<vmem>>, vector<192x128xbf16>
    %cst_86 = arith.constant dense<0.000000e+00> : vector<64x128xf32>
    %163 = tpu.matmul %161, %162, %cst_86 {dimension_numbers = #tpu.dot_dimension_numbers<[1], [0], [0], [1], [0, 0, 1, 1], [], []>} : vector<64x192xbf16>, vector<192x128xbf16>, vector<64x128xf32> -> vector<64x128xf32>
    %164 = arith.addf %159, %163 : vector<64x128xf32>
    %165 = vector.extract_strided_slice %135 {offsets = [2, 0, 0], sizes = [8, 8, 192], strides = [1, 1, 1]} : vector<10x10x192xbf16> to vector<8x8x192xbf16>
    %166 = vector.shape_cast %165 : vector<8x8x192xbf16> to vector<64x192xbf16>
    %c1152 = arith.constant 1152 : index
    %c0_87 = arith.constant 0 : index
    %167 = vector.load %arg11[%c1152, %c0_87] : memref<1728x128xbf16, #tpu.memory_space<vmem>>, vector<192x128xbf16>
    %cst_88 = arith.constant dense<0.000000e+00> : vector<64x128xf32>
    %168 = tpu.matmul %166, %167, %cst_88 {dimension_numbers = #tpu.dot_dimension_numbers<[1], [0], [0], [1], [0, 0, 1, 1], [], []>} : vector<64x192xbf16>, vector<192x128xbf16>, vector<64x128xf32> -> vector<64x128xf32>
    %169 = arith.addf %164, %168 : vector<64x128xf32>
    %170 = vector.extract_strided_slice %135 {offsets = [2, 1, 0], sizes = [8, 8, 192], strides = [1, 1, 1]} : vector<10x10x192xbf16> to vector<8x8x192xbf16>
    %171 = vector.shape_cast %170 : vector<8x8x192xbf16> to vector<64x192xbf16>
    %c1344 = arith.constant 1344 : index
    %c0_89 = arith.constant 0 : index
    %172 = vector.load %arg11[%c1344, %c0_89] : memref<1728x128xbf16, #tpu.memory_space<vmem>>, vector<192x128xbf16>
    %cst_90 = arith.constant dense<0.000000e+00> : vector<64x128xf32>
    %173 = tpu.matmul %171, %172, %cst_90 {dimension_numbers = #tpu.dot_dimension_numbers<[1], [0], [0], [1], [0, 0, 1, 1], [], []>} : vector<64x192xbf16>, vector<192x128xbf16>, vector<64x128xf32> -> vector<64x128xf32>
    %174 = arith.addf %169, %173 : vector<64x128xf32>
    %175 = vector.extract_strided_slice %135 {offsets = [2, 2, 0], sizes = [8, 8, 192], strides = [1, 1, 1]} : vector<10x10x192xbf16> to vector<8x8x192xbf16>
    %176 = vector.shape_cast %175 : vector<8x8x192xbf16> to vector<64x192xbf16>
    %c1536_91 = arith.constant 1536 : index
    %c0_92 = arith.constant 0 : index
    %177 = vector.load %arg11[%c1536_91, %c0_92] : memref<1728x128xbf16, #tpu.memory_space<vmem>>, vector<192x128xbf16>
    %cst_93 = arith.constant dense<0.000000e+00> : vector<64x128xf32>
    %178 = tpu.matmul %176, %177, %cst_93 {dimension_numbers = #tpu.dot_dimension_numbers<[1], [0], [0], [1], [0, 0, 1, 1], [], []>} : vector<64x192xbf16>, vector<192x128xbf16>, vector<64x128xf32> -> vector<64x128xf32>
    %179 = arith.addf %174, %178 : vector<64x128xf32>
    %180 = arith.truncf %129 : vector<64x64xf32> to vector<64x64xbf16>
    %181 = vector.shape_cast %180 : vector<64x64xbf16> to vector<8x8x64xbf16>
    %cst_94 = arith.constant 0.000000e+00 : bf16
    %182 = vector.broadcast %cst_94 : bf16 to vector<8x1x64xbf16>
    %183 = tpu.concatenate %182, %181, %182 in 1 : vector<8x1x64xbf16>, vector<8x8x64xbf16>, vector<8x1x64xbf16> -> vector<8x10x64xbf16>
    %cst_95 = arith.constant 0.000000e+00 : bf16
    %184 = vector.broadcast %cst_95 : bf16 to vector<1x10x64xbf16>
    %185 = tpu.concatenate %184, %183, %184 in 0 : vector<1x10x64xbf16>, vector<8x10x64xbf16>, vector<1x10x64xbf16> -> vector<10x10x64xbf16>
    %186 = vector.extract_strided_slice %185 {offsets = [0, 0, 0], sizes = [8, 8, 64], strides = [1, 1, 1]} : vector<10x10x64xbf16> to vector<8x8x64xbf16>
    %187 = vector.shape_cast %186 : vector<8x8x64xbf16> to vector<64x64xbf16>
    %c0_96 = arith.constant 0 : index
    %c0_97 = arith.constant 0 : index
    %188 = vector.load %arg12[%c0_96, %c0_97] : memref<576x128xbf16, #tpu.memory_space<vmem>>, vector<64x128xbf16>
    %cst_98 = arith.constant dense<0.000000e+00> : vector<64x128xf32>
    %189 = tpu.matmul %187, %188, %cst_98 {dimension_numbers = #tpu.dot_dimension_numbers<[1], [0], [0], [1], [0, 0, 1, 1], [], []>} : vector<64x64xbf16>, vector<64x128xbf16>, vector<64x128xf32> -> vector<64x128xf32>
    %190 = vector.extract_strided_slice %185 {offsets = [0, 1, 0], sizes = [8, 8, 64], strides = [1, 1, 1]} : vector<10x10x64xbf16> to vector<8x8x64xbf16>
    %191 = vector.shape_cast %190 : vector<8x8x64xbf16> to vector<64x64xbf16>
    %c64 = arith.constant 64 : index
    %c0_99 = arith.constant 0 : index
    %192 = vector.load %arg12[%c64, %c0_99] : memref<576x128xbf16, #tpu.memory_space<vmem>>, vector<64x128xbf16>
    %cst_100 = arith.constant dense<0.000000e+00> : vector<64x128xf32>
    %193 = tpu.matmul %191, %192, %cst_100 {dimension_numbers = #tpu.dot_dimension_numbers<[1], [0], [0], [1], [0, 0, 1, 1], [], []>} : vector<64x64xbf16>, vector<64x128xbf16>, vector<64x128xf32> -> vector<64x128xf32>
    %194 = arith.addf %189, %193 : vector<64x128xf32>
    %195 = vector.extract_strided_slice %185 {offsets = [0, 2, 0], sizes = [8, 8, 64], strides = [1, 1, 1]} : vector<10x10x64xbf16> to vector<8x8x64xbf16>
    %196 = vector.shape_cast %195 : vector<8x8x64xbf16> to vector<64x64xbf16>
    %c128_101 = arith.constant 128 : index
    %c0_102 = arith.constant 0 : index
    %197 = vector.load %arg12[%c128_101, %c0_102] : memref<576x128xbf16, #tpu.memory_space<vmem>>, vector<64x128xbf16>
    %cst_103 = arith.constant dense<0.000000e+00> : vector<64x128xf32>
    %198 = tpu.matmul %196, %197, %cst_103 {dimension_numbers = #tpu.dot_dimension_numbers<[1], [0], [0], [1], [0, 0, 1, 1], [], []>} : vector<64x64xbf16>, vector<64x128xbf16>, vector<64x128xf32> -> vector<64x128xf32>
    %199 = arith.addf %194, %198 : vector<64x128xf32>
    %200 = vector.extract_strided_slice %185 {offsets = [1, 0, 0], sizes = [8, 8, 64], strides = [1, 1, 1]} : vector<10x10x64xbf16> to vector<8x8x64xbf16>
    %201 = vector.shape_cast %200 : vector<8x8x64xbf16> to vector<64x64xbf16>
    %c192_104 = arith.constant 192 : index
    %c0_105 = arith.constant 0 : index
    %202 = vector.load %arg12[%c192_104, %c0_105] : memref<576x128xbf16, #tpu.memory_space<vmem>>, vector<64x128xbf16>
    %cst_106 = arith.constant dense<0.000000e+00> : vector<64x128xf32>
    %203 = tpu.matmul %201, %202, %cst_106 {dimension_numbers = #tpu.dot_dimension_numbers<[1], [0], [0], [1], [0, 0, 1, 1], [], []>} : vector<64x64xbf16>, vector<64x128xbf16>, vector<64x128xf32> -> vector<64x128xf32>
    %204 = arith.addf %199, %203 : vector<64x128xf32>
    %205 = vector.extract_strided_slice %185 {offsets = [1, 1, 0], sizes = [8, 8, 64], strides = [1, 1, 1]} : vector<10x10x64xbf16> to vector<8x8x64xbf16>
    %206 = vector.shape_cast %205 : vector<8x8x64xbf16> to vector<64x64xbf16>
    %c256_107 = arith.constant 256 : index
    %c0_108 = arith.constant 0 : index
    %207 = vector.load %arg12[%c256_107, %c0_108] : memref<576x128xbf16, #tpu.memory_space<vmem>>, vector<64x128xbf16>
    %cst_109 = arith.constant dense<0.000000e+00> : vector<64x128xf32>
    %208 = tpu.matmul %206, %207, %cst_109 {dimension_numbers = #tpu.dot_dimension_numbers<[1], [0], [0], [1], [0, 0, 1, 1], [], []>} : vector<64x64xbf16>, vector<64x128xbf16>, vector<64x128xf32> -> vector<64x128xf32>
    %209 = arith.addf %204, %208 : vector<64x128xf32>
    %210 = vector.extract_strided_slice %185 {offsets = [1, 2, 0], sizes = [8, 8, 64], strides = [1, 1, 1]} : vector<10x10x64xbf16> to vector<8x8x64xbf16>
    %211 = vector.shape_cast %210 : vector<8x8x64xbf16> to vector<64x64xbf16>
    %c320 = arith.constant 320 : index
    %c0_110 = arith.constant 0 : index
    %212 = vector.load %arg12[%c320, %c0_110] : memref<576x128xbf16, #tpu.memory_space<vmem>>, vector<64x128xbf16>
    %cst_111 = arith.constant dense<0.000000e+00> : vector<64x128xf32>
    %213 = tpu.matmul %211, %212, %cst_111 {dimension_numbers = #tpu.dot_dimension_numbers<[1], [0], [0], [1], [0, 0, 1, 1], [], []>} : vector<64x64xbf16>, vector<64x128xbf16>, vector<64x128xf32> -> vector<64x128xf32>
    %214 = arith.addf %209, %213 : vector<64x128xf32>
    %215 = vector.extract_strided_slice %185 {offsets = [2, 0, 0], sizes = [8, 8, 64], strides = [1, 1, 1]} : vector<10x10x64xbf16> to vector<8x8x64xbf16>
    %216 = vector.shape_cast %215 : vector<8x8x64xbf16> to vector<64x64xbf16>
    %c384_112 = arith.constant 384 : index
    %c0_113 = arith.constant 0 : index
    %217 = vector.load %arg12[%c384_112, %c0_113] : memref<576x128xbf16, #tpu.memory_space<vmem>>, vector<64x128xbf16>
    %cst_114 = arith.constant dense<0.000000e+00> : vector<64x128xf32>
    %218 = tpu.matmul %216, %217, %cst_114 {dimension_numbers = #tpu.dot_dimension_numbers<[1], [0], [0], [1], [0, 0, 1, 1], [], []>} : vector<64x64xbf16>, vector<64x128xbf16>, vector<64x128xf32> -> vector<64x128xf32>
    %219 = arith.addf %214, %218 : vector<64x128xf32>
    %220 = vector.extract_strided_slice %185 {offsets = [2, 1, 0], sizes = [8, 8, 64], strides = [1, 1, 1]} : vector<10x10x64xbf16> to vector<8x8x64xbf16>
    %221 = vector.shape_cast %220 : vector<8x8x64xbf16> to vector<64x64xbf16>
    %c448 = arith.constant 448 : index
    %c0_115 = arith.constant 0 : index
    %222 = vector.load %arg12[%c448, %c0_115] : memref<576x128xbf16, #tpu.memory_space<vmem>>, vector<64x128xbf16>
    %cst_116 = arith.constant dense<0.000000e+00> : vector<64x128xf32>
    %223 = tpu.matmul %221, %222, %cst_116 {dimension_numbers = #tpu.dot_dimension_numbers<[1], [0], [0], [1], [0, 0, 1, 1], [], []>} : vector<64x64xbf16>, vector<64x128xbf16>, vector<64x128xf32> -> vector<64x128xf32>
    %224 = arith.addf %219, %223 : vector<64x128xf32>
    %225 = vector.extract_strided_slice %185 {offsets = [2, 2, 0], sizes = [8, 8, 64], strides = [1, 1, 1]} : vector<10x10x64xbf16> to vector<8x8x64xbf16>
    %226 = vector.shape_cast %225 : vector<8x8x64xbf16> to vector<64x64xbf16>
    %c512_117 = arith.constant 512 : index
    %c0_118 = arith.constant 0 : index
    %227 = vector.load %arg12[%c512_117, %c0_118] : memref<576x128xbf16, #tpu.memory_space<vmem>>, vector<64x128xbf16>
    %cst_119 = arith.constant dense<0.000000e+00> : vector<64x128xf32>
    %228 = tpu.matmul %226, %227, %cst_119 {dimension_numbers = #tpu.dot_dimension_numbers<[1], [0], [0], [1], [0, 0, 1, 1], [], []>} : vector<64x64xbf16>, vector<64x128xbf16>, vector<64x128xf32> -> vector<64x128xf32>
    %229 = arith.addf %224, %228 : vector<64x128xf32>
    %230 = arith.addf %179, %229 : vector<64x128xf32>
    %c0_120 = arith.constant 0 : index
    %c0_121 = arith.constant 0 : index
    %231 = vector.load %arg13[%c0_120, %c0_121] : memref<1x128xf32, #tpu.memory_space<vmem>>, vector<1x128xf32>
    %232 = vector.broadcast %231 : vector<1x128xf32> to vector<64x128xf32>
    %233 = arith.addf %230, %232 : vector<64x128xf32>
    %cst_122 = arith.constant 0.000000e+00 : f32
    %234 = vector.broadcast %cst_122 : f32 to vector<64x128xf32>
    %235 = arith.maximumf %233, %234 : vector<64x128xf32>
    %c0_123 = arith.constant 0 : index
    %c0_124 = arith.constant 0 : index
    %236 = vector.load %arg14[%c0_123, %c0_124] : memref<98x128xbf16, #tpu.memory_space<vmem>>, vector<98x128xbf16>
    %cst_125 = arith.constant dense<0.000000e+00> : vector<64x128xf32>
    %237 = tpu.matmul %5, %236, %cst_125 {dimension_numbers = #tpu.dot_dimension_numbers<[1], [0], [0], [1], [0, 0, 1, 1], [], []>} : vector<64x98xbf16>, vector<98x128xbf16>, vector<64x128xf32> -> vector<64x128xf32>
    %238 = arith.addf %235, %237 : vector<64x128xf32>
    %239 = vector.shape_cast %238 : vector<64x128xf32> to vector<8x8x128xf32>
    %240 = arith.truncf %239 : vector<8x8x128xf32> to vector<8x8x128xbf16>
    %c0_126 = arith.constant 0 : index
    %c0_127 = arith.constant 0 : index
    %c0_128 = arith.constant 0 : index
    %c0_129 = arith.constant 0 : index
    %241 = vector.load %arg15[%c0_126, %c0_127, %c0_128, %c0_129] : memref<1x8x8x128xbf16, #tpu.memory_space<vmem>>, vector<1x8x8x128xbf16>
    %242 = vector.shape_cast %241 : vector<1x8x8x128xbf16> to vector<8x8x128xbf16>
    %243 = vector.shape_cast %240 : vector<8x8x128xbf16> to vector<1x8x8x128xbf16>
    tpu.vector_store %arg15[%c0_126, %c0_127, %c0_128, %c0_129], %243 {strides = array<i32>} : memref<1x8x8x128xbf16, #tpu.memory_space<vmem>>, vector<1x8x8x128xbf16>,
    return
  }
  func.func @transform_0(%arg0: i32) -> (i32, i32, i32, i32) {
    %c0_i32 = arith.constant 0 : i32
    %c0_i32_0 = arith.constant 0 : i32
    %c0_i32_1 = arith.constant 0 : i32
    %c0_i32_2 = arith.constant 0 : i32
    return %arg0, %c0_i32, %c0_i32_0, %c0_i32_1 : i32, i32, i32, i32
  }
  func.func @transform_1(%arg0: i32) -> (i32, i32, i32, i32) {
    %c0_i32 = arith.constant 0 : i32
    %c0_i32_0 = arith.constant 0 : i32
    %c0_i32_1 = arith.constant 0 : i32
    %c0_i32_2 = arith.constant 0 : i32
    return %arg0, %c0_i32, %c0_i32_0, %c0_i32_1 : i32, i32, i32, i32
  }
  func.func @transform_2(%arg0: i32) -> (i32, i32) {
    %c0_i32 = arith.constant 0 : i32
    %c0_i32_0 = arith.constant 0 : i32
    %c0_i32_1 = arith.constant 0 : i32
    return %c0_i32, %c0_i32_0 : i32, i32
  }
  func.func @transform_3(%arg0: i32) -> (i32, i32) {
    %c0_i32 = arith.constant 0 : i32
    %c0_i32_0 = arith.constant 0 : i32
    %c0_i32_1 = arith.constant 0 : i32
    return %c0_i32, %c0_i32_0 : i32, i32
  }
  func.func @transform_4(%arg0: i32) -> (i32, i32) {
    %c0_i32 = arith.constant 0 : i32
    %c0_i32_0 = arith.constant 0 : i32
    %c0_i32_1 = arith.constant 0 : i32
    return %c0_i32, %c0_i32_0 : i32, i32
  }
  func.func @transform_5(%arg0: i32) -> (i32, i32) {
    %c0_i32 = arith.constant 0 : i32
    %c0_i32_0 = arith.constant 0 : i32
    %c0_i32_1 = arith.constant 0 : i32
    return %c0_i32, %c0_i32_0 : i32, i32
  }
  func.func @transform_6(%arg0: i32) -> (i32, i32) {
    %c0_i32 = arith.constant 0 : i32
    %c0_i32_0 = arith.constant 0 : i32
    %c0_i32_1 = arith.constant 0 : i32
    return %c0_i32, %c0_i32_0 : i32, i32
  }
  func.func @transform_7(%arg0: i32) -> (i32, i32) {
    %c0_i32 = arith.constant 0 : i32
    %c0_i32_0 = arith.constant 0 : i32
    %c0_i32_1 = arith.constant 0 : i32
    return %c0_i32, %c0_i32_0 : i32, i32
  }
  func.func @transform_8(%arg0: i32) -> (i32, i32) {
    %c0_i32 = arith.constant 0 : i32
    %c0_i32_0 = arith.constant 0 : i32
    %c0_i32_1 = arith.constant 0 : i32
    return %c0_i32, %c0_i32_0 : i32, i32
  }
  func.func @transform_9(%arg0: i32) -> (i32, i32) {
    %c0_i32 = arith.constant 0 : i32
    %c0_i32_0 = arith.constant 0 : i32
    %c0_i32_1 = arith.constant 0 : i32
    return %c0_i32, %c0_i32_0 : i32, i32
  }
  func.func @transform_10(%arg0: i32) -> (i32, i32) {
    %c0_i32 = arith.constant 0 : i32
    %c0_i32_0 = arith.constant 0 : i32
    %c0_i32_1 = arith.constant 0 : i32
    return %c0_i32, %c0_i32_0 : i32, i32
  }
  func.func @transform_11(%arg0: i32) -> (i32, i32) {
    %c0_i32 = arith.constant 0 : i32
    %c0_i32_0 = arith.constant 0 : i32
    %c0_i32_1 = arith.constant 0 : i32
    return %c0_i32, %c0_i32_0 : i32, i32
  }
  func.func @transform_12(%arg0: i32) -> (i32, i32) {
    %c0_i32 = arith.constant 0 : i32
    %c0_i32_0 = arith.constant 0 : i32
    %c0_i32_1 = arith.constant 0 : i32
    return %c0_i32, %c0_i32_0 : i32, i32
  }
  func.func @transform_13(%arg0: i32) -> (i32, i32) {
    %c0_i32 = arith.constant 0 : i32
    %c0_i32_0 = arith.constant 0 : i32
    %c0_i32_1 = arith.constant 0 : i32
    return %c0_i32, %c0_i32_0 : i32, i32
  }
  func.func @transform_14(%arg0: i32) -> (i32, i32, i32, i32) {
    %c0_i32 = arith.constant 0 : i32
    %c0_i32_0 = arith.constant 0 : i32
    %c0_i32_1 = arith.constant 0 : i32
    %c0_i32_2 = arith.constant 0 : i32
    return %arg0, %c0_i32, %c0_i32_0, %c0_i32_1 : i32, i32, i32, i32
  }
}

</mosaic_0001>

<llo_original>
// kernel: tpu_custom_call.1
$region0: #{tpu_custom_call.1}
  #allocation0 [shape = 'u32[]', space=smem, size = 0x4, offset = 0x4, fixed_abs, tag = 'smem constant byte address 0x4 - core index']
  #allocation1 [shape = 'u32[144,128]{1,0:T(1,128)}', space=vmem, size = 0x12000, scoped, tag = 'internal scratch']
  %s0 = inlined_call_operand.vmem [shape: bf16[2,8,8,9], index: 0, kind: input, shape index: {}]
  %s1 = inlined_call_operand.vmem [shape: bf16[2,8,8,98], index: 1, kind: input, shape index: {}]
  %s2 = inlined_call_operand.vmem [shape: bf16[9,256], index: 2, kind: input, shape index: {}]
  %s3 = inlined_call_operand.vmem [shape: f32[1,256], index: 3, kind: input, shape index: {}]
  %s4 = inlined_call_operand.vmem [shape: bf16[2304,192], index: 4, kind: input, shape index: {}]
  %s5 = inlined_call_operand.vmem [shape: f32[1,192], index: 5, kind: input, shape index: {}]
  %s6 = inlined_call_operand.vmem [shape: bf16[98,128], index: 6, kind: input, shape index: {}]
  %s7 = inlined_call_operand.vmem [shape: f32[1,128], index: 7, kind: input, shape index: {}]
  %s8 = inlined_call_operand.vmem [shape: bf16[1152,64], index: 8, kind: input, shape index: {}]
  %s9 = inlined_call_operand.vmem [shape: f32[1,64], index: 9, kind: input, shape index: {}]
  %s10 = inlined_call_operand.vmem [shape: bf16[1728,128], index: 10, kind: input, shape index: {}]
  %s11 = inlined_call_operand.vmem [shape: bf16[576,128], index: 11, kind: input, shape index: {}]
  %s12 = inlined_call_operand.vmem [shape: f32[1,128], index: 12, kind: input, shape index: {}]
  %s13 = inlined_call_operand.vmem [shape: bf16[98,128], index: 13, kind: input, shape index: {}]
  %s14 = inlined_call_operand.hbm [shape: bf16[2,8,8,128], index: 14, kind: output, shape index: {}]
  %s15 = sld [smem:[#allocation0]]
  $region89: #{tpu_custom_call.1} parent=0
    _
  %s17 = ssub.s32 1, %s15
  %s18 = scalar_select 0, %s17, %s15
  $region1: #{tpu_custom_call.1} parent=0
    #allocation2 [shape = 'u8[32768]{0}', space=vmem, size = 0x8000, scoped, tag = 'output window, operand 0']
    #allocation3 [shape = 's32[2]{0}', space=sflag, size = 0x8, scoped, tag = 'scoped memory for tpu_custom_call.1']
    %19 = vsyncpa [#allocation3], 0
    %s20 = scalar_lea.sflag [#allocation3], 1
    %21 = vsyncpa %s20, 0
    loop: start=0, step=1, limit=4
    $region2: #{tpu_custom_call.1} parent=1 // loop_pre_header
      _
    $region3: #{tpu_custom_call.1} parent=1 // loop_header
      %s23 = sphi 0, %s27
      %p24 = scmp.ge.s32.totalorder %s23, 4
      %s33 = sphi 0, %s35
      %s36 = sphi 0, %s33
      %s37 = sphi 0, %s36
      %s53 = sphi 0, %s37
      %s59 = sphi 0, %s61
      %s62 = sphi 0, %s59
      %s63 = sphi 0, %s62
      %s79 = sphi 0, %s63
      %s83 = sphi 0, %s83
      %s85 = sphi 0, %s83
      %s86 = sphi 0, %s85
      %s100 = sphi 0, %s86
      %s104 = sphi 0, %s104
      %s106 = sphi 0, %s104
      %s107 = sphi 0, %s106
      %s121 = sphi 0, %s107
      %s125 = sphi 0, %s125
      %s127 = sphi 0, %s125
      %s128 = sphi 0, %s127
      %s142 = sphi 0, %s128
      %s146 = sphi 0, %s146
      %s148 = sphi 0, %s146
      %s149 = sphi 0, %s148
      %s163 = sphi 0, %s149
      %s167 = sphi 0, %s167
      %s169 = sphi 0, %s167
      %s170 = sphi 0, %s169
      %s184 = sphi 0, %s170
      %s188 = sphi 0, %s188
      %s190 = sphi 0, %s188
      %s191 = sphi 0, %s190
      %s205 = sphi 0, %s191
      %s209 = sphi 0, %s209
      %s211 = sphi 0, %s209
      %s212 = sphi 0, %s211
      %s226 = sphi 0, %s212
      %s230 = sphi 0, %s230
      %s232 = sphi 0, %s230
      %s233 = sphi 0, %s232
      %s247 = sphi 0, %s233
      %s251 = sphi 0, %s251
      %s253 = sphi 0, %s251
      %s254 = sphi 0, %s253
      %s268 = sphi 0, %s254
      %s272 = sphi 0, %s272
      %s274 = sphi 0, %s272
      %s275 = sphi 0, %s274
      %s289 = sphi 0, %s275
      %s293 = sphi 0, %s293
      %s295 = sphi 0, %s293
      %s296 = sphi 0, %s295
      %s310 = sphi 0, %s296
      %s314 = sphi 0, %s314
      %s316 = sphi 0, %s314
      %s317 = sphi 0, %s316
      %s331 = sphi 0, %s317
      %s337 = sphi 0, %s339
      %s340 = sphi 0, %s337
      %s341 = sphi 0, %s340
      %s357 = sphi 0, %s341
    $region4: #{tpu_custom_call.1} parent=1 // loop_header_branch
      %26 = sbr.rel (%p24) target = $region8
    $region5: #{tpu_custom_call.1} parent=1 // loop_body
      %s28 = ssub.s32 %s23, 1
      %s29 = ssub.s32 %s23, 2
      %s30 = sadd.s32 %s23, 1
      %s31 = ssub.s32 %s23, %s30
      %p32 = scmp.eq.s32.totalorder %s31, 0
      %s34 = sadd.s32 %s33, 1
      %s35 = scalar_select %p32, %s33, %s34
      %p38 = pneg %p32
      %p39 = scmp.eq.s32.totalorder %s23, 1
      %p40 = por %p38, %p39
      %p41 = scmp.ne.s32.totalorder %s33, %s36
      %p42 = scmp.eq.s32.totalorder %s23, 0
      %p43 = por %p41, %p42
      %p44 = scmp.ne.s32.totalorder %s33, %s36
      %p45 = scmp.eq.s32.totalorder %s28, 1
      %p46 = por %p44, %p45
      %p47 = scmp.ne.s32.totalorder %s36, %s37
      %p48 = scmp.eq.s32.totalorder %s28, 0
      %p49 = por %p47, %p48
      %p50 = scmp.ne.s32.totalorder %s36, %s37
      %p51 = scmp.eq.s32.totalorder %s29, 1
      %p52 = por %p50, %p51
      %p54 = scmp.ne.s32.totalorder %s37, %s53
      %p55 = scmp.eq.s32.totalorder %s29, 0
      %p56 = por %p54, %p55
      %s57 = ssub.s32 %s23, %s30
      %p58 = scmp.eq.s32.totalorder %s57, 0
      %s60 = sadd.s32 %s59, 1
      %s61 = scalar_select %p58, %s59, %s60
      %p64 = pneg %p58
      %p65 = scmp.eq.s32.totalorder %s23, 1
      %p66 = por %p64, %p65
      %p67 = scmp.ne.s32.totalorder %s59, %s62
      %p68 = scmp.eq.s32.totalorder %s23, 0
      %p69 = por %p67, %p68
      %p70 = scmp.ne.s32.totalorder %s59, %s62
      %p71 = scmp.eq.s32.totalorder %s28, 1
      %p72 = por %p70, %p71
      %p73 = scmp.ne.s32.totalorder %s62, %s63
      %p74 = scmp.eq.s32.totalorder %s28, 0
      %p75 = por %p73, %p74
      %p76 = scmp.ne.s32.totalorder %s62, %s63
      %p77 = scmp.eq.s32.totalorder %s29, 1
      %p78 = por %p76, %p77
      %p80 = scmp.ne.s32.totalorder %s63, %s79
      %p81 = scmp.eq.s32.totalorder %s29, 0
      %p82 = por %p80, %p81
      %s84 = sadd.s32 %s83, 1
      %p87 = scmp.eq.s32.totalorder %s23, 1
      %p88 = scmp.ne.s32.totalorder %s83, %s85
      %p89 = scmp.eq.s32.totalorder %s23, 0
      %p90 = por %p88, %p89
      %p91 = scmp.ne.s32.totalorder %s83, %s85
      %p92 = scmp.eq.s32.totalorder %s28, 1
      %p93 = por %p91, %p92
      %p94 = scmp.ne.s32.totalorder %s85, %s86
      %p95 = scmp.eq.s32.totalorder %s28, 0
      %p96 = por %p94, %p95
      %p97 = scmp.ne.s32.totalorder %s85, %s86
      %p98 = scmp.eq.s32.totalorder %s29, 1
      %p99 = por %p97, %p98
      %p101 = scmp.ne.s32.totalorder %s86, %s100
      %p102 = scmp.eq.s32.totalorder %s29, 0
      %p103 = por %p101, %p102
      %s105 = sadd.s32 %s104, 1
      %p108 = scmp.eq.s32.totalorder %s23, 1
      %p109 = scmp.ne.s32.totalorder %s104, %s106
      %p110 = scmp.eq.s32.totalorder %s23, 0
      %p111 = por %p109, %p110
      %p112 = scmp.ne.s32.totalorder %s104, %s106
      %p113 = scmp.eq.s32.totalorder %s28, 1
      %p114 = por %p112, %p113
      %p115 = scmp.ne.s32.totalorder %s106, %s107
      %p116 = scmp.eq.s32.totalorder %s28, 0
      %p117 = por %p115, %p116
      %p118 = scmp.ne.s32.totalorder %s106, %s107
      %p119 = scmp.eq.s32.totalorder %s29, 1
      %p120 = por %p118, %p119
      %p122 = scmp.ne.s32.totalorder %s107, %s121
      %p123 = scmp.eq.s32.totalorder %s29, 0
      %p124 = por %p122, %p123
      %s126 = sadd.s32 %s125, 1
      %p129 = scmp.eq.s32.totalorder %s23, 1
      %p130 = scmp.ne.s32.totalorder %s125, %s127
      %p131 = scmp.eq.s32.totalorder %s23, 0
      %p132 = por %p130, %p131
      %p133 = scmp.ne.s32.totalorder %s125, %s127
      %p134 = scmp.eq.s32.totalorder %s28, 1
      %p135 = por %p133, %p134
      %p136 = scmp.ne.s32.totalorder %s127, %s128
      %p137 = scmp.eq.s32.totalorder %s28, 0
      %p138 = por %p136, %p137
      %p139 = scmp.ne.s32.totalorder %s127, %s128
      %p140 = scmp.eq.s32.totalorder %s29, 1
      %p141 = por %p139, %p140
      %p143 = scmp.ne.s32.totalorder %s128, %s142
      %p144 = scmp.eq.s32.totalorder %s29, 0
      %p145 = por %p143, %p144
      %s147 = sadd.s32 %s146, 1
      %p150 = scmp.eq.s32.totalorder %s23, 1
      %p151 = scmp.ne.s32.totalorder %s146, %s148
      %p152 = scmp.eq.s32.totalorder %s23, 0
      %p153 = por %p151, %p152
      %p154 = scmp.ne.s32.totalorder %s146, %s148
      %p155 = scmp.eq.s32.totalorder %s28, 1
      %p156 = por %p154, %p155
      %p157 = scmp.ne.s32.totalorder %s148, %s149
      %p158 = scmp.eq.s32.totalorder %s28, 0
      %p159 = por %p157, %p158
      %p160 = scmp.ne.s32.totalorder %s148, %s149
      %p161 = scmp.eq.s32.totalorder %s29, 1
      %p162 = por %p160, %p161
      %p164 = scmp.ne.s32.totalorder %s149, %s163
      %p165 = scmp.eq.s32.totalorder %s29, 0
      %p166 = por %p164, %p165
      %s168 = sadd.s32 %s167, 1
      %p171 = scmp.eq.s32.totalorder %s23, 1
      %p172 = scmp.ne.s32.totalorder %s167, %s169
      %p173 = scmp.eq.s32.totalorder %s23, 0
      %p174 = por %p172, %p173
      %p175 = scmp.ne.s32.totalorder %s167, %s169
      %p176 = scmp.eq.s32.totalorder %s28, 1
      %p177 = por %p175, %p176
      %p178 = scmp.ne.s32.totalorder %s169, %s170
      %p179 = scmp.eq.s32.totalorder %s28, 0
      %p180 = por %p178, %p179
      %p181 = scmp.ne.s32.totalorder %s169, %s170
      %p182 = scmp.eq.s32.totalorder %s29, 1
      %p183 = por %p181, %p182
      %p185 = scmp.ne.s32.totalorder %s170, %s184
      %p186 = scmp.eq.s32.totalorder %s29, 0
      %p187 = por %p185, %p186
      %s189 = sadd.s32 %s188, 1
      %p192 = scmp.eq.s32.totalorder %s23, 1
      %p193 = scmp.ne.s32.totalorder %s188, %s190
      %p194 = scmp.eq.s32.totalorder %s23, 0
      %p195 = por %p193, %p194
      %p196 = scmp.ne.s32.totalorder %s188, %s190
      %p197 = scmp.eq.s32.totalorder %s28, 1
      %p198 = por %p196, %p197
      %p199 = scmp.ne.s32.totalorder %s190, %s191
      %p200 = scmp.eq.s32.totalorder %s28, 0
      %p201 = por %p199, %p200
      %p202 = scmp.ne.s32.totalorder %s190, %s191
      %p203 = scmp.eq.s32.totalorder %s29, 1
      %p204 = por %p202, %p203
      %p206 = scmp.ne.s32.totalorder %s191, %s205
      %p207 = scmp.eq.s32.totalorder %s29, 0
      %p208 = por %p206, %p207
      %s210 = sadd.s32 %s209, 1
      %p213 = scmp.eq.s32.totalorder %s23, 1
      %p214 = scmp.ne.s32.totalorder %s209, %s211
      %p215 = scmp.eq.s32.totalorder %s23, 0
      %p216 = por %p214, %p215
      %p217 = scmp.ne.s32.totalorder %s209, %s211
      %p218 = scmp.eq.s32.totalorder %s28, 1
      %p219 = por %p217, %p218
      %p220 = scmp.ne.s32.totalorder %s211, %s212
      %p221 = scmp.eq.s32.totalorder %s28, 0
      %p222 = por %p220, %p221
      %p223 = scmp.ne.s32.totalorder %s211, %s212
      %p224 = scmp.eq.s32.totalorder %s29, 1
      %p225 = por %p223, %p224
      %p227 = scmp.ne.s32.totalorder %s212, %s226
      %p228 = scmp.eq.s32.totalorder %s29, 0
      %p229 = por %p227, %p228
      %s231 = sadd.s32 %s230, 1
      %p234 = scmp.eq.s32.totalorder %s23, 1
      %p235 = scmp.ne.s32.totalorder %s230, %s232
      %p236 = scmp.eq.s32.totalorder %s23, 0
      %p237 = por %p235, %p236
      %p238 = scmp.ne.s32.totalorder %s230, %s232
      %p239 = scmp.eq.s32.totalorder %s28, 1
      %p240 = por %p238, %p239
      %p241 = scmp.ne.s32.totalorder %s232, %s233
      %p242 = scmp.eq.s32.totalorder %s28, 0
      %p243 = por %p241, %p242
      %p244 = scmp.ne.s32.totalorder %s232, %s233
      %p245 = scmp.eq.s32.totalorder %s29, 1
      %p246 = por %p244, %p245
      %p248 = scmp.ne.s32.totalorder %s233, %s247
      %p249 = scmp.eq.s32.totalorder %s29, 0
      %p250 = por %p248, %p249
      %s252 = sadd.s32 %s251, 1
      %p255 = scmp.eq.s32.totalorder %s23, 1
      %p256 = scmp.ne.s32.totalorder %s251, %s253
      %p257 = scmp.eq.s32.totalorder %s23, 0
      %p258 = por %p256, %p257
      %p259 = scmp.ne.s32.totalorder %s251, %s253
      %p260 = scmp.eq.s32.totalorder %s28, 1
      %p261 = por %p259, %p260
      %p262 = scmp.ne.s32.totalorder %s253, %s254
      %p263 = scmp.eq.s32.totalorder %s28, 0
      %p264 = por %p262, %p263
      %p265 = scmp.ne.s32.totalorder %s253, %s254
      %p266 = scmp.eq.s32.totalorder %s29, 1
      %p267 = por %p265, %p266
      %p269 = scmp.ne.s32.totalorder %s254, %s268
      %p270 = scmp.eq.s32.totalorder %s29, 0
      %p271 = por %p269, %p270
      %s273 = sadd.s32 %s272, 1
      %p276 = scmp.eq.s32.totalorder %s23, 1
      %p277 = scmp.ne.s32.totalorder %s272, %s274
      %p278 = scmp.eq.s32.totalorder %s23, 0
      %p279 = por %p277, %p278
      %p280 = scmp.ne.s32.totalorder %s272, %s274
      %p281 = scmp.eq.s32.totalorder %s28, 1
      %p282 = por %p280, %p281
      %p283 = scmp.ne.s32.totalorder %s274, %s275
      %p284 = scmp.eq.s32.totalorder %s28, 0
      %p285 = por %p283, %p284
      %p286 = scmp.ne.s32.totalorder %s274, %s275
      %p287 = scmp.eq.s32.totalorder %s29, 1
      %p288 = por %p286, %p287
      %p290 = scmp.ne.s32.totalorder %s275, %s289
      %p291 = scmp.eq.s32.totalorder %s29, 0
      %p292 = por %p290, %p291
      %s294 = sadd.s32 %s293, 1
      %p297 = scmp.eq.s32.totalorder %s23, 1
      %p298 = scmp.ne.s32.totalorder %s293, %s295
      %p299 = scmp.eq.s32.totalorder %s23, 0
      %p300 = por %p298, %p299
      %p301 = scmp.ne.s32.totalorder %s293, %s295
      %p302 = scmp.eq.s32.totalorder %s28, 1
      %p303 = por %p301, %p302
      %p304 = scmp.ne.s32.totalorder %s295, %s296
      %p305 = scmp.eq.s32.totalorder %s28, 0
      %p306 = por %p304, %p305
      %p307 = scmp.ne.s32.totalorder %s295, %s296
      %p308 = scmp.eq.s32.totalorder %s29, 1
      %p309 = por %p307, %p308
      %p311 = scmp.ne.s32.totalorder %s296, %s310
      %p312 = scmp.eq.s32.totalorder %s29, 0
      %p313 = por %p311, %p312
      %s315 = sadd.s32 %s314, 1
      %p318 = scmp.eq.s32.totalorder %s23, 1
      %p319 = scmp.ne.s32.totalorder %s314, %s316
      %p320 = scmp.eq.s32.totalorder %s23, 0
      %p321 = por %p319, %p320
      %p322 = scmp.ne.s32.totalorder %s314, %s316
      %p323 = scmp.eq.s32.totalorder %s28, 1
      %p324 = por %p322, %p323
      %p325 = scmp.ne.s32.totalorder %s316, %s317
      %p326 = scmp.eq.s32.totalorder %s28, 0
      %p327 = por %p325, %p326
      %p328 = scmp.ne.s32.totalorder %s316, %s317
      %p329 = scmp.eq.s32.totalorder %s29, 1
      %p330 = por %p328, %p329
      %p332 = scmp.ne.s32.totalorder %s317, %s331
      %p333 = scmp.eq.s32.totalorder %s29, 0
      %p334 = por %p332, %p333
      %s335 = ssub.s32 %s23, %s30
      %p336 = scmp.eq.s32.totalorder %s335, 0
      %s338 = sadd.s32 %s337, 1
      %s339 = scalar_select %p336, %s337, %s338
      %p342 = pneg %p336
      %p343 = scmp.eq.s32.totalorder %s23, 1
      %p344 = por %p342, %p343
      %p345 = scmp.ne.s32.totalorder %s337, %s340
      %p346 = scmp.eq.s32.totalorder %s23, 0
      %p347 = por %p345, %p346
      %p348 = scmp.ne.s32.totalorder %s337, %s340
      %p349 = scmp.eq.s32.totalorder %s28, 1
      %p350 = por %p348, %p349
      %p351 = scmp.ne.s32.totalorder %s340, %s341
      %p352 = scmp.eq.s32.totalorder %s28, 0
      %p353 = por %p351, %p352
      %p354 = scmp.ne.s32.totalorder %s340, %s341
      %p355 = scmp.eq.s32.totalorder %s29, 1
      %p356 = por %p354, %p355
      %p358 = scmp.ne.s32.totalorder %s341, %s357
      %p359 = scmp.eq.s32.totalorder %s29, 0
      %p360 = por %p358, %p359
      %p361 = scmp.le.s32.totalorder 1, %s23
      %p362 = scmp.lt.s32.totalorder %s23, 3
      %p363 = pnand %p361, %p362
      %p364 = pneg %p363
      // Predicated region
      $region9: #{tpu_custom_call.1} parent=5 // pred_check
        _
      $region10: #{tpu_custom_call.1} parent=5 // pred_check_branch
        %366 = sbr.rel (%p363) target = $region12
      $region11: #{tpu_custom_call.1} parent=5 // pred_region
        %s367 = ssub.s32 %s23, 1
        // Predicated region
        $region13: #{tpu_custom_call.1} parent=11 // pred_check
          %p368 = pneg %p96
        $region14: #{tpu_custom_call.1} parent=11 // pred_check_branch
          %370 = sbr.rel (%p368) target = $region16
        $region15: #{tpu_custom_call.1} parent=11 // pred_region
          _
        $region16: #{tpu_custom_call.1} parent=11 // pred_fallthru
          _
        // Predicated region
        $region17: #{tpu_custom_call.1} parent=11 // pred_check
          %p371 = pneg %p117
        $region18: #{tpu_custom_call.1} parent=11 // pred_check_branch
          %373 = sbr.rel (%p371) target = $region20
        $region19: #{tpu_custom_call.1} parent=11 // pred_region
          _
        $region20: #{tpu_custom_call.1} parent=11 // pred_fallthru
          _
        // Predicated region
        $region21: #{tpu_custom_call.1} parent=11 // pred_check
          %p374 = pneg %p138
        $region22: #{tpu_custom_call.1} parent=11 // pred_check_branch
          %376 = sbr.rel (%p374) target = $region24
        $region23: #{tpu_custom_call.1} parent=11 // pred_region
          _
        $region24: #{tpu_custom_call.1} parent=11 // pred_fallthru
          _
        // Predicated region
        $region25: #{tpu_custom_call.1} parent=11 // pred_check
          %p377 = pneg %p159
        $region26: #{tpu_custom_call.1} parent=11 // pred_check_branch
          %379 = sbr.rel (%p377) target = $region28
        $region27: #{tpu_custom_call.1} parent=11 // pred_region
          _
        $region28: #{tpu_custom_call.1} parent=11 // pred_fallthru
          _
        // Predicated region
        $region29: #{tpu_custom_call.1} parent=11 // pred_check
          %p380 = pneg %p180
        $region30: #{tpu_custom_call.1} parent=11 // pred_check_branch
          %382 = sbr.rel (%p380) target = $region32
        $region31: #{tpu_custom_call.1} parent=11 // pred_region
          _
        $region32: #{tpu_custom_call.1} parent=11 // pred_fallthru
          _
        // Predicated region
        $region33: #{tpu_custom_call.1} parent=11 // pred_check
          %p383 = pneg %p201
        $region34: #{tpu_custom_call.1} parent=11 // pred_check_branch
          %385 = sbr.rel (%p383) target = $region36
        $region35: #{tpu_custom_call.1} parent=11 // pred_region
          _
        $region36: #{tpu_custom_call.1} parent=11 // pred_fallthru
          _
        // Predicated region
        $region37: #{tpu_custom_call.1} parent=11 // pred_check
          %p386 = pneg %p222
        $region38: #{tpu_custom_call.1} parent=11 // pred_check_branch
          %388 = sbr.rel (%p386) target = $region40
        $region39: #{tpu_custom_call.1} parent=11 // pred_region
          _
        $region40: #{tpu_custom_call.1} parent=11 // pred_fallthru
          _
        // Predicated region
        $region41: #{tpu_custom_call.1} parent=11 // pred_check
          %p389 = pneg %p243
        $region42: #{tpu_custom_call.1} parent=11 // pred_check_branch
          %391 = sbr.rel (%p389) target = $region44
        $region43: #{tpu_custom_call.1} parent=11 // pred_region
          _
        $region44: #{tpu_custom_call.1} parent=11 // pred_fallthru
          _
        // Predicated region
        $region45: #{tpu_custom_call.1} parent=11 // pred_check
          %p392 = pneg %p264
        $region46: #{tpu_custom_call.1} parent=11 // pred_check_branch
          %394 = sbr.rel (%p392) target = $region48
        $region47: #{tpu_custom_call.1} parent=11 // pred_region
          _
        $region48: #{tpu_custom_call.1} parent=11 // pred_fallthru
          _
        // Predicated region
        $region49: #{tpu_custom_call.1} parent=11 // pred_check
          %p395 = pneg %p285
        $region50: #{tpu_custom_call.1} parent=11 // pred_check_branch
          %397 = sbr.rel (%p395) target = $region52
        $region51: #{tpu_custom_call.1} parent=11 // pred_region
          _
        $region52: #{tpu_custom_call.1} parent=11 // pred_fallthru
          _
        // Predicated region
        $region53: #{tpu_custom_call.1} parent=11 // pred_check
          %p398 = pneg %p306
        $region54: #{tpu_custom_call.1} parent=11 // pred_check_branch
          %400 = sbr.rel (%p398) target = $region56
        $region55: #{tpu_custom_call.1} parent=11 // pred_region
          _
        $region56: #{tpu_custom_call.1} parent=11 // pred_fallthru
          _
        // Predicated region
        $region57: #{tpu_custom_call.1} parent=11 // pred_check
          %p401 = pneg %p327
        $region58: #{tpu_custom_call.1} parent=11 // pred_check_branch
          %403 = sbr.rel (%p401) target = $region60
        $region59: #{tpu_custom_call.1} parent=11 // pred_region
          _
        $region60: #{tpu_custom_call.1} parent=11 // pred_fallthru
          _
      $region12: #{tpu_custom_call.1} parent=5 // pred_fallthru
        _
      %p404 = scmp.lt.s32.totalorder %s23, 2
      // Predicated region
      $region61: #{tpu_custom_call.1} parent=5 // pred_check
        %p405 = pneg %p404
      $region62: #{tpu_custom_call.1} parent=5 // pred_check_branch
        %407 = sbr.rel (%p405) target = $region64
      $region63: #{tpu_custom_call.1} parent=5 // pred_region
        // Predicated region
        $region65: #{tpu_custom_call.1} parent=63 // pred_check
          %p408 = pneg %p43
        $region66: #{tpu_custom_call.1} parent=63 // pred_check_branch
          %410 = sbr.rel (%p408) target = $region68
        $region67: #{tpu_custom_call.1} parent=63 // pred_region
          %p411 = scmp.lt.s32.totalorder %s23, 1
          %s412 = scalar_select %p411, %s23, 1
          %s413 = smul.addr %s412, 8
          %s414 = smul.addr %s413, 4
          %s415 = scalar_lea.vmem %s0, %s414
        $region68: #{tpu_custom_call.1} parent=63 // pred_fallthru
          _
        // Predicated region
        $region69: #{tpu_custom_call.1} parent=63 // pred_check
          %p416 = pneg %p69
        $region70: #{tpu_custom_call.1} parent=63 // pred_check_branch
          %418 = sbr.rel (%p416) target = $region72
        $region71: #{tpu_custom_call.1} parent=63 // pred_region
          %p419 = scmp.lt.s32.totalorder %s23, 1
          %s420 = scalar_select %p419, %s23, 1
          %s421 = smul.addr %s420, 8
          %s422 = smul.addr %s421, 4
          %s423 = scalar_lea.vmem %s1, %s422
        $region72: #{tpu_custom_call.1} parent=63 // pred_fallthru
          _
      $region64: #{tpu_custom_call.1} parent=5 // pred_fallthru
        _
      %p424 = scmp.le.s32.totalorder 1, %s23
      %p425 = scmp.lt.s32.totalorder %s23, 3
      %p426 = pnand %p424, %p425
      %p427 = pneg %p426
      // Predicated region
      $region73: #{tpu_custom_call.1} parent=5 // pred_check
        _
      $region74: #{tpu_custom_call.1} parent=5 // pred_check_branch
        %429 = sbr.rel (%p426) target = $region76
      $region75: #{tpu_custom_call.1} parent=5 // pred_region
        %s430 = ssub.s32 %s23, 1
        %p431 = scmp.lt.s32.totalorder %s28, 1
        %s432 = scalar_select %p431, %s28, 1
        %s433 = smul.addr %s432, 8
        %s434 = smul.addr %s433, 4
        %s435 = scalar_lea.vmem %s0, %s434
        %p436 = pneg %p49
        %p437 = pneg %p46
        %p438 = scmp.lt.s32.totalorder %s28, 1
        %s439 = scalar_select %p438, %s28, 1
        %s440 = smul.addr %s439, 8
        %s441 = smul.addr %s440, 4
        %s442 = scalar_lea.vmem %s1, %s441
        %p443 = pneg %p75
        %p444 = pneg %p72
        %p445 = pneg %p96
        %p446 = pneg %p93
        %p447 = pneg %p117
        %p448 = pneg %p114
        %p449 = pneg %p138
        %p450 = pneg %p135
        %p451 = pneg %p159
        %p452 = pneg %p156
        %p453 = pneg %p180
        %p454 = pneg %p177
        %p455 = pneg %p201
        %p456 = pneg %p198
        %p457 = pneg %p222
        %p458 = pneg %p219
        %p459 = pneg %p243
        %p460 = pneg %p240
        %p461 = pneg %p264
        %p462 = pneg %p261
        %p463 = pneg %p285
        %p464 = pneg %p282
        %p465 = pneg %p306
        %p466 = pneg %p303
        %p467 = pneg %p327
        %p468 = pneg %p324
        %p469 = pneg %p353
        %p470 = pneg %p350
        %s471 = sand.u32 %s340, 1
        %s472 = scalar_lea.sflag [#allocation3], %s471
        %s473 = sand.u32 %s340, 1
        %s474 = smul.addr %s473, 32
        %s475 = scalar_lea.vmem [#allocation2], %s474
        %p476 = scmp.lt.s32.totalorder %s28, 1
        %s477 = scalar_select %p476, %s28, 1
        %s478 = smul.addr %s477, 8
        %s479 = smul.addr %s478, 4
        %s480 = scalar_lea.vmem %s0, %s479
        %p481 = scmp.lt.s32.totalorder %s28, 1
        %s482 = scalar_select %p481, %s28, 1
        %s483 = smul.addr %s482, 8
        %s484 = smul.addr %s483, 4
        %s485 = scalar_lea.vmem %s1, %s484
        %v487 = vld [vmem:[%s480] sm:$0xf]
        %v488 = vld [vmem:[%s480 + $0x4] sm:$0xf]
        %v489 = vld [vmem:[%s480 + $0x8] sm:$0xf]
        %v490 = vld [vmem:[%s480 + $0xc] sm:$0xf]
        %v491 = vld [vmem:[%s480 + $0x10] sm:$0xf]
        %v492 = vld [vmem:[%s480 + $0x14] sm:$0xf]
        %v493 = vld [vmem:[%s480 + $0x18] sm:$0xf]
        %v494 = vld [vmem:[%s480 + $0x1c] sm:$0xf]
        %v495 = vld [vmem:[%s485] sm:$0xf]
        %v496 = vld [vmem:[%s485 + $0x4] sm:$0xf]
        %v497 = vld [vmem:[%s485 + $0x8] sm:$0xf]
        %v498 = vld [vmem:[%s485 + $0xc] sm:$0xf]
        %v499 = vld [vmem:[%s485 + $0x10] sm:$0xf]
        %v500 = vld [vmem:[%s485 + $0x14] sm:$0xf]
        %v501 = vld [vmem:[%s485 + $0x18] sm:$0xf]
        %v502 = vld [vmem:[%s485 + $0x1c] sm:$0xf]
        %v503 = vld [vmem:[%s2] sm:$0xff]
        %v504 = vld [vmem:[%s2 + $0x8] sm:$0x11]
        %v505 = vld [vmem:[%s3] sm:$0x3]
        %v507 = vlaneseq
        %v508 = vshrl.u32 %v507, 7
        %v509 = vsub.s32 0, %v508
        %v510 = vrot.slane %v505, %v509
        %v511 = vlaneseq
        %v512 = vshrl.u32 %v511, 7
        %v513 = vsub.s32 1, %v512
        %v514 = vrot.slane %v505, %v513
        %v525 = vunpack.c.l.b16 %v487
        %v526 = vunpack.c.l.b16 %v488
        %v527 = vunpack.c.l.b16 %v489
        %v528 = vunpack.c.l.b16 %v490
        %v529 = vunpack.c.l.b16 %v491
        %v530 = vunpack.c.l.b16 %v492
        %v531 = vunpack.c.l.b16 %v493
        %v532 = vunpack.c.l.b16 %v494
        %v533 = vpack.c.b16 %v526, %v525
        %v534 = vpack.c.b16 %v528, %v527
        %v535 = vpack.c.b16 %v530, %v529
        %v536 = vpack.c.b16 %v532, %v531
        %v539 = vunpack.c.l.b16 %v503
        %v540 = vunpack.c.h.b16 %v503
        %v541 = vunpack.c.l.b16 %v504
        %v542 = vunpack.c.h.b16 %v504
        %v543 = vpack.c.b16 %v541, %v539
        %v544 = vpack.c.b16 %v542, %v540
        %vm545 = vcmask 72704
        %v547 = vsel %vm545, %v533, 0
        %v550 = vsel %vm545, %v534, 0
        %v553 = vsel %vm545, %v535, 0
        %v556 = vsel %vm545, %v536, 0
        %vm558 = vcmask 1043456
        %vm559 = vcmask 1044480
        %v560 = vsel %vm558, 4294967295, 65535
        %v561 = vsel %vm559, %v560, 0
        %v563 = vand.u32 %v543, %v561
        %v566 = vand.u32 %v544, %v561
        %568 = vmatprep.subr.bf16.mxu0 %v566
        %569 = vmatpush1.bf16.msra.mxu0 %v563
        %570 = vmatprep.subr.bf16.mxu0 0
        %571 = vmatpush1.bf16.msra.mxu0 0
        %572 = vmatprep.subr.bf16.mxu0 0
        %573 = vmatpush1.bf16.msra.mxu0 0
        %574 = vmatprep.subr.bf16.mxu0 0
        %575 = vmatpush1.bf16.msra.mxu0 0
        %576 = vmatprep.subr.bf16.mxu0 0
        %577 = vmatpush1.bf16.msra.mxu0 0
        %578 = vmatprep.subr.bf16.mxu0 0
        %579 = vmatpush1.bf16.msra.mxu0 0
        %580 = vmatprep.subr.bf16.mxu0 0
        %581 = vmatpush1.bf16.msra.mxu0 0
        %582 = vmatprep.subr.bf16.mxu0 0
        %583 = vmatpush1.bf16.msra.mxu0 0
        %584 = vmatprep.subr.bf16.mxu0 0
        %585 = vmatpush1.bf16.msra.mxu0 0
        %586 = vmatprep.subr.bf16.mxu0 0
        %587 = vmatpush1.bf16.msra.mxu0 0
        %588 = vmatprep.subr.bf16.mxu0 0
        %589 = vmatpush1.bf16.msra.mxu0 0
        %590 = vmatprep.subr.bf16.mxu0 0
        %591 = vmatpush1.bf16.msra.mxu0 0
        %592 = vmatprep.subr.bf16.mxu0 0
        %593 = vmatpush1.bf16.msra.mxu0 0
        %594 = vmatprep.subr.bf16.mxu0 0
        %595 = vmatpush1.bf16.msra.mxu0 0
        %596 = vmatprep.subr.bf16.mxu0 0
        %597 = vmatpush1.bf16.msra.mxu0 0
        %598 = vmatprep.subr.bf16.mxu0 0
        %599 = vmatpush1.bf16.msra.mxu0 0
        %600 = vmatprep.mubr.bf16.mxu0 0
        %601 = vmatmul.mubr.bf16.gmra.mrb[0].mxu0 %v547
        %v602 = vpop.f32.mrb[0].mxu0
        %v603 = vadd.f32 %v510, %v602
        %v604 = vpop.f32.mrb[0].mxu0
        %v605 = vadd.f32 %v514, %v604
        %v606 = vpop.f32.mrb[0].mxu0
        %v607 = vadd.f32 %v510, %v606
        %v608 = vpop.f32.mrb[0].mxu0
        %v609 = vadd.f32 %v514, %v608
        %610 = vmatprep.mubr.bf16.mxu0 0
        %611 = vmatmul.mubr.bf16.gmra.mrb[0].mxu0 %v550
        %v612 = vpop.f32.mrb[0].mxu0
        %v613 = vadd.f32 %v510, %v612
        %v614 = vpop.f32.mrb[0].mxu0
        %v615 = vadd.f32 %v514, %v614
        %v616 = vpop.f32.mrb[0].mxu0
        %v617 = vadd.f32 %v510, %v616
        %v618 = vpop.f32.mrb[0].mxu0
        %v619 = vadd.f32 %v514, %v618
        %620 = vmatprep.mubr.bf16.mxu0 0
        %621 = vmatmul.mubr.bf16.gmra.mrb[0].mxu0 %v553
        %v622 = vpop.f32.mrb[0].mxu0
        %v623 = vadd.f32 %v510, %v622
        %v624 = vpop.f32.mrb[0].mxu0
        %v625 = vadd.f32 %v514, %v624
        %v626 = vpop.f32.mrb[0].mxu0
        %v627 = vadd.f32 %v510, %v626
        %v628 = vpop.f32.mrb[0].mxu0
        %v629 = vadd.f32 %v514, %v628
        %630 = vmatprep.mubr.bf16.mxu0 0
        %631 = vmatmul.mubr.bf16.gmra.mrb[0].mxu0 %v556
        %v632 = vpop.f32.mrb[0].mxu0
        %v633 = vadd.f32 %v510, %v632
        %v634 = vpop.f32.mrb[0].mxu0
        %v635 = vadd.f32 %v514, %v634
        %v636 = vpop.f32.mrb[0].mxu0
        %v637 = vadd.f32 %v510, %v636
        %v638 = vpop.f32.mrb[0].mxu0
        %v639 = vadd.f32 %v514, %v638
        %640 = vdwg.mxu0
        %v641 = vmax.f32 %v603, 0.0
        %v642 = vmax.f32 %v605, 0.0
        %v643 = vmax.f32 %v607, 0.0
        %v644 = vmax.f32 %v609, 0.0
        %v645 = vmax.f32 %v613, 0.0
        %v646 = vmax.f32 %v615, 0.0
        %v647 = vmax.f32 %v617, 0.0
        %v648 = vmax.f32 %v619, 0.0
        %v649 = vmax.f32 %v623, 0.0
        %v650 = vmax.f32 %v625, 0.0
        %v651 = vmax.f32 %v627, 0.0
        %v652 = vmax.f32 %v629, 0.0
        %v653 = vmax.f32 %v633, 0.0
        %v654 = vmax.f32 %v635, 0.0
        %v655 = vmax.f32 %v637, 0.0
        %v656 = vmax.f32 %v639, 0.0
        %v657 = vpack.c.bf16 %v643, %v641
        %v658 = vpack.c.bf16 %v644, %v642
        %v659 = vpack.c.bf16 %v647, %v645
        %v660 = vpack.c.bf16 %v648, %v646
        %v661 = vpack.c.bf16 %v651, %v649
        %v662 = vpack.c.bf16 %v652, %v650
        %v663 = vpack.c.bf16 %v655, %v653
        %v664 = vpack.c.bf16 %v656, %v654
        %v673 = vunpack.c.l.b16 %v657
        %v674 = vunpack.c.l.b16 %v658
        %v675 = vunpack.c.h.b16 %v657
        %v676 = vunpack.c.h.b16 %v658
        %v677 = vunpack.c.l.b16 %v659
        %v678 = vunpack.c.l.b16 %v660
        %v679 = vunpack.c.h.b16 %v659
        %v680 = vunpack.c.h.b16 %v660
        %v681 = vunpack.c.l.b16 %v661
        %v682 = vunpack.c.l.b16 %v662
        %v683 = vunpack.c.h.b16 %v661
        %v684 = vunpack.c.h.b16 %v662
        %v685 = vunpack.c.l.b16 %v663
        %v686 = vunpack.c.l.b16 %v664
        %v687 = vunpack.c.h.b16 %v663
        %v688 = vunpack.c.h.b16 %v664
        %v689 = vld [vmem:[%s5] sm:$0x3]
        %v690 = vpack.c.b16 %v673, %v673
        %v691 = vpack.c.b16 %v674, %v674
        %v692 = vpack.c.b16 %v675, %v675
        %v693 = vpack.c.b16 %v676, %v676
        %v694 = vpack.c.b16 %v677, %v677
        %v695 = vpack.c.b16 %v678, %v678
        %v696 = vpack.c.b16 %v679, %v679
        %v697 = vpack.c.b16 %v680, %v680
        %v698 = vpack.c.b16 %v681, %v681
        %v699 = vpack.c.b16 %v682, %v682
        %v700 = vpack.c.b16 %v683, %v683
        %v701 = vpack.c.b16 %v684, %v684
        %v702 = vpack.c.b16 %v685, %v685
        %v703 = vpack.c.b16 %v686, %v686
        %v704 = vpack.c.b16 %v687, %v687
        %v705 = vpack.c.b16 %v688, %v688
        %v707 = vshrl.u32 %v690, 16
        %v709 = vrot.slane %v707, 7
        %v710 = vshll.u32 %v690, 16
        %v712 = vor.u32 %v709, %v710
        %v714 = vshrl.u32 %v691, 16
        %v716 = vrot.slane %v714, 7
        %v717 = vshll.u32 %v691, 16
        %v719 = vor.u32 %v716, %v717
        %v721 = vshrl.u32 %v692, 16
        %v723 = vrot.slane %v721, 7
        %v724 = vshll.u32 %v692, 16
        %v726 = vor.u32 %v723, %v724
        %v728 = vshrl.u32 %v693, 16
        %v730 = vrot.slane %v728, 7
        %v731 = vshll.u32 %v693, 16
        %v733 = vor.u32 %v730, %v731
        %v735 = vshrl.u32 %v694, 16
        %v737 = vrot.slane %v735, 7
        %v738 = vshll.u32 %v694, 16
        %v740 = vor.u32 %v737, %v738
        %v742 = vshrl.u32 %v695, 16
        %v744 = vrot.slane %v742, 7
        %v745 = vshll.u32 %v695, 16
        %v747 = vor.u32 %v744, %v745
        %v749 = vshrl.u32 %v696, 16
        %v751 = vrot.slane %v749, 7
        %v752 = vshll.u32 %v696, 16
        %v754 = vor.u32 %v751, %v752
        %v756 = vshrl.u32 %v697, 16
        %v758 = vrot.slane %v756, 7
        %v759 = vshll.u32 %v697, 16
        %v761 = vor.u32 %v758, %v759
        %v763 = vshrl.u32 %v698, 16
        %v765 = vrot.slane %v763, 7
        %v766 = vshll.u32 %v698, 16
        %v768 = vor.u32 %v765, %v766
        %v770 = vshrl.u32 %v699, 16
        %v772 = vrot.slane %v770, 7
        %v773 = vshll.u32 %v699, 16
        %v775 = vor.u32 %v772, %v773
        %v777 = vshrl.u32 %v700, 16
        %v779 = vrot.slane %v777, 7
        %v780 = vshll.u32 %v700, 16
        %v782 = vor.u32 %v779, %v780
        %v784 = vshrl.u32 %v701, 16
        %v786 = vrot.slane %v784, 7
        %v787 = vshll.u32 %v701, 16
        %v789 = vor.u32 %v786, %v787
        %v791 = vshrl.u32 %v702, 16
        %v793 = vrot.slane %v791, 7
        %v794 = vshll.u32 %v702, 16
        %v796 = vor.u32 %v793, %v794
        %v798 = vshrl.u32 %v703, 16
        %v800 = vrot.slane %v798, 7
        %v801 = vshll.u32 %v703, 16
        %v803 = vor.u32 %v800, %v801
        %v805 = vshrl.u32 %v704, 16
        %v807 = vrot.slane %v805, 7
        %v808 = vshll.u32 %v704, 16
        %v810 = vor.u32 %v807, %v808
        %v812 = vshrl.u32 %v705, 16
        %v814 = vrot.slane %v812, 7
        %v815 = vshll.u32 %v705, 16
        %v817 = vor.u32 %v814, %v815
        %vm834 = vcmask 1040384
        %vm835 = vsmask.f32 256
        %vm836 = vmand %vm834, %vm835
        %v837 = vsel %vm836, 0, %v712
        %v838 = vsel %vm836, 0, %v719
        %v839 = vsel %vm836, 0, %v726
        %v840 = vsel %vm836, 0, %v733
        %v841 = vsel %vm836, 0, %v740
        %v842 = vsel %vm836, 0, %v747
        %v843 = vsel %vm836, 0, %v754
        %v844 = vsel %vm836, 0, %v761
        %v845 = vsel %vm836, 0, %v768
        %v846 = vsel %vm836, 0, %v775
        %v847 = vsel %vm836, 0, %v782
        %v848 = vsel %vm836, 0, %v789
        %v849 = vsel %vm836, 0, %v796
        %v850 = vsel %vm836, 0, %v803
        %v851 = vsel %vm836, 0, %v810
        %v852 = vsel %vm836, 0, %v817
        %vm853 = vcmask 1044480
        %vm854 = vsmask.f32 4352
        %vm855 = vmand %vm853, %vm854
        %v856 = vsel %vm855, %v837, 0
        %v857 = vsel %vm855, %v838, 0
        %v858 = vsel %vm855, %v839, 0
        %v859 = vsel %vm855, %v840, 0
        %v860 = vsel %vm855, %v841, 0
        %v861 = vsel %vm855, %v842, 0
        %v862 = vsel %vm855, %v843, 0
        %v863 = vsel %vm855, %v844, 0
        %v864 = vsel %vm855, %v845, 0
        %v865 = vsel %vm855, %v846, 0
        %v866 = vsel %vm855, %v847, 0
        %v867 = vsel %vm855, %v848, 0
        %v868 = vsel %vm855, %v849, 0
        %v869 = vsel %vm855, %v850, 0
        %v870 = vsel %vm855, %v851, 0
        %v871 = vsel %vm855, %v852, 0
        %v887 = vunpack.c.l.b16 0
        %v888 = vunpack.c.l.b16 %v856
        %v889 = vunpack.c.l.b16 %v857
        %v890 = vunpack.c.l.b16 %v858
        %v891 = vunpack.c.l.b16 %v859
        %v892 = vunpack.c.l.b16 %v860
        %v893 = vunpack.c.l.b16 %v861
        %v894 = vunpack.c.l.b16 %v862
        %v895 = vunpack.c.l.b16 %v863
        %v896 = vunpack.c.l.b16 %v864
        %v897 = vunpack.c.l.b16 %v865
        %v898 = vunpack.c.l.b16 %v866
        %v899 = vunpack.c.l.b16 %v867
        %v900 = vunpack.c.l.b16 %v868
        %v901 = vunpack.c.l.b16 %v869
        %v902 = vld [vmem:[%s4] sm:$0xff]
        %v903 = vld [vmem:[%s4 + $0x8] sm:$0xff]
        %v904 = vld [vmem:[%s4 + $0x10] sm:$0xff]
        %v905 = vld [vmem:[%s4 + $0x18] sm:$0xff]
        %v906 = vld [vmem:[%s4 + $0x20] sm:$0xff]
        %v907 = vld [vmem:[%s4 + $0x28] sm:$0xff]
        %v908 = vld [vmem:[%s4 + $0x30] sm:$0xff]
        %v909 = vld [vmem:[%s4 + $0x38] sm:$0xff]
        %v910 = vld [vmem:[%s4 + $0x40] sm:$0xff]
        %v911 = vld [vmem:[%s4 + $0x48] sm:$0xff]
        %v912 = vld [vmem:[%s4 + $0x50] sm:$0xff]
        %v913 = vld [vmem:[%s4 + $0x58] sm:$0xff]
        %v914 = vld [vmem:[%s4 + $0x60] sm:$0xff]
        %v915 = vld [vmem:[%s4 + $0x68] sm:$0xff]
        %v916 = vld [vmem:[%s4 + $0x70] sm:$0xff]
        %v917 = vld [vmem:[%s4 + $0x78] sm:$0xff]
        %v918 = vld [vmem:[%s4 + $0x80] sm:$0xff]
        %v919 = vld [vmem:[%s4 + $0x88] sm:$0xff]
        %v920 = vld [vmem:[%s4 + $0x90] sm:$0xff]
        %v921 = vld [vmem:[%s4 + $0x98] sm:$0xff]
        %v922 = vld [vmem:[%s4 + $0xa0] sm:$0xff]
        %v923 = vld [vmem:[%s4 + $0xa8] sm:$0xff]
        %v924 = vld [vmem:[%s4 + $0xb0] sm:$0xff]
        %v925 = vld [vmem:[%s4 + $0xb8] sm:$0xff]
        %v926 = vld [vmem:[%s4 + $0xc0] sm:$0xff]
        %v927 = vld [vmem:[%s4 + $0xc8] sm:$0xff]
        %v928 = vld [vmem:[%s4 + $0xd0] sm:$0xff]
        %v929 = vld [vmem:[%s4 + $0xd8] sm:$0xff]
        %v930 = vld [vmem:[%s4 + $0xe0] sm:$0xff]
        %v931 = vld [vmem:[%s4 + $0xe8] sm:$0xff]
        %v932 = vld [vmem:[%s4 + $0xf0] sm:$0xff]
        %v933 = vld [vmem:[%s4 + $0xf8] sm:$0xff]
        %v934 = vunpack.c.h.b16 0
        %v935 = vunpack.c.h.b16 %v856
        %v936 = vunpack.c.h.b16 %v857
        %v937 = vunpack.c.h.b16 %v858
        %v938 = vunpack.c.h.b16 %v859
        %v939 = vunpack.c.h.b16 %v860
        %v940 = vunpack.c.h.b16 %v861
        %v941 = vunpack.c.h.b16 %v862
        %v942 = vunpack.c.h.b16 %v863
        %v943 = vunpack.c.h.b16 %v864
        %v944 = vunpack.c.h.b16 %v865
        %v945 = vunpack.c.h.b16 %v866
        %v946 = vunpack.c.h.b16 %v867
        %v947 = vunpack.c.h.b16 %v868
        %v948 = vunpack.c.h.b16 %v869
        %v949 = vpack.c.b16 %v887, %v887
        %v950 = vpack.c.b16 %v934, %v934
        %v951 = vpack.c.b16 %v889, %v888
        %v952 = vpack.c.b16 %v936, %v935
        %v953 = vpack.c.b16 %v891, %v890
        %v954 = vpack.c.b16 %v938, %v937
        %v955 = vpack.c.b16 %v893, %v892
        %v956 = vpack.c.b16 %v940, %v939
        %v957 = vpack.c.b16 %v895, %v894
        %v958 = vpack.c.b16 %v942, %v941
        %v959 = vpack.c.b16 %v897, %v896
        %v960 = vpack.c.b16 %v944, %v943
        %v961 = vpack.c.b16 %v899, %v898
        %v962 = vpack.c.b16 %v946, %v945
        %v963 = vpack.c.b16 %v901, %v900
        %v964 = vpack.c.b16 %v948, %v947
        %vm965 = vsmask.f32 3328
        %vm966 = vsmask.f32 7440
        %vm967 = vmor %vm965, %vm966
        %v969 = vshrl.u32 %v949, 16
        %v971 = vrot.slane %v969, 4
        %v972 = vshll.u32 %v949, 16
        %v974 = vrot.slane %v972, 5
        %v975 = vor.u32 %v971, %v974
        %v976 = vrot.slane %v975, 4
        %v978 = vshll.u32 %v950, 16
        %v980 = vrot.slane %v978, 5
        %v981 = vsel %vm967, %v976, %v980
        %v983 = vshrl.u32 %v951, 16
        %v985 = vrot.slane %v983, 4
        %v986 = vshll.u32 %v951, 16
        %v988 = vrot.slane %v986, 5
        %v989 = vor.u32 %v985, %v988
        %v990 = vrot.slane %v989, 4
        %v992 = vshll.u32 %v952, 16
        %v994 = vrot.slane %v992, 5
        %v995 = vsel %vm967, %v990, %v994
        %v997 = vshrl.u32 %v953, 16
        %v999 = vrot.slane %v997, 4
        %v1000 = vshll.u32 %v953, 16
        %v1002 = vrot.slane %v1000, 5
        %v1003 = vor.u32 %v999, %v1002
        %v1004 = vrot.slane %v1003, 4
        %v1006 = vshll.u32 %v954, 16
        %v1008 = vrot.slane %v1006, 5
        %v1009 = vsel %vm967, %v1004, %v1008
        %v1011 = vshrl.u32 %v955, 16
        %v1013 = vrot.slane %v1011, 4
        %v1014 = vshll.u32 %v955, 16
        %v1016 = vrot.slane %v1014, 5
        %v1017 = vor.u32 %v1013, %v1016
        %v1018 = vrot.slane %v1017, 4
        %v1020 = vshll.u32 %v956, 16
        %v1022 = vrot.slane %v1020, 5
        %v1023 = vsel %vm967, %v1018, %v1022
        %v1025 = vshrl.u32 %v957, 16
        %v1027 = vrot.slane %v1025, 4
        %v1028 = vshll.u32 %v957, 16
        %v1030 = vrot.slane %v1028, 5
        %v1031 = vor.u32 %v1027, %v1030
        %v1032 = vrot.slane %v1031, 4
        %v1034 = vshll.u32 %v958, 16
        %v1036 = vrot.slane %v1034, 5
        %v1037 = vsel %vm967, %v1032, %v1036
        %v1039 = vshrl.u32 %v959, 16
        %v1041 = vrot.slane %v1039, 4
        %v1042 = vshll.u32 %v959, 16
        %v1044 = vrot.slane %v1042, 5
        %v1045 = vor.u32 %v1041, %v1044
        %v1046 = vrot.slane %v1045, 4
        %v1048 = vshll.u32 %v960, 16
        %v1050 = vrot.slane %v1048, 5
        %v1051 = vsel %vm967, %v1046, %v1050
        %v1053 = vshrl.u32 %v961, 16
        %v1055 = vrot.slane %v1053, 4
        %v1056 = vshll.u32 %v961, 16
        %v1058 = vrot.slane %v1056, 5
        %v1059 = vor.u32 %v1055, %v1058
        %v1060 = vrot.slane %v1059, 4
        %v1062 = vshll.u32 %v962, 16
        %v1064 = vrot.slane %v1062, 5
        %v1065 = vsel %vm967, %v1060, %v1064
        %v1067 = vshrl.u32 %v963, 16
        %v1069 = vrot.slane %v1067, 4
        %v1070 = vshll.u32 %v963, 16
        %v1072 = vrot.slane %v1070, 5
        %v1073 = vor.u32 %v1069, %v1072
        %v1074 = vrot.slane %v1073, 4
        %v1076 = vshll.u32 %v964, 16
        %v1078 = vrot.slane %v1076, 5
        %v1079 = vsel %vm967, %v1074, %v1078
        %v1080 = vld [vmem:[%s4 + $0x100] sm:$0xff]
        %v1081 = vld [vmem:[%s4 + $0x108] sm:$0xff]
        %v1082 = vld [vmem:[%s4 + $0x110] sm:$0xff]
        %v1083 = vld [vmem:[%s4 + $0x118] sm:$0xff]
        %v1084 = vld [vmem:[%s4 + $0x120] sm:$0xff]
        %v1085 = vld [vmem:[%s4 + $0x128] sm:$0xff]
        %v1086 = vld [vmem:[%s4 + $0x130] sm:$0xff]
        %v1087 = vld [vmem:[%s4 + $0x138] sm:$0xff]
        %v1088 = vld [vmem:[%s4 + $0x140] sm:$0xff]
        %v1089 = vld [vmem:[%s4 + $0x148] sm:$0xff]
        %v1090 = vld [vmem:[%s4 + $0x150] sm:$0xff]
        %v1091 = vld [vmem:[%s4 + $0x158] sm:$0xff]
        %v1092 = vld [vmem:[%s4 + $0x160] sm:$0xff]
        %v1093 = vld [vmem:[%s4 + $0x168] sm:$0xff]
        %v1094 = vld [vmem:[%s4 + $0x170] sm:$0xff]
        %v1095 = vld [vmem:[%s4 + $0x178] sm:$0xff]
        %v1096 = vld [vmem:[%s4 + $0x180] sm:$0xff]
        %v1097 = vld [vmem:[%s4 + $0x188] sm:$0xff]
        %v1098 = vld [vmem:[%s4 + $0x190] sm:$0xff]
        %v1099 = vld [vmem:[%s4 + $0x198] sm:$0xff]
        %v1100 = vld [vmem:[%s4 + $0x1a0] sm:$0xff]
        %v1101 = vld [vmem:[%s4 + $0x1a8] sm:$0xff]
        %v1102 = vld [vmem:[%s4 + $0x1b0] sm:$0xff]
        %v1103 = vld [vmem:[%s4 + $0x1b8] sm:$0xff]
        %v1104 = vld [vmem:[%s4 + $0x1c0] sm:$0xff]
        %v1105 = vld [vmem:[%s4 + $0x1c8] sm:$0xff]
        %v1106 = vld [vmem:[%s4 + $0x1d0] sm:$0xff]
        %v1107 = vld [vmem:[%s4 + $0x1d8] sm:$0xff]
        %v1108 = vld [vmem:[%s4 + $0x1e0] sm:$0xff]
        %v1109 = vld [vmem:[%s4 + $0x1e8] sm:$0xff]
        %v1110 = vld [vmem:[%s4 + $0x1f0] sm:$0xff]
        %v1111 = vld [vmem:[%s4 + $0x1f8] sm:$0xff]
        %v1112 = vunpack.c.l.b16 %v981
        %v1113 = vunpack.c.h.b16 %v981
        %v1114 = vunpack.c.l.b16 %v995
        %v1115 = vunpack.c.h.b16 %v995
        %v1116 = vunpack.c.l.b16 %v1009
        %v1117 = vunpack.c.h.b16 %v1009
        %v1118 = vunpack.c.l.b16 %v1023
        %v1119 = vunpack.c.h.b16 %v1023
        %v1120 = vunpack.c.l.b16 %v1037
        %v1121 = vunpack.c.h.b16 %v1037
        %v1122 = vunpack.c.l.b16 %v1051
        %v1123 = vunpack.c.h.b16 %v1051
        %v1124 = vunpack.c.l.b16 %v1065
        %v1125 = vunpack.c.h.b16 %v1065
        %v1126 = vunpack.c.l.b16 %v1079
        %v1127 = vunpack.c.h.b16 %v1079
        %v1128 = vpack.c.b16 %v1114, %v1112
        %v1129 = vpack.c.b16 %v1115, %v1113
        %v1130 = vpack.c.b16 %v1118, %v1116
        %v1131 = vpack.c.b16 %v1119, %v1117
        %v1132 = vpack.c.b16 %v1122, %v1120
        %v1133 = vpack.c.b16 %v1123, %v1121
        %v1134 = vpack.c.b16 %v1126, %v1124
        %v1135 = vpack.c.b16 %v1127, %v1125
        %v1176 = vunpack.c.l.b16 %v1080
        %v1177 = vunpack.c.h.b16 %v1080
        %v1178 = vunpack.c.l.b16 %v1081
        %v1179 = vunpack.c.h.b16 %v1081
        %v1180 = vunpack.c.l.b16 %v1082
        %v1181 = vunpack.c.h.b16 %v1082
        %v1182 = vunpack.c.l.b16 %v1083
        %v1183 = vunpack.c.h.b16 %v1083
        %v1184 = vunpack.c.l.b16 %v1084
        %v1185 = vunpack.c.h.b16 %v1084
        %v1186 = vunpack.c.l.b16 %v1085
        %v1187 = vunpack.c.h.b16 %v1085
        %v1188 = vunpack.c.l.b16 %v1086
        %v1189 = vunpack.c.h.b16 %v1086
        %v1190 = vunpack.c.l.b16 %v1087
        %v1191 = vunpack.c.h.b16 %v1087
        %v1192 = vunpack.c.l.b16 %v1088
        %v1193 = vunpack.c.h.b16 %v1088
        %v1194 = vunpack.c.l.b16 %v1089
        %v1195 = vunpack.c.h.b16 %v1089
        %v1196 = vunpack.c.l.b16 %v1090
        %v1197 = vunpack.c.h.b16 %v1090
        %v1198 = vunpack.c.l.b16 %v1091
        %v1199 = vunpack.c.h.b16 %v1091
        %v1200 = vunpack.c.l.b16 %v1092
        %v1201 = vunpack.c.h.b16 %v1092
        %v1202 = vunpack.c.l.b16 %v1093
        %v1203 = vunpack.c.h.b16 %v1093
        %v1204 = vunpack.c.l.b16 %v1094
        %v1205 = vunpack.c.h.b16 %v1094
        %v1206 = vunpack.c.l.b16 %v1095
        %v1207 = vunpack.c.h.b16 %v1095
        %v1208 = vunpack.c.l.b16 %v1096
        %v1209 = vunpack.c.h.b16 %v1096
        %v1210 = vunpack.c.l.b16 %v1097
        %v1211 = vunpack.c.h.b16 %v1097
        %v1212 = vunpack.c.l.b16 %v1098
        %v1213 = vunpack.c.h.b16 %v1098
        %v1214 = vunpack.c.l.b16 %v1099
        %v1215 = vunpack.c.h.b16 %v1099
        %v1216 = vunpack.c.l.b16 %v1100
        %v1217 = vunpack.c.h.b16 %v1100
        %v1218 = vunpack.c.l.b16 %v1101
        %v1219 = vunpack.c.h.b16 %v1101
        %v1220 = vunpack.c.l.b16 %v1102
        %v1221 = vunpack.c.h.b16 %v1102
        %v1222 = vunpack.c.l.b16 %v1103
        %v1223 = vunpack.c.h.b16 %v1103
        %v1224 = vunpack.c.l.b16 %v1104
        %v1225 = vunpack.c.h.b16 %v1104
        %v1226 = vunpack.c.l.b16 %v1105
        %v1227 = vunpack.c.h.b16 %v1105
        %v1228 = vunpack.c.l.b16 %v1106
        %v1229 = vunpack.c.h.b16 %v1106
        %v1230 = vunpack.c.l.b16 %v1107
        %v1231 = vunpack.c.h.b16 %v1107
        %v1232 = vunpack.c.l.b16 %v1108
        %v1233 = vunpack.c.h.b16 %v1108
        %v1234 = vunpack.c.l.b16 %v1109
        %v1235 = vunpack.c.h.b16 %v1109
        %v1236 = vunpack.c.l.b16 %v1110
        %v1237 = vunpack.c.h.b16 %v1110
        %v1238 = vunpack.c.l.b16 %v1111
        %v1239 = vunpack.c.h.b16 %v1111
        %v1240 = vpack.c.b16 %v1178, %v1176
        %v1241 = vpack.c.b16 %v1179, %v1177
        %v1242 = vpack.c.b16 %v1182, %v1180
        %v1243 = vpack.c.b16 %v1183, %v1181
        %v1244 = vpack.c.b16 %v1186, %v1184
        %v1245 = vpack.c.b16 %v1187, %v1185
        %v1246 = vpack.c.b16 %v1190, %v1188
        %v1247 = vpack.c.b16 %v1191, %v1189
        %v1248 = vpack.c.b16 %v1194, %v1192
        %v1249 = vpack.c.b16 %v1195, %v1193
        %v1250 = vpack.c.b16 %v1198, %v1196
        %v1251 = vpack.c.b16 %v1199, %v1197
        %v1252 = vpack.c.b16 %v1202, %v1200
        %v1253 = vpack.c.b16 %v1203, %v1201
        %v1254 = vpack.c.b16 %v1206, %v1204
        %v1255 = vpack.c.b16 %v1207, %v1205
        %v1256 = vpack.c.b16 %v1210, %v1208
        %v1257 = vpack.c.b16 %v1211, %v1209
        %v1258 = vpack.c.b16 %v1214, %v1212
        %v1259 = vpack.c.b16 %v1215, %v1213
        %v1260 = vpack.c.b16 %v1218, %v1216
        %v1261 = vpack.c.b16 %v1219, %v1217
        %v1262 = vpack.c.b16 %v1222, %v1220
        %v1263 = vpack.c.b16 %v1223, %v1221
        %v1264 = vpack.c.b16 %v1226, %v1224
        %v1265 = vpack.c.b16 %v1227, %v1225
        %v1266 = vpack.c.b16 %v1230, %v1228
        %v1267 = vpack.c.b16 %v1231, %v1229
        %v1268 = vpack.c.b16 %v1234, %v1232
        %v1269 = vpack.c.b16 %v1235, %v1233
        %v1270 = vpack.c.b16 %v1238, %v1236
        %v1271 = vpack.c.b16 %v1239, %v1237
        %1304 = vmatprep.subr.bf16.mxu0 %v1241
        %1305 = vmatpush1.bf16.msra.mxu0 %v1240
        %1306 = vmatprep.subr.bf16.mxu0 %v1243
        %1307 = vmatpush1.bf16.msra.mxu0 %v1242
        %1308 = vmatprep.subr.bf16.mxu0 %v1245
        %1309 = vmatpush1.bf16.msra.mxu0 %v1244
        %1310 = vmatprep.subr.bf16.mxu0 %v1247
        %1311 = vmatpush1.bf16.msra.mxu0 %v1246
        %1312 = vmatprep.subr.bf16.mxu0 %v1249
        %1313 = vmatpush1.bf16.msra.mxu0 %v1248
        %1314 = vmatprep.subr.bf16.mxu0 %v1251
        %1315 = vmatpush1.bf16.msra.mxu0 %v1250
        %1316 = vmatprep.subr.bf16.mxu0 %v1253
        %1317 = vmatpush1.bf16.msra.mxu0 %v1252
        %1318 = vmatprep.subr.bf16.mxu0 %v1255
        %1319 = vmatpush1.bf16.msra.mxu0 %v1254
        %1320 = vmatprep.subr.bf16.mxu0 %v1257
        %1321 = vmatpush1.bf16.msra.mxu0 %v1256
        %1322 = vmatprep.subr.bf16.mxu0 %v1259
        %1323 = vmatpush1.bf16.msra.mxu0 %v1258
        %1324 = vmatprep.subr.bf16.mxu0 %v1261
        %1325 = vmatpush1.bf16.msra.mxu0 %v1260
        %1326 = vmatprep.subr.bf16.mxu0 %v1263
        %1327 = vmatpush1.bf16.msra.mxu0 %v1262
        %1328 = vmatprep.subr.bf16.mxu0 %v1265
        %1329 = vmatpush1.bf16.msra.mxu0 %v1264
        %1330 = vmatprep.subr.bf16.mxu0 %v1267
        %1331 = vmatpush1.bf16.msra.mxu0 %v1266
        %1332 = vmatprep.subr.bf16.mxu0 %v1269
        %1333 = vmatpush1.bf16.msra.mxu0 %v1268
        %1334 = vmatprep.subr.bf16.mxu0 %v1271
        %1335 = vmatpush1.bf16.msra.mxu0 %v1270
        %1336 = vmatprep.mubr.bf16.mxu0 %v1129
        %1337 = vmatmul.mubr.bf16.gmra.mrb[0].mxu0 %v1128
        %v1338 = vpop.f32.mrb[0].mxu0
        %v1339 = vadd.f32 0.0, %v1338
        %v1340 = vpop.f32.mrb[0].mxu0
        %v1341 = vadd.f32 0.0, %v1340
        %v1342 = vpop.f32.mrb[0].mxu0
        %v1343 = vadd.f32 0.0, %v1342
        %v1344 = vpop.f32.mrb[0].mxu0
        %v1345 = vadd.f32 0.0, %v1344
        %1346 = vmatprep.mubr.bf16.mxu0 %v1131
        %1347 = vmatmul.mubr.bf16.gmra.mrb[0].mxu0 %v1130
        %v1348 = vpop.f32.mrb[0].mxu0
        %v1349 = vadd.f32 0.0, %v1348
        %v1350 = vpop.f32.mrb[0].mxu0
        %v1351 = vadd.f32 0.0, %v1350
        %v1352 = vpop.f32.mrb[0].mxu0
        %v1353 = vadd.f32 0.0, %v1352
        %v1354 = vpop.f32.mrb[0].mxu0
        %v1355 = vadd.f32 0.0, %v1354
        %1356 = vmatprep.mubr.bf16.mxu0 %v1133
        %1357 = vmatmul.mubr.bf16.gmra.mrb[0].mxu0 %v1132
        %v1358 = vpop.f32.mrb[0].mxu0
        %v1359 = vadd.f32 0.0, %v1358
        %v1360 = vpop.f32.mrb[0].mxu0
        %v1361 = vadd.f32 0.0, %v1360
        %v1362 = vpop.f32.mrb[0].mxu0
        %v1363 = vadd.f32 0.0, %v1362
        %v1364 = vpop.f32.mrb[0].mxu0
        %v1365 = vadd.f32 0.0, %v1364
        %1366 = vmatprep.mubr.bf16.mxu0 %v1135
        %1367 = vmatmul.mubr.bf16.gmra.mrb[0].mxu0 %v1134
        %v1368 = vpop.f32.mrb[0].mxu0
        %v1369 = vadd.f32 0.0, %v1368
        %v1370 = vpop.f32.mrb[0].mxu0
        %v1371 = vadd.f32 0.0, %v1370
        %v1372 = vpop.f32.mrb[0].mxu0
        %v1373 = vadd.f32 0.0, %v1372
        %v1374 = vpop.f32.mrb[0].mxu0
        %v1375 = vadd.f32 0.0, %v1374
        %1376 = vdwg.mxu0
        %v1377 = vpack.c.b16 %v888, %v887
        %v1378 = vpack.c.b16 %v889, %v887
        %v1379 = vpack.c.b16 %v892, %v890
        %v1380 = vpack.c.b16 %v893, %v891
        %v1381 = vpack.c.b16 %v896, %v894
        %v1382 = vpack.c.b16 %v897, %v895
        %v1383 = vpack.c.b16 %v900, %v898
        %v1384 = vpack.c.b16 %v901, %v899
        %v1425 = vunpack.c.l.b16 %v902
        %v1426 = vunpack.c.h.b16 %v902
        %v1427 = vunpack.c.l.b16 %v903
        %v1428 = vunpack.c.h.b16 %v903
        %v1429 = vunpack.c.l.b16 %v904
        %v1430 = vunpack.c.h.b16 %v904
        %v1431 = vunpack.c.l.b16 %v905
        %v1432 = vunpack.c.h.b16 %v905
        %v1433 = vunpack.c.l.b16 %v906
        %v1434 = vunpack.c.h.b16 %v906
        %v1435 = vunpack.c.l.b16 %v907
        %v1436 = vunpack.c.h.b16 %v907
        %v1437 = vunpack.c.l.b16 %v908
        %v1438 = vunpack.c.h.b16 %v908
        %v1439 = vunpack.c.l.b16 %v909
        %v1440 = vunpack.c.h.b16 %v909
        %v1441 = vunpack.c.l.b16 %v910
        %v1442 = vunpack.c.h.b16 %v910
        %v1443 = vunpack.c.l.b16 %v911
        %v1444 = vunpack.c.h.b16 %v911
        %v1445 = vunpack.c.l.b16 %v912
        %v1446 = vunpack.c.h.b16 %v912
        %v1447 = vunpack.c.l.b16 %v913
        %v1448 = vunpack.c.h.b16 %v913
        %v1449 = vunpack.c.l.b16 %v914
        %v1450 = vunpack.c.h.b16 %v914
        %v1451 = vunpack.c.l.b16 %v915
        %v1452 = vunpack.c.h.b16 %v915
        %v1453 = vunpack.c.l.b16 %v916
        %v1454 = vunpack.c.h.b16 %v916
        %v1455 = vunpack.c.l.b16 %v917
        %v1456 = vunpack.c.h.b16 %v917
        %v1457 = vunpack.c.l.b16 %v918
        %v1458 = vunpack.c.h.b16 %v918
        %v1459 = vunpack.c.l.b16 %v919
        %v1460 = vunpack.c.h.b16 %v919
        %v1461 = vunpack.c.l.b16 %v920
        %v1462 = vunpack.c.h.b16 %v920
        %v1463 = vunpack.c.l.b16 %v921
        %v1464 = vunpack.c.h.b16 %v921
        %v1465 = vunpack.c.l.b16 %v922
        %v1466 = vunpack.c.h.b16 %v922
        %v1467 = vunpack.c.l.b16 %v923
        %v1468 = vunpack.c.h.b16 %v923
        %v1469 = vunpack.c.l.b16 %v924
        %v1470 = vunpack.c.h.b16 %v924
        %v1471 = vunpack.c.l.b16 %v925
        %v1472 = vunpack.c.h.b16 %v925
        %v1473 = vunpack.c.l.b16 %v926
        %v1474 = vunpack.c.h.b16 %v926
        %v1475 = vunpack.c.l.b16 %v927
        %v1476 = vunpack.c.h.b16 %v927
        %v1477 = vunpack.c.l.b16 %v928
        %v1478 = vunpack.c.h.b16 %v928
        %v1479 = vunpack.c.l.b16 %v929
        %v1480 = vunpack.c.h.b16 %v929
        %v1481 = vunpack.c.l.b16 %v930
        %v1482 = vunpack.c.h.b16 %v930
        %v1483 = vunpack.c.l.b16 %v931
        %v1484 = vunpack.c.h.b16 %v931
        %v1485 = vunpack.c.l.b16 %v932
        %v1486 = vunpack.c.h.b16 %v932
        %v1487 = vunpack.c.l.b16 %v933
        %v1488 = vunpack.c.h.b16 %v933
        %v1489 = vpack.c.b16 %v1427, %v1425
        %v1490 = vpack.c.b16 %v1428, %v1426
        %v1491 = vpack.c.b16 %v1431, %v1429
        %v1492 = vpack.c.b16 %v1432, %v1430
        %v1493 = vpack.c.b16 %v1435, %v1433
        %v1494 = vpack.c.b16 %v1436, %v1434
        %v1495 = vpack.c.b16 %v1439, %v1437
        %v1496 = vpack.c.b16 %v1440, %v1438
        %v1497 = vpack.c.b16 %v1443, %v1441
        %v1498 = vpack.c.b16 %v1444, %v1442
        %v1499 = vpack.c.b16 %v1447, %v1445
        %v1500 = vpack.c.b16 %v1448, %v1446
        %v1501 = vpack.c.b16 %v1451, %v1449
        %v1502 = vpack.c.b16 %v1452, %v1450
        %v1503 = vpack.c.b16 %v1455, %v1453
        %v1504 = vpack.c.b16 %v1456, %v1454
        %v1505 = vpack.c.b16 %v1459, %v1457
        %v1506 = vpack.c.b16 %v1460, %v1458
        %v1507 = vpack.c.b16 %v1463, %v1461
        %v1508 = vpack.c.b16 %v1464, %v1462
        %v1509 = vpack.c.b16 %v1467, %v1465
        %v1510 = vpack.c.b16 %v1468, %v1466
        %v1511 = vpack.c.b16 %v1471, %v1469
        %v1512 = vpack.c.b16 %v1472, %v1470
        %v1513 = vpack.c.b16 %v1475, %v1473
        %v1514 = vpack.c.b16 %v1476, %v1474
        %v1515 = vpack.c.b16 %v1479, %v1477
        %v1516 = vpack.c.b16 %v1480, %v1478
        %v1517 = vpack.c.b16 %v1483, %v1481
        %v1518 = vpack.c.b16 %v1484, %v1482
        %v1519 = vpack.c.b16 %v1487, %v1485
        %v1520 = vpack.c.b16 %v1488, %v1486
        %1553 = vmatprep.subr.bf16.mxu0 %v1490
        %1554 = vmatpush1.bf16.msra.mxu0 %v1489
        %1555 = vmatprep.subr.bf16.mxu0 %v1492
        %1556 = vmatpush1.bf16.msra.mxu0 %v1491
        %1557 = vmatprep.subr.bf16.mxu0 %v1494
        %1558 = vmatpush1.bf16.msra.mxu0 %v1493
        %1559 = vmatprep.subr.bf16.mxu0 %v1496
        %1560 = vmatpush1.bf16.msra.mxu0 %v1495
        %1561 = vmatprep.subr.bf16.mxu0 %v1498
        %1562 = vmatpush1.bf16.msra.mxu0 %v1497
        %1563 = vmatprep.subr.bf16.mxu0 %v1500
        %1564 = vmatpush1.bf16.msra.mxu0 %v1499
        %1565 = vmatprep.subr.bf16.mxu0 %v1502
        %1566 = vmatpush1.bf16.msra.mxu0 %v1501
        %1567 = vmatprep.subr.bf16.mxu0 %v1504
        %1568 = vmatpush1.bf16.msra.mxu0 %v1503
        %1569 = vmatprep.subr.bf16.mxu0 %v1506
        %1570 = vmatpush1.bf16.msra.mxu0 %v1505
        %1571 = vmatprep.subr.bf16.mxu0 %v1508
        %1572 = vmatpush1.bf16.msra.mxu0 %v1507
        %1573 = vmatprep.subr.bf16.mxu0 %v1510
        %1574 = vmatpush1.bf16.msra.mxu0 %v1509
        %1575 = vmatprep.subr.bf16.mxu0 %v1512
        %1576 = vmatpush1.bf16.msra.mxu0 %v1511
        %1577 = vmatprep.subr.bf16.mxu0 %v1514
        %1578 = vmatpush1.bf16.msra.mxu0 %v1513
        %1579 = vmatprep.subr.bf16.mxu0 %v1516
        %1580 = vmatpush1.bf16.msra.mxu0 %v1515
        %1581 = vmatprep.subr.bf16.mxu0 %v1518
        %1582 = vmatpush1.bf16.msra.mxu0 %v1517
        %1583 = vmatprep.subr.bf16.mxu0 %v1520
        %1584 = vmatpush1.bf16.msra.mxu0 %v1519
        %1585 = vmatprep.mubr.bf16.mxu0 %v1378
        %1586 = vmatmul.mubr.bf16.gmra.mrb[0].mxu0 %v1377
        %v1587 = vpop.f32.mrb[0].mxu0
        %v1588 = vadd.f32 %v1339, %v1587
        %v1589 = vpop.f32.mrb[0].mxu0
        %v1590 = vadd.f32 %v1341, %v1589
        %v1591 = vpop.f32.mrb[0].mxu0
        %v1592 = vadd.f32 %v1343, %v1591
        %v1593 = vpop.f32.mrb[0].mxu0
        %v1594 = vadd.f32 %v1345, %v1593
        %1595 = vmatprep.mubr.bf16.mxu0 %v1380
        %1596 = vmatmul.mubr.bf16.gmra.mrb[0].mxu0 %v1379
        %v1597 = vpop.f32.mrb[0].mxu0
        %v1598 = vadd.f32 %v1349, %v1597
        %v1599 = vpop.f32.mrb[0].mxu0
        %v1600 = vadd.f32 %v1351, %v1599
        %v1601 = vpop.f32.mrb[0].mxu0
        %v1602 = vadd.f32 %v1353, %v1601
        %v1603 = vpop.f32.mrb[0].mxu0
        %v1604 = vadd.f32 %v1355, %v1603
        %1605 = vmatprep.mubr.bf16.mxu0 %v1382
        %1606 = vmatmul.mubr.bf16.gmra.mrb[0].mxu0 %v1381
        %v1607 = vpop.f32.mrb[0].mxu0
        %v1608 = vadd.f32 %v1359, %v1607
        %v1609 = vpop.f32.mrb[0].mxu0
        %v1610 = vadd.f32 %v1361, %v1609
        %v1611 = vpop.f32.mrb[0].mxu0
        %v1612 = vadd.f32 %v1363, %v1611
        %v1613 = vpop.f32.mrb[0].mxu0
        %v1614 = vadd.f32 %v1365, %v1613
        %1615 = vmatprep.mubr.bf16.mxu0 %v1384
        %1616 = vmatmul.mubr.bf16.gmra.mrb[0].mxu0 %v1383
        %v1617 = vpop.f32.mrb[0].mxu0
        %v1618 = vadd.f32 %v1369, %v1617
        %v1619 = vpop.f32.mrb[0].mxu0
        %v1620 = vadd.f32 %v1371, %v1619
        %v1621 = vpop.f32.mrb[0].mxu0
        %v1622 = vadd.f32 %v1373, %v1621
        %v1623 = vpop.f32.mrb[0].mxu0
        %v1624 = vadd.f32 %v1375, %v1623
        %1625 = vdwg.mxu0
        %vm1626 = vcmask 1042432
        %vm1627 = vcmask 1046532
        %vm1628 = vmor %vm1626, %vm1627
        %v1629 = vrot.slane %v949, 5
        %v1630 = vrot.slane %v1629, 4
        %v1631 = vrot.slane %v950, 5
        %v1632 = vsel %vm1628, %v1630, %v1631
        %v1633 = vrot.slane %v951, 5
        %v1634 = vrot.slane %v1633, 4
        %v1635 = vrot.slane %v952, 5
        %v1636 = vsel %vm1628, %v1634, %v1635
        %v1637 = vrot.slane %v953, 5
        %v1638 = vrot.slane %v1637, 4
        %v1639 = vrot.slane %v954, 5
        %v1640 = vsel %vm1628, %v1638, %v1639
        %v1641 = vrot.slane %v955, 5
        %v1642 = vrot.slane %v1641, 4
        %v1643 = vrot.slane %v956, 5
        %v1644 = vsel %vm1628, %v1642, %v1643
        %v1645 = vrot.slane %v957, 5
        %v1646 = vrot.slane %v1645, 4
        %v1647 = vrot.slane %v958, 5
        %v1648 = vsel %vm1628, %v1646, %v1647
        %v1649 = vrot.slane %v959, 5
        %v1650 = vrot.slane %v1649, 4
        %v1651 = vrot.slane %v960, 5
        %v1652 = vsel %vm1628, %v1650, %v1651
        %v1653 = vrot.slane %v961, 5
        %v1654 = vrot.slane %v1653, 4
        %v1655 = vrot.slane %v962, 5
        %v1656 = vsel %vm1628, %v1654, %v1655
        %v1657 = vrot.slane %v963, 5
        %v1658 = vrot.slane %v1657, 4
        %v1659 = vrot.slane %v964, 5
        %v1660 = vsel %vm1628, %v1658, %v1659
        %v1661 = vld [vmem:[%s4 + $0x200] sm:$0xff]
        %v1662 = vld [vmem:[%s4 + $0x208] sm:$0xff]
        %v1663 = vld [vmem:[%s4 + $0x210] sm:$0xff]
        %v1664 = vld [vmem:[%s4 + $0x218] sm:$0xff]
        %v1665 = vld [vmem:[%s4 + $0x220] sm:$0xff]
        %v1666 = vld [vmem:[%s4 + $0x228] sm:$0xff]
        %v1667 = vld [vmem:[%s4 + $0x230] sm:$0xff]
        %v1668 = vld [vmem:[%s4 + $0x238] sm:$0xff]
        %v1669 = vld [vmem:[%s4 + $0x240] sm:$0xff]
        %v1670 = vld [vmem:[%s4 + $0x248] sm:$0xff]
        %v1671 = vld [vmem:[%s4 + $0x250] sm:$0xff]
        %v1672 = vld [vmem:[%s4 + $0x258] sm:$0xff]
        %v1673 = vld [vmem:[%s4 + $0x260] sm:$0xff]
        %v1674 = vld [vmem:[%s4 + $0x268] sm:$0xff]
        %v1675 = vld [vmem:[%s4 + $0x270] sm:$0xff]
        %v1676 = vld [vmem:[%s4 + $0x278] sm:$0xff]
        %v1677 = vld [vmem:[%s4 + $0x280] sm:$0xff]
        %v1678 = vld [vmem:[%s4 + $0x288] sm:$0xff]
        %v1679 = vld [vmem:[%s4 + $0x290] sm:$0xff]
        %v1680 = vld [vmem:[%s4 + $0x298] sm:$0xff]
        %v1681 = vld [vmem:[%s4 + $0x2a0] sm:$0xff]
        %v1682 = vld [vmem:[%s4 + $0x2a8] sm:$0xff]
        %v1683 = vld [vmem:[%s4 + $0x2b0] sm:$0xff]
        %v1684 = vld [vmem:[%s4 + $0x2b8] sm:$0xff]
        %v1685 = vld [vmem:[%s4 + $0x2c0] sm:$0xff]
        %v1686 = vld [vmem:[%s4 + $0x2c8] sm:$0xff]
        %v1687 = vld [vmem:[%s4 + $0x2d0] sm:$0xff]
        %v1688 = vld [vmem:[%s4 + $0x2d8] sm:$0xff]
        %v1689 = vld [vmem:[%s4 + $0x2e0] sm:$0xff]
        %v1690 = vld [vmem:[%s4 + $0x2e8] sm:$0xff]
        %v1691 = vld [vmem:[%s4 + $0x2f0] sm:$0xff]
        %v1692 = vld [vmem:[%s4 + $0x2f8] sm:$0xff]
        %v1693 = vunpack.c.l.b16 %v1632
        %v1694 = vunpack.c.h.b16 %v1632
        %v1695 = vunpack.c.l.b16 %v1636
        %v1696 = vunpack.c.h.b16 %v1636
        %v1697 = vunpack.c.l.b16 %v1640
        %v1698 = vunpack.c.h.b16 %v1640
        %v1699 = vunpack.c.l.b16 %v1644
        %v1700 = vunpack.c.h.b16 %v1644
        %v1701 = vunpack.c.l.b16 %v1648
        %v1702 = vunpack.c.h.b16 %v1648
        %v1703 = vunpack.c.l.b16 %v1652
        %v1704 = vunpack.c.h.b16 %v1652
        %v1705 = vunpack.c.l.b16 %v1656
        %v1706 = vunpack.c.h.b16 %v1656
        %v1707 = vunpack.c.l.b16 %v1660
        %v1708 = vunpack.c.h.b16 %v1660
        %v1709 = vpack.c.b16 %v1695, %v1693
        %v1710 = vpack.c.b16 %v1696, %v1694
        %v1711 = vpack.c.b16 %v1699, %v1697
        %v1712 = vpack.c.b16 %v1700, %v1698
        %v1713 = vpack.c.b16 %v1703, %v1701
        %v1714 = vpack.c.b16 %v1704, %v1702
        %v1715 = vpack.c.b16 %v1707, %v1705
        %v1716 = vpack.c.b16 %v1708, %v1706
        %v1757 = vunpack.c.l.b16 %v1661
        %v1758 = vunpack.c.h.b16 %v1661
        %v1759 = vunpack.c.l.b16 %v1662
        %v1760 = vunpack.c.h.b16 %v1662
        %v1761 = vunpack.c.l.b16 %v1663
        %v1762 = vunpack.c.h.b16 %v1663
        %v1763 = vunpack.c.l.b16 %v1664
        %v1764 = vunpack.c.h.b16 %v1664
        %v1765 = vunpack.c.l.b16 %v1665
        %v1766 = vunpack.c.h.b16 %v1665
        %v1767 = vunpack.c.l.b16 %v1666
        %v1768 = vunpack.c.h.b16 %v1666
        %v1769 = vunpack.c.l.b16 %v1667
        %v1770 = vunpack.c.h.b16 %v1667
        %v1771 = vunpack.c.l.b16 %v1668
        %v1772 = vunpack.c.h.b16 %v1668
        %v1773 = vunpack.c.l.b16 %v1669
        %v1774 = vunpack.c.h.b16 %v1669
        %v1775 = vunpack.c.l.b16 %v1670
        %v1776 = vunpack.c.h.b16 %v1670
        %v1777 = vunpack.c.l.b16 %v1671
        %v1778 = vunpack.c.h.b16 %v1671
        %v1779 = vunpack.c.l.b16 %v1672
        %v1780 = vunpack.c.h.b16 %v1672
        %v1781 = vunpack.c.l.b16 %v1673
        %v1782 = vunpack.c.h.b16 %v1673
        %v1783 = vunpack.c.l.b16 %v1674
        %v1784 = vunpack.c.h.b16 %v1674
        %v1785 = vunpack.c.l.b16 %v1675
        %v1786 = vunpack.c.h.b16 %v1675
        %v1787 = vunpack.c.l.b16 %v1676
        %v1788 = vunpack.c.h.b16 %v1676
        %v1789 = vunpack.c.l.b16 %v1677
        %v1790 = vunpack.c.h.b16 %v1677
        %v1791 = vunpack.c.l.b16 %v1678
        %v1792 = vunpack.c.h.b16 %v1678
        %v1793 = vunpack.c.l.b16 %v1679
        %v1794 = vunpack.c.h.b16 %v1679
        %v1795 = vunpack.c.l.b16 %v1680
        %v1796 = vunpack.c.h.b16 %v1680
        %v1797 = vunpack.c.l.b16 %v1681
        %v1798 = vunpack.c.h.b16 %v1681
        %v1799 = vunpack.c.l.b16 %v1682
        %v1800 = vunpack.c.h.b16 %v1682
        %v1801 = vunpack.c.l.b16 %v1683
        %v1802 = vunpack.c.h.b16 %v1683
        %v1803 = vunpack.c.l.b16 %v1684
        %v1804 = vunpack.c.h.b16 %v1684
        %v1805 = vunpack.c.l.b16 %v1685
        %v1806 = vunpack.c.h.b16 %v1685
        %v1807 = vunpack.c.l.b16 %v1686
        %v1808 = vunpack.c.h.b16 %v1686
        %v1809 = vunpack.c.l.b16 %v1687
        %v1810 = vunpack.c.h.b16 %v1687
        %v1811 = vunpack.c.l.b16 %v1688
        %v1812 = vunpack.c.h.b16 %v1688
        %v1813 = vunpack.c.l.b16 %v1689
        %v1814 = vunpack.c.h.b16 %v1689
        %v1815 = vunpack.c.l.b16 %v1690
        %v1816 = vunpack.c.h.b16 %v1690
        %v1817 = vunpack.c.l.b16 %v1691
        %v1818 = vunpack.c.h.b16 %v1691
        %v1819 = vunpack.c.l.b16 %v1692
        %v1820 = vunpack.c.h.b16 %v1692
        %v1821 = vpack.c.b16 %v1759, %v1757
        %v1822 = vpack.c.b16 %v1760, %v1758
        %v1823 = vpack.c.b16 %v1763, %v1761
        %v1824 = vpack.c.b16 %v1764, %v1762
        %v1825 = vpack.c.b16 %v1767, %v1765
        %v1826 = vpack.c.b16 %v1768, %v1766
        %v1827 = vpack.c.b16 %v1771, %v1769
        %v1828 = vpack.c.b16 %v1772, %v1770
        %v1829 = vpack.c.b16 %v1775, %v1773
        %v1830 = vpack.c.b16 %v1776, %v1774
        %v1831 = vpack.c.b16 %v1779, %v1777
        %v1832 = vpack.c.b16 %v1780, %v1778
        %v1833 = vpack.c.b16 %v1783, %v1781
        %v1834 = vpack.c.b16 %v1784, %v1782
        %v1835 = vpack.c.b16 %v1787, %v1785
        %v1836 = vpack.c.b16 %v1788, %v1786
        %v1837 = vpack.c.b16 %v1791, %v1789
        %v1838 = vpack.c.b16 %v1792, %v1790
        %v1839 = vpack.c.b16 %v1795, %v1793
        %v1840 = vpack.c.b16 %v1796, %v1794
        %v1841 = vpack.c.b16 %v1799, %v1797
        %v1842 = vpack.c.b16 %v1800, %v1798
        %v1843 = vpack.c.b16 %v1803, %v1801
        %v1844 = vpack.c.b16 %v1804, %v1802
        %v1845 = vpack.c.b16 %v1807, %v1805
        %v1846 = vpack.c.b16 %v1808, %v1806
        %v1847 = vpack.c.b16 %v1811, %v1809
        %v1848 = vpack.c.b16 %v1812, %v1810
        %v1849 = vpack.c.b16 %v1815, %v1813
        %v1850 = vpack.c.b16 %v1816, %v1814
        %v1851 = vpack.c.b16 %v1819, %v1817
        %v1852 = vpack.c.b16 %v1820, %v1818
        %1885 = vmatprep.subr.bf16.mxu0 %v1822
        %1886 = vmatpush1.bf16.msra.mxu0 %v1821
        %1887 = vmatprep.subr.bf16.mxu0 %v1824
        %1888 = vmatpush1.bf16.msra.mxu0 %v1823
        %1889 = vmatprep.subr.bf16.mxu0 %v1826
        %1890 = vmatpush1.bf16.msra.mxu0 %v1825
        %1891 = vmatprep.subr.bf16.mxu0 %v1828
        %1892 = vmatpush1.bf16.msra.mxu0 %v1827
        %1893 = vmatprep.subr.bf16.mxu0 %v1830
        %1894 = vmatpush1.bf16.msra.mxu0 %v1829
        %1895 = vmatprep.subr.bf16.mxu0 %v1832
        %1896 = vmatpush1.bf16.msra.mxu0 %v1831
        %1897 = vmatprep.subr.bf16.mxu0 %v1834
        %1898 = vmatpush1.bf16.msra.mxu0 %v1833
        %1899 = vmatprep.subr.bf16.mxu0 %v1836
        %1900 = vmatpush1.bf16.msra.mxu0 %v1835
        %1901 = vmatprep.subr.bf16.mxu0 %v1838
        %1902 = vmatpush1.bf16.msra.mxu0 %v1837
        %1903 = vmatprep.subr.bf16.mxu0 %v1840
        %1904 = vmatpush1.bf16.msra.mxu0 %v1839
        %1905 = vmatprep.subr.bf16.mxu0 %v1842
        %1906 = vmatpush1.bf16.msra.mxu0 %v1841
        %1907 = vmatprep.subr.bf16.mxu0 %v1844
        %1908 = vmatpush1.bf16.msra.mxu0 %v1843
        %1909 = vmatprep.subr.bf16.mxu0 %v1846
        %1910 = vmatpush1.bf16.msra.mxu0 %v1845
        %1911 = vmatprep.subr.bf16.mxu0 %v1848
        %1912 = vmatpush1.bf16.msra.mxu0 %v1847
        %1913 = vmatprep.subr.bf16.mxu0 %v1850
        %1914 = vmatpush1.bf16.msra.mxu0 %v1849
        %1915 = vmatprep.subr.bf16.mxu0 %v1852
        %1916 = vmatpush1.bf16.msra.mxu0 %v1851
        %1917 = vmatprep.mubr.bf16.mxu0 %v1710
        %1918 = vmatmul.mubr.bf16.gmra.mrb[0].mxu0 %v1709
        %v1919 = vpop.f32.mrb[0].mxu0
        %v1920 = vadd.f32 0.0, %v1919
        %v1921 = vpop.f32.mrb[0].mxu0
        %v1922 = vadd.f32 0.0, %v1921
        %v1923 = vpop.f32.mrb[0].mxu0
        %v1924 = vadd.f32 0.0, %v1923
        %v1925 = vpop.f32.mrb[0].mxu0
        %v1926 = vadd.f32 0.0, %v1925
        %1927 = vmatprep.mubr.bf16.mxu0 %v1712
        %1928 = vmatmul.mubr.bf16.gmra.mrb[0].mxu0 %v1711
        %v1929 = vpop.f32.mrb[0].mxu0
        %v1930 = vadd.f32 0.0, %v1929
        %v1931 = vpop.f32.mrb[0].mxu0
        %v1932 = vadd.f32 0.0, %v1931
        %v1933 = vpop.f32.mrb[0].mxu0
        %v1934 = vadd.f32 0.0, %v1933
        %v1935 = vpop.f32.mrb[0].mxu0
        %v1936 = vadd.f32 0.0, %v1935
        %1937 = vmatprep.mubr.bf16.mxu0 %v1714
        %1938 = vmatmul.mubr.bf16.gmra.mrb[0].mxu0 %v1713
        %v1939 = vpop.f32.mrb[0].mxu0
        %v1940 = vadd.f32 0.0, %v1939
        %v1941 = vpop.f32.mrb[0].mxu0
        %v1942 = vadd.f32 0.0, %v1941
        %v1943 = vpop.f32.mrb[0].mxu0
        %v1944 = vadd.f32 0.0, %v1943
        %v1945 = vpop.f32.mrb[0].mxu0
        %v1946 = vadd.f32 0.0, %v1945
        %1947 = vmatprep.mubr.bf16.mxu0 %v1716
        %1948 = vmatmul.mubr.bf16.gmra.mrb[0].mxu0 %v1715
        %v1949 = vpop.f32.mrb[0].mxu0
        %v1950 = vadd.f32 0.0, %v1949
        %v1951 = vpop.f32.mrb[0].mxu0
        %v1952 = vadd.f32 0.0, %v1951
        %v1953 = vpop.f32.mrb[0].mxu0
        %v1954 = vadd.f32 0.0, %v1953
        %v1955 = vpop.f32.mrb[0].mxu0
        %v1956 = vadd.f32 0.0, %v1955
        %1957 = vdwg.mxu0
        %v1958 = vadd.f32 %v1588, %v1920
        %v1959 = vadd.f32 %v1590, %v1922
        %v1960 = vadd.f32 %v1592, %v1924
        %v1961 = vadd.f32 %v1594, %v1926
        %v1962 = vadd.f32 %v1598, %v1930
        %v1963 = vadd.f32 %v1600, %v1932
        %v1964 = vadd.f32 %v1602, %v1934
        %v1965 = vadd.f32 %v1604, %v1936
        %v1966 = vadd.f32 %v1608, %v1940
        %v1967 = vadd.f32 %v1610, %v1942
        %v1968 = vadd.f32 %v1612, %v1944
        %v1969 = vadd.f32 %v1614, %v1946
        %v1970 = vadd.f32 %v1618, %v1950
        %v1971 = vadd.f32 %v1620, %v1952
        %v1972 = vadd.f32 %v1622, %v1954
        %v1973 = vadd.f32 %v1624, %v1956
        %v1976 = vunpack.c.l.b16 %v870
        %v1977 = vunpack.c.l.b16 %v871
        %v1978 = vld [vmem:[%s4 + $0x300] sm:$0xff]
        %v1979 = vld [vmem:[%s4 + $0x308] sm:$0xff]
        %v1980 = vld [vmem:[%s4 + $0x310] sm:$0xff]
        %v1981 = vld [vmem:[%s4 + $0x318] sm:$0xff]
        %v1982 = vld [vmem:[%s4 + $0x320] sm:$0xff]
        %v1983 = vld [vmem:[%s4 + $0x328] sm:$0xff]
        %v1984 = vld [vmem:[%s4 + $0x330] sm:$0xff]
        %v1985 = vld [vmem:[%s4 + $0x338] sm:$0xff]
        %v1986 = vld [vmem:[%s4 + $0x340] sm:$0xff]
        %v1987 = vld [vmem:[%s4 + $0x348] sm:$0xff]
        %v1988 = vld [vmem:[%s4 + $0x350] sm:$0xff]
        %v1989 = vld [vmem:[%s4 + $0x358] sm:$0xff]
        %v1990 = vld [vmem:[%s4 + $0x360] sm:$0xff]
        %v1991 = vld [vmem:[%s4 + $0x368] sm:$0xff]
        %v1992 = vld [vmem:[%s4 + $0x370] sm:$0xff]
        %v1993 = vld [vmem:[%s4 + $0x378] sm:$0xff]
        %v1994 = vld [vmem:[%s4 + $0x380] sm:$0xff]
        %v1995 = vld [vmem:[%s4 + $0x388] sm:$0xff]
        %v1996 = vld [vmem:[%s4 + $0x390] sm:$0xff]
        %v1997 = vld [vmem:[%s4 + $0x398] sm:$0xff]
        %v1998 = vld [vmem:[%s4 + $0x3a0] sm:$0xff]
        %v1999 = vld [vmem:[%s4 + $0x3a8] sm:$0xff]
        %v2000 = vld [vmem:[%s4 + $0x3b0] sm:$0xff]
        %v2001 = vld [vmem:[%s4 + $0x3b8] sm:$0xff]
        %v2002 = vld [vmem:[%s4 + $0x3c0] sm:$0xff]
        %v2003 = vld [vmem:[%s4 + $0x3c8] sm:$0xff]
        %v2004 = vld [vmem:[%s4 + $0x3d0] sm:$0xff]
        %v2005 = vld [vmem:[%s4 + $0x3d8] sm:$0xff]
        %v2006 = vld [vmem:[%s4 + $0x3e0] sm:$0xff]
        %v2007 = vld [vmem:[%s4 + $0x3e8] sm:$0xff]
        %v2008 = vld [vmem:[%s4 + $0x3f0] sm:$0xff]
        %v2009 = vld [vmem:[%s4 + $0x3f8] sm:$0xff]
        %v2010 = vpack.c.b16 %v890, %v888
        %v2011 = vpack.c.b16 %v891, %v889
        %v2012 = vpack.c.b16 %v894, %v892
        %v2013 = vpack.c.b16 %v895, %v893
        %v2014 = vpack.c.b16 %v898, %v896
        %v2015 = vpack.c.b16 %v899, %v897
        %v2016 = vpack.c.b16 %v1976, %v900
        %v2017 = vpack.c.b16 %v1977, %v901
        %v2058 = vunpack.c.l.b16 %v1978
        %v2059 = vunpack.c.h.b16 %v1978
        %v2060 = vunpack.c.l.b16 %v1979
        %v2061 = vunpack.c.h.b16 %v1979
        %v2062 = vunpack.c.l.b16 %v1980
        %v2063 = vunpack.c.h.b16 %v1980
        %v2064 = vunpack.c.l.b16 %v1981
        %v2065 = vunpack.c.h.b16 %v1981
        %v2066 = vunpack.c.l.b16 %v1982
        %v2067 = vunpack.c.h.b16 %v1982
        %v2068 = vunpack.c.l.b16 %v1983
        %v2069 = vunpack.c.h.b16 %v1983
        %v2070 = vunpack.c.l.b16 %v1984
        %v2071 = vunpack.c.h.b16 %v1984
        %v2072 = vunpack.c.l.b16 %v1985
        %v2073 = vunpack.c.h.b16 %v1985
        %v2074 = vunpack.c.l.b16 %v1986
        %v2075 = vunpack.c.h.b16 %v1986
        %v2076 = vunpack.c.l.b16 %v1987
        %v2077 = vunpack.c.h.b16 %v1987
        %v2078 = vunpack.c.l.b16 %v1988
        %v2079 = vunpack.c.h.b16 %v1988
        %v2080 = vunpack.c.l.b16 %v1989
        %v2081 = vunpack.c.h.b16 %v1989
        %v2082 = vunpack.c.l.b16 %v1990
        %v2083 = vunpack.c.h.b16 %v1990
        %v2084 = vunpack.c.l.b16 %v1991
        %v2085 = vunpack.c.h.b16 %v1991
        %v2086 = vunpack.c.l.b16 %v1992
        %v2087 = vunpack.c.h.b16 %v1992
        %v2088 = vunpack.c.l.b16 %v1993
        %v2089 = vunpack.c.h.b16 %v1993
        %v2090 = vunpack.c.l.b16 %v1994
        %v2091 = vunpack.c.h.b16 %v1994
        %v2092 = vunpack.c.l.b16 %v1995
        %v2093 = vunpack.c.h.b16 %v1995
        %v2094 = vunpack.c.l.b16 %v1996
        %v2095 = vunpack.c.h.b16 %v1996
        %v2096 = vunpack.c.l.b16 %v1997
        %v2097 = vunpack.c.h.b16 %v1997
        %v2098 = vunpack.c.l.b16 %v1998
        %v2099 = vunpack.c.h.b16 %v1998
        %v2100 = vunpack.c.l.b16 %v1999
        %v2101 = vunpack.c.h.b16 %v1999
        %v2102 = vunpack.c.l.b16 %v2000
        %v2103 = vunpack.c.h.b16 %v2000
        %v2104 = vunpack.c.l.b16 %v2001
        %v2105 = vunpack.c.h.b16 %v2001
        %v2106 = vunpack.c.l.b16 %v2002
        %v2107 = vunpack.c.h.b16 %v2002
        %v2108 = vunpack.c.l.b16 %v2003
        %v2109 = vunpack.c.h.b16 %v2003
        %v2110 = vunpack.c.l.b16 %v2004
        %v2111 = vunpack.c.h.b16 %v2004
        %v2112 = vunpack.c.l.b16 %v2005
        %v2113 = vunpack.c.h.b16 %v2005
        %v2114 = vunpack.c.l.b16 %v2006
        %v2115 = vunpack.c.h.b16 %v2006
        %v2116 = vunpack.c.l.b16 %v2007
        %v2117 = vunpack.c.h.b16 %v2007
        %v2118 = vunpack.c.l.b16 %v2008
        %v2119 = vunpack.c.h.b16 %v2008
        %v2120 = vunpack.c.l.b16 %v2009
        %v2121 = vunpack.c.h.b16 %v2009
        %v2122 = vpack.c.b16 %v2060, %v2058
        %v2123 = vpack.c.b16 %v2061, %v2059
        %v2124 = vpack.c.b16 %v2064, %v2062
        %v2125 = vpack.c.b16 %v2065, %v2063
        %v2126 = vpack.c.b16 %v2068, %v2066
        %v2127 = vpack.c.b16 %v2069, %v2067
        %v2128 = vpack.c.b16 %v2072, %v2070
        %v2129 = vpack.c.b16 %v2073, %v2071
        %v2130 = vpack.c.b16 %v2076, %v2074
        %v2131 = vpack.c.b16 %v2077, %v2075
        %v2132 = vpack.c.b16 %v2080, %v2078
        %v2133 = vpack.c.b16 %v2081, %v2079
        %v2134 = vpack.c.b16 %v2084, %v2082
        %v2135 = vpack.c.b16 %v2085, %v2083
        %v2136 = vpack.c.b16 %v2088, %v2086
        %v2137 = vpack.c.b16 %v2089, %v2087
        %v2138 = vpack.c.b16 %v2092, %v2090
        %v2139 = vpack.c.b16 %v2093, %v2091
        %v2140 = vpack.c.b16 %v2096, %v2094
        %v2141 = vpack.c.b16 %v2097, %v2095
        %v2142 = vpack.c.b16 %v2100, %v2098
        %v2143 = vpack.c.b16 %v2101, %v2099
        %v2144 = vpack.c.b16 %v2104, %v2102
        %v2145 = vpack.c.b16 %v2105, %v2103
        %v2146 = vpack.c.b16 %v2108, %v2106
        %v2147 = vpack.c.b16 %v2109, %v2107
        %v2148 = vpack.c.b16 %v2112, %v2110
        %v2149 = vpack.c.b16 %v2113, %v2111
        %v2150 = vpack.c.b16 %v2116, %v2114
        %v2151 = vpack.c.b16 %v2117, %v2115
        %v2152 = vpack.c.b16 %v2120, %v2118
        %v2153 = vpack.c.b16 %v2121, %v2119
        %2186 = vmatprep.subr.bf16.mxu0 %v2123
        %2187 = vmatpush1.bf16.msra.mxu0 %v2122
        %2188 = vmatprep.subr.bf16.mxu0 %v2125
        %2189 = vmatpush1.bf16.msra.mxu0 %v2124
        %2190 = vmatprep.subr.bf16.mxu0 %v2127
        %2191 = vmatpush1.bf16.msra.mxu0 %v2126
        %2192 = vmatprep.subr.bf16.mxu0 %v2129
        %2193 = vmatpush1.bf16.msra.mxu0 %v2128
        %2194 = vmatprep.subr.bf16.mxu0 %v2131
        %2195 = vmatpush1.bf16.msra.mxu0 %v2130
        %2196 = vmatprep.subr.bf16.mxu0 %v2133
        %2197 = vmatpush1.bf16.msra.mxu0 %v2132
        %2198 = vmatprep.subr.bf16.mxu0 %v2135
        %2199 = vmatpush1.bf16.msra.mxu0 %v2134
        %2200 = vmatprep.subr.bf16.mxu0 %v2137
        %2201 = vmatpush1.bf16.msra.mxu0 %v2136
        %2202 = vmatprep.subr.bf16.mxu0 %v2139
        %2203 = vmatpush1.bf16.msra.mxu0 %v2138
        %2204 = vmatprep.subr.bf16.mxu0 %v2141
        %2205 = vmatpush1.bf16.msra.mxu0 %v2140
        %2206 = vmatprep.subr.bf16.mxu0 %v2143
        %2207 = vmatpush1.bf16.msra.mxu0 %v2142
        %2208 = vmatprep.subr.bf16.mxu0 %v2145
        %2209 = vmatpush1.bf16.msra.mxu0 %v2144
        %2210 = vmatprep.subr.bf16.mxu0 %v2147
        %2211 = vmatpush1.bf16.msra.mxu0 %v2146
        %2212 = vmatprep.subr.bf16.mxu0 %v2149
        %2213 = vmatpush1.bf16.msra.mxu0 %v2148
        %2214 = vmatprep.subr.bf16.mxu0 %v2151
        %2215 = vmatpush1.bf16.msra.mxu0 %v2150
        %2216 = vmatprep.subr.bf16.mxu0 %v2153
        %2217 = vmatpush1.bf16.msra.mxu0 %v2152
        %2218 = vmatprep.mubr.bf16.mxu0 %v2011
        %2219 = vmatmul.mubr.bf16.gmra.mrb[0].mxu0 %v2010
        %v2220 = vpop.f32.mrb[0].mxu0
        %v2221 = vadd.f32 0.0, %v2220
        %v2222 = vpop.f32.mrb[0].mxu0
        %v2223 = vadd.f32 0.0, %v2222
        %v2224 = vpop.f32.mrb[0].mxu0
        %v2225 = vadd.f32 0.0, %v2224
        %v2226 = vpop.f32.mrb[0].mxu0
        %v2227 = vadd.f32 0.0, %v2226
        %2228 = vmatprep.mubr.bf16.mxu0 %v2013
        %2229 = vmatmul.mubr.bf16.gmra.mrb[0].mxu0 %v2012
        %v2230 = vpop.f32.mrb[0].mxu0
        %v2231 = vadd.f32 0.0, %v2230
        %v2232 = vpop.f32.mrb[0].mxu0
        %v2233 = vadd.f32 0.0, %v2232
        %v2234 = vpop.f32.mrb[0].mxu0
        %v2235 = vadd.f32 0.0, %v2234
        %v2236 = vpop.f32.mrb[0].mxu0
        %v2237 = vadd.f32 0.0, %v2236
        %2238 = vmatprep.mubr.bf16.mxu0 %v2015
        %2239 = vmatmul.mubr.bf16.gmra.mrb[0].mxu0 %v2014
        %v2240 = vpop.f32.mrb[0].mxu0
        %v2241 = vadd.f32 0.0, %v2240
        %v2242 = vpop.f32.mrb[0].mxu0
        %v2243 = vadd.f32 0.0, %v2242
        %v2244 = vpop.f32.mrb[0].mxu0
        %v2245 = vadd.f32 0.0, %v2244
        %v2246 = vpop.f32.mrb[0].mxu0
        %v2247 = vadd.f32 0.0, %v2246
        %2248 = vmatprep.mubr.bf16.mxu0 %v2017
        %2249 = vmatmul.mubr.bf16.gmra.mrb[0].mxu0 %v2016
        %v2250 = vpop.f32.mrb[0].mxu0
        %v2251 = vadd.f32 0.0, %v2250
        %v2252 = vpop.f32.mrb[0].mxu0
        %v2253 = vadd.f32 0.0, %v2252
        %v2254 = vpop.f32.mrb[0].mxu0
        %v2255 = vadd.f32 0.0, %v2254
        %v2256 = vpop.f32.mrb[0].mxu0
        %v2257 = vadd.f32 0.0, %v2256
        %2258 = vdwg.mxu0
        %v2259 = vadd.f32 %v1958, %v2221
        %v2260 = vadd.f32 %v1959, %v2223
        %v2261 = vadd.f32 %v1960, %v2225
        %v2262 = vadd.f32 %v1961, %v2227
        %v2263 = vadd.f32 %v1962, %v2231
        %v2264 = vadd.f32 %v1963, %v2233
        %v2265 = vadd.f32 %v1964, %v2235
        %v2266 = vadd.f32 %v1965, %v2237
        %v2267 = vadd.f32 %v1966, %v2241
        %v2268 = vadd.f32 %v1967, %v2243
        %v2269 = vadd.f32 %v1968, %v2245
        %v2270 = vadd.f32 %v1969, %v2247
        %v2271 = vadd.f32 %v1970, %v2251
        %v2272 = vadd.f32 %v1971, %v2253
        %v2273 = vadd.f32 %v1972, %v2255
        %v2274 = vadd.f32 %v1973, %v2257
        %v2275 = vunpack.c.h.b16 %v870
        %v2276 = vunpack.c.h.b16 %v871
        %v2277 = vpack.c.b16 %v1977, %v1976
        %v2278 = vpack.c.b16 %v2276, %v2275
        %v2280 = vshrl.u32 %v2277, 16
        %v2282 = vrot.slane %v2280, 4
        %v2283 = vshll.u32 %v2277, 16
        %v2285 = vrot.slane %v2283, 5
        %v2286 = vor.u32 %v2282, %v2285
        %v2287 = vrot.slane %v2286, 4
        %v2289 = vshll.u32 %v2278, 16
        %v2291 = vrot.slane %v2289, 5
        %v2292 = vsel %vm967, %v2287, %v2291
        %v2293 = vld [vmem:[%s4 + $0x400] sm:$0xff]
        %v2294 = vld [vmem:[%s4 + $0x408] sm:$0xff]
        %v2295 = vld [vmem:[%s4 + $0x410] sm:$0xff]
        %v2296 = vld [vmem:[%s4 + $0x418] sm:$0xff]
        %v2297 = vld [vmem:[%s4 + $0x420] sm:$0xff]
        %v2298 = vld [vmem:[%s4 + $0x428] sm:$0xff]
        %v2299 = vld [vmem:[%s4 + $0x430] sm:$0xff]
        %v2300 = vld [vmem:[%s4 + $0x438] sm:$0xff]
        %v2301 = vld [vmem:[%s4 + $0x440] sm:$0xff]
        %v2302 = vld [vmem:[%s4 + $0x448] sm:$0xff]
        %v2303 = vld [vmem:[%s4 + $0x450] sm:$0xff]
        %v2304 = vld [vmem:[%s4 + $0x458] sm:$0xff]
        %v2305 = vld [vmem:[%s4 + $0x460] sm:$0xff]
        %v2306 = vld [vmem:[%s4 + $0x468] sm:$0xff]
        %v2307 = vld [vmem:[%s4 + $0x470] sm:$0xff]
        %v2308 = vld [vmem:[%s4 + $0x478] sm:$0xff]
        %v2309 = vld [vmem:[%s4 + $0x480] sm:$0xff]
        %v2310 = vld [vmem:[%s4 + $0x488] sm:$0xff]
        %v2311 = vld [vmem:[%s4 + $0x490] sm:$0xff]
        %v2312 = vld [vmem:[%s4 + $0x498] sm:$0xff]
        %v2313 = vld [vmem:[%s4 + $0x4a0] sm:$0xff]
        %v2314 = vld [vmem:[%s4 + $0x4a8] sm:$0xff]
        %v2315 = vld [vmem:[%s4 + $0x4b0] sm:$0xff]
        %v2316 = vld [vmem:[%s4 + $0x4b8] sm:$0xff]
        %v2317 = vld [vmem:[%s4 + $0x4c0] sm:$0xff]
        %v2318 = vld [vmem:[%s4 + $0x4c8] sm:$0xff]
        %v2319 = vld [vmem:[%s4 + $0x4d0] sm:$0xff]
        %v2320 = vld [vmem:[%s4 + $0x4d8] sm:$0xff]
        %v2321 = vld [vmem:[%s4 + $0x4e0] sm:$0xff]
        %v2322 = vld [vmem:[%s4 + $0x4e8] sm:$0xff]
        %v2323 = vld [vmem:[%s4 + $0x4f0] sm:$0xff]
        %v2324 = vld [vmem:[%s4 + $0x4f8] sm:$0xff]
        %v2325 = vunpack.c.l.b16 %v2292
        %v2326 = vunpack.c.h.b16 %v2292
        %v2327 = vpack.c.b16 %v1116, %v1114
        %v2328 = vpack.c.b16 %v1117, %v1115
        %v2329 = vpack.c.b16 %v1120, %v1118
        %v2330 = vpack.c.b16 %v1121, %v1119
        %v2331 = vpack.c.b16 %v1124, %v1122
        %v2332 = vpack.c.b16 %v1125, %v1123
        %v2333 = vpack.c.b16 %v2325, %v1126
        %v2334 = vpack.c.b16 %v2326, %v1127
        %v2375 = vunpack.c.l.b16 %v2293
        %v2376 = vunpack.c.h.b16 %v2293
        %v2377 = vunpack.c.l.b16 %v2294
        %v2378 = vunpack.c.h.b16 %v2294
        %v2379 = vunpack.c.l.b16 %v2295
        %v2380 = vunpack.c.h.b16 %v2295
        %v2381 = vunpack.c.l.b16 %v2296
        %v2382 = vunpack.c.h.b16 %v2296
        %v2383 = vunpack.c.l.b16 %v2297
        %v2384 = vunpack.c.h.b16 %v2297
        %v2385 = vunpack.c.l.b16 %v2298
        %v2386 = vunpack.c.h.b16 %v2298
        %v2387 = vunpack.c.l.b16 %v2299
        %v2388 = vunpack.c.h.b16 %v2299
        %v2389 = vunpack.c.l.b16 %v2300
        %v2390 = vunpack.c.h.b16 %v2300
        %v2391 = vunpack.c.l.b16 %v2301
        %v2392 = vunpack.c.h.b16 %v2301
        %v2393 = vunpack.c.l.b16 %v2302
        %v2394 = vunpack.c.h.b16 %v2302
        %v2395 = vunpack.c.l.b16 %v2303
        %v2396 = vunpack.c.h.b16 %v2303
        %v2397 = vunpack.c.l.b16 %v2304
        %v2398 = vunpack.c.h.b16 %v2304
        %v2399 = vunpack.c.l.b16 %v2305
        %v2400 = vunpack.c.h.b16 %v2305
        %v2401 = vunpack.c.l.b16 %v2306
        %v2402 = vunpack.c.h.b16 %v2306
        %v2403 = vunpack.c.l.b16 %v2307
        %v2404 = vunpack.c.h.b16 %v2307
        %v2405 = vunpack.c.l.b16 %v2308
        %v2406 = vunpack.c.h.b16 %v2308
        %v2407 = vunpack.c.l.b16 %v2309
        %v2408 = vunpack.c.h.b16 %v2309
        %v2409 = vunpack.c.l.b16 %v2310
        %v2410 = vunpack.c.h.b16 %v2310
        %v2411 = vunpack.c.l.b16 %v2311
        %v2412 = vunpack.c.h.b16 %v2311
        %v2413 = vunpack.c.l.b16 %v2312
        %v2414 = vunpack.c.h.b16 %v2312
        %v2415 = vunpack.c.l.b16 %v2313
        %v2416 = vunpack.c.h.b16 %v2313
        %v2417 = vunpack.c.l.b16 %v2314
        %v2418 = vunpack.c.h.b16 %v2314
        %v2419 = vunpack.c.l.b16 %v2315
        %v2420 = vunpack.c.h.b16 %v2315
        %v2421 = vunpack.c.l.b16 %v2316
        %v2422 = vunpack.c.h.b16 %v2316
        %v2423 = vunpack.c.l.b16 %v2317
        %v2424 = vunpack.c.h.b16 %v2317
        %v2425 = vunpack.c.l.b16 %v2318
        %v2426 = vunpack.c.h.b16 %v2318
        %v2427 = vunpack.c.l.b16 %v2319
        %v2428 = vunpack.c.h.b16 %v2319
        %v2429 = vunpack.c.l.b16 %v2320
        %v2430 = vunpack.c.h.b16 %v2320
        %v2431 = vunpack.c.l.b16 %v2321
        %v2432 = vunpack.c.h.b16 %v2321
        %v2433 = vunpack.c.l.b16 %v2322
        %v2434 = vunpack.c.h.b16 %v2322
        %v2435 = vunpack.c.l.b16 %v2323
        %v2436 = vunpack.c.h.b16 %v2323
        %v2437 = vunpack.c.l.b16 %v2324
        %v2438 = vunpack.c.h.b16 %v2324
        %v2439 = vpack.c.b16 %v2377, %v2375
        %v2440 = vpack.c.b16 %v2378, %v2376
        %v2441 = vpack.c.b16 %v2381, %v2379
        %v2442 = vpack.c.b16 %v2382, %v2380
        %v2443 = vpack.c.b16 %v2385, %v2383
        %v2444 = vpack.c.b16 %v2386, %v2384
        %v2445 = vpack.c.b16 %v2389, %v2387
        %v2446 = vpack.c.b16 %v2390, %v2388
        %v2447 = vpack.c.b16 %v2393, %v2391
        %v2448 = vpack.c.b16 %v2394, %v2392
        %v2449 = vpack.c.b16 %v2397, %v2395
        %v2450 = vpack.c.b16 %v2398, %v2396
        %v2451 = vpack.c.b16 %v2401, %v2399
        %v2452 = vpack.c.b16 %v2402, %v2400
        %v2453 = vpack.c.b16 %v2405, %v2403
        %v2454 = vpack.c.b16 %v2406, %v2404
        %v2455 = vpack.c.b16 %v2409, %v2407
        %v2456 = vpack.c.b16 %v2410, %v2408
        %v2457 = vpack.c.b16 %v2413, %v2411
        %v2458 = vpack.c.b16 %v2414, %v2412
        %v2459 = vpack.c.b16 %v2417, %v2415
        %v2460 = vpack.c.b16 %v2418, %v2416
        %v2461 = vpack.c.b16 %v2421, %v2419
        %v2462 = vpack.c.b16 %v2422, %v2420
        %v2463 = vpack.c.b16 %v2425, %v2423
        %v2464 = vpack.c.b16 %v2426, %v2424
        %v2465 = vpack.c.b16 %v2429, %v2427
        %v2466 = vpack.c.b16 %v2430, %v2428
        %v2467 = vpack.c.b16 %v2433, %v2431
        %v2468 = vpack.c.b16 %v2434, %v2432
        %v2469 = vpack.c.b16 %v2437, %v2435
        %v2470 = vpack.c.b16 %v2438, %v2436
        %2503 = vmatprep.subr.bf16.mxu0 %v2440
        %2504 = vmatpush1.bf16.msra.mxu0 %v2439
        %2505 = vmatprep.subr.bf16.mxu0 %v2442
        %2506 = vmatpush1.bf16.msra.mxu0 %v2441
        %2507 = vmatprep.subr.bf16.mxu0 %v2444
        %2508 = vmatpush1.bf16.msra.mxu0 %v2443
        %2509 = vmatprep.subr.bf16.mxu0 %v2446
        %2510 = vmatpush1.bf16.msra.mxu0 %v2445
        %2511 = vmatprep.subr.bf16.mxu0 %v2448
        %2512 = vmatpush1.bf16.msra.mxu0 %v2447
        %2513 = vmatprep.subr.bf16.mxu0 %v2450
        %2514 = vmatpush1.bf16.msra.mxu0 %v2449
        %2515 = vmatprep.subr.bf16.mxu0 %v2452
        %2516 = vmatpush1.bf16.msra.mxu0 %v2451
        %2517 = vmatprep.subr.bf16.mxu0 %v2454
        %2518 = vmatpush1.bf16.msra.mxu0 %v2453
        %2519 = vmatprep.subr.bf16.mxu0 %v2456
        %2520 = vmatpush1.bf16.msra.mxu0 %v2455
        %2521 = vmatprep.subr.bf16.mxu0 %v2458
        %2522 = vmatpush1.bf16.msra.mxu0 %v2457
        %2523 = vmatprep.subr.bf16.mxu0 %v2460
        %2524 = vmatpush1.bf16.msra.mxu0 %v2459
        %2525 = vmatprep.subr.bf16.mxu0 %v2462
        %2526 = vmatpush1.bf16.msra.mxu0 %v2461
        %2527 = vmatprep.subr.bf16.mxu0 %v2464
        %2528 = vmatpush1.bf16.msra.mxu0 %v2463
        %2529 = vmatprep.subr.bf16.mxu0 %v2466
        %2530 = vmatpush1.bf16.msra.mxu0 %v2465
        %2531 = vmatprep.subr.bf16.mxu0 %v2468
        %2532 = vmatpush1.bf16.msra.mxu0 %v2467
        %2533 = vmatprep.subr.bf16.mxu0 %v2470
        %2534 = vmatpush1.bf16.msra.mxu0 %v2469
        %2535 = vmatprep.mubr.bf16.mxu0 %v2328
        %2536 = vmatmul.mubr.bf16.gmra.mrb[0].mxu0 %v2327
        %v2537 = vpop.f32.mrb[0].mxu0
        %v2538 = vadd.f32 0.0, %v2537
        %v2539 = vpop.f32.mrb[0].mxu0
        %v2540 = vadd.f32 0.0, %v2539
        %v2541 = vpop.f32.mrb[0].mxu0
        %v2542 = vadd.f32 0.0, %v2541
        %v2543 = vpop.f32.mrb[0].mxu0
        %v2544 = vadd.f32 0.0, %v2543
        %2545 = vmatprep.mubr.bf16.mxu0 %v2330
        %2546 = vmatmul.mubr.bf16.gmra.mrb[0].mxu0 %v2329
        %v2547 = vpop.f32.mrb[0].mxu0
        %v2548 = vadd.f32 0.0, %v2547
        %v2549 = vpop.f32.mrb[0].mxu0
        %v2550 = vadd.f32 0.0, %v2549
        %v2551 = vpop.f32.mrb[0].mxu0
        %v2552 = vadd.f32 0.0, %v2551
        %v2553 = vpop.f32.mrb[0].mxu0
        %v2554 = vadd.f32 0.0, %v2553
        %2555 = vmatprep.mubr.bf16.mxu0 %v2332
        %2556 = vmatmul.mubr.bf16.gmra.mrb[0].mxu0 %v2331
        %v2557 = vpop.f32.mrb[0].mxu0
        %v2558 = vadd.f32 0.0, %v2557
        %v2559 = vpop.f32.mrb[0].mxu0
        %v2560 = vadd.f32 0.0, %v2559
        %v2561 = vpop.f32.mrb[0].mxu0
        %v2562 = vadd.f32 0.0, %v2561
        %v2563 = vpop.f32.mrb[0].mxu0
        %v2564 = vadd.f32 0.0, %v2563
        %2565 = vmatprep.mubr.bf16.mxu0 %v2334
        %2566 = vmatmul.mubr.bf16.gmra.mrb[0].mxu0 %v2333
        %v2567 = vpop.f32.mrb[0].mxu0
        %v2568 = vadd.f32 0.0, %v2567
        %v2569 = vpop.f32.mrb[0].mxu0
        %v2570 = vadd.f32 0.0, %v2569
        %v2571 = vpop.f32.mrb[0].mxu0
        %v2572 = vadd.f32 0.0, %v2571
        %v2573 = vpop.f32.mrb[0].mxu0
        %v2574 = vadd.f32 0.0, %v2573
        %2575 = vdwg.mxu0
        %v2576 = vadd.f32 %v2259, %v2538
        %v2577 = vadd.f32 %v2260, %v2540
        %v2578 = vadd.f32 %v2261, %v2542
        %v2579 = vadd.f32 %v2262, %v2544
        %v2580 = vadd.f32 %v2263, %v2548
        %v2581 = vadd.f32 %v2264, %v2550
        %v2582 = vadd.f32 %v2265, %v2552
        %v2583 = vadd.f32 %v2266, %v2554
        %v2584 = vadd.f32 %v2267, %v2558
        %v2585 = vadd.f32 %v2268, %v2560
        %v2586 = vadd.f32 %v2269, %v2562
        %v2587 = vadd.f32 %v2270, %v2564
        %v2588 = vadd.f32 %v2271, %v2568
        %v2589 = vadd.f32 %v2272, %v2570
        %v2590 = vadd.f32 %v2273, %v2572
        %v2591 = vadd.f32 %v2274, %v2574
        %v2592 = vrot.slane %v2277, 5
        %v2593 = vrot.slane %v2592, 4
        %v2594 = vrot.slane %v2278, 5
        %v2595 = vsel %vm1628, %v2593, %v2594
        %v2596 = vld [vmem:[%s4 + $0x500] sm:$0xff]
        %v2597 = vld [vmem:[%s4 + $0x508] sm:$0xff]
        %v2598 = vld [vmem:[%s4 + $0x510] sm:$0xff]
        %v2599 = vld [vmem:[%s4 + $0x518] sm:$0xff]
        %v2600 = vld [vmem:[%s4 + $0x520] sm:$0xff]
        %v2601 = vld [vmem:[%s4 + $0x528] sm:$0xff]
        %v2602 = vld [vmem:[%s4 + $0x530] sm:$0xff]
        %v2603 = vld [vmem:[%s4 + $0x538] sm:$0xff]
        %v2604 = vld [vmem:[%s4 + $0x540] sm:$0xff]
        %v2605 = vld [vmem:[%s4 + $0x548] sm:$0xff]
        %v2606 = vld [vmem:[%s4 + $0x550] sm:$0xff]
        %v2607 = vld [vmem:[%s4 + $0x558] sm:$0xff]
        %v2608 = vld [vmem:[%s4 + $0x560] sm:$0xff]
        %v2609 = vld [vmem:[%s4 + $0x568] sm:$0xff]
        %v2610 = vld [vmem:[%s4 + $0x570] sm:$0xff]
        %v2611 = vld [vmem:[%s4 + $0x578] sm:$0xff]
        %v2612 = vld [vmem:[%s4 + $0x580] sm:$0xff]
        %v2613 = vld [vmem:[%s4 + $0x588] sm:$0xff]
        %v2614 = vld [vmem:[%s4 + $0x590] sm:$0xff]
        %v2615 = vld [vmem:[%s4 + $0x598] sm:$0xff]
        %v2616 = vld [vmem:[%s4 + $0x5a0] sm:$0xff]
        %v2617 = vld [vmem:[%s4 + $0x5a8] sm:$0xff]
        %v2618 = vld [vmem:[%s4 + $0x5b0] sm:$0xff]
        %v2619 = vld [vmem:[%s4 + $0x5b8] sm:$0xff]
        %v2620 = vld [vmem:[%s4 + $0x5c0] sm:$0xff]
        %v2621 = vld [vmem:[%s4 + $0x5c8] sm:$0xff]
        %v2622 = vld [vmem:[%s4 + $0x5d0] sm:$0xff]
        %v2623 = vld [vmem:[%s4 + $0x5d8] sm:$0xff]
        %v2624 = vld [vmem:[%s4 + $0x5e0] sm:$0xff]
        %v2625 = vld [vmem:[%s4 + $0x5e8] sm:$0xff]
        %v2626 = vld [vmem:[%s4 + $0x5f0] sm:$0xff]
        %v2627 = vld [vmem:[%s4 + $0x5f8] sm:$0xff]
        %v2628 = vunpack.c.l.b16 %v2595
        %v2629 = vunpack.c.h.b16 %v2595
        %v2630 = vpack.c.b16 %v1697, %v1695
        %v2631 = vpack.c.b16 %v1698, %v1696
        %v2632 = vpack.c.b16 %v1701, %v1699
        %v2633 = vpack.c.b16 %v1702, %v1700
        %v2634 = vpack.c.b16 %v1705, %v1703
        %v2635 = vpack.c.b16 %v1706, %v1704
        %v2636 = vpack.c.b16 %v2628, %v1707
        %v2637 = vpack.c.b16 %v2629, %v1708
        %v2678 = vunpack.c.l.b16 %v2596
        %v2679 = vunpack.c.h.b16 %v2596
        %v2680 = vunpack.c.l.b16 %v2597
        %v2681 = vunpack.c.h.b16 %v2597
        %v2682 = vunpack.c.l.b16 %v2598
        %v2683 = vunpack.c.h.b16 %v2598
        %v2684 = vunpack.c.l.b16 %v2599
        %v2685 = vunpack.c.h.b16 %v2599
        %v2686 = vunpack.c.l.b16 %v2600
        %v2687 = vunpack.c.h.b16 %v2600
        %v2688 = vunpack.c.l.b16 %v2601
        %v2689 = vunpack.c.h.b16 %v2601
        %v2690 = vunpack.c.l.b16 %v2602
        %v2691 = vunpack.c.h.b16 %v2602
        %v2692 = vunpack.c.l.b16 %v2603
        %v2693 = vunpack.c.h.b16 %v2603
        %v2694 = vunpack.c.l.b16 %v2604
        %v2695 = vunpack.c.h.b16 %v2604
        %v2696 = vunpack.c.l.b16 %v2605
        %v2697 = vunpack.c.h.b16 %v2605
        %v2698 = vunpack.c.l.b16 %v2606
        %v2699 = vunpack.c.h.b16 %v2606
        %v2700 = vunpack.c.l.b16 %v2607
        %v2701 = vunpack.c.h.b16 %v2607
        %v2702 = vunpack.c.l.b16 %v2608
        %v2703 = vunpack.c.h.b16 %v2608
        %v2704 = vunpack.c.l.b16 %v2609
        %v2705 = vunpack.c.h.b16 %v2609
        %v2706 = vunpack.c.l.b16 %v2610
        %v2707 = vunpack.c.h.b16 %v2610
        %v2708 = vunpack.c.l.b16 %v2611
        %v2709 = vunpack.c.h.b16 %v2611
        %v2710 = vunpack.c.l.b16 %v2612
        %v2711 = vunpack.c.h.b16 %v2612
        %v2712 = vunpack.c.l.b16 %v2613
        %v2713 = vunpack.c.h.b16 %v2613
        %v2714 = vunpack.c.l.b16 %v2614
        %v2715 = vunpack.c.h.b16 %v2614
        %v2716 = vunpack.c.l.b16 %v2615
        %v2717 = vunpack.c.h.b16 %v2615
        %v2718 = vunpack.c.l.b16 %v2616
        %v2719 = vunpack.c.h.b16 %v2616
        %v2720 = vunpack.c.l.b16 %v2617
        %v2721 = vunpack.c.h.b16 %v2617
        %v2722 = vunpack.c.l.b16 %v2618
        %v2723 = vunpack.c.h.b16 %v2618
        %v2724 = vunpack.c.l.b16 %v2619
        %v2725 = vunpack.c.h.b16 %v2619
        %v2726 = vunpack.c.l.b16 %v2620
        %v2727 = vunpack.c.h.b16 %v2620
        %v2728 = vunpack.c.l.b16 %v2621
        %v2729 = vunpack.c.h.b16 %v2621
        %v2730 = vunpack.c.l.b16 %v2622
        %v2731 = vunpack.c.h.b16 %v2622
        %v2732 = vunpack.c.l.b16 %v2623
        %v2733 = vunpack.c.h.b16 %v2623
        %v2734 = vunpack.c.l.b16 %v2624
        %v2735 = vunpack.c.h.b16 %v2624
        %v2736 = vunpack.c.l.b16 %v2625
        %v2737 = vunpack.c.h.b16 %v2625
        %v2738 = vunpack.c.l.b16 %v2626
        %v2739 = vunpack.c.h.b16 %v2626
        %v2740 = vunpack.c.l.b16 %v2627
        %v2741 = vunpack.c.h.b16 %v2627
        %v2742 = vpack.c.b16 %v2680, %v2678
        %v2743 = vpack.c.b16 %v2681, %v2679
        %v2744 = vpack.c.b16 %v2684, %v2682
        %v2745 = vpack.c.b16 %v2685, %v2683
        %v2746 = vpack.c.b16 %v2688, %v2686
        %v2747 = vpack.c.b16 %v2689, %v2687
        %v2748 = vpack.c.b16 %v2692, %v2690
        %v2749 = vpack.c.b16 %v2693, %v2691
        %v2750 = vpack.c.b16 %v2696, %v2694
        %v2751 = vpack.c.b16 %v2697, %v2695
        %v2752 = vpack.c.b16 %v2700, %v2698
        %v2753 = vpack.c.b16 %v2701, %v2699
        %v2754 = vpack.c.b16 %v2704, %v2702
        %v2755 = vpack.c.b16 %v2705, %v2703
        %v2756 = vpack.c.b16 %v2708, %v2706
        %v2757 = vpack.c.b16 %v2709, %v2707
        %v2758 = vpack.c.b16 %v2712, %v2710
        %v2759 = vpack.c.b16 %v2713, %v2711
        %v2760 = vpack.c.b16 %v2716, %v2714
        %v2761 = vpack.c.b16 %v2717, %v2715
        %v2762 = vpack.c.b16 %v2720, %v2718
        %v2763 = vpack.c.b16 %v2721, %v2719
        %v2764 = vpack.c.b16 %v2724, %v2722
        %v2765 = vpack.c.b16 %v2725, %v2723
        %v2766 = vpack.c.b16 %v2728, %v2726
        %v2767 = vpack.c.b16 %v2729, %v2727
        %v2768 = vpack.c.b16 %v2732, %v2730
        %v2769 = vpack.c.b16 %v2733, %v2731
        %v2770 = vpack.c.b16 %v2736, %v2734
        %v2771 = vpack.c.b16 %v2737, %v2735
        %v2772 = vpack.c.b16 %v2740, %v2738
        %v2773 = vpack.c.b16 %v2741, %v2739
        %2806 = vmatprep.subr.bf16.mxu0 %v2743
        %2807 = vmatpush1.bf16.msra.mxu0 %v2742
        %2808 = vmatprep.subr.bf16.mxu0 %v2745
        %2809 = vmatpush1.bf16.msra.mxu0 %v2744
        %2810 = vmatprep.subr.bf16.mxu0 %v2747
        %2811 = vmatpush1.bf16.msra.mxu0 %v2746
        %2812 = vmatprep.subr.bf16.mxu0 %v2749
        %2813 = vmatpush1.bf16.msra.mxu0 %v2748
        %2814 = vmatprep.subr.bf16.mxu0 %v2751
        %2815 = vmatpush1.bf16.msra.mxu0 %v2750
        %2816 = vmatprep.subr.bf16.mxu0 %v2753
        %2817 = vmatpush1.bf16.msra.mxu0 %v2752
        %2818 = vmatprep.subr.bf16.mxu0 %v2755
        %2819 = vmatpush1.bf16.msra.mxu0 %v2754
        %2820 = vmatprep.subr.bf16.mxu0 %v2757
        %2821 = vmatpush1.bf16.msra.mxu0 %v2756
        %2822 = vmatprep.subr.bf16.mxu0 %v2759
        %2823 = vmatpush1.bf16.msra.mxu0 %v2758
        %2824 = vmatprep.subr.bf16.mxu0 %v2761
        %2825 = vmatpush1.bf16.msra.mxu0 %v2760
        %2826 = vmatprep.subr.bf16.mxu0 %v2763
        %2827 = vmatpush1.bf16.msra.mxu0 %v2762
        %2828 = vmatprep.subr.bf16.mxu0 %v2765
        %2829 = vmatpush1.bf16.msra.mxu0 %v2764
        %2830 = vmatprep.subr.bf16.mxu0 %v2767
        %2831 = vmatpush1.bf16.msra.mxu0 %v2766
        %2832 = vmatprep.subr.bf16.mxu0 %v2769
        %2833 = vmatpush1.bf16.msra.mxu0 %v2768
        %2834 = vmatprep.subr.bf16.mxu0 %v2771
        %2835 = vmatpush1.bf16.msra.mxu0 %v2770
        %2836 = vmatprep.subr.bf16.mxu0 %v2773
        %2837 = vmatpush1.bf16.msra.mxu0 %v2772
        %2838 = vmatprep.mubr.bf16.mxu0 %v2631
        %2839 = vmatmul.mubr.bf16.gmra.mrb[0].mxu0 %v2630
        %v2840 = vpop.f32.mrb[0].mxu0
        %v2841 = vadd.f32 0.0, %v2840
        %v2842 = vpop.f32.mrb[0].mxu0
        %v2843 = vadd.f32 0.0, %v2842
        %v2844 = vpop.f32.mrb[0].mxu0
        %v2845 = vadd.f32 0.0, %v2844
        %v2846 = vpop.f32.mrb[0].mxu0
        %v2847 = vadd.f32 0.0, %v2846
        %2848 = vmatprep.mubr.bf16.mxu0 %v2633
        %2849 = vmatmul.mubr.bf16.gmra.mrb[0].mxu0 %v2632
        %v2850 = vpop.f32.mrb[0].mxu0
        %v2851 = vadd.f32 0.0, %v2850
        %v2852 = vpop.f32.mrb[0].mxu0
        %v2853 = vadd.f32 0.0, %v2852
        %v2854 = vpop.f32.mrb[0].mxu0
        %v2855 = vadd.f32 0.0, %v2854
        %v2856 = vpop.f32.mrb[0].mxu0
        %v2857 = vadd.f32 0.0, %v2856
        %2858 = vmatprep.mubr.bf16.mxu0 %v2635
        %2859 = vmatmul.mubr.bf16.gmra.mrb[0].mxu0 %v2634
        %v2860 = vpop.f32.mrb[0].mxu0
        %v2861 = vadd.f32 0.0, %v2860
        %v2862 = vpop.f32.mrb[0].mxu0
        %v2863 = vadd.f32 0.0, %v2862
        %v2864 = vpop.f32.mrb[0].mxu0
        %v2865 = vadd.f32 0.0, %v2864
        %v2866 = vpop.f32.mrb[0].mxu0
        %v2867 = vadd.f32 0.0, %v2866
        %2868 = vmatprep.mubr.bf16.mxu0 %v2637
        %2869 = vmatmul.mubr.bf16.gmra.mrb[0].mxu0 %v2636
        %v2870 = vpop.f32.mrb[0].mxu0
        %v2871 = vadd.f32 0.0, %v2870
        %v2872 = vpop.f32.mrb[0].mxu0
        %v2873 = vadd.f32 0.0, %v2872
        %v2874 = vpop.f32.mrb[0].mxu0
        %v2875 = vadd.f32 0.0, %v2874
        %v2876 = vpop.f32.mrb[0].mxu0
        %v2877 = vadd.f32 0.0, %v2876
        %2878 = vdwg.mxu0
        %v2879 = vadd.f32 %v2576, %v2841
        %v2880 = vadd.f32 %v2577, %v2843
        %v2881 = vadd.f32 %v2578, %v2845
        %v2882 = vadd.f32 %v2579, %v2847
        %v2883 = vadd.f32 %v2580, %v2851
        %v2884 = vadd.f32 %v2581, %v2853
        %v2885 = vadd.f32 %v2582, %v2855
        %v2886 = vadd.f32 %v2583, %v2857
        %v2887 = vadd.f32 %v2584, %v2861
        %v2888 = vadd.f32 %v2585, %v2863
        %v2889 = vadd.f32 %v2586, %v2865
        %v2890 = vadd.f32 %v2587, %v2867
        %v2891 = vadd.f32 %v2588, %v2871
        %v2892 = vadd.f32 %v2589, %v2873
        %v2893 = vadd.f32 %v2590, %v2875
        %v2894 = vadd.f32 %v2591, %v2877
        %v2895 = vld [vmem:[%s4 + $0x600] sm:$0xff]
        %v2896 = vld [vmem:[%s4 + $0x608] sm:$0xff]
        %v2897 = vld [vmem:[%s4 + $0x610] sm:$0xff]
        %v2898 = vld [vmem:[%s4 + $0x618] sm:$0xff]
        %v2899 = vld [vmem:[%s4 + $0x620] sm:$0xff]
        %v2900 = vld [vmem:[%s4 + $0x628] sm:$0xff]
        %v2901 = vld [vmem:[%s4 + $0x630] sm:$0xff]
        %v2902 = vld [vmem:[%s4 + $0x638] sm:$0xff]
        %v2903 = vld [vmem:[%s4 + $0x640] sm:$0xff]
        %v2904 = vld [vmem:[%s4 + $0x648] sm:$0xff]
        %v2905 = vld [vmem:[%s4 + $0x650] sm:$0xff]
        %v2906 = vld [vmem:[%s4 + $0x658] sm:$0xff]
        %v2907 = vld [vmem:[%s4 + $0x660] sm:$0xff]
        %v2908 = vld [vmem:[%s4 + $0x668] sm:$0xff]
        %v2909 = vld [vmem:[%s4 + $0x670] sm:$0xff]
        %v2910 = vld [vmem:[%s4 + $0x678] sm:$0xff]
        %v2911 = vld [vmem:[%s4 + $0x680] sm:$0xff]
        %v2912 = vld [vmem:[%s4 + $0x688] sm:$0xff]
        %v2913 = vld [vmem:[%s4 + $0x690] sm:$0xff]
        %v2914 = vld [vmem:[%s4 + $0x698] sm:$0xff]
        %v2915 = vld [vmem:[%s4 + $0x6a0] sm:$0xff]
        %v2916 = vld [vmem:[%s4 + $0x6a8] sm:$0xff]
        %v2917 = vld [vmem:[%s4 + $0x6b0] sm:$0xff]
        %v2918 = vld [vmem:[%s4 + $0x6b8] sm:$0xff]
        %v2919 = vld [vmem:[%s4 + $0x6c0] sm:$0xff]
        %v2920 = vld [vmem:[%s4 + $0x6c8] sm:$0xff]
        %v2921 = vld [vmem:[%s4 + $0x6d0] sm:$0xff]
        %v2922 = vld [vmem:[%s4 + $0x6d8] sm:$0xff]
        %v2923 = vld [vmem:[%s4 + $0x6e0] sm:$0xff]
        %v2924 = vld [vmem:[%s4 + $0x6e8] sm:$0xff]
        %v2925 = vld [vmem:[%s4 + $0x6f0] sm:$0xff]
        %v2926 = vld [vmem:[%s4 + $0x6f8] sm:$0xff]
        %v2927 = vpack.c.b16 %v887, %v1976
        %v2928 = vpack.c.b16 %v887, %v1977
        %v2963 = vunpack.c.l.b16 %v2895
        %v2964 = vunpack.c.h.b16 %v2895
        %v2965 = vunpack.c.l.b16 %v2896
        %v2966 = vunpack.c.h.b16 %v2896
        %v2967 = vunpack.c.l.b16 %v2897
        %v2968 = vunpack.c.h.b16 %v2897
        %v2969 = vunpack.c.l.b16 %v2898
        %v2970 = vunpack.c.h.b16 %v2898
        %v2971 = vunpack.c.l.b16 %v2899
        %v2972 = vunpack.c.h.b16 %v2899
        %v2973 = vunpack.c.l.b16 %v2900
        %v2974 = vunpack.c.h.b16 %v2900
        %v2975 = vunpack.c.l.b16 %v2901
        %v2976 = vunpack.c.h.b16 %v2901
        %v2977 = vunpack.c.l.b16 %v2902
        %v2978 = vunpack.c.h.b16 %v2902
        %v2979 = vunpack.c.l.b16 %v2903
        %v2980 = vunpack.c.h.b16 %v2903
        %v2981 = vunpack.c.l.b16 %v2904
        %v2982 = vunpack.c.h.b16 %v2904
        %v2983 = vunpack.c.l.b16 %v2905
        %v2984 = vunpack.c.h.b16 %v2905
        %v2985 = vunpack.c.l.b16 %v2906
        %v2986 = vunpack.c.h.b16 %v2906
        %v2987 = vunpack.c.l.b16 %v2907
        %v2988 = vunpack.c.h.b16 %v2907
        %v2989 = vunpack.c.l.b16 %v2908
        %v2990 = vunpack.c.h.b16 %v2908
        %v2991 = vunpack.c.l.b16 %v2909
        %v2992 = vunpack.c.h.b16 %v2909
        %v2993 = vunpack.c.l.b16 %v2910
        %v2994 = vunpack.c.h.b16 %v2910
        %v2995 = vunpack.c.l.b16 %v2911
        %v2996 = vunpack.c.h.b16 %v2911
        %v2997 = vunpack.c.l.b16 %v2912
        %v2998 = vunpack.c.h.b16 %v2912
        %v2999 = vunpack.c.l.b16 %v2913
        %v3000 = vunpack.c.h.b16 %v2913
        %v3001 = vunpack.c.l.b16 %v2914
        %v3002 = vunpack.c.h.b16 %v2914
        %v3003 = vunpack.c.l.b16 %v2915
        %v3004 = vunpack.c.h.b16 %v2915
        %v3005 = vunpack.c.l.b16 %v2916
        %v3006 = vunpack.c.h.b16 %v2916
        %v3007 = vunpack.c.l.b16 %v2917
        %v3008 = vunpack.c.h.b16 %v2917
        %v3009 = vunpack.c.l.b16 %v2918
        %v3010 = vunpack.c.h.b16 %v2918
        %v3011 = vunpack.c.l.b16 %v2919
        %v3012 = vunpack.c.h.b16 %v2919
        %v3013 = vunpack.c.l.b16 %v2920
        %v3014 = vunpack.c.h.b16 %v2920
        %v3015 = vunpack.c.l.b16 %v2921
        %v3016 = vunpack.c.h.b16 %v2921
        %v3017 = vunpack.c.l.b16 %v2922
        %v3018 = vunpack.c.h.b16 %v2922
        %v3019 = vunpack.c.l.b16 %v2923
        %v3020 = vunpack.c.h.b16 %v2923
        %v3021 = vunpack.c.l.b16 %v2924
        %v3022 = vunpack.c.h.b16 %v2924
        %v3023 = vunpack.c.l.b16 %v2925
        %v3024 = vunpack.c.h.b16 %v2925
        %v3025 = vunpack.c.l.b16 %v2926
        %v3026 = vunpack.c.h.b16 %v2926
        %v3027 = vpack.c.b16 %v2965, %v2963
        %v3028 = vpack.c.b16 %v2966, %v2964
        %v3029 = vpack.c.b16 %v2969, %v2967
        %v3030 = vpack.c.b16 %v2970, %v2968
        %v3031 = vpack.c.b16 %v2973, %v2971
        %v3032 = vpack.c.b16 %v2974, %v2972
        %v3033 = vpack.c.b16 %v2977, %v2975
        %v3034 = vpack.c.b16 %v2978, %v2976
        %v3035 = vpack.c.b16 %v2981, %v2979
        %v3036 = vpack.c.b16 %v2982, %v2980
        %v3037 = vpack.c.b16 %v2985, %v2983
        %v3038 = vpack.c.b16 %v2986, %v2984
        %v3039 = vpack.c.b16 %v2989, %v2987
        %v3040 = vpack.c.b16 %v2990, %v2988
        %v3041 = vpack.c.b16 %v2993, %v2991
        %v3042 = vpack.c.b16 %v2994, %v2992
        %v3043 = vpack.c.b16 %v2997, %v2995
        %v3044 = vpack.c.b16 %v2998, %v2996
        %v3045 = vpack.c.b16 %v3001, %v2999
        %v3046 = vpack.c.b16 %v3002, %v3000
        %v3047 = vpack.c.b16 %v3005, %v3003
        %v3048 = vpack.c.b16 %v3006, %v3004
        %v3049 = vpack.c.b16 %v3009, %v3007
        %v3050 = vpack.c.b16 %v3010, %v3008
        %v3051 = vpack.c.b16 %v3013, %v3011
        %v3052 = vpack.c.b16 %v3014, %v3012
        %v3053 = vpack.c.b16 %v3017, %v3015
        %v3054 = vpack.c.b16 %v3018, %v3016
        %v3055 = vpack.c.b16 %v3021, %v3019
        %v3056 = vpack.c.b16 %v3022, %v3020
        %v3057 = vpack.c.b16 %v3025, %v3023
        %v3058 = vpack.c.b16 %v3026, %v3024
        %3091 = vmatprep.subr.bf16.mxu0 %v3028
        %3092 = vmatpush1.bf16.msra.mxu0 %v3027
        %3093 = vmatprep.subr.bf16.mxu0 %v3030
        %3094 = vmatpush1.bf16.msra.mxu0 %v3029
        %3095 = vmatprep.subr.bf16.mxu0 %v3032
        %3096 = vmatpush1.bf16.msra.mxu0 %v3031
        %3097 = vmatprep.subr.bf16.mxu0 %v3034
        %3098 = vmatpush1.bf16.msra.mxu0 %v3033
        %3099 = vmatprep.subr.bf16.mxu0 %v3036
        %3100 = vmatpush1.bf16.msra.mxu0 %v3035
        %3101 = vmatprep.subr.bf16.mxu0 %v3038
        %3102 = vmatpush1.bf16.msra.mxu0 %v3037
        %3103 = vmatprep.subr.bf16.mxu0 %v3040
        %3104 = vmatpush1.bf16.msra.mxu0 %v3039
        %3105 = vmatprep.subr.bf16.mxu0 %v3042
        %3106 = vmatpush1.bf16.msra.mxu0 %v3041
        %3107 = vmatprep.subr.bf16.mxu0 %v3044
        %3108 = vmatpush1.bf16.msra.mxu0 %v3043
        %3109 = vmatprep.subr.bf16.mxu0 %v3046
        %3110 = vmatpush1.bf16.msra.mxu0 %v3045
        %3111 = vmatprep.subr.bf16.mxu0 %v3048
        %3112 = vmatpush1.bf16.msra.mxu0 %v3047
        %3113 = vmatprep.subr.bf16.mxu0 %v3050
        %3114 = vmatpush1.bf16.msra.mxu0 %v3049
        %3115 = vmatprep.subr.bf16.mxu0 %v3052
        %3116 = vmatpush1.bf16.msra.mxu0 %v3051
        %3117 = vmatprep.subr.bf16.mxu0 %v3054
        %3118 = vmatpush1.bf16.msra.mxu0 %v3053
        %3119 = vmatprep.subr.bf16.mxu0 %v3056
        %3120 = vmatpush1.bf16.msra.mxu0 %v3055
        %3121 = vmatprep.subr.bf16.mxu0 %v3058
        %3122 = vmatpush1.bf16.msra.mxu0 %v3057
        %3123 = vmatprep.mubr.bf16.mxu0 %v1380
        %3124 = vmatmul.mubr.bf16.gmra.mrb[0].mxu0 %v1379
        %v3125 = vpop.f32.mrb[0].mxu0
        %v3126 = vadd.f32 0.0, %v3125
        %v3127 = vpop.f32.mrb[0].mxu0
        %v3128 = vadd.f32 0.0, %v3127
        %v3129 = vpop.f32.mrb[0].mxu0
        %v3130 = vadd.f32 0.0, %v3129
        %v3131 = vpop.f32.mrb[0].mxu0
        %v3132 = vadd.f32 0.0, %v3131
        %3133 = vmatprep.mubr.bf16.mxu0 %v1382
        %3134 = vmatmul.mubr.bf16.gmra.mrb[0].mxu0 %v1381
        %v3135 = vpop.f32.mrb[0].mxu0
        %v3136 = vadd.f32 0.0, %v3135
        %v3137 = vpop.f32.mrb[0].mxu0
        %v3138 = vadd.f32 0.0, %v3137
        %v3139 = vpop.f32.mrb[0].mxu0
        %v3140 = vadd.f32 0.0, %v3139
        %v3141 = vpop.f32.mrb[0].mxu0
        %v3142 = vadd.f32 0.0, %v3141
        %3143 = vmatprep.mubr.bf16.mxu0 %v1384
        %3144 = vmatmul.mubr.bf16.gmra.mrb[0].mxu0 %v1383
        %v3145 = vpop.f32.mrb[0].mxu0
        %v3146 = vadd.f32 0.0, %v3145
        %v3147 = vpop.f32.mrb[0].mxu0
        %v3148 = vadd.f32 0.0, %v3147
        %v3149 = vpop.f32.mrb[0].mxu0
        %v3150 = vadd.f32 0.0, %v3149
        %v3151 = vpop.f32.mrb[0].mxu0
        %v3152 = vadd.f32 0.0, %v3151
        %3153 = vmatprep.mubr.bf16.mxu0 %v2928
        %3154 = vmatmul.mubr.bf16.gmra.mrb[0].mxu0 %v2927
        %v3155 = vpop.f32.mrb[0].mxu0
        %v3156 = vadd.f32 0.0, %v3155
        %v3157 = vpop.f32.mrb[0].mxu0
        %v3158 = vadd.f32 0.0, %v3157
        %v3159 = vpop.f32.mrb[0].mxu0
        %v3160 = vadd.f32 0.0, %v3159
        %v3161 = vpop.f32.mrb[0].mxu0
        %v3162 = vadd.f32 0.0, %v3161
        %3163 = vdwg.mxu0
        %v3164 = vadd.f32 %v2879, %v3126
        %v3165 = vadd.f32 %v2880, %v3128
        %v3166 = vadd.f32 %v2881, %v3130
        %v3167 = vadd.f32 %v2882, %v3132
        %v3168 = vadd.f32 %v2883, %v3136
        %v3169 = vadd.f32 %v2884, %v3138
        %v3170 = vadd.f32 %v2885, %v3140
        %v3171 = vadd.f32 %v2886, %v3142
        %v3172 = vadd.f32 %v2887, %v3146
        %v3173 = vadd.f32 %v2888, %v3148
        %v3174 = vadd.f32 %v2889, %v3150
        %v3175 = vadd.f32 %v2890, %v3152
        %v3176 = vadd.f32 %v2891, %v3156
        %v3177 = vadd.f32 %v2892, %v3158
        %v3178 = vadd.f32 %v2893, %v3160
        %v3179 = vadd.f32 %v2894, %v3162
        %v3180 = vld [vmem:[%s4 + $0x700] sm:$0xff]
        %v3181 = vld [vmem:[%s4 + $0x708] sm:$0xff]
        %v3182 = vld [vmem:[%s4 + $0x710] sm:$0xff]
        %v3183 = vld [vmem:[%s4 + $0x718] sm:$0xff]
        %v3184 = vld [vmem:[%s4 + $0x720] sm:$0xff]
        %v3185 = vld [vmem:[%s4 + $0x728] sm:$0xff]
        %v3186 = vld [vmem:[%s4 + $0x730] sm:$0xff]
        %v3187 = vld [vmem:[%s4 + $0x738] sm:$0xff]
        %v3188 = vld [vmem:[%s4 + $0x740] sm:$0xff]
        %v3189 = vld [vmem:[%s4 + $0x748] sm:$0xff]
        %v3190 = vld [vmem:[%s4 + $0x750] sm:$0xff]
        %v3191 = vld [vmem:[%s4 + $0x758] sm:$0xff]
        %v3192 = vld [vmem:[%s4 + $0x760] sm:$0xff]
        %v3193 = vld [vmem:[%s4 + $0x768] sm:$0xff]
        %v3194 = vld [vmem:[%s4 + $0x770] sm:$0xff]
        %v3195 = vld [vmem:[%s4 + $0x778] sm:$0xff]
        %v3196 = vld [vmem:[%s4 + $0x780] sm:$0xff]
        %v3197 = vld [vmem:[%s4 + $0x788] sm:$0xff]
        %v3198 = vld [vmem:[%s4 + $0x790] sm:$0xff]
        %v3199 = vld [vmem:[%s4 + $0x798] sm:$0xff]
        %v3200 = vld [vmem:[%s4 + $0x7a0] sm:$0xff]
        %v3201 = vld [vmem:[%s4 + $0x7a8] sm:$0xff]
        %v3202 = vld [vmem:[%s4 + $0x7b0] sm:$0xff]
        %v3203 = vld [vmem:[%s4 + $0x7b8] sm:$0xff]
        %v3204 = vld [vmem:[%s4 + $0x7c0] sm:$0xff]
        %v3205 = vld [vmem:[%s4 + $0x7c8] sm:$0xff]
        %v3206 = vld [vmem:[%s4 + $0x7d0] sm:$0xff]
        %v3207 = vld [vmem:[%s4 + $0x7d8] sm:$0xff]
        %v3208 = vld [vmem:[%s4 + $0x7e0] sm:$0xff]
        %v3209 = vld [vmem:[%s4 + $0x7e8] sm:$0xff]
        %v3210 = vld [vmem:[%s4 + $0x7f0] sm:$0xff]
        %v3211 = vld [vmem:[%s4 + $0x7f8] sm:$0xff]
        %v3212 = vpack.c.b16 %v1112, %v2325
        %v3213 = vpack.c.b16 %v1113, %v2326
        %v3248 = vunpack.c.l.b16 %v3180
        %v3249 = vunpack.c.h.b16 %v3180
        %v3250 = vunpack.c.l.b16 %v3181
        %v3251 = vunpack.c.h.b16 %v3181
        %v3252 = vunpack.c.l.b16 %v3182
        %v3253 = vunpack.c.h.b16 %v3182
        %v3254 = vunpack.c.l.b16 %v3183
        %v3255 = vunpack.c.h.b16 %v3183
        %v3256 = vunpack.c.l.b16 %v3184
        %v3257 = vunpack.c.h.b16 %v3184
        %v3258 = vunpack.c.l.b16 %v3185
        %v3259 = vunpack.c.h.b16 %v3185
        %v3260 = vunpack.c.l.b16 %v3186
        %v3261 = vunpack.c.h.b16 %v3186
        %v3262 = vunpack.c.l.b16 %v3187
        %v3263 = vunpack.c.h.b16 %v3187
        %v3264 = vunpack.c.l.b16 %v3188
        %v3265 = vunpack.c.h.b16 %v3188
        %v3266 = vunpack.c.l.b16 %v3189
        %v3267 = vunpack.c.h.b16 %v3189
        %v3268 = vunpack.c.l.b16 %v3190
        %v3269 = vunpack.c.h.b16 %v3190
        %v3270 = vunpack.c.l.b16 %v3191
        %v3271 = vunpack.c.h.b16 %v3191
        %v3272 = vunpack.c.l.b16 %v3192
        %v3273 = vunpack.c.h.b16 %v3192
        %v3274 = vunpack.c.l.b16 %v3193
        %v3275 = vunpack.c.h.b16 %v3193
        %v3276 = vunpack.c.l.b16 %v3194
        %v3277 = vunpack.c.h.b16 %v3194
        %v3278 = vunpack.c.l.b16 %v3195
        %v3279 = vunpack.c.h.b16 %v3195
        %v3280 = vunpack.c.l.b16 %v3196
        %v3281 = vunpack.c.h.b16 %v3196
        %v3282 = vunpack.c.l.b16 %v3197
        %v3283 = vunpack.c.h.b16 %v3197
        %v3284 = vunpack.c.l.b16 %v3198
        %v3285 = vunpack.c.h.b16 %v3198
        %v3286 = vunpack.c.l.b16 %v3199
        %v3287 = vunpack.c.h.b16 %v3199
        %v3288 = vunpack.c.l.b16 %v3200
        %v3289 = vunpack.c.h.b16 %v3200
        %v3290 = vunpack.c.l.b16 %v3201
        %v3291 = vunpack.c.h.b16 %v3201
        %v3292 = vunpack.c.l.b16 %v3202
        %v3293 = vunpack.c.h.b16 %v3202
        %v3294 = vunpack.c.l.b16 %v3203
        %v3295 = vunpack.c.h.b16 %v3203
        %v3296 = vunpack.c.l.b16 %v3204
        %v3297 = vunpack.c.h.b16 %v3204
        %v3298 = vunpack.c.l.b16 %v3205
        %v3299 = vunpack.c.h.b16 %v3205
        %v3300 = vunpack.c.l.b16 %v3206
        %v3301 = vunpack.c.h.b16 %v3206
        %v3302 = vunpack.c.l.b16 %v3207
        %v3303 = vunpack.c.h.b16 %v3207
        %v3304 = vunpack.c.l.b16 %v3208
        %v3305 = vunpack.c.h.b16 %v3208
        %v3306 = vunpack.c.l.b16 %v3209
        %v3307 = vunpack.c.h.b16 %v3209
        %v3308 = vunpack.c.l.b16 %v3210
        %v3309 = vunpack.c.h.b16 %v3210
        %v3310 = vunpack.c.l.b16 %v3211
        %v3311 = vunpack.c.h.b16 %v3211
        %v3312 = vpack.c.b16 %v3250, %v3248
        %v3313 = vpack.c.b16 %v3251, %v3249
        %v3314 = vpack.c.b16 %v3254, %v3252
        %v3315 = vpack.c.b16 %v3255, %v3253
        %v3316 = vpack.c.b16 %v3258, %v3256
        %v3317 = vpack.c.b16 %v3259, %v3257
        %v3318 = vpack.c.b16 %v3262, %v3260
        %v3319 = vpack.c.b16 %v3263, %v3261
        %v3320 = vpack.c.b16 %v3266, %v3264
        %v3321 = vpack.c.b16 %v3267, %v3265
        %v3322 = vpack.c.b16 %v3270, %v3268
        %v3323 = vpack.c.b16 %v3271, %v3269
        %v3324 = vpack.c.b16 %v3274, %v3272
        %v3325 = vpack.c.b16 %v3275, %v3273
        %v3326 = vpack.c.b16 %v3278, %v3276
        %v3327 = vpack.c.b16 %v3279, %v3277
        %v3328 = vpack.c.b16 %v3282, %v3280
        %v3329 = vpack.c.b16 %v3283, %v3281
        %v3330 = vpack.c.b16 %v3286, %v3284
        %v3331 = vpack.c.b16 %v3287, %v3285
        %v3332 = vpack.c.b16 %v3290, %v3288
        %v3333 = vpack.c.b16 %v3291, %v3289
        %v3334 = vpack.c.b16 %v3294, %v3292
        %v3335 = vpack.c.b16 %v3295, %v3293
        %v3336 = vpack.c.b16 %v3298, %v3296
        %v3337 = vpack.c.b16 %v3299, %v3297
        %v3338 = vpack.c.b16 %v3302, %v3300
        %v3339 = vpack.c.b16 %v3303, %v3301
        %v3340 = vpack.c.b16 %v3306, %v3304
        %v3341 = vpack.c.b16 %v3307, %v3305
        %v3342 = vpack.c.b16 %v3310, %v3308
        %v3343 = vpack.c.b16 %v3311, %v3309
        %3376 = vmatprep.subr.bf16.mxu0 %v3313
        %3377 = vmatpush1.bf16.msra.mxu0 %v3312
        %3378 = vmatprep.subr.bf16.mxu0 %v3315
        %3379 = vmatpush1.bf16.msra.mxu0 %v3314
        %3380 = vmatprep.subr.bf16.mxu0 %v3317
        %3381 = vmatpush1.bf16.msra.mxu0 %v3316
        %3382 = vmatprep.subr.bf16.mxu0 %v3319
        %3383 = vmatpush1.bf16.msra.mxu0 %v3318
        %3384 = vmatprep.subr.bf16.mxu0 %v3321
        %3385 = vmatpush1.bf16.msra.mxu0 %v3320
        %3386 = vmatprep.subr.bf16.mxu0 %v3323
        %3387 = vmatpush1.bf16.msra.mxu0 %v3322
        %3388 = vmatprep.subr.bf16.mxu0 %v3325
        %3389 = vmatpush1.bf16.msra.mxu0 %v3324
        %3390 = vmatprep.subr.bf16.mxu0 %v3327
        %3391 = vmatpush1.bf16.msra.mxu0 %v3326
        %3392 = vmatprep.subr.bf16.mxu0 %v3329
        %3393 = vmatpush1.bf16.msra.mxu0 %v3328
        %3394 = vmatprep.subr.bf16.mxu0 %v3331
        %3395 = vmatpush1.bf16.msra.mxu0 %v3330
        %3396 = vmatprep.subr.bf16.mxu0 %v3333
        %3397 = vmatpush1.bf16.msra.mxu0 %v3332
        %3398 = vmatprep.subr.bf16.mxu0 %v3335
        %3399 = vmatpush1.bf16.msra.mxu0 %v3334
        %3400 = vmatprep.subr.bf16.mxu0 %v3337
        %3401 = vmatpush1.bf16.msra.mxu0 %v3336
        %3402 = vmatprep.subr.bf16.mxu0 %v3339
        %3403 = vmatpush1.bf16.msra.mxu0 %v3338
        %3404 = vmatprep.subr.bf16.mxu0 %v3341
        %3405 = vmatpush1.bf16.msra.mxu0 %v3340
        %3406 = vmatprep.subr.bf16.mxu0 %v3343
        %3407 = vmatpush1.bf16.msra.mxu0 %v3342
        %3408 = vmatprep.mubr.bf16.mxu0 %v1131
        %3409 = vmatmul.mubr.bf16.gmra.mrb[0].mxu0 %v1130
        %v3410 = vpop.f32.mrb[0].mxu0
        %v3411 = vadd.f32 0.0, %v3410
        %v3412 = vpop.f32.mrb[0].mxu0
        %v3413 = vadd.f32 0.0, %v3412
        %v3414 = vpop.f32.mrb[0].mxu0
        %v3415 = vadd.f32 0.0, %v3414
        %v3416 = vpop.f32.mrb[0].mxu0
        %v3417 = vadd.f32 0.0, %v3416
        %3418 = vmatprep.mubr.bf16.mxu0 %v1133
        %3419 = vmatmul.mubr.bf16.gmra.mrb[0].mxu0 %v1132
        %v3420 = vpop.f32.mrb[0].mxu0
        %v3421 = vadd.f32 0.0, %v3420
        %v3422 = vpop.f32.mrb[0].mxu0
        %v3423 = vadd.f32 0.0, %v3422
        %v3424 = vpop.f32.mrb[0].mxu0
        %v3425 = vadd.f32 0.0, %v3424
        %v3426 = vpop.f32.mrb[0].mxu0
        %v3427 = vadd.f32 0.0, %v3426
        %3428 = vmatprep.mubr.bf16.mxu0 %v1135
        %3429 = vmatmul.mubr.bf16.gmra.mrb[0].mxu0 %v1134
        %v3430 = vpop.f32.mrb[0].mxu0
        %v3431 = vadd.f32 0.0, %v3430
        %v3432 = vpop.f32.mrb[0].mxu0
        %v3433 = vadd.f32 0.0, %v3432
        %v3434 = vpop.f32.mrb[0].mxu0
        %v3435 = vadd.f32 0.0, %v3434
        %v3436 = vpop.f32.mrb[0].mxu0
        %v3437 = vadd.f32 0.0, %v3436
        %3438 = vmatprep.mubr.bf16.mxu0 %v3213
        %3439 = vmatmul.mubr.bf16.gmra.mrb[0].mxu0 %v3212
        %v3440 = vpop.f32.mrb[0].mxu0
        %v3441 = vadd.f32 0.0, %v3440
        %v3442 = vpop.f32.mrb[0].mxu0
        %v3443 = vadd.f32 0.0, %v3442
        %v3444 = vpop.f32.mrb[0].mxu0
        %v3445 = vadd.f32 0.0, %v3444
        %v3446 = vpop.f32.mrb[0].mxu0
        %v3447 = vadd.f32 0.0, %v3446
        %3448 = vdwg.mxu0
        %v3449 = vadd.f32 %v3164, %v3411
        %v3450 = vadd.f32 %v3165, %v3413
        %v3451 = vadd.f32 %v3166, %v3415
        %v3452 = vadd.f32 %v3167, %v3417
        %v3453 = vadd.f32 %v3168, %v3421
        %v3454 = vadd.f32 %v3169, %v3423
        %v3455 = vadd.f32 %v3170, %v3425
        %v3456 = vadd.f32 %v3171, %v3427
        %v3457 = vadd.f32 %v3172, %v3431
        %v3458 = vadd.f32 %v3173, %v3433
        %v3459 = vadd.f32 %v3174, %v3435
        %v3460 = vadd.f32 %v3175, %v3437
        %v3461 = vadd.f32 %v3176, %v3441
        %v3462 = vadd.f32 %v3177, %v3443
        %v3463 = vadd.f32 %v3178, %v3445
        %v3464 = vadd.f32 %v3179, %v3447
        %v3465 = vld [vmem:[%s4 + $0x800] sm:$0xff]
        %v3466 = vld [vmem:[%s4 + $0x808] sm:$0xff]
        %v3467 = vld [vmem:[%s4 + $0x810] sm:$0xff]
        %v3468 = vld [vmem:[%s4 + $0x818] sm:$0xff]
        %v3469 = vld [vmem:[%s4 + $0x820] sm:$0xff]
        %v3470 = vld [vmem:[%s4 + $0x828] sm:$0xff]
        %v3471 = vld [vmem:[%s4 + $0x830] sm:$0xff]
        %v3472 = vld [vmem:[%s4 + $0x838] sm:$0xff]
        %v3473 = vld [vmem:[%s4 + $0x840] sm:$0xff]
        %v3474 = vld [vmem:[%s4 + $0x848] sm:$0xff]
        %v3475 = vld [vmem:[%s4 + $0x850] sm:$0xff]
        %v3476 = vld [vmem:[%s4 + $0x858] sm:$0xff]
        %v3477 = vld [vmem:[%s4 + $0x860] sm:$0xff]
        %v3478 = vld [vmem:[%s4 + $0x868] sm:$0xff]
        %v3479 = vld [vmem:[%s4 + $0x870] sm:$0xff]
        %v3480 = vld [vmem:[%s4 + $0x878] sm:$0xff]
        %v3481 = vld [vmem:[%s4 + $0x880] sm:$0xff]
        %v3482 = vld [vmem:[%s4 + $0x888] sm:$0xff]
        %v3483 = vld [vmem:[%s4 + $0x890] sm:$0xff]
        %v3484 = vld [vmem:[%s4 + $0x898] sm:$0xff]
        %v3485 = vld [vmem:[%s4 + $0x8a0] sm:$0xff]
        %v3486 = vld [vmem:[%s4 + $0x8a8] sm:$0xff]
        %v3487 = vld [vmem:[%s4 + $0x8b0] sm:$0xff]
        %v3488 = vld [vmem:[%s4 + $0x8b8] sm:$0xff]
        %v3489 = vld [vmem:[%s4 + $0x8c0] sm:$0xff]
        %v3490 = vld [vmem:[%s4 + $0x8c8] sm:$0xff]
        %v3491 = vld [vmem:[%s4 + $0x8d0] sm:$0xff]
        %v3492 = vld [vmem:[%s4 + $0x8d8] sm:$0xff]
        %v3493 = vld [vmem:[%s4 + $0x8e0] sm:$0xff]
        %v3494 = vld [vmem:[%s4 + $0x8e8] sm:$0xff]
        %v3495 = vld [vmem:[%s4 + $0x8f0] sm:$0xff]
        %v3496 = vld [vmem:[%s4 + $0x8f8] sm:$0xff]
        %v3497 = vpack.c.b16 %v1693, %v2628
        %v3498 = vpack.c.b16 %v1694, %v2629
        %v3533 = vunpack.c.l.b16 %v3465
        %v3534 = vunpack.c.h.b16 %v3465
        %v3535 = vunpack.c.l.b16 %v3466
        %v3536 = vunpack.c.h.b16 %v3466
        %v3537 = vunpack.c.l.b16 %v3467
        %v3538 = vunpack.c.h.b16 %v3467
        %v3539 = vunpack.c.l.b16 %v3468
        %v3540 = vunpack.c.h.b16 %v3468
        %v3541 = vunpack.c.l.b16 %v3469
        %v3542 = vunpack.c.h.b16 %v3469
        %v3543 = vunpack.c.l.b16 %v3470
        %v3544 = vunpack.c.h.b16 %v3470
        %v3545 = vunpack.c.l.b16 %v3471
        %v3546 = vunpack.c.h.b16 %v3471
        %v3547 = vunpack.c.l.b16 %v3472
        %v3548 = vunpack.c.h.b16 %v3472
        %v3549 = vunpack.c.l.b16 %v3473
        %v3550 = vunpack.c.h.b16 %v3473
        %v3551 = vunpack.c.l.b16 %v3474
        %v3552 = vunpack.c.h.b16 %v3474
        %v3553 = vunpack.c.l.b16 %v3475
        %v3554 = vunpack.c.h.b16 %v3475
        %v3555 = vunpack.c.l.b16 %v3476
        %v3556 = vunpack.c.h.b16 %v3476
        %v3557 = vunpack.c.l.b16 %v3477
        %v3558 = vunpack.c.h.b16 %v3477
        %v3559 = vunpack.c.l.b16 %v3478
        %v3560 = vunpack.c.h.b16 %v3478
        %v3561 = vunpack.c.l.b16 %v3479
        %v3562 = vunpack.c.h.b16 %v3479
        %v3563 = vunpack.c.l.b16 %v3480
        %v3564 = vunpack.c.h.b16 %v3480
        %v3565 = vunpack.c.l.b16 %v3481
        %v3566 = vunpack.c.h.b16 %v3481
        %v3567 = vunpack.c.l.b16 %v3482
        %v3568 = vunpack.c.h.b16 %v3482
        %v3569 = vunpack.c.l.b16 %v3483
        %v3570 = vunpack.c.h.b16 %v3483
        %v3571 = vunpack.c.l.b16 %v3484
        %v3572 = vunpack.c.h.b16 %v3484
        %v3573 = vunpack.c.l.b16 %v3485
        %v3574 = vunpack.c.h.b16 %v3485
        %v3575 = vunpack.c.l.b16 %v3486
        %v3576 = vunpack.c.h.b16 %v3486
        %v3577 = vunpack.c.l.b16 %v3487
        %v3578 = vunpack.c.h.b16 %v3487
        %v3579 = vunpack.c.l.b16 %v3488
        %v3580 = vunpack.c.h.b16 %v3488
        %v3581 = vunpack.c.l.b16 %v3489
        %v3582 = vunpack.c.h.b16 %v3489
        %v3583 = vunpack.c.l.b16 %v3490
        %v3584 = vunpack.c.h.b16 %v3490
        %v3585 = vunpack.c.l.b16 %v3491
        %v3586 = vunpack.c.h.b16 %v3491
        %v3587 = vunpack.c.l.b16 %v3492
        %v3588 = vunpack.c.h.b16 %v3492
        %v3589 = vunpack.c.l.b16 %v3493
        %v3590 = vunpack.c.h.b16 %v3493
        %v3591 = vunpack.c.l.b16 %v3494
        %v3592 = vunpack.c.h.b16 %v3494
        %v3593 = vunpack.c.l.b16 %v3495
        %v3594 = vunpack.c.h.b16 %v3495
        %v3595 = vunpack.c.l.b16 %v3496
        %v3596 = vunpack.c.h.b16 %v3496
        %v3597 = vpack.c.b16 %v3535, %v3533
        %v3598 = vpack.c.b16 %v3536, %v3534
        %v3599 = vpack.c.b16 %v3539, %v3537
        %v3600 = vpack.c.b16 %v3540, %v3538
        %v3601 = vpack.c.b16 %v3543, %v3541
        %v3602 = vpack.c.b16 %v3544, %v3542
        %v3603 = vpack.c.b16 %v3547, %v3545
        %v3604 = vpack.c.b16 %v3548, %v3546
        %v3605 = vpack.c.b16 %v3551, %v3549
        %v3606 = vpack.c.b16 %v3552, %v3550
        %v3607 = vpack.c.b16 %v3555, %v3553
        %v3608 = vpack.c.b16 %v3556, %v3554
        %v3609 = vpack.c.b16 %v3559, %v3557
        %v3610 = vpack.c.b16 %v3560, %v3558
        %v3611 = vpack.c.b16 %v3563, %v3561
        %v3612 = vpack.c.b16 %v3564, %v3562
        %v3613 = vpack.c.b16 %v3567, %v3565
        %v3614 = vpack.c.b16 %v3568, %v3566
        %v3615 = vpack.c.b16 %v3571, %v3569
        %v3616 = vpack.c.b16 %v3572, %v3570
        %v3617 = vpack.c.b16 %v3575, %v3573
        %v3618 = vpack.c.b16 %v3576, %v3574
        %v3619 = vpack.c.b16 %v3579, %v3577
        %v3620 = vpack.c.b16 %v3580, %v3578
        %v3621 = vpack.c.b16 %v3583, %v3581
        %v3622 = vpack.c.b16 %v3584, %v3582
        %v3623 = vpack.c.b16 %v3587, %v3585
        %v3624 = vpack.c.b16 %v3588, %v3586
        %v3625 = vpack.c.b16 %v3591, %v3589
        %v3626 = vpack.c.b16 %v3592, %v3590
        %v3627 = vpack.c.b16 %v3595, %v3593
        %v3628 = vpack.c.b16 %v3596, %v3594
        %3661 = vmatprep.subr.bf16.mxu0 %v3598
        %3662 = vmatpush1.bf16.msra.mxu0 %v3597
        %3663 = vmatprep.subr.bf16.mxu0 %v3600
        %3664 = vmatpush1.bf16.msra.mxu0 %v3599
        %3665 = vmatprep.subr.bf16.mxu0 %v3602
        %3666 = vmatpush1.bf16.msra.mxu0 %v3601
        %3667 = vmatprep.subr.bf16.mxu0 %v3604
        %3668 = vmatpush1.bf16.msra.mxu0 %v3603
        %3669 = vmatprep.subr.bf16.mxu0 %v3606
        %3670 = vmatpush1.bf16.msra.mxu0 %v3605
        %3671 = vmatprep.subr.bf16.mxu0 %v3608
        %3672 = vmatpush1.bf16.msra.mxu0 %v3607
        %3673 = vmatprep.subr.bf16.mxu0 %v3610
        %3674 = vmatpush1.bf16.msra.mxu0 %v3609
        %3675 = vmatprep.subr.bf16.mxu0 %v3612
        %3676 = vmatpush1.bf16.msra.mxu0 %v3611
        %3677 = vmatprep.subr.bf16.mxu0 %v3614
        %3678 = vmatpush1.bf16.msra.mxu0 %v3613
        %3679 = vmatprep.subr.bf16.mxu0 %v3616
        %3680 = vmatpush1.bf16.msra.mxu0 %v3615
        %3681 = vmatprep.subr.bf16.mxu0 %v3618
        %3682 = vmatpush1.bf16.msra.mxu0 %v3617
        %3683 = vmatprep.subr.bf16.mxu0 %v3620
        %3684 = vmatpush1.bf16.msra.mxu0 %v3619
        %3685 = vmatprep.subr.bf16.mxu0 %v3622
        %3686 = vmatpush1.bf16.msra.mxu0 %v3621
        %3687 = vmatprep.subr.bf16.mxu0 %v3624
        %3688 = vmatpush1.bf16.msra.mxu0 %v3623
        %3689 = vmatprep.subr.bf16.mxu0 %v3626
        %3690 = vmatpush1.bf16.msra.mxu0 %v3625
        %3691 = vmatprep.subr.bf16.mxu0 %v3628
        %3692 = vmatpush1.bf16.msra.mxu0 %v3627
        %3693 = vmatprep.mubr.bf16.mxu0 %v1712
        %3694 = vmatmul.mubr.bf16.gmra.mrb[0].mxu0 %v1711
        %v3695 = vpop.f32.mrb[0].mxu0
        %v3696 = vadd.f32 0.0, %v3695
        %v3697 = vpop.f32.mrb[0].mxu0
        %v3698 = vadd.f32 0.0, %v3697
        %v3699 = vpop.f32.mrb[0].mxu0
        %v3700 = vadd.f32 0.0, %v3699
        %v3701 = vpop.f32.mrb[0].mxu0
        %v3702 = vadd.f32 0.0, %v3701
        %3703 = vmatprep.mubr.bf16.mxu0 %v1714
        %3704 = vmatmul.mubr.bf16.gmra.mrb[0].mxu0 %v1713
        %v3705 = vpop.f32.mrb[0].mxu0
        %v3706 = vadd.f32 0.0, %v3705
        %v3707 = vpop.f32.mrb[0].mxu0
        %v3708 = vadd.f32 0.0, %v3707
        %v3709 = vpop.f32.mrb[0].mxu0
        %v3710 = vadd.f32 0.0, %v3709
        %v3711 = vpop.f32.mrb[0].mxu0
        %v3712 = vadd.f32 0.0, %v3711
        %3713 = vmatprep.mubr.bf16.mxu0 %v1716
        %3714 = vmatmul.mubr.bf16.gmra.mrb[0].mxu0 %v1715
        %v3715 = vpop.f32.mrb[0].mxu0
        %v3716 = vadd.f32 0.0, %v3715
        %v3717 = vpop.f32.mrb[0].mxu0
        %v3718 = vadd.f32 0.0, %v3717
        %v3719 = vpop.f32.mrb[0].mxu0
        %v3720 = vadd.f32 0.0, %v3719
        %v3721 = vpop.f32.mrb[0].mxu0
        %v3722 = vadd.f32 0.0, %v3721
        %3723 = vmatprep.mubr.bf16.mxu0 %v3498
        %3724 = vmatmul.mubr.bf16.gmra.mrb[0].mxu0 %v3497
        %v3725 = vpop.f32.mrb[0].mxu0
        %v3726 = vadd.f32 0.0, %v3725
        %v3727 = vpop.f32.mrb[0].mxu0
        %v3728 = vadd.f32 0.0, %v3727
        %v3729 = vpop.f32.mrb[0].mxu0
        %v3730 = vadd.f32 0.0, %v3729
        %v3731 = vpop.f32.mrb[0].mxu0
        %v3732 = vadd.f32 0.0, %v3731
        %3733 = vdwg.mxu0
        %v3734 = vadd.f32 %v3449, %v3696
        %v3735 = vadd.f32 %v3450, %v3698
        %v3736 = vadd.f32 %v3451, %v3700
        %v3737 = vadd.f32 %v3452, %v3702
        %v3738 = vadd.f32 %v3453, %v3706
        %v3739 = vadd.f32 %v3454, %v3708
        %v3740 = vadd.f32 %v3455, %v3710
        %v3741 = vadd.f32 %v3456, %v3712
        %v3742 = vadd.f32 %v3457, %v3716
        %v3743 = vadd.f32 %v3458, %v3718
        %v3744 = vadd.f32 %v3459, %v3720
        %v3745 = vadd.f32 %v3460, %v3722
        %v3746 = vadd.f32 %v3461, %v3726
        %v3747 = vadd.f32 %v3462, %v3728
        %v3748 = vadd.f32 %v3463, %v3730
        %v3749 = vadd.f32 %v3464, %v3732
        %v3751 = vlaneseq
        %v3752 = vshrl.u32 %v3751, 7
        %v3753 = vsub.s32 0, %v3752
        %v3754 = vrot.slane %v689, %v3753
        %v3755 = vlaneseq
        %v3756 = vshrl.u32 %v3755, 7
        %v3757 = vsub.s32 1, %v3756
        %v3758 = vrot.slane %v689, %v3757
        %v3761 = vadd.f32 %v3734, %v3754
        %v3762 = vadd.f32 %v3735, %v3758
        %v3763 = vadd.f32 %v3736, %v3754
        %v3764 = vadd.f32 %v3737, %v3758
        %v3765 = vadd.f32 %v3738, %v3754
        %v3766 = vadd.f32 %v3739, %v3758
        %v3767 = vadd.f32 %v3740, %v3754
        %v3768 = vadd.f32 %v3741, %v3758
        %v3769 = vadd.f32 %v3742, %v3754
        %v3770 = vadd.f32 %v3743, %v3758
        %v3771 = vadd.f32 %v3744, %v3754
        %v3772 = vadd.f32 %v3745, %v3758
        %v3773 = vadd.f32 %v3746, %v3754
        %v3774 = vadd.f32 %v3747, %v3758
        %v3775 = vadd.f32 %v3748, %v3754
        %v3776 = vadd.f32 %v3749, %v3758
        %v3777 = vmax.f32 %v3761, 0.0
        %v3778 = vmax.f32 %v3762, 0.0
        %v3779 = vmax.f32 %v3763, 0.0
        %v3780 = vmax.f32 %v3764, 0.0
        %v3781 = vmax.f32 %v3765, 0.0
        %v3782 = vmax.f32 %v3766, 0.0
        %v3783 = vmax.f32 %v3767, 0.0
        %v3784 = vmax.f32 %v3768, 0.0
        %v3785 = vmax.f32 %v3769, 0.0
        %v3786 = vmax.f32 %v3770, 0.0
        %v3787 = vmax.f32 %v3771, 0.0
        %v3788 = vmax.f32 %v3772, 0.0
        %v3789 = vmax.f32 %v3773, 0.0
        %v3790 = vmax.f32 %v3774, 0.0
        %v3791 = vmax.f32 %v3775, 0.0
        %v3792 = vmax.f32 %v3776, 0.0
        %v3793 = vld [vmem:[%s6] sm:$0xf]
        %v3794 = vld [vmem:[%s6 + $0x4] sm:$0xf]
        %v3795 = vld [vmem:[%s6 + $0x8] sm:$0xf]
        %v3796 = vld [vmem:[%s6 + $0xc] sm:$0xf]
        %v3797 = vld [vmem:[%s6 + $0x10] sm:$0xf]
        %v3798 = vld [vmem:[%s6 + $0x14] sm:$0xf]
        %v3799 = vld [vmem:[%s6 + $0x18] sm:$0xf]
        %v3800 = vld [vmem:[%s6 + $0x1c] sm:$0xf]
        %v3801 = vld [vmem:[%s6 + $0x20] sm:$0xf]
        %v3802 = vld [vmem:[%s6 + $0x24] sm:$0xf]
        %v3803 = vld [vmem:[%s6 + $0x28] sm:$0xf]
        %v3804 = vld [vmem:[%s6 + $0x2c] sm:$0xf]
        %v3805 = vld [vmem:[%s6 + $0x30] sm:$0x1]
        %v3806 = vld [vmem:[%s7] sm:$0x1]
        %v3808 = vlaneseq
        %v3809 = vshrl.u32 %v3808, 7
        %v3810 = vsub.s32 0, %v3809
        %v3811 = vrot.slane %v3806, %v3810
        %v3821 = vunpack.c.l.b16 %v495
        %v3822 = vunpack.c.l.b16 %v496
        %v3823 = vunpack.c.l.b16 %v497
        %v3824 = vunpack.c.l.b16 %v498
        %v3825 = vunpack.c.l.b16 %v499
        %v3826 = vunpack.c.l.b16 %v500
        %v3827 = vunpack.c.l.b16 %v501
        %v3828 = vunpack.c.l.b16 %v502
        %v3829 = vpack.c.b16 %v3822, %v3821
        %v3830 = vpack.c.b16 %v3824, %v3823
        %v3831 = vpack.c.b16 %v3826, %v3825
        %v3832 = vpack.c.b16 %v3828, %v3827
        %v3846 = vunpack.c.l.b16 %v3793
        %v3847 = vunpack.c.l.b16 %v3794
        %v3848 = vunpack.c.l.b16 %v3795
        %v3849 = vunpack.c.l.b16 %v3796
        %v3850 = vunpack.c.l.b16 %v3797
        %v3851 = vunpack.c.l.b16 %v3798
        %v3852 = vunpack.c.l.b16 %v3799
        %v3853 = vunpack.c.l.b16 %v3800
        %v3854 = vunpack.c.l.b16 %v3801
        %v3855 = vunpack.c.l.b16 %v3802
        %v3856 = vunpack.c.l.b16 %v3803
        %v3857 = vunpack.c.l.b16 %v3804
        %v3858 = vunpack.c.l.b16 %v3805
        %v3859 = vpack.c.b16 %v3847, %v3846
        %v3860 = vpack.c.b16 %v3849, %v3848
        %v3861 = vpack.c.b16 %v3851, %v3850
        %v3862 = vpack.c.b16 %v3853, %v3852
        %v3863 = vpack.c.b16 %v3855, %v3854
        %v3864 = vpack.c.b16 %v3857, %v3856
        %v3865 = vpack.c.b16 %v3858, %v3858
        %vm3872 = vcmask 801792
        %v3874 = vsel %vm3872, %v3829, 0
        %v3877 = vsel %vm3872, %v3830, 0
        %v3880 = vsel %vm3872, %v3831, 0
        %v3883 = vsel %vm3872, %v3832, 0
        %vm3885 = vcmask 1040384
        %v3887 = vsel %vm3885, %v3865, 0
        %3889 = vmatprep.subr.bf16.mxu0 0
        %3890 = vmatpush1.bf16.msra.mxu0 %v3859
        %3891 = vmatprep.subr.bf16.mxu0 0
        %3892 = vmatpush1.bf16.msra.mxu0 %v3860
        %3893 = vmatprep.subr.bf16.mxu0 0
        %3894 = vmatpush1.bf16.msra.mxu0 %v3861
        %3895 = vmatprep.subr.bf16.mxu0 0
        %3896 = vmatpush1.bf16.msra.mxu0 %v3862
        %3897 = vmatprep.subr.bf16.mxu0 0
        %3898 = vmatpush1.bf16.msra.mxu0 %v3863
        %3899 = vmatprep.subr.bf16.mxu0 0
        %3900 = vmatpush1.bf16.msra.mxu0 %v3864
        %3901 = vmatprep.subr.bf16.mxu0 0
        %3902 = vmatpush1.bf16.msra.mxu0 %v3887
        %3903 = vmatprep.subr.bf16.mxu0 0
        %3904 = vmatpush1.bf16.msra.mxu0 0
        %3905 = vmatprep.subr.bf16.mxu0 0
        %3906 = vmatpush1.bf16.msra.mxu0 0
        %3907 = vmatprep.subr.bf16.mxu0 0
        %3908 = vmatpush1.bf16.msra.mxu0 0
        %3909 = vmatprep.subr.bf16.mxu0 0
        %3910 = vmatpush1.bf16.msra.mxu0 0
        %3911 = vmatprep.subr.bf16.mxu0 0
        %3912 = vmatpush1.bf16.msra.mxu0 0
        %3913 = vmatprep.subr.bf16.mxu0 0
        %3914 = vmatpush1.bf16.msra.mxu0 0
        %3915 = vmatprep.subr.bf16.mxu0 0
        %3916 = vmatpush1.bf16.msra.mxu0 0
        %3917 = vmatprep.subr.bf16.mxu0 0
        %3918 = vmatpush1.bf16.msra.mxu0 0
        %3919 = vmatprep.subr.bf16.mxu0 0
        %3920 = vmatpush1.bf16.msra.mxu0 0
        %3921 = vmatprep.mubr.bf16.mxu0 0
        %3922 = vmatmul.mubr.bf16.gmra.mrb[0].mxu0 %v3874
        %v3923 = vpop.f32.mrb[0].mxu0
        %v3924 = vadd.f32 %v3811, %v3923
        %v3925 = vpop.f32.mrb[0].mxu0
        %v3926 = vpop.f32.mrb[0].mxu0
        %v3927 = vadd.f32 %v3811, %v3926
        %v3928 = vpop.f32.mrb[0].mxu0
        %3929 = vmatprep.mubr.bf16.mxu0 0
        %3930 = vmatmul.mubr.bf16.gmra.mrb[0].mxu0 %v3877
        %v3931 = vpop.f32.mrb[0].mxu0
        %v3932 = vadd.f32 %v3811, %v3931
        %v3933 = vpop.f32.mrb[0].mxu0
        %v3934 = vpop.f32.mrb[0].mxu0
        %v3935 = vadd.f32 %v3811, %v3934
        %v3936 = vpop.f32.mrb[0].mxu0
        %3937 = vmatprep.mubr.bf16.mxu0 0
        %3938 = vmatmul.mubr.bf16.gmra.mrb[0].mxu0 %v3880
        %v3939 = vpop.f32.mrb[0].mxu0
        %v3940 = vadd.f32 %v3811, %v3939
        %v3941 = vpop.f32.mrb[0].mxu0
        %v3942 = vpop.f32.mrb[0].mxu0
        %v3943 = vadd.f32 %v3811, %v3942
        %v3944 = vpop.f32.mrb[0].mxu0
        %3945 = vmatprep.mubr.bf16.mxu0 0
        %3946 = vmatmul.mubr.bf16.gmra.mrb[0].mxu0 %v3883
        %v3947 = vpop.f32.mrb[0].mxu0
        %v3948 = vadd.f32 %v3811, %v3947
        %v3949 = vpop.f32.mrb[0].mxu0
        %v3950 = vpop.f32.mrb[0].mxu0
        %v3951 = vadd.f32 %v3811, %v3950
        %v3952 = vpop.f32.mrb[0].mxu0
        %3953 = vdwg.mxu0
        %v3954 = vmax.f32 %v3924, 0.0
        %v3955 = vmax.f32 %v3927, 0.0
        %v3956 = vmax.f32 %v3932, 0.0
        %v3957 = vmax.f32 %v3935, 0.0
        %v3958 = vmax.f32 %v3940, 0.0
        %v3959 = vmax.f32 %v3943, 0.0
        %v3960 = vmax.f32 %v3948, 0.0
        %v3961 = vmax.f32 %v3951, 0.0
        %v3962 = vpack.c.bf16 %v3955, %v3954
        %v3963 = vpack.c.bf16 %v3957, %v3956
        %v3964 = vpack.c.bf16 %v3959, %v3958
        %v3965 = vpack.c.bf16 %v3961, %v3960
        %v3970 = vunpack.c.l.b16 %v3962
        %v3971 = vunpack.c.h.b16 %v3962
        %v3972 = vunpack.c.l.b16 %v3963
        %v3973 = vunpack.c.h.b16 %v3963
        %v3974 = vunpack.c.l.b16 %v3964
        %v3975 = vunpack.c.h.b16 %v3964
        %v3976 = vunpack.c.l.b16 %v3965
        %v3977 = vunpack.c.h.b16 %v3965
        %v3978 = vld [vmem:[%s9] sm:$0x1]
        %v3979 = vpack.c.b16 %v3970, %v3970
        %v3980 = vpack.c.b16 %v3971, %v3971
        %v3981 = vpack.c.b16 %v3972, %v3972
        %v3982 = vpack.c.b16 %v3973, %v3973
        %v3983 = vpack.c.b16 %v3974, %v3974
        %v3984 = vpack.c.b16 %v3975, %v3975
        %v3985 = vpack.c.b16 %v3976, %v3976
        %v3986 = vpack.c.b16 %v3977, %v3977
        %v3988 = vshrl.u32 %v3979, 16
        %v3990 = vrot.slane %v3988, 7
        %v3991 = vshll.u32 %v3979, 16
        %v3993 = vor.u32 %v3990, %v3991
        %v3995 = vshrl.u32 %v3980, 16
        %v3997 = vrot.slane %v3995, 7
        %v3998 = vshll.u32 %v3980, 16
        %v4000 = vor.u32 %v3997, %v3998
        %v4002 = vshrl.u32 %v3981, 16
        %v4004 = vrot.slane %v4002, 7
        %v4005 = vshll.u32 %v3981, 16
        %v4007 = vor.u32 %v4004, %v4005
        %v4009 = vshrl.u32 %v3982, 16
        %v4011 = vrot.slane %v4009, 7
        %v4012 = vshll.u32 %v3982, 16
        %v4014 = vor.u32 %v4011, %v4012
        %v4016 = vshrl.u32 %v3983, 16
        %v4018 = vrot.slane %v4016, 7
        %v4019 = vshll.u32 %v3983, 16
        %v4021 = vor.u32 %v4018, %v4019
        %v4023 = vshrl.u32 %v3984, 16
        %v4025 = vrot.slane %v4023, 7
        %v4026 = vshll.u32 %v3984, 16
        %v4028 = vor.u32 %v4025, %v4026
        %v4030 = vshrl.u32 %v3985, 16
        %v4032 = vrot.slane %v4030, 7
        %v4033 = vshll.u32 %v3985, 16
        %v4035 = vor.u32 %v4032, %v4033
        %v4037 = vshrl.u32 %v3986, 16
        %v4039 = vrot.slane %v4037, 7
        %v4040 = vshll.u32 %v3986, 16
        %v4042 = vor.u32 %v4039, %v4040
        %v4051 = vsel %vm836, 0, %v3993
        %v4052 = vsel %vm836, 0, %v4000
        %v4053 = vsel %vm836, 0, %v4007
        %v4054 = vsel %vm836, 0, %v4014
        %v4055 = vsel %vm836, 0, %v4021
        %v4056 = vsel %vm836, 0, %v4028
        %v4057 = vsel %vm836, 0, %v4035
        %v4058 = vsel %vm836, 0, %v4042
        %v4059 = vsel %vm855, %v4051, 0
        %v4060 = vsel %vm855, %v4052, 0
        %v4061 = vsel %vm855, %v4053, 0
        %v4062 = vsel %vm855, %v4054, 0
        %v4063 = vsel %vm855, %v4055, 0
        %v4064 = vsel %vm855, %v4056, 0
        %v4065 = vsel %vm855, %v4057, 0
        %v4066 = vsel %vm855, %v4058, 0
        %v4067 = vld [vmem:[%s8] sm:$0xf]
        %v4068 = vld [vmem:[%s8 + $0x4] sm:$0xf]
        %v4069 = vld [vmem:[%s8 + $0x8] sm:$0xf]
        %v4070 = vld [vmem:[%s8 + $0xc] sm:$0xf]
        %v4071 = vld [vmem:[%s8 + $0x10] sm:$0xf]
        %v4072 = vld [vmem:[%s8 + $0x14] sm:$0xf]
        %v4073 = vld [vmem:[%s8 + $0x18] sm:$0xf]
        %v4074 = vld [vmem:[%s8 + $0x1c] sm:$0xf]
        %v4075 = vld [vmem:[%s8 + $0x20] sm:$0xf]
        %v4076 = vld [vmem:[%s8 + $0x24] sm:$0xf]
        %v4077 = vld [vmem:[%s8 + $0x28] sm:$0xf]
        %v4078 = vld [vmem:[%s8 + $0x2c] sm:$0xf]
        %v4079 = vld [vmem:[%s8 + $0x30] sm:$0xf]
        %v4080 = vld [vmem:[%s8 + $0x34] sm:$0xf]
        %v4081 = vld [vmem:[%s8 + $0x38] sm:$0xf]
        %v4082 = vld [vmem:[%s8 + $0x3c] sm:$0xf]
        %v4090 = vunpack.c.l.b16 %v4059
        %v4091 = vunpack.c.h.b16 %v4059
        %v4092 = vunpack.c.l.b16 %v4060
        %v4093 = vunpack.c.h.b16 %v4060
        %v4094 = vunpack.c.l.b16 %v4061
        %v4095 = vunpack.c.h.b16 %v4061
        %v4096 = vunpack.c.l.b16 %v4062
        %v4097 = vunpack.c.h.b16 %v4062
        %v4098 = vunpack.c.l.b16 %v4063
        %v4099 = vunpack.c.h.b16 %v4063
        %v4100 = vunpack.c.l.b16 %v4064
        %v4101 = vunpack.c.h.b16 %v4064
        %v4102 = vunpack.c.l.b16 %v4065
        %v4103 = vunpack.c.h.b16 %v4065
        %v4104 = vpack.c.b16 %v4090, %v4090
        %v4105 = vpack.c.b16 %v4091, %v4091
        %v4106 = vpack.c.b16 %v4092, %v4092
        %v4107 = vpack.c.b16 %v4093, %v4093
        %v4108 = vpack.c.b16 %v4094, %v4094
        %v4109 = vpack.c.b16 %v4095, %v4095
        %v4110 = vpack.c.b16 %v4096, %v4096
        %v4111 = vpack.c.b16 %v4097, %v4097
        %v4112 = vpack.c.b16 %v4098, %v4098
        %v4113 = vpack.c.b16 %v4099, %v4099
        %v4114 = vpack.c.b16 %v4100, %v4100
        %v4115 = vpack.c.b16 %v4101, %v4101
        %v4116 = vpack.c.b16 %v4102, %v4102
        %v4117 = vpack.c.b16 %v4103, %v4103
        %v4119 = vshrl.u32 %v4104, 16
        %v4121 = vrot.slane %v4119, 4
        %v4122 = vshll.u32 %v4104, 16
        %v4124 = vrot.slane %v4122, 5
        %v4125 = vor.u32 %v4121, %v4124
        %v4126 = vrot.slane %v4125, 4
        %v4128 = vshll.u32 %v4105, 16
        %v4130 = vrot.slane %v4128, 5
        %v4131 = vsel %vm967, %v4126, %v4130
        %v4133 = vshrl.u32 %v4106, 16
        %v4135 = vrot.slane %v4133, 4
        %v4136 = vshll.u32 %v4106, 16
        %v4138 = vrot.slane %v4136, 5
        %v4139 = vor.u32 %v4135, %v4138
        %v4140 = vrot.slane %v4139, 4
        %v4142 = vshll.u32 %v4107, 16
        %v4144 = vrot.slane %v4142, 5
        %v4145 = vsel %vm967, %v4140, %v4144
        %v4147 = vshrl.u32 %v4108, 16
        %v4149 = vrot.slane %v4147, 4
        %v4150 = vshll.u32 %v4108, 16
        %v4152 = vrot.slane %v4150, 5
        %v4153 = vor.u32 %v4149, %v4152
        %v4154 = vrot.slane %v4153, 4
        %v4156 = vshll.u32 %v4109, 16
        %v4158 = vrot.slane %v4156, 5
        %v4159 = vsel %vm967, %v4154, %v4158
        %v4161 = vshrl.u32 %v4110, 16
        %v4163 = vrot.slane %v4161, 4
        %v4164 = vshll.u32 %v4110, 16
        %v4166 = vrot.slane %v4164, 5
        %v4167 = vor.u32 %v4163, %v4166
        %v4168 = vrot.slane %v4167, 4
        %v4170 = vshll.u32 %v4111, 16
        %v4172 = vrot.slane %v4170, 5
        %v4173 = vsel %vm967, %v4168, %v4172
        %v4175 = vshrl.u32 %v4112, 16
        %v4177 = vrot.slane %v4175, 4
        %v4178 = vshll.u32 %v4112, 16
        %v4180 = vrot.slane %v4178, 5
        %v4181 = vor.u32 %v4177, %v4180
        %v4182 = vrot.slane %v4181, 4
        %v4184 = vshll.u32 %v4113, 16
        %v4186 = vrot.slane %v4184, 5
        %v4187 = vsel %vm967, %v4182, %v4186
        %v4189 = vshrl.u32 %v4114, 16
        %v4191 = vrot.slane %v4189, 4
        %v4192 = vshll.u32 %v4114, 16
        %v4194 = vrot.slane %v4192, 5
        %v4195 = vor.u32 %v4191, %v4194
        %v4196 = vrot.slane %v4195, 4
        %v4198 = vshll.u32 %v4115, 16
        %v4200 = vrot.slane %v4198, 5
        %v4201 = vsel %vm967, %v4196, %v4200
        %v4203 = vshrl.u32 %v4116, 16
        %v4205 = vrot.slane %v4203, 4
        %v4206 = vshll.u32 %v4116, 16
        %v4208 = vrot.slane %v4206, 5
        %v4209 = vor.u32 %v4205, %v4208
        %v4210 = vrot.slane %v4209, 4
        %v4212 = vshll.u32 %v4117, 16
        %v4214 = vrot.slane %v4212, 5
        %v4215 = vsel %vm967, %v4210, %v4214
        %v4216 = vld [vmem:[%s8 + $0x40] sm:$0xf]
        %v4217 = vld [vmem:[%s8 + $0x44] sm:$0xf]
        %v4218 = vld [vmem:[%s8 + $0x48] sm:$0xf]
        %v4219 = vld [vmem:[%s8 + $0x4c] sm:$0xf]
        %v4220 = vld [vmem:[%s8 + $0x50] sm:$0xf]
        %v4221 = vld [vmem:[%s8 + $0x54] sm:$0xf]
        %v4222 = vld [vmem:[%s8 + $0x58] sm:$0xf]
        %v4223 = vld [vmem:[%s8 + $0x5c] sm:$0xf]
        %v4224 = vld [vmem:[%s8 + $0x60] sm:$0xf]
        %v4225 = vld [vmem:[%s8 + $0x64] sm:$0xf]
        %v4226 = vld [vmem:[%s8 + $0x68] sm:$0xf]
        %v4227 = vld [vmem:[%s8 + $0x6c] sm:$0xf]
        %v4228 = vld [vmem:[%s8 + $0x70] sm:$0xf]
        %v4229 = vld [vmem:[%s8 + $0x74] sm:$0xf]
        %v4230 = vld [vmem:[%s8 + $0x78] sm:$0xf]
        %v4231 = vld [vmem:[%s8 + $0x7c] sm:$0xf]
        %v4232 = vunpack.c.l.b16 %v4131
        %v4233 = vunpack.c.l.b16 %v4145
        %v4234 = vunpack.c.l.b16 %v4159
        %v4235 = vunpack.c.l.b16 %v4173
        %v4236 = vunpack.c.l.b16 %v4187
        %v4237 = vunpack.c.l.b16 %v4201
        %v4238 = vunpack.c.l.b16 %v4215
        %v4239 = vpack.c.b16 %v4232, %v1112
        %v4240 = vpack.c.b16 %v4234, %v4233
        %v4241 = vpack.c.b16 %v4236, %v4235
        %v4242 = vpack.c.b16 %v4238, %v4237
        %v4263 = vunpack.c.l.b16 %v4216
        %v4264 = vunpack.c.l.b16 %v4217
        %v4265 = vunpack.c.l.b16 %v4218
        %v4266 = vunpack.c.l.b16 %v4219
        %v4267 = vunpack.c.l.b16 %v4220
        %v4268 = vunpack.c.l.b16 %v4221
        %v4269 = vunpack.c.l.b16 %v4222
        %v4270 = vunpack.c.l.b16 %v4223
        %v4271 = vunpack.c.l.b16 %v4224
        %v4272 = vunpack.c.l.b16 %v4225
        %v4273 = vunpack.c.l.b16 %v4226
        %v4274 = vunpack.c.l.b16 %v4227
        %v4275 = vunpack.c.l.b16 %v4228
        %v4276 = vunpack.c.l.b16 %v4229
        %v4277 = vunpack.c.l.b16 %v4230
        %v4278 = vunpack.c.l.b16 %v4231
        %v4279 = vpack.c.b16 %v4264, %v4263
        %v4280 = vpack.c.b16 %v4266, %v4265
        %v4281 = vpack.c.b16 %v4268, %v4267
        %v4282 = vpack.c.b16 %v4270, %v4269
        %v4283 = vpack.c.b16 %v4272, %v4271
        %v4284 = vpack.c.b16 %v4274, %v4273
        %v4285 = vpack.c.b16 %v4276, %v4275
        %v4286 = vpack.c.b16 %v4278, %v4277
        %4295 = vmatprep.subr.bf16.mxu0 0
        %4296 = vmatpush1.bf16.msra.mxu0 %v4279
        %4297 = vmatprep.subr.bf16.mxu0 0
        %4298 = vmatpush1.bf16.msra.mxu0 %v4280
        %4299 = vmatprep.subr.bf16.mxu0 0
        %4300 = vmatpush1.bf16.msra.mxu0 %v4281
        %4301 = vmatprep.subr.bf16.mxu0 0
        %4302 = vmatpush1.bf16.msra.mxu0 %v4282
        %4303 = vmatprep.subr.bf16.mxu0 0
        %4304 = vmatpush1.bf16.msra.mxu0 %v4283
        %4305 = vmatprep.subr.bf16.mxu0 0
        %4306 = vmatpush1.bf16.msra.mxu0 %v4284
        %4307 = vmatprep.subr.bf16.mxu0 0
        %4308 = vmatpush1.bf16.msra.mxu0 %v4285
        %4309 = vmatprep.subr.bf16.mxu0 0
        %4310 = vmatpush1.bf16.msra.mxu0 %v4286
        %4311 = vmatprep.subr.bf16.mxu0 0
        %4312 = vmatpush1.bf16.msra.mxu0 0
        %4313 = vmatprep.subr.bf16.mxu0 0
        %4314 = vmatpush1.bf16.msra.mxu0 0
        %4315 = vmatprep.subr.bf16.mxu0 0
        %4316 = vmatpush1.bf16.msra.mxu0 0
        %4317 = vmatprep.subr.bf16.mxu0 0
        %4318 = vmatpush1.bf16.msra.mxu0 0
        %4319 = vmatprep.subr.bf16.mxu0 0
        %4320 = vmatpush1.bf16.msra.mxu0 0
        %4321 = vmatprep.subr.bf16.mxu0 0
        %4322 = vmatpush1.bf16.msra.mxu0 0
        %4323 = vmatprep.subr.bf16.mxu0 0
        %4324 = vmatpush1.bf16.msra.mxu0 0
        %4325 = vmatprep.subr.bf16.mxu0 0
        %4326 = vmatpush1.bf16.msra.mxu0 0
        %4327 = vmatprep.mubr.bf16.mxu0 0
        %4328 = vmatmul.mubr.bf16.gmra.mrb[0].mxu0 %v4239
        %v4329 = vpop.f32.mrb[0].mxu0
        %v4330 = vadd.f32 0.0, %v4329
        %v4331 = vpop.f32.mrb[0].mxu0
        %v4332 = vpop.f32.mrb[0].mxu0
        %v4333 = vadd.f32 0.0, %v4332
        %v4334 = vpop.f32.mrb[0].mxu0
        %4335 = vmatprep.mubr.bf16.mxu0 0
        %4336 = vmatmul.mubr.bf16.gmra.mrb[0].mxu0 %v4240
        %v4337 = vpop.f32.mrb[0].mxu0
        %v4338 = vadd.f32 0.0, %v4337
        %v4339 = vpop.f32.mrb[0].mxu0
        %v4340 = vpop.f32.mrb[0].mxu0
        %v4341 = vadd.f32 0.0, %v4340
        %v4342 = vpop.f32.mrb[0].mxu0
        %4343 = vmatprep.mubr.bf16.mxu0 0
        %4344 = vmatmul.mubr.bf16.gmra.mrb[0].mxu0 %v4241
        %v4345 = vpop.f32.mrb[0].mxu0
        %v4346 = vadd.f32 0.0, %v4345
        %v4347 = vpop.f32.mrb[0].mxu0
        %v4348 = vpop.f32.mrb[0].mxu0
        %v4349 = vadd.f32 0.0, %v4348
        %v4350 = vpop.f32.mrb[0].mxu0
        %4351 = vmatprep.mubr.bf16.mxu0 0
        %4352 = vmatmul.mubr.bf16.gmra.mrb[0].mxu0 %v4242
        %v4353 = vpop.f32.mrb[0].mxu0
        %v4354 = vadd.f32 0.0, %v4353
        %v4355 = vpop.f32.mrb[0].mxu0
        %v4356 = vpop.f32.mrb[0].mxu0
        %v4357 = vadd.f32 0.0, %v4356
        %v4358 = vpop.f32.mrb[0].mxu0
        %4359 = vdwg.mxu0
        %v4360 = vpack.c.b16 %v4090, %v887
        %v4361 = vpack.c.b16 %v4094, %v4092
        %v4362 = vpack.c.b16 %v4098, %v4096
        %v4363 = vpack.c.b16 %v4102, %v4100
        %v4384 = vunpack.c.l.b16 %v4067
        %v4385 = vunpack.c.l.b16 %v4068
        %v4386 = vunpack.c.l.b16 %v4069
        %v4387 = vunpack.c.l.b16 %v4070
        %v4388 = vunpack.c.l.b16 %v4071
        %v4389 = vunpack.c.l.b16 %v4072
        %v4390 = vunpack.c.l.b16 %v4073
        %v4391 = vunpack.c.l.b16 %v4074
        %v4392 = vunpack.c.l.b16 %v4075
        %v4393 = vunpack.c.l.b16 %v4076
        %v4394 = vunpack.c.l.b16 %v4077
        %v4395 = vunpack.c.l.b16 %v4078
        %v4396 = vunpack.c.l.b16 %v4079
        %v4397 = vunpack.c.l.b16 %v4080
        %v4398 = vunpack.c.l.b16 %v4081
        %v4399 = vunpack.c.l.b16 %v4082
        %v4400 = vpack.c.b16 %v4385, %v4384
        %v4401 = vpack.c.b16 %v4387, %v4386
        %v4402 = vpack.c.b16 %v4389, %v4388
        %v4403 = vpack.c.b16 %v4391, %v4390
        %v4404 = vpack.c.b16 %v4393, %v4392
        %v4405 = vpack.c.b16 %v4395, %v4394
        %v4406 = vpack.c.b16 %v4397, %v4396
        %v4407 = vpack.c.b16 %v4399, %v4398
        %4416 = vmatprep.subr.bf16.mxu0 0
        %4417 = vmatpush1.bf16.msra.mxu0 %v4400
        %4418 = vmatprep.subr.bf16.mxu0 0
        %4419 = vmatpush1.bf16.msra.mxu0 %v4401
        %4420 = vmatprep.subr.bf16.mxu0 0
        %4421 = vmatpush1.bf16.msra.mxu0 %v4402
        %4422 = vmatprep.subr.bf16.mxu0 0
        %4423 = vmatpush1.bf16.msra.mxu0 %v4403
        %4424 = vmatprep.subr.bf16.mxu0 0
        %4425 = vmatpush1.bf16.msra.mxu0 %v4404
        %4426 = vmatprep.subr.bf16.mxu0 0
        %4427 = vmatpush1.bf16.msra.mxu0 %v4405
        %4428 = vmatprep.subr.bf16.mxu0 0
        %4429 = vmatpush1.bf16.msra.mxu0 %v4406
        %4430 = vmatprep.subr.bf16.mxu0 0
        %4431 = vmatpush1.bf16.msra.mxu0 %v4407
        %4432 = vmatprep.subr.bf16.mxu0 0
        %4433 = vmatpush1.bf16.msra.mxu0 0
        %4434 = vmatprep.subr.bf16.mxu0 0
        %4435 = vmatpush1.bf16.msra.mxu0 0
        %4436 = vmatprep.subr.bf16.mxu0 0
        %4437 = vmatpush1.bf16.msra.mxu0 0
        %4438 = vmatprep.subr.bf16.mxu0 0
        %4439 = vmatpush1.bf16.msra.mxu0 0
        %4440 = vmatprep.subr.bf16.mxu0 0
        %4441 = vmatpush1.bf16.msra.mxu0 0
        %4442 = vmatprep.subr.bf16.mxu0 0
        %4443 = vmatpush1.bf16.msra.mxu0 0
        %4444 = vmatprep.subr.bf16.mxu0 0
        %4445 = vmatpush1.bf16.msra.mxu0 0
        %4446 = vmatprep.subr.bf16.mxu0 0
        %4447 = vmatpush1.bf16.msra.mxu0 0
        %4448 = vmatprep.mubr.bf16.mxu0 0
        %4449 = vmatmul.mubr.bf16.gmra.mrb[0].mxu0 %v4360
        %v4450 = vpop.f32.mrb[0].mxu0
        %v4451 = vadd.f32 %v4330, %v4450
        %v4452 = vpop.f32.mrb[0].mxu0
        %v4453 = vpop.f32.mrb[0].mxu0
        %v4454 = vadd.f32 %v4333, %v4453
        %v4455 = vpop.f32.mrb[0].mxu0
        %4456 = vmatprep.mubr.bf16.mxu0 0
        %4457 = vmatmul.mubr.bf16.gmra.mrb[0].mxu0 %v4361
        %v4458 = vpop.f32.mrb[0].mxu0
        %v4459 = vadd.f32 %v4338, %v4458
        %v4460 = vpop.f32.mrb[0].mxu0
        %v4461 = vpop.f32.mrb[0].mxu0
        %v4462 = vadd.f32 %v4341, %v4461
        %v4463 = vpop.f32.mrb[0].mxu0
        %4464 = vmatprep.mubr.bf16.mxu0 0
        %4465 = vmatmul.mubr.bf16.gmra.mrb[0].mxu0 %v4362
        %v4466 = vpop.f32.mrb[0].mxu0
        %v4467 = vadd.f32 %v4346, %v4466
        %v4468 = vpop.f32.mrb[0].mxu0
        %v4469 = vpop.f32.mrb[0].mxu0
        %v4470 = vadd.f32 %v4349, %v4469
        %v4471 = vpop.f32.mrb[0].mxu0
        %4472 = vmatprep.mubr.bf16.mxu0 0
        %4473 = vmatmul.mubr.bf16.gmra.mrb[0].mxu0 %v4363
        %v4474 = vpop.f32.mrb[0].mxu0
        %v4475 = vadd.f32 %v4354, %v4474
        %v4476 = vpop.f32.mrb[0].mxu0
        %v4477 = vpop.f32.mrb[0].mxu0
        %v4478 = vadd.f32 %v4357, %v4477
        %v4479 = vpop.f32.mrb[0].mxu0
        %4480 = vdwg.mxu0
        %v4481 = vrot.slane %v4104, 5
        %v4482 = vrot.slane %v4481, 4
        %v4483 = vrot.slane %v4105, 5
        %v4484 = vsel %vm1628, %v4482, %v4483
        %v4485 = vrot.slane %v4106, 5
        %v4486 = vrot.slane %v4485, 4
        %v4487 = vrot.slane %v4107, 5
        %v4488 = vsel %vm1628, %v4486, %v4487
        %v4489 = vrot.slane %v4108, 5
        %v4490 = vrot.slane %v4489, 4
        %v4491 = vrot.slane %v4109, 5
        %v4492 = vsel %vm1628, %v4490, %v4491
        %v4493 = vrot.slane %v4110, 5
        %v4494 = vrot.slane %v4493, 4
        %v4495 = vrot.slane %v4111, 5
        %v4496 = vsel %vm1628, %v4494, %v4495
        %v4497 = vrot.slane %v4112, 5
        %v4498 = vrot.slane %v4497, 4
        %v4499 = vrot.slane %v4113, 5
        %v4500 = vsel %vm1628, %v4498, %v4499
        %v4501 = vrot.slane %v4114, 5
        %v4502 = vrot.slane %v4501, 4
        %v4503 = vrot.slane %v4115, 5
        %v4504 = vsel %vm1628, %v4502, %v4503
        %v4505 = vrot.slane %v4116, 5
        %v4506 = vrot.slane %v4505, 4
        %v4507 = vrot.slane %v4117, 5
        %v4508 = vsel %vm1628, %v4506, %v4507
        %v4509 = vld [vmem:[%s8 + $0x80] sm:$0xf]
        %v4510 = vld [vmem:[%s8 + $0x84] sm:$0xf]
        %v4511 = vld [vmem:[%s8 + $0x88] sm:$0xf]
        %v4512 = vld [vmem:[%s8 + $0x8c] sm:$0xf]
        %v4513 = vld [vmem:[%s8 + $0x90] sm:$0xf]
        %v4514 = vld [vmem:[%s8 + $0x94] sm:$0xf]
        %v4515 = vld [vmem:[%s8 + $0x98] sm:$0xf]
        %v4516 = vld [vmem:[%s8 + $0x9c] sm:$0xf]
        %v4517 = vld [vmem:[%s8 + $0xa0] sm:$0xf]
        %v4518 = vld [vmem:[%s8 + $0xa4] sm:$0xf]
        %v4519 = vld [vmem:[%s8 + $0xa8] sm:$0xf]
        %v4520 = vld [vmem:[%s8 + $0xac] sm:$0xf]
        %v4521 = vld [vmem:[%s8 + $0xb0] sm:$0xf]
        %v4522 = vld [vmem:[%s8 + $0xb4] sm:$0xf]
        %v4523 = vld [vmem:[%s8 + $0xb8] sm:$0xf]
        %v4524 = vld [vmem:[%s8 + $0xbc] sm:$0xf]
        %v4525 = vunpack.c.l.b16 %v4484
        %v4526 = vunpack.c.l.b16 %v4488
        %v4527 = vunpack.c.l.b16 %v4492
        %v4528 = vunpack.c.l.b16 %v4496
        %v4529 = vunpack.c.l.b16 %v4500
        %v4530 = vunpack.c.l.b16 %v4504
        %v4531 = vunpack.c.l.b16 %v4508
        %v4532 = vpack.c.b16 %v4525, %v1693
        %v4533 = vpack.c.b16 %v4527, %v4526
        %v4534 = vpack.c.b16 %v4529, %v4528
        %v4535 = vpack.c.b16 %v4531, %v4530
        %v4556 = vunpack.c.l.b16 %v4509
        %v4557 = vunpack.c.l.b16 %v4510
        %v4558 = vunpack.c.l.b16 %v4511
        %v4559 = vunpack.c.l.b16 %v4512
        %v4560 = vunpack.c.l.b16 %v4513
        %v4561 = vunpack.c.l.b16 %v4514
        %v4562 = vunpack.c.l.b16 %v4515
        %v4563 = vunpack.c.l.b16 %v4516
        %v4564 = vunpack.c.l.b16 %v4517
        %v4565 = vunpack.c.l.b16 %v4518
        %v4566 = vunpack.c.l.b16 %v4519
        %v4567 = vunpack.c.l.b16 %v4520
        %v4568 = vunpack.c.l.b16 %v4521
        %v4569 = vunpack.c.l.b16 %v4522
        %v4570 = vunpack.c.l.b16 %v4523
        %v4571 = vunpack.c.l.b16 %v4524
        %v4572 = vpack.c.b16 %v4557, %v4556
        %v4573 = vpack.c.b16 %v4559, %v4558
        %v4574 = vpack.c.b16 %v4561, %v4560
        %v4575 = vpack.c.b16 %v4563, %v4562
        %v4576 = vpack.c.b16 %v4565, %v4564
        %v4577 = vpack.c.b16 %v4567, %v4566
        %v4578 = vpack.c.b16 %v4569, %v4568
        %v4579 = vpack.c.b16 %v4571, %v4570
        %4588 = vmatprep.subr.bf16.mxu0 0
        %4589 = vmatpush1.bf16.msra.mxu0 %v4572
        %4590 = vmatprep.subr.bf16.mxu0 0
        %4591 = vmatpush1.bf16.msra.mxu0 %v4573
        %4592 = vmatprep.subr.bf16.mxu0 0
        %4593 = vmatpush1.bf16.msra.mxu0 %v4574
        %4594 = vmatprep.subr.bf16.mxu0 0
        %4595 = vmatpush1.bf16.msra.mxu0 %v4575
        %4596 = vmatprep.subr.bf16.mxu0 0
        %4597 = vmatpush1.bf16.msra.mxu0 %v4576
        %4598 = vmatprep.subr.bf16.mxu0 0
        %4599 = vmatpush1.bf16.msra.mxu0 %v4577
        %4600 = vmatprep.subr.bf16.mxu0 0
        %4601 = vmatpush1.bf16.msra.mxu0 %v4578
        %4602 = vmatprep.subr.bf16.mxu0 0
        %4603 = vmatpush1.bf16.msra.mxu0 %v4579
        %4604 = vmatprep.subr.bf16.mxu0 0
        %4605 = vmatpush1.bf16.msra.mxu0 0
        %4606 = vmatprep.subr.bf16.mxu0 0
        %4607 = vmatpush1.bf16.msra.mxu0 0
        %4608 = vmatprep.subr.bf16.mxu0 0
        %4609 = vmatpush1.bf16.msra.mxu0 0
        %4610 = vmatprep.subr.bf16.mxu0 0
        %4611 = vmatpush1.bf16.msra.mxu0 0
        %4612 = vmatprep.subr.bf16.mxu0 0
        %4613 = vmatpush1.bf16.msra.mxu0 0
        %4614 = vmatprep.subr.bf16.mxu0 0
        %4615 = vmatpush1.bf16.msra.mxu0 0
        %4616 = vmatprep.subr.bf16.mxu0 0
        %4617 = vmatpush1.bf16.msra.mxu0 0
        %4618 = vmatprep.subr.bf16.mxu0 0
        %4619 = vmatpush1.bf16.msra.mxu0 0
        %4620 = vmatprep.mubr.bf16.mxu0 0
        %4621 = vmatmul.mubr.bf16.gmra.mrb[0].mxu0 %v4532
        %v4622 = vpop.f32.mrb[0].mxu0
        %v4623 = vadd.f32 0.0, %v4622
        %v4624 = vpop.f32.mrb[0].mxu0
        %v4625 = vpop.f32.mrb[0].mxu0
        %v4626 = vadd.f32 0.0, %v4625
        %v4627 = vpop.f32.mrb[0].mxu0
        %4628 = vmatprep.mubr.bf16.mxu0 0
        %4629 = vmatmul.mubr.bf16.gmra.mrb[0].mxu0 %v4533
        %v4630 = vpop.f32.mrb[0].mxu0
        %v4631 = vadd.f32 0.0, %v4630
        %v4632 = vpop.f32.mrb[0].mxu0
        %v4633 = vpop.f32.mrb[0].mxu0
        %v4634 = vadd.f32 0.0, %v4633
        %v4635 = vpop.f32.mrb[0].mxu0
        %4636 = vmatprep.mubr.bf16.mxu0 0
        %4637 = vmatmul.mubr.bf16.gmra.mrb[0].mxu0 %v4534
        %v4638 = vpop.f32.mrb[0].mxu0
        %v4639 = vadd.f32 0.0, %v4638
        %v4640 = vpop.f32.mrb[0].mxu0
        %v4641 = vpop.f32.mrb[0].mxu0
        %v4642 = vadd.f32 0.0, %v4641
        %v4643 = vpop.f32.mrb[0].mxu0
        %4644 = vmatprep.mubr.bf16.mxu0 0
        %4645 = vmatmul.mubr.bf16.gmra.mrb[0].mxu0 %v4535
        %v4646 = vpop.f32.mrb[0].mxu0
        %v4647 = vadd.f32 0.0, %v4646
        %v4648 = vpop.f32.mrb[0].mxu0
        %v4649 = vpop.f32.mrb[0].mxu0
        %v4650 = vadd.f32 0.0, %v4649
        %v4651 = vpop.f32.mrb[0].mxu0
        %4652 = vdwg.mxu0
        %v4653 = vadd.f32 %v4451, %v4623
        %v4654 = vadd.f32 %v4454, %v4626
        %v4655 = vadd.f32 %v4459, %v4631
        %v4656 = vadd.f32 %v4462, %v4634
        %v4657 = vadd.f32 %v4467, %v4639
        %v4658 = vadd.f32 %v4470, %v4642
        %v4659 = vadd.f32 %v4475, %v4647
        %v4660 = vadd.f32 %v4478, %v4650
        %v4661 = vld [vmem:[%s8 + $0xc0] sm:$0xf]
        %v4662 = vld [vmem:[%s8 + $0xc4] sm:$0xf]
        %v4663 = vld [vmem:[%s8 + $0xc8] sm:$0xf]
        %v4664 = vld [vmem:[%s8 + $0xcc] sm:$0xf]
        %v4665 = vld [vmem:[%s8 + $0xd0] sm:$0xf]
        %v4666 = vld [vmem:[%s8 + $0xd4] sm:$0xf]
        %v4667 = vld [vmem:[%s8 + $0xd8] sm:$0xf]
        %v4668 = vld [vmem:[%s8 + $0xdc] sm:$0xf]
        %v4669 = vld [vmem:[%s8 + $0xe0] sm:$0xf]
        %v4670 = vld [vmem:[%s8 + $0xe4] sm:$0xf]
        %v4671 = vld [vmem:[%s8 + $0xe8] sm:$0xf]
        %v4672 = vld [vmem:[%s8 + $0xec] sm:$0xf]
        %v4673 = vld [vmem:[%s8 + $0xf0] sm:$0xf]
        %v4674 = vld [vmem:[%s8 + $0xf4] sm:$0xf]
        %v4675 = vld [vmem:[%s8 + $0xf8] sm:$0xf]
        %v4676 = vld [vmem:[%s8 + $0xfc] sm:$0xf]
        %v4678 = vunpack.c.l.b16 %v4066
        %v4679 = vpack.c.b16 %v4092, %v4090
        %v4680 = vpack.c.b16 %v4096, %v4094
        %v4681 = vpack.c.b16 %v4100, %v4098
        %v4682 = vpack.c.b16 %v4678, %v4102
        %v4703 = vunpack.c.l.b16 %v4661
        %v4704 = vunpack.c.l.b16 %v4662
        %v4705 = vunpack.c.l.b16 %v4663
        %v4706 = vunpack.c.l.b16 %v4664
        %v4707 = vunpack.c.l.b16 %v4665
        %v4708 = vunpack.c.l.b16 %v4666
        %v4709 = vunpack.c.l.b16 %v4667
        %v4710 = vunpack.c.l.b16 %v4668
        %v4711 = vunpack.c.l.b16 %v4669
        %v4712 = vunpack.c.l.b16 %v4670
        %v4713 = vunpack.c.l.b16 %v4671
        %v4714 = vunpack.c.l.b16 %v4672
        %v4715 = vunpack.c.l.b16 %v4673
        %v4716 = vunpack.c.l.b16 %v4674
        %v4717 = vunpack.c.l.b16 %v4675
        %v4718 = vunpack.c.l.b16 %v4676
        %v4719 = vpack.c.b16 %v4704, %v4703
        %v4720 = vpack.c.b16 %v4706, %v4705
        %v4721 = vpack.c.b16 %v4708, %v4707
        %v4722 = vpack.c.b16 %v4710, %v4709
        %v4723 = vpack.c.b16 %v4712, %v4711
        %v4724 = vpack.c.b16 %v4714, %v4713
        %v4725 = vpack.c.b16 %v4716, %v4715
        %v4726 = vpack.c.b16 %v4718, %v4717
        %4735 = vmatprep.subr.bf16.mxu0 0
        %4736 = vmatpush1.bf16.msra.mxu0 %v4719
        %4737 = vmatprep.subr.bf16.mxu0 0
        %4738 = vmatpush1.bf16.msra.mxu0 %v4720
        %4739 = vmatprep.subr.bf16.mxu0 0
        %4740 = vmatpush1.bf16.msra.mxu0 %v4721
        %4741 = vmatprep.subr.bf16.mxu0 0
        %4742 = vmatpush1.bf16.msra.mxu0 %v4722
        %4743 = vmatprep.subr.bf16.mxu0 0
        %4744 = vmatpush1.bf16.msra.mxu0 %v4723
        %4745 = vmatprep.subr.bf16.mxu0 0
        %4746 = vmatpush1.bf16.msra.mxu0 %v4724
        %4747 = vmatprep.subr.bf16.mxu0 0
        %4748 = vmatpush1.bf16.msra.mxu0 %v4725
        %4749 = vmatprep.subr.bf16.mxu0 0
        %4750 = vmatpush1.bf16.msra.mxu0 %v4726
        %4751 = vmatprep.subr.bf16.mxu0 0
        %4752 = vmatpush1.bf16.msra.mxu0 0
        %4753 = vmatprep.subr.bf16.mxu0 0
        %4754 = vmatpush1.bf16.msra.mxu0 0
        %4755 = vmatprep.subr.bf16.mxu0 0
        %4756 = vmatpush1.bf16.msra.mxu0 0
        %4757 = vmatprep.subr.bf16.mxu0 0
        %4758 = vmatpush1.bf16.msra.mxu0 0
        %4759 = vmatprep.subr.bf16.mxu0 0
        %4760 = vmatpush1.bf16.msra.mxu0 0
        %4761 = vmatprep.subr.bf16.mxu0 0
        %4762 = vmatpush1.bf16.msra.mxu0 0
        %4763 = vmatprep.subr.bf16.mxu0 0
        %4764 = vmatpush1.bf16.msra.mxu0 0
        %4765 = vmatprep.subr.bf16.mxu0 0
        %4766 = vmatpush1.bf16.msra.mxu0 0
        %4767 = vmatprep.mubr.bf16.mxu0 0
        %4768 = vmatmul.mubr.bf16.gmra.mrb[0].mxu0 %v4679
        %v4769 = vpop.f32.mrb[0].mxu0
        %v4770 = vadd.f32 0.0, %v4769
        %v4771 = vpop.f32.mrb[0].mxu0
        %v4772 = vpop.f32.mrb[0].mxu0
        %v4773 = vadd.f32 0.0, %v4772
        %v4774 = vpop.f32.mrb[0].mxu0
        %4775 = vmatprep.mubr.bf16.mxu0 0
        %4776 = vmatmul.mubr.bf16.gmra.mrb[0].mxu0 %v4680
        %v4777 = vpop.f32.mrb[0].mxu0
        %v4778 = vadd.f32 0.0, %v4777
        %v4779 = vpop.f32.mrb[0].mxu0
        %v4780 = vpop.f32.mrb[0].mxu0
        %v4781 = vadd.f32 0.0, %v4780
        %v4782 = vpop.f32.mrb[0].mxu0
        %4783 = vmatprep.mubr.bf16.mxu0 0
        %4784 = vmatmul.mubr.bf16.gmra.mrb[0].mxu0 %v4681
        %v4785 = vpop.f32.mrb[0].mxu0
        %v4786 = vadd.f32 0.0, %v4785
        %v4787 = vpop.f32.mrb[0].mxu0
        %v4788 = vpop.f32.mrb[0].mxu0
        %v4789 = vadd.f32 0.0, %v4788
        %v4790 = vpop.f32.mrb[0].mxu0
        %4791 = vmatprep.mubr.bf16.mxu0 0
        %4792 = vmatmul.mubr.bf16.gmra.mrb[0].mxu0 %v4682
        %v4793 = vpop.f32.mrb[0].mxu0
        %v4794 = vadd.f32 0.0, %v4793
        %v4795 = vpop.f32.mrb[0].mxu0
        %v4796 = vpop.f32.mrb[0].mxu0
        %v4797 = vadd.f32 0.0, %v4796
        %v4798 = vpop.f32.mrb[0].mxu0
        %4799 = vdwg.mxu0
        %v4800 = vadd.f32 %v4653, %v4770
        %v4801 = vadd.f32 %v4654, %v4773
        %v4802 = vadd.f32 %v4655, %v4778
        %v4803 = vadd.f32 %v4656, %v4781
        %v4804 = vadd.f32 %v4657, %v4786
        %v4805 = vadd.f32 %v4658, %v4789
        %v4806 = vadd.f32 %v4659, %v4794
        %v4807 = vadd.f32 %v4660, %v4797
        %v4808 = vunpack.c.h.b16 %v4066
        %v4809 = vpack.c.b16 %v4678, %v4678
        %v4810 = vpack.c.b16 %v4808, %v4808
        %v4812 = vshrl.u32 %v4809, 16
        %v4814 = vrot.slane %v4812, 4
        %v4815 = vshll.u32 %v4809, 16
        %v4817 = vrot.slane %v4815, 5
        %v4818 = vor.u32 %v4814, %v4817
        %v4819 = vrot.slane %v4818, 4
        %v4821 = vshll.u32 %v4810, 16
        %v4823 = vrot.slane %v4821, 5
        %v4824 = vsel %vm967, %v4819, %v4823
        %v4825 = vld [vmem:[%s8 + $0x100] sm:$0xf]
        %v4826 = vld [vmem:[%s8 + $0x104] sm:$0xf]
        %v4827 = vld [vmem:[%s8 + $0x108] sm:$0xf]
        %v4828 = vld [vmem:[%s8 + $0x10c] sm:$0xf]
        %v4829 = vld [vmem:[%s8 + $0x110] sm:$0xf]
        %v4830 = vld [vmem:[%s8 + $0x114] sm:$0xf]
        %v4831 = vld [vmem:[%s8 + $0x118] sm:$0xf]
        %v4832 = vld [vmem:[%s8 + $0x11c] sm:$0xf]
        %v4833 = vld [vmem:[%s8 + $0x120] sm:$0xf]
        %v4834 = vld [vmem:[%s8 + $0x124] sm:$0xf]
        %v4835 = vld [vmem:[%s8 + $0x128] sm:$0xf]
        %v4836 = vld [vmem:[%s8 + $0x12c] sm:$0xf]
        %v4837 = vld [vmem:[%s8 + $0x130] sm:$0xf]
        %v4838 = vld [vmem:[%s8 + $0x134] sm:$0xf]
        %v4839 = vld [vmem:[%s8 + $0x138] sm:$0xf]
        %v4840 = vld [vmem:[%s8 + $0x13c] sm:$0xf]
        %v4841 = vunpack.c.l.b16 %v4824
        %v4842 = vpack.c.b16 %v4233, %v4232
        %v4843 = vpack.c.b16 %v4235, %v4234
        %v4844 = vpack.c.b16 %v4237, %v4236
        %v4845 = vpack.c.b16 %v4841, %v4238
        %v4866 = vunpack.c.l.b16 %v4825
        %v4867 = vunpack.c.l.b16 %v4826
        %v4868 = vunpack.c.l.b16 %v4827
        %v4869 = vunpack.c.l.b16 %v4828
        %v4870 = vunpack.c.l.b16 %v4829
        %v4871 = vunpack.c.l.b16 %v4830
        %v4872 = vunpack.c.l.b16 %v4831
        %v4873 = vunpack.c.l.b16 %v4832
        %v4874 = vunpack.c.l.b16 %v4833
        %v4875 = vunpack.c.l.b16 %v4834
        %v4876 = vunpack.c.l.b16 %v4835
        %v4877 = vunpack.c.l.b16 %v4836
        %v4878 = vunpack.c.l.b16 %v4837
        %v4879 = vunpack.c.l.b16 %v4838
        %v4880 = vunpack.c.l.b16 %v4839
        %v4881 = vunpack.c.l.b16 %v4840
        %v4882 = vpack.c.b16 %v4867, %v4866
        %v4883 = vpack.c.b16 %v4869, %v4868
        %v4884 = vpack.c.b16 %v4871, %v4870
        %v4885 = vpack.c.b16 %v4873, %v4872
        %v4886 = vpack.c.b16 %v4875, %v4874
        %v4887 = vpack.c.b16 %v4877, %v4876
        %v4888 = vpack.c.b16 %v4879, %v4878
        %v4889 = vpack.c.b16 %v4881, %v4880
        %4898 = vmatprep.subr.bf16.mxu0 0
        %4899 = vmatpush1.bf16.msra.mxu0 %v4882
        %4900 = vmatprep.subr.bf16.mxu0 0
        %4901 = vmatpush1.bf16.msra.mxu0 %v4883
        %4902 = vmatprep.subr.bf16.mxu0 0
        %4903 = vmatpush1.bf16.msra.mxu0 %v4884
        %4904 = vmatprep.subr.bf16.mxu0 0
        %4905 = vmatpush1.bf16.msra.mxu0 %v4885
        %4906 = vmatprep.subr.bf16.mxu0 0
        %4907 = vmatpush1.bf16.msra.mxu0 %v4886
        %4908 = vmatprep.subr.bf16.mxu0 0
        %4909 = vmatpush1.bf16.msra.mxu0 %v4887
        %4910 = vmatprep.subr.bf16.mxu0 0
        %4911 = vmatpush1.bf16.msra.mxu0 %v4888
        %4912 = vmatprep.subr.bf16.mxu0 0
        %4913 = vmatpush1.bf16.msra.mxu0 %v4889
        %4914 = vmatprep.subr.bf16.mxu0 0
        %4915 = vmatpush1.bf16.msra.mxu0 0
        %4916 = vmatprep.subr.bf16.mxu0 0
        %4917 = vmatpush1.bf16.msra.mxu0 0
        %4918 = vmatprep.subr.bf16.mxu0 0
        %4919 = vmatpush1.bf16.msra.mxu0 0
        %4920 = vmatprep.subr.bf16.mxu0 0
        %4921 = vmatpush1.bf16.msra.mxu0 0
        %4922 = vmatprep.subr.bf16.mxu0 0
        %4923 = vmatpush1.bf16.msra.mxu0 0
        %4924 = vmatprep.subr.bf16.mxu0 0
        %4925 = vmatpush1.bf16.msra.mxu0 0
        %4926 = vmatprep.subr.bf16.mxu0 0
        %4927 = vmatpush1.bf16.msra.mxu0 0
        %4928 = vmatprep.subr.bf16.mxu0 0
        %4929 = vmatpush1.bf16.msra.mxu0 0
        %4930 = vmatprep.mubr.bf16.mxu0 0
        %4931 = vmatmul.mubr.bf16.gmra.mrb[0].mxu0 %v4842
        %v4932 = vpop.f32.mrb[0].mxu0
        %v4933 = vadd.f32 0.0, %v4932
        %v4934 = vpop.f32.mrb[0].mxu0
        %v4935 = vpop.f32.mrb[0].mxu0
        %v4936 = vadd.f32 0.0, %v4935
        %v4937 = vpop.f32.mrb[0].mxu0
        %4938 = vmatprep.mubr.bf16.mxu0 0
        %4939 = vmatmul.mubr.bf16.gmra.mrb[0].mxu0 %v4843
        %v4940 = vpop.f32.mrb[0].mxu0
        %v4941 = vadd.f32 0.0, %v4940
        %v4942 = vpop.f32.mrb[0].mxu0
        %v4943 = vpop.f32.mrb[0].mxu0
        %v4944 = vadd.f32 0.0, %v4943
        %v4945 = vpop.f32.mrb[0].mxu0
        %4946 = vmatprep.mubr.bf16.mxu0 0
        %4947 = vmatmul.mubr.bf16.gmra.mrb[0].mxu0 %v4844
        %v4948 = vpop.f32.mrb[0].mxu0
        %v4949 = vadd.f32 0.0, %v4948
        %v4950 = vpop.f32.mrb[0].mxu0
        %v4951 = vpop.f32.mrb[0].mxu0
        %v4952 = vadd.f32 0.0, %v4951
        %v4953 = vpop.f32.mrb[0].mxu0
        %4954 = vmatprep.mubr.bf16.mxu0 0
        %4955 = vmatmul.mubr.bf16.gmra.mrb[0].mxu0 %v4845
        %v4956 = vpop.f32.mrb[0].mxu0
        %v4957 = vadd.f32 0.0, %v4956
        %v4958 = vpop.f32.mrb[0].mxu0
        %v4959 = vpop.f32.mrb[0].mxu0
        %v4960 = vadd.f32 0.0, %v4959
        %v4961 = vpop.f32.mrb[0].mxu0
        %4962 = vdwg.mxu0
        %v4963 = vadd.f32 %v4800, %v4933
        %v4964 = vadd.f32 %v4801, %v4936
        %v4965 = vadd.f32 %v4802, %v4941
        %v4966 = vadd.f32 %v4803, %v4944
        %v4967 = vadd.f32 %v4804, %v4949
        %v4968 = vadd.f32 %v4805, %v4952
        %v4969 = vadd.f32 %v4806, %v4957
        %v4970 = vadd.f32 %v4807, %v4960
        %v4971 = vrot.slane %v4809, 5
        %v4972 = vrot.slane %v4971, 4
        %v4973 = vrot.slane %v4810, 5
        %v4974 = vsel %vm1628, %v4972, %v4973
        %v4975 = vld [vmem:[%s8 + $0x140] sm:$0xf]
        %v4976 = vld [vmem:[%s8 + $0x144] sm:$0xf]
        %v4977 = vld [vmem:[%s8 + $0x148] sm:$0xf]
        %v4978 = vld [vmem:[%s8 + $0x14c] sm:$0xf]
        %v4979 = vld [vmem:[%s8 + $0x150] sm:$0xf]
        %v4980 = vld [vmem:[%s8 + $0x154] sm:$0xf]
        %v4981 = vld [vmem:[%s8 + $0x158] sm:$0xf]
        %v4982 = vld [vmem:[%s8 + $0x15c] sm:$0xf]
        %v4983 = vld [vmem:[%s8 + $0x160] sm:$0xf]
        %v4984 = vld [vmem:[%s8 + $0x164] sm:$0xf]
        %v4985 = vld [vmem:[%s8 + $0x168] sm:$0xf]
        %v4986 = vld [vmem:[%s8 + $0x16c] sm:$0xf]
        %v4987 = vld [vmem:[%s8 + $0x170] sm:$0xf]
        %v4988 = vld [vmem:[%s8 + $0x174] sm:$0xf]
        %v4989 = vld [vmem:[%s8 + $0x178] sm:$0xf]
        %v4990 = vld [vmem:[%s8 + $0x17c] sm:$0xf]
        %v4991 = vunpack.c.l.b16 %v4974
        %v4992 = vpack.c.b16 %v4526, %v4525
        %v4993 = vpack.c.b16 %v4528, %v4527
        %v4994 = vpack.c.b16 %v4530, %v4529
        %v4995 = vpack.c.b16 %v4991, %v4531
        %v5016 = vunpack.c.l.b16 %v4975
        %v5017 = vunpack.c.l.b16 %v4976
        %v5018 = vunpack.c.l.b16 %v4977
        %v5019 = vunpack.c.l.b16 %v4978
        %v5020 = vunpack.c.l.b16 %v4979
        %v5021 = vunpack.c.l.b16 %v4980
        %v5022 = vunpack.c.l.b16 %v4981
        %v5023 = vunpack.c.l.b16 %v4982
        %v5024 = vunpack.c.l.b16 %v4983
        %v5025 = vunpack.c.l.b16 %v4984
        %v5026 = vunpack.c.l.b16 %v4985
        %v5027 = vunpack.c.l.b16 %v4986
        %v5028 = vunpack.c.l.b16 %v4987
        %v5029 = vunpack.c.l.b16 %v4988
        %v5030 = vunpack.c.l.b16 %v4989
        %v5031 = vunpack.c.l.b16 %v4990
        %v5032 = vpack.c.b16 %v5017, %v5016
        %v5033 = vpack.c.b16 %v5019, %v5018
        %v5034 = vpack.c.b16 %v5021, %v5020
        %v5035 = vpack.c.b16 %v5023, %v5022
        %v5036 = vpack.c.b16 %v5025, %v5024
        %v5037 = vpack.c.b16 %v5027, %v5026
        %v5038 = vpack.c.b16 %v5029, %v5028
        %v5039 = vpack.c.b16 %v5031, %v5030
        %5048 = vmatprep.subr.bf16.mxu0 0
        %5049 = vmatpush1.bf16.msra.mxu0 %v5032
        %5050 = vmatprep.subr.bf16.mxu0 0
        %5051 = vmatpush1.bf16.msra.mxu0 %v5033
        %5052 = vmatprep.subr.bf16.mxu0 0
        %5053 = vmatpush1.bf16.msra.mxu0 %v5034
        %5054 = vmatprep.subr.bf16.mxu0 0
        %5055 = vmatpush1.bf16.msra.mxu0 %v5035
        %5056 = vmatprep.subr.bf16.mxu0 0
        %5057 = vmatpush1.bf16.msra.mxu0 %v5036
        %5058 = vmatprep.subr.bf16.mxu0 0
        %5059 = vmatpush1.bf16.msra.mxu0 %v5037
        %5060 = vmatprep.subr.bf16.mxu0 0
        %5061 = vmatpush1.bf16.msra.mxu0 %v5038
        %5062 = vmatprep.subr.bf16.mxu0 0
        %5063 = vmatpush1.bf16.msra.mxu0 %v5039
        %5064 = vmatprep.subr.bf16.mxu0 0
        %5065 = vmatpush1.bf16.msra.mxu0 0
        %5066 = vmatprep.subr.bf16.mxu0 0
        %5067 = vmatpush1.bf16.msra.mxu0 0
        %5068 = vmatprep.subr.bf16.mxu0 0
        %5069 = vmatpush1.bf16.msra.mxu0 0
        %5070 = vmatprep.subr.bf16.mxu0 0
        %5071 = vmatpush1.bf16.msra.mxu0 0
        %5072 = vmatprep.subr.bf16.mxu0 0
        %5073 = vmatpush1.bf16.msra.mxu0 0
        %5074 = vmatprep.subr.bf16.mxu0 0
        %5075 = vmatpush1.bf16.msra.mxu0 0
        %5076 = vmatprep.subr.bf16.mxu0 0
        %5077 = vmatpush1.bf16.msra.mxu0 0
        %5078 = vmatprep.subr.bf16.mxu0 0
        %5079 = vmatpush1.bf16.msra.mxu0 0
        %5080 = vmatprep.mubr.bf16.mxu0 0
        %5081 = vmatmul.mubr.bf16.gmra.mrb[0].mxu0 %v4992
        %v5082 = vpop.f32.mrb[0].mxu0
        %v5083 = vadd.f32 0.0, %v5082
        %v5084 = vpop.f32.mrb[0].mxu0
        %v5085 = vpop.f32.mrb[0].mxu0
        %v5086 = vadd.f32 0.0, %v5085
        %v5087 = vpop.f32.mrb[0].mxu0
        %5088 = vmatprep.mubr.bf16.mxu0 0
        %5089 = vmatmul.mubr.bf16.gmra.mrb[0].mxu0 %v4993
        %v5090 = vpop.f32.mrb[0].mxu0
        %v5091 = vadd.f32 0.0, %v5090
        %v5092 = vpop.f32.mrb[0].mxu0
        %v5093 = vpop.f32.mrb[0].mxu0
        %v5094 = vadd.f32 0.0, %v5093
        %v5095 = vpop.f32.mrb[0].mxu0
        %5096 = vmatprep.mubr.bf16.mxu0 0
        %5097 = vmatmul.mubr.bf16.gmra.mrb[0].mxu0 %v4994
        %v5098 = vpop.f32.mrb[0].mxu0
        %v5099 = vadd.f32 0.0, %v5098
        %v5100 = vpop.f32.mrb[0].mxu0
        %v5101 = vpop.f32.mrb[0].mxu0
        %v5102 = vadd.f32 0.0, %v5101
        %v5103 = vpop.f32.mrb[0].mxu0
        %5104 = vmatprep.mubr.bf16.mxu0 0
        %5105 = vmatmul.mubr.bf16.gmra.mrb[0].mxu0 %v4995
        %v5106 = vpop.f32.mrb[0].mxu0
        %v5107 = vadd.f32 0.0, %v5106
        %v5108 = vpop.f32.mrb[0].mxu0
        %v5109 = vpop.f32.mrb[0].mxu0
        %v5110 = vadd.f32 0.0, %v5109
        %v5111 = vpop.f32.mrb[0].mxu0
        %5112 = vdwg.mxu0
        %v5113 = vadd.f32 %v4963, %v5083
        %v5114 = vadd.f32 %v4964, %v5086
        %v5115 = vadd.f32 %v4965, %v5091
        %v5116 = vadd.f32 %v4966, %v5094
        %v5117 = vadd.f32 %v4967, %v5099
        %v5118 = vadd.f32 %v4968, %v5102
        %v5119 = vadd.f32 %v4969, %v5107
        %v5120 = vadd.f32 %v4970, %v5110
        %v5121 = vld [vmem:[%s8 + $0x180] sm:$0xf]
        %v5122 = vld [vmem:[%s8 + $0x184] sm:$0xf]
        %v5123 = vld [vmem:[%s8 + $0x188] sm:$0xf]
        %v5124 = vld [vmem:[%s8 + $0x18c] sm:$0xf]
        %v5125 = vld [vmem:[%s8 + $0x190] sm:$0xf]
        %v5126 = vld [vmem:[%s8 + $0x194] sm:$0xf]
        %v5127 = vld [vmem:[%s8 + $0x198] sm:$0xf]
        %v5128 = vld [vmem:[%s8 + $0x19c] sm:$0xf]
        %v5129 = vld [vmem:[%s8 + $0x1a0] sm:$0xf]
        %v5130 = vld [vmem:[%s8 + $0x1a4] sm:$0xf]
        %v5131 = vld [vmem:[%s8 + $0x1a8] sm:$0xf]
        %v5132 = vld [vmem:[%s8 + $0x1ac] sm:$0xf]
        %v5133 = vld [vmem:[%s8 + $0x1b0] sm:$0xf]
        %v5134 = vld [vmem:[%s8 + $0x1b4] sm:$0xf]
        %v5135 = vld [vmem:[%s8 + $0x1b8] sm:$0xf]
        %v5136 = vld [vmem:[%s8 + $0x1bc] sm:$0xf]
        %v5137 = vpack.c.b16 %v887, %v4678
        %v5155 = vunpack.c.l.b16 %v5121
        %v5156 = vunpack.c.l.b16 %v5122
        %v5157 = vunpack.c.l.b16 %v5123
        %v5158 = vunpack.c.l.b16 %v5124
        %v5159 = vunpack.c.l.b16 %v5125
        %v5160 = vunpack.c.l.b16 %v5126
        %v5161 = vunpack.c.l.b16 %v5127
        %v5162 = vunpack.c.l.b16 %v5128
        %v5163 = vunpack.c.l.b16 %v5129
        %v5164 = vunpack.c.l.b16 %v5130
        %v5165 = vunpack.c.l.b16 %v5131
        %v5166 = vunpack.c.l.b16 %v5132
        %v5167 = vunpack.c.l.b16 %v5133
        %v5168 = vunpack.c.l.b16 %v5134
        %v5169 = vunpack.c.l.b16 %v5135
        %v5170 = vunpack.c.l.b16 %v5136
        %v5171 = vpack.c.b16 %v5156, %v5155
        %v5172 = vpack.c.b16 %v5158, %v5157
        %v5173 = vpack.c.b16 %v5160, %v5159
        %v5174 = vpack.c.b16 %v5162, %v5161
        %v5175 = vpack.c.b16 %v5164, %v5163
        %v5176 = vpack.c.b16 %v5166, %v5165
        %v5177 = vpack.c.b16 %v5168, %v5167
        %v5178 = vpack.c.b16 %v5170, %v5169
        %5187 = vmatprep.subr.bf16.mxu0 0
        %5188 = vmatpush1.bf16.msra.mxu0 %v5171
        %5189 = vmatprep.subr.bf16.mxu0 0
        %5190 = vmatpush1.bf16.msra.mxu0 %v5172
        %5191 = vmatprep.subr.bf16.mxu0 0
        %5192 = vmatpush1.bf16.msra.mxu0 %v5173
        %5193 = vmatprep.subr.bf16.mxu0 0
        %5194 = vmatpush1.bf16.msra.mxu0 %v5174
        %5195 = vmatprep.subr.bf16.mxu0 0
        %5196 = vmatpush1.bf16.msra.mxu0 %v5175
        %5197 = vmatprep.subr.bf16.mxu0 0
        %5198 = vmatpush1.bf16.msra.mxu0 %v5176
        %5199 = vmatprep.subr.bf16.mxu0 0
        %5200 = vmatpush1.bf16.msra.mxu0 %v5177
        %5201 = vmatprep.subr.bf16.mxu0 0
        %5202 = vmatpush1.bf16.msra.mxu0 %v5178
        %5203 = vmatprep.subr.bf16.mxu0 0
        %5204 = vmatpush1.bf16.msra.mxu0 0
        %5205 = vmatprep.subr.bf16.mxu0 0
        %5206 = vmatpush1.bf16.msra.mxu0 0
        %5207 = vmatprep.subr.bf16.mxu0 0
        %5208 = vmatpush1.bf16.msra.mxu0 0
        %5209 = vmatprep.subr.bf16.mxu0 0
        %5210 = vmatpush1.bf16.msra.mxu0 0
        %5211 = vmatprep.subr.bf16.mxu0 0
        %5212 = vmatpush1.bf16.msra.mxu0 0
        %5213 = vmatprep.subr.bf16.mxu0 0
        %5214 = vmatpush1.bf16.msra.mxu0 0
        %5215 = vmatprep.subr.bf16.mxu0 0
        %5216 = vmatpush1.bf16.msra.mxu0 0
        %5217 = vmatprep.subr.bf16.mxu0 0
        %5218 = vmatpush1.bf16.msra.mxu0 0
        %5219 = vmatprep.mubr.bf16.mxu0 0
        %5220 = vmatmul.mubr.bf16.gmra.mrb[0].mxu0 %v4361
        %v5221 = vpop.f32.mrb[0].mxu0
        %v5222 = vadd.f32 0.0, %v5221
        %v5223 = vpop.f32.mrb[0].mxu0
        %v5224 = vpop.f32.mrb[0].mxu0
        %v5225 = vadd.f32 0.0, %v5224
        %v5226 = vpop.f32.mrb[0].mxu0
        %5227 = vmatprep.mubr.bf16.mxu0 0
        %5228 = vmatmul.mubr.bf16.gmra.mrb[0].mxu0 %v4362
        %v5229 = vpop.f32.mrb[0].mxu0
        %v5230 = vadd.f32 0.0, %v5229
        %v5231 = vpop.f32.mrb[0].mxu0
        %v5232 = vpop.f32.mrb[0].mxu0
        %v5233 = vadd.f32 0.0, %v5232
        %v5234 = vpop.f32.mrb[0].mxu0
        %5235 = vmatprep.mubr.bf16.mxu0 0
        %5236 = vmatmul.mubr.bf16.gmra.mrb[0].mxu0 %v4363
        %v5237 = vpop.f32.mrb[0].mxu0
        %v5238 = vadd.f32 0.0, %v5237
        %v5239 = vpop.f32.mrb[0].mxu0
        %v5240 = vpop.f32.mrb[0].mxu0
        %v5241 = vadd.f32 0.0, %v5240
        %v5242 = vpop.f32.mrb[0].mxu0
        %5243 = vmatprep.mubr.bf16.mxu0 0
        %5244 = vmatmul.mubr.bf16.gmra.mrb[0].mxu0 %v5137
        %v5245 = vpop.f32.mrb[0].mxu0
        %v5246 = vadd.f32 0.0, %v5245
        %v5247 = vpop.f32.mrb[0].mxu0
        %v5248 = vpop.f32.mrb[0].mxu0
        %v5249 = vadd.f32 0.0, %v5248
        %v5250 = vpop.f32.mrb[0].mxu0
        %5251 = vdwg.mxu0
        %v5252 = vadd.f32 %v5113, %v5222
        %v5253 = vadd.f32 %v5114, %v5225
        %v5254 = vadd.f32 %v5115, %v5230
        %v5255 = vadd.f32 %v5116, %v5233
        %v5256 = vadd.f32 %v5117, %v5238
        %v5257 = vadd.f32 %v5118, %v5241
        %v5258 = vadd.f32 %v5119, %v5246
        %v5259 = vadd.f32 %v5120, %v5249
        %v5260 = vld [vmem:[%s8 + $0x1c0] sm:$0xf]
        %v5261 = vld [vmem:[%s8 + $0x1c4] sm:$0xf]
        %v5262 = vld [vmem:[%s8 + $0x1c8] sm:$0xf]
        %v5263 = vld [vmem:[%s8 + $0x1cc] sm:$0xf]
        %v5264 = vld [vmem:[%s8 + $0x1d0] sm:$0xf]
        %v5265 = vld [vmem:[%s8 + $0x1d4] sm:$0xf]
        %v5266 = vld [vmem:[%s8 + $0x1d8] sm:$0xf]
        %v5267 = vld [vmem:[%s8 + $0x1dc] sm:$0xf]
        %v5268 = vld [vmem:[%s8 + $0x1e0] sm:$0xf]
        %v5269 = vld [vmem:[%s8 + $0x1e4] sm:$0xf]
        %v5270 = vld [vmem:[%s8 + $0x1e8] sm:$0xf]
        %v5271 = vld [vmem:[%s8 + $0x1ec] sm:$0xf]
        %v5272 = vld [vmem:[%s8 + $0x1f0] sm:$0xf]
        %v5273 = vld [vmem:[%s8 + $0x1f4] sm:$0xf]
        %v5274 = vld [vmem:[%s8 + $0x1f8] sm:$0xf]
        %v5275 = vld [vmem:[%s8 + $0x1fc] sm:$0xf]
        %v5276 = vpack.c.b16 %v1112, %v4841
        %v5294 = vunpack.c.l.b16 %v5260
        %v5295 = vunpack.c.l.b16 %v5261
        %v5296 = vunpack.c.l.b16 %v5262
        %v5297 = vunpack.c.l.b16 %v5263
        %v5298 = vunpack.c.l.b16 %v5264
        %v5299 = vunpack.c.l.b16 %v5265
        %v5300 = vunpack.c.l.b16 %v5266
        %v5301 = vunpack.c.l.b16 %v5267
        %v5302 = vunpack.c.l.b16 %v5268
        %v5303 = vunpack.c.l.b16 %v5269
        %v5304 = vunpack.c.l.b16 %v5270
        %v5305 = vunpack.c.l.b16 %v5271
        %v5306 = vunpack.c.l.b16 %v5272
        %v5307 = vunpack.c.l.b16 %v5273
        %v5308 = vunpack.c.l.b16 %v5274
        %v5309 = vunpack.c.l.b16 %v5275
        %v5310 = vpack.c.b16 %v5295, %v5294
        %v5311 = vpack.c.b16 %v5297, %v5296
        %v5312 = vpack.c.b16 %v5299, %v5298
        %v5313 = vpack.c.b16 %v5301, %v5300
        %v5314 = vpack.c.b16 %v5303, %v5302
        %v5315 = vpack.c.b16 %v5305, %v5304
        %v5316 = vpack.c.b16 %v5307, %v5306
        %v5317 = vpack.c.b16 %v5309, %v5308
        %5326 = vmatprep.subr.bf16.mxu0 0
        %5327 = vmatpush1.bf16.msra.mxu0 %v5310
        %5328 = vmatprep.subr.bf16.mxu0 0
        %5329 = vmatpush1.bf16.msra.mxu0 %v5311
        %5330 = vmatprep.subr.bf16.mxu0 0
        %5331 = vmatpush1.bf16.msra.mxu0 %v5312
        %5332 = vmatprep.subr.bf16.mxu0 0
        %5333 = vmatpush1.bf16.msra.mxu0 %v5313
        %5334 = vmatprep.subr.bf16.mxu0 0
        %5335 = vmatpush1.bf16.msra.mxu0 %v5314
        %5336 = vmatprep.subr.bf16.mxu0 0
        %5337 = vmatpush1.bf16.msra.mxu0 %v5315
        %5338 = vmatprep.subr.bf16.mxu0 0
        %5339 = vmatpush1.bf16.msra.mxu0 %v5316
        %5340 = vmatprep.subr.bf16.mxu0 0
        %5341 = vmatpush1.bf16.msra.mxu0 %v5317
        %5342 = vmatprep.subr.bf16.mxu0 0
        %5343 = vmatpush1.bf16.msra.mxu0 0
        %5344 = vmatprep.subr.bf16.mxu0 0
        %5345 = vmatpush1.bf16.msra.mxu0 0
        %5346 = vmatprep.subr.bf16.mxu0 0
        %5347 = vmatpush1.bf16.msra.mxu0 0
        %5348 = vmatprep.subr.bf16.mxu0 0
        %5349 = vmatpush1.bf16.msra.mxu0 0
        %5350 = vmatprep.subr.bf16.mxu0 0
        %5351 = vmatpush1.bf16.msra.mxu0 0
        %5352 = vmatprep.subr.bf16.mxu0 0
        %5353 = vmatpush1.bf16.msra.mxu0 0
        %5354 = vmatprep.subr.bf16.mxu0 0
        %5355 = vmatpush1.bf16.msra.mxu0 0
        %5356 = vmatprep.subr.bf16.mxu0 0
        %5357 = vmatpush1.bf16.msra.mxu0 0
        %5358 = vmatprep.mubr.bf16.mxu0 0
        %5359 = vmatmul.mubr.bf16.gmra.mrb[0].mxu0 %v4240
        %v5360 = vpop.f32.mrb[0].mxu0
        %v5361 = vadd.f32 0.0, %v5360
        %v5362 = vpop.f32.mrb[0].mxu0
        %v5363 = vpop.f32.mrb[0].mxu0
        %v5364 = vadd.f32 0.0, %v5363
        %v5365 = vpop.f32.mrb[0].mxu0
        %5366 = vmatprep.mubr.bf16.mxu0 0
        %5367 = vmatmul.mubr.bf16.gmra.mrb[0].mxu0 %v4241
        %v5368 = vpop.f32.mrb[0].mxu0
        %v5369 = vadd.f32 0.0, %v5368
        %v5370 = vpop.f32.mrb[0].mxu0
        %v5371 = vpop.f32.mrb[0].mxu0
        %v5372 = vadd.f32 0.0, %v5371
        %v5373 = vpop.f32.mrb[0].mxu0
        %5374 = vmatprep.mubr.bf16.mxu0 0
        %5375 = vmatmul.mubr.bf16.gmra.mrb[0].mxu0 %v4242
        %v5376 = vpop.f32.mrb[0].mxu0
        %v5377 = vadd.f32 0.0, %v5376
        %v5378 = vpop.f32.mrb[0].mxu0
        %v5379 = vpop.f32.mrb[0].mxu0
        %v5380 = vadd.f32 0.0, %v5379
        %v5381 = vpop.f32.mrb[0].mxu0
        %5382 = vmatprep.mubr.bf16.mxu0 0
        %5383 = vmatmul.mubr.bf16.gmra.mrb[0].mxu0 %v5276
        %v5384 = vpop.f32.mrb[0].mxu0
        %v5385 = vadd.f32 0.0, %v5384
        %v5386 = vpop.f32.mrb[0].mxu0
        %v5387 = vpop.f32.mrb[0].mxu0
        %v5388 = vadd.f32 0.0, %v5387
        %v5389 = vpop.f32.mrb[0].mxu0
        %5390 = vdwg.mxu0
        %v5391 = vadd.f32 %v5252, %v5361
        %v5392 = vadd.f32 %v5253, %v5364
        %v5393 = vadd.f32 %v5254, %v5369
        %v5394 = vadd.f32 %v5255, %v5372
        %v5395 = vadd.f32 %v5256, %v5377
        %v5396 = vadd.f32 %v5257, %v5380
        %v5397 = vadd.f32 %v5258, %v5385
        %v5398 = vadd.f32 %v5259, %v5388
        %v5399 = vld [vmem:[%s8 + $0x200] sm:$0xf]
        %v5400 = vld [vmem:[%s8 + $0x204] sm:$0xf]
        %v5401 = vld [vmem:[%s8 + $0x208] sm:$0xf]
        %v5402 = vld [vmem:[%s8 + $0x20c] sm:$0xf]
        %v5403 = vld [vmem:[%s8 + $0x210] sm:$0xf]
        %v5404 = vld [vmem:[%s8 + $0x214] sm:$0xf]
        %v5405 = vld [vmem:[%s8 + $0x218] sm:$0xf]
        %v5406 = vld [vmem:[%s8 + $0x21c] sm:$0xf]
        %v5407 = vld [vmem:[%s8 + $0x220] sm:$0xf]
        %v5408 = vld [vmem:[%s8 + $0x224] sm:$0xf]
        %v5409 = vld [vmem:[%s8 + $0x228] sm:$0xf]
        %v5410 = vld [vmem:[%s8 + $0x22c] sm:$0xf]
        %v5411 = vld [vmem:[%s8 + $0x230] sm:$0xf]
        %v5412 = vld [vmem:[%s8 + $0x234] sm:$0xf]
        %v5413 = vld [vmem:[%s8 + $0x238] sm:$0xf]
        %v5414 = vld [vmem:[%s8 + $0x23c] sm:$0xf]
        %v5415 = vpack.c.b16 %v1693, %v4991
        %v5433 = vunpack.c.l.b16 %v5399
        %v5434 = vunpack.c.l.b16 %v5400
        %v5435 = vunpack.c.l.b16 %v5401
        %v5436 = vunpack.c.l.b16 %v5402
        %v5437 = vunpack.c.l.b16 %v5403
        %v5438 = vunpack.c.l.b16 %v5404
        %v5439 = vunpack.c.l.b16 %v5405
        %v5440 = vunpack.c.l.b16 %v5406
        %v5441 = vunpack.c.l.b16 %v5407
        %v5442 = vunpack.c.l.b16 %v5408
        %v5443 = vunpack.c.l.b16 %v5409
        %v5444 = vunpack.c.l.b16 %v5410
        %v5445 = vunpack.c.l.b16 %v5411
        %v5446 = vunpack.c.l.b16 %v5412
        %v5447 = vunpack.c.l.b16 %v5413
        %v5448 = vunpack.c.l.b16 %v5414
        %v5449 = vpack.c.b16 %v5434, %v5433
        %v5450 = vpack.c.b16 %v5436, %v5435
        %v5451 = vpack.c.b16 %v5438, %v5437
        %v5452 = vpack.c.b16 %v5440, %v5439
        %v5453 = vpack.c.b16 %v5442, %v5441
        %v5454 = vpack.c.b16 %v5444, %v5443
        %v5455 = vpack.c.b16 %v5446, %v5445
        %v5456 = vpack.c.b16 %v5448, %v5447
        %5465 = vmatprep.subr.bf16.mxu0 0
        %5466 = vmatpush1.bf16.msra.mxu0 %v5449
        %5467 = vmatprep.subr.bf16.mxu0 0
        %5468 = vmatpush1.bf16.msra.mxu0 %v5450
        %5469 = vmatprep.subr.bf16.mxu0 0
        %5470 = vmatpush1.bf16.msra.mxu0 %v5451
        %5471 = vmatprep.subr.bf16.mxu0 0
        %5472 = vmatpush1.bf16.msra.mxu0 %v5452
        %5473 = vmatprep.subr.bf16.mxu0 0
        %5474 = vmatpush1.bf16.msra.mxu0 %v5453
        %5475 = vmatprep.subr.bf16.mxu0 0
        %5476 = vmatpush1.bf16.msra.mxu0 %v5454
        %5477 = vmatprep.subr.bf16.mxu0 0
        %5478 = vmatpush1.bf16.msra.mxu0 %v5455
        %5479 = vmatprep.subr.bf16.mxu0 0
        %5480 = vmatpush1.bf16.msra.mxu0 %v5456
        %5481 = vmatprep.subr.bf16.mxu0 0
        %5482 = vmatpush1.bf16.msra.mxu0 0
        %5483 = vmatprep.subr.bf16.mxu0 0
        %5484 = vmatpush1.bf16.msra.mxu0 0
        %5485 = vmatprep.subr.bf16.mxu0 0
        %5486 = vmatpush1.bf16.msra.mxu0 0
        %5487 = vmatprep.subr.bf16.mxu0 0
        %5488 = vmatpush1.bf16.msra.mxu0 0
        %5489 = vmatprep.subr.bf16.mxu0 0
        %5490 = vmatpush1.bf16.msra.mxu0 0
        %5491 = vmatprep.subr.bf16.mxu0 0
        %5492 = vmatpush1.bf16.msra.mxu0 0
        %5493 = vmatprep.subr.bf16.mxu0 0
        %5494 = vmatpush1.bf16.msra.mxu0 0
        %5495 = vmatprep.subr.bf16.mxu0 0
        %5496 = vmatpush1.bf16.msra.mxu0 0
        %5497 = vmatprep.mubr.bf16.mxu0 0
        %5498 = vmatmul.mubr.bf16.gmra.mrb[0].mxu0 %v4533
        %v5499 = vpop.f32.mrb[0].mxu0
        %v5500 = vadd.f32 0.0, %v5499
        %v5501 = vpop.f32.mrb[0].mxu0
        %v5502 = vpop.f32.mrb[0].mxu0
        %v5503 = vadd.f32 0.0, %v5502
        %v5504 = vpop.f32.mrb[0].mxu0
        %5505 = vmatprep.mubr.bf16.mxu0 0
        %5506 = vmatmul.mubr.bf16.gmra.mrb[0].mxu0 %v4534
        %v5507 = vpop.f32.mrb[0].mxu0
        %v5508 = vadd.f32 0.0, %v5507
        %v5509 = vpop.f32.mrb[0].mxu0
        %v5510 = vpop.f32.mrb[0].mxu0
        %v5511 = vadd.f32 0.0, %v5510
        %v5512 = vpop.f32.mrb[0].mxu0
        %5513 = vmatprep.mubr.bf16.mxu0 0
        %5514 = vmatmul.mubr.bf16.gmra.mrb[0].mxu0 %v4535
        %v5515 = vpop.f32.mrb[0].mxu0
        %v5516 = vadd.f32 0.0, %v5515
        %v5517 = vpop.f32.mrb[0].mxu0
        %v5518 = vpop.f32.mrb[0].mxu0
        %v5519 = vadd.f32 0.0, %v5518
        %v5520 = vpop.f32.mrb[0].mxu0
        %5521 = vmatprep.mubr.bf16.mxu0 0
        %5522 = vmatmul.mubr.bf16.gmra.mrb[0].mxu0 %v5415
        %v5523 = vpop.f32.mrb[0].mxu0
        %v5524 = vadd.f32 0.0, %v5523
        %v5525 = vpop.f32.mrb[0].mxu0
        %v5526 = vpop.f32.mrb[0].mxu0
        %v5527 = vadd.f32 0.0, %v5526
        %v5528 = vpop.f32.mrb[0].mxu0
        %5529 = vdwg.mxu0
        %v5530 = vadd.f32 %v5391, %v5500
        %v5531 = vadd.f32 %v5392, %v5503
        %v5532 = vadd.f32 %v5393, %v5508
        %v5533 = vadd.f32 %v5394, %v5511
        %v5534 = vadd.f32 %v5395, %v5516
        %v5535 = vadd.f32 %v5396, %v5519
        %v5536 = vadd.f32 %v5397, %v5524
        %v5537 = vadd.f32 %v5398, %v5527
        %v5539 = vlaneseq
        %v5540 = vshrl.u32 %v5539, 7
        %v5541 = vsub.s32 0, %v5540
        %v5542 = vrot.slane %v3978, %v5541
        %v5544 = vadd.f32 %v5530, %v5542
        %v5545 = vadd.f32 %v5531, %v5542
        %v5546 = vadd.f32 %v5532, %v5542
        %v5547 = vadd.f32 %v5533, %v5542
        %v5548 = vadd.f32 %v5534, %v5542
        %v5549 = vadd.f32 %v5535, %v5542
        %v5550 = vadd.f32 %v5536, %v5542
        %v5551 = vadd.f32 %v5537, %v5542
        %v5552 = vmax.f32 %v5544, 0.0
        %v5553 = vmax.f32 %v5545, 0.0
        %v5554 = vmax.f32 %v5546, 0.0
        %v5555 = vmax.f32 %v5547, 0.0
        %v5556 = vmax.f32 %v5548, 0.0
        %v5557 = vmax.f32 %v5549, 0.0
        %v5558 = vmax.f32 %v5550, 0.0
        %v5559 = vmax.f32 %v5551, 0.0
        %v5560 = vpack.c.bf16 %v3779, %v3777
        %v5561 = vpack.c.bf16 %v3780, %v3778
        %v5562 = vpack.c.bf16 %v3783, %v3781
        %v5563 = vpack.c.bf16 %v3784, %v3782
        %v5564 = vpack.c.bf16 %v3787, %v3785
        %v5565 = vpack.c.bf16 %v3788, %v3786
        %v5566 = vpack.c.bf16 %v3791, %v3789
        %v5567 = vpack.c.bf16 %v3792, %v3790
        %v5576 = vunpack.c.l.b16 %v5560
        %v5577 = vunpack.c.l.b16 %v5561
        %v5578 = vunpack.c.h.b16 %v5560
        %v5579 = vunpack.c.h.b16 %v5561
        %v5580 = vunpack.c.l.b16 %v5562
        %v5581 = vunpack.c.l.b16 %v5563
        %v5582 = vunpack.c.h.b16 %v5562
        %v5583 = vunpack.c.h.b16 %v5563
        %v5584 = vunpack.c.l.b16 %v5564
        %v5585 = vunpack.c.l.b16 %v5565
        %v5586 = vunpack.c.h.b16 %v5564
        %v5587 = vunpack.c.h.b16 %v5565
        %v5588 = vunpack.c.l.b16 %v5566
        %v5589 = vunpack.c.l.b16 %v5567
        %v5590 = vunpack.c.h.b16 %v5566
        %v5591 = vunpack.c.h.b16 %v5567
        %v5592 = vpack.c.b16 %v5576, %v5576
        %v5593 = vpack.c.b16 %v5577, %v5577
        %v5594 = vpack.c.b16 %v5578, %v5578
        %v5595 = vpack.c.b16 %v5579, %v5579
        %v5596 = vpack.c.b16 %v5580, %v5580
        %v5597 = vpack.c.b16 %v5581, %v5581
        %v5598 = vpack.c.b16 %v5582, %v5582
        %v5599 = vpack.c.b16 %v5583, %v5583
        %v5600 = vpack.c.b16 %v5584, %v5584
        %v5601 = vpack.c.b16 %v5585, %v5585
        %v5602 = vpack.c.b16 %v5586, %v5586
        %v5603 = vpack.c.b16 %v5587, %v5587
        %v5604 = vpack.c.b16 %v5588, %v5588
        %v5605 = vpack.c.b16 %v5589, %v5589
        %v5606 = vpack.c.b16 %v5590, %v5590
        %v5607 = vpack.c.b16 %v5591, %v5591
        %v5609 = vshrl.u32 %v5592, 16
        %v5611 = vrot.slane %v5609, 7
        %v5612 = vshll.u32 %v5592, 16
        %v5614 = vor.u32 %v5611, %v5612
        %v5616 = vshrl.u32 %v5593, 16
        %v5618 = vrot.slane %v5616, 7
        %v5619 = vshll.u32 %v5593, 16
        %v5621 = vor.u32 %v5618, %v5619
        %v5623 = vshrl.u32 %v5594, 16
        %v5625 = vrot.slane %v5623, 7
        %v5626 = vshll.u32 %v5594, 16
        %v5628 = vor.u32 %v5625, %v5626
        %v5630 = vshrl.u32 %v5595, 16
        %v5632 = vrot.slane %v5630, 7
        %v5633 = vshll.u32 %v5595, 16
        %v5635 = vor.u32 %v5632, %v5633
        %v5637 = vshrl.u32 %v5596, 16
        %v5639 = vrot.slane %v5637, 7
        %v5640 = vshll.u32 %v5596, 16
        %v5642 = vor.u32 %v5639, %v5640
        %v5644 = vshrl.u32 %v5597, 16
        %v5646 = vrot.slane %v5644, 7
        %v5647 = vshll.u32 %v5597, 16
        %v5649 = vor.u32 %v5646, %v5647
        %v5651 = vshrl.u32 %v5598, 16
        %v5653 = vrot.slane %v5651, 7
        %v5654 = vshll.u32 %v5598, 16
        %v5656 = vor.u32 %v5653, %v5654
        %v5658 = vshrl.u32 %v5599, 16
        %v5660 = vrot.slane %v5658, 7
        %v5661 = vshll.u32 %v5599, 16
        %v5663 = vor.u32 %v5660, %v5661
        %v5665 = vshrl.u32 %v5600, 16
        %v5667 = vrot.slane %v5665, 7
        %v5668 = vshll.u32 %v5600, 16
        %v5670 = vor.u32 %v5667, %v5668
        %v5672 = vshrl.u32 %v5601, 16
        %v5674 = vrot.slane %v5672, 7
        %v5675 = vshll.u32 %v5601, 16
        %v5677 = vor.u32 %v5674, %v5675
        %v5679 = vshrl.u32 %v5602, 16
        %v5681 = vrot.slane %v5679, 7
        %v5682 = vshll.u32 %v5602, 16
        %v5684 = vor.u32 %v5681, %v5682
        %v5686 = vshrl.u32 %v5603, 16
        %v5688 = vrot.slane %v5686, 7
        %v5689 = vshll.u32 %v5603, 16
        %v5691 = vor.u32 %v5688, %v5689
        %v5693 = vshrl.u32 %v5604, 16
        %v5695 = vrot.slane %v5693, 7
        %v5696 = vshll.u32 %v5604, 16
        %v5698 = vor.u32 %v5695, %v5696
        %v5700 = vshrl.u32 %v5605, 16
        %v5702 = vrot.slane %v5700, 7
        %v5703 = vshll.u32 %v5605, 16
        %v5705 = vor.u32 %v5702, %v5703
        %v5707 = vshrl.u32 %v5606, 16
        %v5709 = vrot.slane %v5707, 7
        %v5710 = vshll.u32 %v5606, 16
        %v5712 = vor.u32 %v5709, %v5710
        %v5714 = vshrl.u32 %v5607, 16
        %v5716 = vrot.slane %v5714, 7
        %v5717 = vshll.u32 %v5607, 16
        %v5719 = vor.u32 %v5716, %v5717
        %v5736 = vsel %vm836, 0, %v5614
        %v5737 = vsel %vm836, 0, %v5621
        %v5738 = vsel %vm836, 0, %v5628
        %v5739 = vsel %vm836, 0, %v5635
        %v5740 = vsel %vm836, 0, %v5642
        %v5741 = vsel %vm836, 0, %v5649
        %v5742 = vsel %vm836, 0, %v5656
        %v5743 = vsel %vm836, 0, %v5663
        %v5744 = vsel %vm836, 0, %v5670
        %v5745 = vsel %vm836, 0, %v5677
        %v5746 = vsel %vm836, 0, %v5684
        %v5747 = vsel %vm836, 0, %v5691
        %v5748 = vsel %vm836, 0, %v5698
        %v5749 = vsel %vm836, 0, %v5705
        %v5750 = vsel %vm836, 0, %v5712
        %v5751 = vsel %vm836, 0, %v5719
        %v5752 = vsel %vm855, %v5736, 0
        %v5753 = vsel %vm855, %v5737, 0
        %v5754 = vsel %vm855, %v5738, 0
        %v5755 = vsel %vm855, %v5739, 0
        %v5756 = vsel %vm855, %v5740, 0
        %v5757 = vsel %vm855, %v5741, 0
        %v5758 = vsel %vm855, %v5742, 0
        %v5759 = vsel %vm855, %v5743, 0
        %v5760 = vsel %vm855, %v5744, 0
        %v5761 = vsel %vm855, %v5745, 0
        %v5762 = vsel %vm855, %v5746, 0
        %v5763 = vsel %vm855, %v5747, 0
        %v5764 = vsel %vm855, %v5748, 0
        %v5765 = vsel %vm855, %v5749, 0
        %v5766 = vsel %vm855, %v5750, 0
        %v5767 = vsel %vm855, %v5751, 0
        %v5782 = vunpack.c.l.b16 %v5752
        %v5783 = vunpack.c.l.b16 %v5753
        %v5784 = vunpack.c.l.b16 %v5754
        %v5785 = vunpack.c.l.b16 %v5755
        %v5786 = vunpack.c.l.b16 %v5756
        %v5787 = vunpack.c.l.b16 %v5757
        %v5788 = vunpack.c.l.b16 %v5758
        %v5789 = vunpack.c.l.b16 %v5759
        %v5790 = vunpack.c.l.b16 %v5760
        %v5791 = vunpack.c.l.b16 %v5761
        %v5792 = vunpack.c.l.b16 %v5762
        %v5793 = vunpack.c.l.b16 %v5763
        %v5794 = vunpack.c.l.b16 %v5764
        %v5795 = vunpack.c.l.b16 %v5765
        %v5796 = vld [vmem:[%s10] sm:$0xf]
        %v5797 = vld [vmem:[%s10 + $0x4] sm:$0xf]
        %v5798 = vld [vmem:[%s10 + $0x8] sm:$0xf]
        %v5799 = vld [vmem:[%s10 + $0xc] sm:$0xf]
        %v5800 = vld [vmem:[%s10 + $0x10] sm:$0xf]
        %v5801 = vld [vmem:[%s10 + $0x14] sm:$0xf]
        %v5802 = vld [vmem:[%s10 + $0x18] sm:$0xf]
        %v5803 = vld [vmem:[%s10 + $0x1c] sm:$0xf]
        %v5804 = vld [vmem:[%s10 + $0x20] sm:$0xf]
        %v5805 = vld [vmem:[%s10 + $0x24] sm:$0xf]
        %v5806 = vld [vmem:[%s10 + $0x28] sm:$0xf]
        %v5807 = vld [vmem:[%s10 + $0x2c] sm:$0xf]
        %v5808 = vld [vmem:[%s10 + $0x30] sm:$0xf]
        %v5809 = vld [vmem:[%s10 + $0x34] sm:$0xf]
        %v5810 = vld [vmem:[%s10 + $0x38] sm:$0xf]
        %v5811 = vld [vmem:[%s10 + $0x3c] sm:$0xf]
        %v5812 = vld [vmem:[%s10 + $0x40] sm:$0xf]
        %v5813 = vld [vmem:[%s10 + $0x44] sm:$0xf]
        %v5814 = vld [vmem:[%s10 + $0x48] sm:$0xf]
        %v5815 = vld [vmem:[%s10 + $0x4c] sm:$0xf]
        %v5816 = vld [vmem:[%s10 + $0x50] sm:$0xf]
        %v5817 = vld [vmem:[%s10 + $0x54] sm:$0xf]
        %v5818 = vld [vmem:[%s10 + $0x58] sm:$0xf]
        %v5819 = vld [vmem:[%s10 + $0x5c] sm:$0xf]
        %v5820 = vunpack.c.h.b16 %v5752
        %v5821 = vunpack.c.h.b16 %v5753
        %v5822 = vunpack.c.h.b16 %v5754
        %v5823 = vunpack.c.h.b16 %v5755
        %v5824 = vunpack.c.h.b16 %v5756
        %v5825 = vunpack.c.h.b16 %v5757
        %v5826 = vunpack.c.h.b16 %v5758
        %v5827 = vunpack.c.h.b16 %v5759
        %v5828 = vunpack.c.h.b16 %v5760
        %v5829 = vunpack.c.h.b16 %v5761
        %v5830 = vunpack.c.h.b16 %v5762
        %v5831 = vunpack.c.h.b16 %v5763
        %v5832 = vunpack.c.h.b16 %v5764
        %v5833 = vunpack.c.h.b16 %v5765
        %v5834 = vpack.c.b16 %v5783, %v5782
        %v5835 = vpack.c.b16 %v5821, %v5820
        %v5836 = vpack.c.b16 %v5785, %v5784
        %v5837 = vpack.c.b16 %v5823, %v5822
        %v5838 = vpack.c.b16 %v5787, %v5786
        %v5839 = vpack.c.b16 %v5825, %v5824
        %v5840 = vpack.c.b16 %v5789, %v5788
        %v5841 = vpack.c.b16 %v5827, %v5826
        %v5842 = vpack.c.b16 %v5791, %v5790
        %v5843 = vpack.c.b16 %v5829, %v5828
        %v5844 = vpack.c.b16 %v5793, %v5792
        %v5845 = vpack.c.b16 %v5831, %v5830
        %v5846 = vpack.c.b16 %v5795, %v5794
        %v5847 = vpack.c.b16 %v5833, %v5832
        %v5849 = vshrl.u32 %v5834, 16
        %v5851 = vrot.slane %v5849, 4
        %v5852 = vshll.u32 %v5834, 16
        %v5854 = vrot.slane %v5852, 5
        %v5855 = vor.u32 %v5851, %v5854
        %v5856 = vrot.slane %v5855, 4
        %v5858 = vshll.u32 %v5835, 16
        %v5860 = vrot.slane %v5858, 5
        %v5861 = vsel %vm967, %v5856, %v5860
        %v5863 = vshrl.u32 %v5836, 16
        %v5865 = vrot.slane %v5863, 4
        %v5866 = vshll.u32 %v5836, 16
        %v5868 = vrot.slane %v5866, 5
        %v5869 = vor.u32 %v5865, %v5868
        %v5870 = vrot.slane %v5869, 4
        %v5872 = vshll.u32 %v5837, 16
        %v5874 = vrot.slane %v5872, 5
        %v5875 = vsel %vm967, %v5870, %v5874
        %v5877 = vshrl.u32 %v5838, 16
        %v5879 = vrot.slane %v5877, 4
        %v5880 = vshll.u32 %v5838, 16
        %v5882 = vrot.slane %v5880, 5
        %v5883 = vor.u32 %v5879, %v5882
        %v5884 = vrot.slane %v5883, 4
        %v5886 = vshll.u32 %v5839, 16
        %v5888 = vrot.slane %v5886, 5
        %v5889 = vsel %vm967, %v5884, %v5888
        %v5891 = vshrl.u32 %v5840, 16
        %v5893 = vrot.slane %v5891, 4
        %v5894 = vshll.u32 %v5840, 16
        %v5896 = vrot.slane %v5894, 5
        %v5897 = vor.u32 %v5893, %v5896
        %v5898 = vrot.slane %v5897, 4
        %v5900 = vshll.u32 %v5841, 16
        %v5902 = vrot.slane %v5900, 5
        %v5903 = vsel %vm967, %v5898, %v5902
        %v5905 = vshrl.u32 %v5842, 16
        %v5907 = vrot.slane %v5905, 4
        %v5908 = vshll.u32 %v5842, 16
        %v5910 = vrot.slane %v5908, 5
        %v5911 = vor.u32 %v5907, %v5910
        %v5912 = vrot.slane %v5911, 4
        %v5914 = vshll.u32 %v5843, 16
        %v5916 = vrot.slane %v5914, 5
        %v5917 = vsel %vm967, %v5912, %v5916
        %v5919 = vshrl.u32 %v5844, 16
        %v5921 = vrot.slane %v5919, 4
        %v5922 = vshll.u32 %v5844, 16
        %v5924 = vrot.slane %v5922, 5
        %v5925 = vor.u32 %v5921, %v5924
        %v5926 = vrot.slane %v5925, 4
        %v5928 = vshll.u32 %v5845, 16
        %v5930 = vrot.slane %v5928, 5
        %v5931 = vsel %vm967, %v5926, %v5930
        %v5933 = vshrl.u32 %v5846, 16
        %v5935 = vrot.slane %v5933, 4
        %v5936 = vshll.u32 %v5846, 16
        %v5938 = vrot.slane %v5936, 5
        %v5939 = vor.u32 %v5935, %v5938
        %v5940 = vrot.slane %v5939, 4
        %v5942 = vshll.u32 %v5847, 16
        %v5944 = vrot.slane %v5942, 5
        %v5945 = vsel %vm967, %v5940, %v5944
        %v5946 = vld [vmem:[%s10 + $0x60] sm:$0xf]
        %v5947 = vld [vmem:[%s10 + $0x64] sm:$0xf]
        %v5948 = vld [vmem:[%s10 + $0x68] sm:$0xf]
        %v5949 = vld [vmem:[%s10 + $0x6c] sm:$0xf]
        %v5950 = vld [vmem:[%s10 + $0x70] sm:$0xf]
        %v5951 = vld [vmem:[%s10 + $0x74] sm:$0xf]
        %v5952 = vld [vmem:[%s10 + $0x78] sm:$0xf]
        %v5953 = vld [vmem:[%s10 + $0x7c] sm:$0xf]
        %v5954 = vld [vmem:[%s10 + $0x80] sm:$0xf]
        %v5955 = vld [vmem:[%s10 + $0x84] sm:$0xf]
        %v5956 = vld [vmem:[%s10 + $0x88] sm:$0xf]
        %v5957 = vld [vmem:[%s10 + $0x8c] sm:$0xf]
        %v5958 = vld [vmem:[%s10 + $0x90] sm:$0xf]
        %v5959 = vld [vmem:[%s10 + $0x94] sm:$0xf]
        %v5960 = vld [vmem:[%s10 + $0x98] sm:$0xf]
        %v5961 = vld [vmem:[%s10 + $0x9c] sm:$0xf]
        %v5962 = vld [vmem:[%s10 + $0xa0] sm:$0xf]
        %v5963 = vld [vmem:[%s10 + $0xa4] sm:$0xf]
        %v5964 = vld [vmem:[%s10 + $0xa8] sm:$0xf]
        %v5965 = vld [vmem:[%s10 + $0xac] sm:$0xf]
        %v5966 = vld [vmem:[%s10 + $0xb0] sm:$0xf]
        %v5967 = vld [vmem:[%s10 + $0xb4] sm:$0xf]
        %v5968 = vld [vmem:[%s10 + $0xb8] sm:$0xf]
        %v5969 = vld [vmem:[%s10 + $0xbc] sm:$0xf]
        %v5970 = vunpack.c.l.b16 %v5861
        %v5971 = vunpack.c.h.b16 %v5861
        %v5972 = vunpack.c.l.b16 %v5875
        %v5973 = vunpack.c.h.b16 %v5875
        %v5974 = vunpack.c.l.b16 %v5889
        %v5975 = vunpack.c.h.b16 %v5889
        %v5976 = vunpack.c.l.b16 %v5903
        %v5977 = vunpack.c.h.b16 %v5903
        %v5978 = vunpack.c.l.b16 %v5917
        %v5979 = vunpack.c.h.b16 %v5917
        %v5980 = vunpack.c.l.b16 %v5931
        %v5981 = vunpack.c.h.b16 %v5931
        %v5982 = vunpack.c.l.b16 %v5945
        %v5983 = vunpack.c.h.b16 %v5945
        %v5984 = vpack.c.b16 %v5970, %v1112
        %v5985 = vpack.c.b16 %v5971, %v1113
        %v5986 = vpack.c.b16 %v5974, %v5972
        %v5987 = vpack.c.b16 %v5975, %v5973
        %v5988 = vpack.c.b16 %v5978, %v5976
        %v5989 = vpack.c.b16 %v5979, %v5977
        %v5990 = vpack.c.b16 %v5982, %v5980
        %v5991 = vpack.c.b16 %v5983, %v5981
        %v6020 = vunpack.c.l.b16 %v5946
        %v6021 = vunpack.c.l.b16 %v5947
        %v6022 = vunpack.c.l.b16 %v5948
        %v6023 = vunpack.c.l.b16 %v5949
        %v6024 = vunpack.c.l.b16 %v5950
        %v6025 = vunpack.c.l.b16 %v5951
        %v6026 = vunpack.c.l.b16 %v5952
        %v6027 = vunpack.c.l.b16 %v5953
        %v6028 = vunpack.c.l.b16 %v5954
        %v6029 = vunpack.c.l.b16 %v5955
        %v6030 = vunpack.c.l.b16 %v5956
        %v6031 = vunpack.c.l.b16 %v5957
        %v6032 = vunpack.c.l.b16 %v5958
        %v6033 = vunpack.c.l.b16 %v5959
        %v6034 = vunpack.c.l.b16 %v5960
        %v6035 = vunpack.c.l.b16 %v5961
        %v6036 = vunpack.c.l.b16 %v5962
        %v6037 = vunpack.c.l.b16 %v5963
        %v6038 = vunpack.c.l.b16 %v5964
        %v6039 = vunpack.c.l.b16 %v5965
        %v6040 = vunpack.c.l.b16 %v5966
        %v6041 = vunpack.c.l.b16 %v5967
        %v6042 = vunpack.c.l.b16 %v5968
        %v6043 = vunpack.c.l.b16 %v5969
        %v6044 = vpack.c.b16 %v6021, %v6020
        %v6045 = vpack.c.b16 %v6023, %v6022
        %v6046 = vpack.c.b16 %v6025, %v6024
        %v6047 = vpack.c.b16 %v6027, %v6026
        %v6048 = vpack.c.b16 %v6029, %v6028
        %v6049 = vpack.c.b16 %v6031, %v6030
        %v6050 = vpack.c.b16 %v6033, %v6032
        %v6051 = vpack.c.b16 %v6035, %v6034
        %v6052 = vpack.c.b16 %v6037, %v6036
        %v6053 = vpack.c.b16 %v6039, %v6038
        %v6054 = vpack.c.b16 %v6041, %v6040
        %v6055 = vpack.c.b16 %v6043, %v6042
        %vm6068 = vcmask 523264
        %v6070 = vsel %vm6068, %v5985, 0
        %v6073 = vsel %vm6068, %v5987, 0
        %v6076 = vsel %vm6068, %v5989, 0
        %v6079 = vsel %vm6068, %v5991, 0
        %6081 = vmatprep.subr.bf16.mxu0 0
        %6082 = vmatpush1.bf16.msra.mxu0 %v6044
        %6083 = vmatprep.subr.bf16.mxu0 0
        %6084 = vmatpush1.bf16.msra.mxu0 %v6045
        %6085 = vmatprep.subr.bf16.mxu0 0
        %6086 = vmatpush1.bf16.msra.mxu0 %v6046
        %6087 = vmatprep.subr.bf16.mxu0 0
        %6088 = vmatpush1.bf16.msra.mxu0 %v6047
        %6089 = vmatprep.subr.bf16.mxu0 0
        %6090 = vmatpush1.bf16.msra.mxu0 %v6048
        %6091 = vmatprep.subr.bf16.mxu0 0
        %6092 = vmatpush1.bf16.msra.mxu0 %v6049
        %6093 = vmatprep.subr.bf16.mxu0 0
        %6094 = vmatpush1.bf16.msra.mxu0 %v6050
        %6095 = vmatprep.subr.bf16.mxu0 0
        %6096 = vmatpush1.bf16.msra.mxu0 %v6051
        %6097 = vmatprep.subr.bf16.mxu0 0
        %6098 = vmatpush1.bf16.msra.mxu0 %v6052
        %6099 = vmatprep.subr.bf16.mxu0 0
        %6100 = vmatpush1.bf16.msra.mxu0 %v6053
        %6101 = vmatprep.subr.bf16.mxu0 0
        %6102 = vmatpush1.bf16.msra.mxu0 %v6054
        %6103 = vmatprep.subr.bf16.mxu0 0
        %6104 = vmatpush1.bf16.msra.mxu0 %v6055
        %6105 = vmatprep.subr.bf16.mxu0 0
        %6106 = vmatpush1.bf16.msra.mxu0 0
        %6107 = vmatprep.subr.bf16.mxu0 0
        %6108 = vmatpush1.bf16.msra.mxu0 0
        %6109 = vmatprep.subr.bf16.mxu0 0
        %6110 = vmatpush1.bf16.msra.mxu0 0
        %6111 = vmatprep.subr.bf16.mxu0 0
        %6112 = vmatpush1.bf16.msra.mxu0 0
        %6113 = vmatprep.mubr.bf16.mxu0 %v6070
        %6114 = vmatmul.mubr.bf16.gmra.mrb[0].mxu0 %v5984
        %v6115 = vpop.f32.mrb[0].mxu0
        %v6116 = vadd.f32 0.0, %v6115
        %v6117 = vpop.f32.mrb[0].mxu0
        %v6118 = vpop.f32.mrb[0].mxu0
        %v6119 = vadd.f32 0.0, %v6118
        %v6120 = vpop.f32.mrb[0].mxu0
        %6121 = vmatprep.mubr.bf16.mxu0 %v6073
        %6122 = vmatmul.mubr.bf16.gmra.mrb[0].mxu0 %v5986
        %v6123 = vpop.f32.mrb[0].mxu0
        %v6124 = vadd.f32 0.0, %v6123
        %v6125 = vpop.f32.mrb[0].mxu0
        %v6126 = vpop.f32.mrb[0].mxu0
        %v6127 = vadd.f32 0.0, %v6126
        %v6128 = vpop.f32.mrb[0].mxu0
        %6129 = vmatprep.mubr.bf16.mxu0 %v6076
        %6130 = vmatmul.mubr.bf16.gmra.mrb[0].mxu0 %v5988
        %v6131 = vpop.f32.mrb[0].mxu0
        %v6132 = vadd.f32 0.0, %v6131
        %v6133 = vpop.f32.mrb[0].mxu0
        %v6134 = vpop.f32.mrb[0].mxu0
        %v6135 = vadd.f32 0.0, %v6134
        %v6136 = vpop.f32.mrb[0].mxu0
        %6137 = vmatprep.mubr.bf16.mxu0 %v6079
        %6138 = vmatmul.mubr.bf16.gmra.mrb[0].mxu0 %v5990
        %v6139 = vpop.f32.mrb[0].mxu0
        %v6140 = vadd.f32 0.0, %v6139
        %v6141 = vpop.f32.mrb[0].mxu0
        %v6142 = vpop.f32.mrb[0].mxu0
        %v6143 = vadd.f32 0.0, %v6142
        %v6144 = vpop.f32.mrb[0].mxu0
        %6145 = vdwg.mxu0
        %v6146 = vpack.c.b16 %v5782, %v887
        %v6147 = vpack.c.b16 %v5783, %v887
        %v6148 = vpack.c.b16 %v5786, %v5784
        %v6149 = vpack.c.b16 %v5787, %v5785
        %v6150 = vpack.c.b16 %v5790, %v5788
        %v6151 = vpack.c.b16 %v5791, %v5789
        %v6152 = vpack.c.b16 %v5794, %v5792
        %v6153 = vpack.c.b16 %v5795, %v5793
        %v6182 = vunpack.c.l.b16 %v5796
        %v6183 = vunpack.c.l.b16 %v5797
        %v6184 = vunpack.c.l.b16 %v5798
        %v6185 = vunpack.c.l.b16 %v5799
        %v6186 = vunpack.c.l.b16 %v5800
        %v6187 = vunpack.c.l.b16 %v5801
        %v6188 = vunpack.c.l.b16 %v5802
        %v6189 = vunpack.c.l.b16 %v5803
        %v6190 = vunpack.c.l.b16 %v5804
        %v6191 = vunpack.c.l.b16 %v5805
        %v6192 = vunpack.c.l.b16 %v5806
        %v6193 = vunpack.c.l.b16 %v5807
        %v6194 = vunpack.c.l.b16 %v5808
        %v6195 = vunpack.c.l.b16 %v5809
        %v6196 = vunpack.c.l.b16 %v5810
        %v6197 = vunpack.c.l.b16 %v5811
        %v6198 = vunpack.c.l.b16 %v5812
        %v6199 = vunpack.c.l.b16 %v5813
        %v6200 = vunpack.c.l.b16 %v5814
        %v6201 = vunpack.c.l.b16 %v5815
        %v6202 = vunpack.c.l.b16 %v5816
        %v6203 = vunpack.c.l.b16 %v5817
        %v6204 = vunpack.c.l.b16 %v5818
        %v6205 = vunpack.c.l.b16 %v5819
        %v6206 = vpack.c.b16 %v6183, %v6182
        %v6207 = vpack.c.b16 %v6185, %v6184
        %v6208 = vpack.c.b16 %v6187, %v6186
        %v6209 = vpack.c.b16 %v6189, %v6188
        %v6210 = vpack.c.b16 %v6191, %v6190
        %v6211 = vpack.c.b16 %v6193, %v6192
        %v6212 = vpack.c.b16 %v6195, %v6194
        %v6213 = vpack.c.b16 %v6197, %v6196
        %v6214 = vpack.c.b16 %v6199, %v6198
        %v6215 = vpack.c.b16 %v6201, %v6200
        %v6216 = vpack.c.b16 %v6203, %v6202
        %v6217 = vpack.c.b16 %v6205, %v6204
        %v6231 = vsel %vm6068, %v6147, 0
        %v6234 = vsel %vm6068, %v6149, 0
        %v6237 = vsel %vm6068, %v6151, 0
        %v6240 = vsel %vm6068, %v6153, 0
        %6242 = vmatprep.subr.bf16.mxu0 0
        %6243 = vmatpush1.bf16.msra.mxu0 %v6206
        %6244 = vmatprep.subr.bf16.mxu0 0
        %6245 = vmatpush1.bf16.msra.mxu0 %v6207
        %6246 = vmatprep.subr.bf16.mxu0 0
        %6247 = vmatpush1.bf16.msra.mxu0 %v6208
        %6248 = vmatprep.subr.bf16.mxu0 0
        %6249 = vmatpush1.bf16.msra.mxu0 %v6209
        %6250 = vmatprep.subr.bf16.mxu0 0
        %6251 = vmatpush1.bf16.msra.mxu0 %v6210
        %6252 = vmatprep.subr.bf16.mxu0 0
        %6253 = vmatpush1.bf16.msra.mxu0 %v6211
        %6254 = vmatprep.subr.bf16.mxu0 0
        %6255 = vmatpush1.bf16.msra.mxu0 %v6212
        %6256 = vmatprep.subr.bf16.mxu0 0
        %6257 = vmatpush1.bf16.msra.mxu0 %v6213
        %6258 = vmatprep.subr.bf16.mxu0 0
        %6259 = vmatpush1.bf16.msra.mxu0 %v6214
        %6260 = vmatprep.subr.bf16.mxu0 0
        %6261 = vmatpush1.bf16.msra.mxu0 %v6215
        %6262 = vmatprep.subr.bf16.mxu0 0
        %6263 = vmatpush1.bf16.msra.mxu0 %v6216
        %6264 = vmatprep.subr.bf16.mxu0 0
        %6265 = vmatpush1.bf16.msra.mxu0 %v6217
        %6266 = vmatprep.subr.bf16.mxu0 0
        %6267 = vmatpush1.bf16.msra.mxu0 0
        %6268 = vmatprep.subr.bf16.mxu0 0
        %6269 = vmatpush1.bf16.msra.mxu0 0
        %6270 = vmatprep.subr.bf16.mxu0 0
        %6271 = vmatpush1.bf16.msra.mxu0 0
        %6272 = vmatprep.subr.bf16.mxu0 0
        %6273 = vmatpush1.bf16.msra.mxu0 0
        %6274 = vmatprep.mubr.bf16.mxu0 %v6231
        %6275 = vmatmul.mubr.bf16.gmra.mrb[0].mxu0 %v6146
        %v6276 = vpop.f32.mrb[0].mxu0
        %v6277 = vadd.f32 %v6116, %v6276
        %v6278 = vpop.f32.mrb[0].mxu0
        %v6279 = vpop.f32.mrb[0].mxu0
        %v6280 = vadd.f32 %v6119, %v6279
        %v6281 = vpop.f32.mrb[0].mxu0
        %6282 = vmatprep.mubr.bf16.mxu0 %v6234
        %6283 = vmatmul.mubr.bf16.gmra.mrb[0].mxu0 %v6148
        %v6284 = vpop.f32.mrb[0].mxu0
        %v6285 = vadd.f32 %v6124, %v6284
        %v6286 = vpop.f32.mrb[0].mxu0
        %v6287 = vpop.f32.mrb[0].mxu0
        %v6288 = vadd.f32 %v6127, %v6287
        %v6289 = vpop.f32.mrb[0].mxu0
        %6290 = vmatprep.mubr.bf16.mxu0 %v6237
        %6291 = vmatmul.mubr.bf16.gmra.mrb[0].mxu0 %v6150
        %v6292 = vpop.f32.mrb[0].mxu0
        %v6293 = vadd.f32 %v6132, %v6292
        %v6294 = vpop.f32.mrb[0].mxu0
        %v6295 = vpop.f32.mrb[0].mxu0
        %v6296 = vadd.f32 %v6135, %v6295
        %v6297 = vpop.f32.mrb[0].mxu0
        %6298 = vmatprep.mubr.bf16.mxu0 %v6240
        %6299 = vmatmul.mubr.bf16.gmra.mrb[0].mxu0 %v6152
        %v6300 = vpop.f32.mrb[0].mxu0
        %v6301 = vadd.f32 %v6140, %v6300
        %v6302 = vpop.f32.mrb[0].mxu0
        %v6303 = vpop.f32.mrb[0].mxu0
        %v6304 = vadd.f32 %v6143, %v6303
        %v6305 = vpop.f32.mrb[0].mxu0
        %6306 = vdwg.mxu0
        %v6307 = vrot.slane %v5834, 5
        %v6308 = vrot.slane %v6307, 4
        %v6309 = vrot.slane %v5835, 5
        %v6310 = vsel %vm1628, %v6308, %v6309
        %v6311 = vrot.slane %v5836, 5
        %v6312 = vrot.slane %v6311, 4
        %v6313 = vrot.slane %v5837, 5
        %v6314 = vsel %vm1628, %v6312, %v6313
        %v6315 = vrot.slane %v5838, 5
        %v6316 = vrot.slane %v6315, 4
        %v6317 = vrot.slane %v5839, 5
        %v6318 = vsel %vm1628, %v6316, %v6317
        %v6319 = vrot.slane %v5840, 5
        %v6320 = vrot.slane %v6319, 4
        %v6321 = vrot.slane %v5841, 5
        %v6322 = vsel %vm1628, %v6320, %v6321
        %v6323 = vrot.slane %v5842, 5
        %v6324 = vrot.slane %v6323, 4
        %v6325 = vrot.slane %v5843, 5
        %v6326 = vsel %vm1628, %v6324, %v6325
        %v6327 = vrot.slane %v5844, 5
        %v6328 = vrot.slane %v6327, 4
        %v6329 = vrot.slane %v5845, 5
        %v6330 = vsel %vm1628, %v6328, %v6329
        %v6331 = vrot.slane %v5846, 5
        %v6332 = vrot.slane %v6331, 4
        %v6333 = vrot.slane %v5847, 5
        %v6334 = vsel %vm1628, %v6332, %v6333
        %v6335 = vld [vmem:[%s10 + $0xc0] sm:$0xf]
        %v6336 = vld [vmem:[%s10 + $0xc4] sm:$0xf]
        %v6337 = vld [vmem:[%s10 + $0xc8] sm:$0xf]
        %v6338 = vld [vmem:[%s10 + $0xcc] sm:$0xf]
        %v6339 = vld [vmem:[%s10 + $0xd0] sm:$0xf]
        %v6340 = vld [vmem:[%s10 + $0xd4] sm:$0xf]
        %v6341 = vld [vmem:[%s10 + $0xd8] sm:$0xf]
        %v6342 = vld [vmem:[%s10 + $0xdc] sm:$0xf]
        %v6343 = vld [vmem:[%s10 + $0xe0] sm:$0xf]
        %v6344 = vld [vmem:[%s10 + $0xe4] sm:$0xf]
        %v6345 = vld [vmem:[%s10 + $0xe8] sm:$0xf]
        %v6346 = vld [vmem:[%s10 + $0xec] sm:$0xf]
        %v6347 = vld [vmem:[%s10 + $0xf0] sm:$0xf]
        %v6348 = vld [vmem:[%s10 + $0xf4] sm:$0xf]
        %v6349 = vld [vmem:[%s10 + $0xf8] sm:$0xf]
        %v6350 = vld [vmem:[%s10 + $0xfc] sm:$0xf]
        %v6351 = vld [vmem:[%s10 + $0x100] sm:$0xf]
        %v6352 = vld [vmem:[%s10 + $0x104] sm:$0xf]
        %v6353 = vld [vmem:[%s10 + $0x108] sm:$0xf]
        %v6354 = vld [vmem:[%s10 + $0x10c] sm:$0xf]
        %v6355 = vld [vmem:[%s10 + $0x110] sm:$0xf]
        %v6356 = vld [vmem:[%s10 + $0x114] sm:$0xf]
        %v6357 = vld [vmem:[%s10 + $0x118] sm:$0xf]
        %v6358 = vld [vmem:[%s10 + $0x11c] sm:$0xf]
        %v6359 = vunpack.c.l.b16 %v6310
        %v6360 = vunpack.c.h.b16 %v6310
        %v6361 = vunpack.c.l.b16 %v6314
        %v6362 = vunpack.c.h.b16 %v6314
        %v6363 = vunpack.c.l.b16 %v6318
        %v6364 = vunpack.c.h.b16 %v6318
        %v6365 = vunpack.c.l.b16 %v6322
        %v6366 = vunpack.c.h.b16 %v6322
        %v6367 = vunpack.c.l.b16 %v6326
        %v6368 = vunpack.c.h.b16 %v6326
        %v6369 = vunpack.c.l.b16 %v6330
        %v6370 = vunpack.c.h.b16 %v6330
        %v6371 = vunpack.c.l.b16 %v6334
        %v6372 = vunpack.c.h.b16 %v6334
        %v6373 = vpack.c.b16 %v6359, %v1693
        %v6374 = vpack.c.b16 %v6360, %v1694
        %v6375 = vpack.c.b16 %v6363, %v6361
        %v6376 = vpack.c.b16 %v6364, %v6362
        %v6377 = vpack.c.b16 %v6367, %v6365
        %v6378 = vpack.c.b16 %v6368, %v6366
        %v6379 = vpack.c.b16 %v6371, %v6369
        %v6380 = vpack.c.b16 %v6372, %v6370
        %v6409 = vunpack.c.l.b16 %v6335
        %v6410 = vunpack.c.l.b16 %v6336
        %v6411 = vunpack.c.l.b16 %v6337
        %v6412 = vunpack.c.l.b16 %v6338
        %v6413 = vunpack.c.l.b16 %v6339
        %v6414 = vunpack.c.l.b16 %v6340
        %v6415 = vunpack.c.l.b16 %v6341
        %v6416 = vunpack.c.l.b16 %v6342
        %v6417 = vunpack.c.l.b16 %v6343
        %v6418 = vunpack.c.l.b16 %v6344
        %v6419 = vunpack.c.l.b16 %v6345
        %v6420 = vunpack.c.l.b16 %v6346
        %v6421 = vunpack.c.l.b16 %v6347
        %v6422 = vunpack.c.l.b16 %v6348
        %v6423 = vunpack.c.l.b16 %v6349
        %v6424 = vunpack.c.l.b16 %v6350
        %v6425 = vunpack.c.l.b16 %v6351
        %v6426 = vunpack.c.l.b16 %v6352
        %v6427 = vunpack.c.l.b16 %v6353
        %v6428 = vunpack.c.l.b16 %v6354
        %v6429 = vunpack.c.l.b16 %v6355
        %v6430 = vunpack.c.l.b16 %v6356
        %v6431 = vunpack.c.l.b16 %v6357
        %v6432 = vunpack.c.l.b16 %v6358
        %v6433 = vpack.c.b16 %v6410, %v6409
        %v6434 = vpack.c.b16 %v6412, %v6411
        %v6435 = vpack.c.b16 %v6414, %v6413
        %v6436 = vpack.c.b16 %v6416, %v6415
        %v6437 = vpack.c.b16 %v6418, %v6417
        %v6438 = vpack.c.b16 %v6420, %v6419
        %v6439 = vpack.c.b16 %v6422, %v6421
        %v6440 = vpack.c.b16 %v6424, %v6423
        %v6441 = vpack.c.b16 %v6426, %v6425
        %v6442 = vpack.c.b16 %v6428, %v6427
        %v6443 = vpack.c.b16 %v6430, %v6429
        %v6444 = vpack.c.b16 %v6432, %v6431
        %v6458 = vsel %vm6068, %v6374, 0
        %v6461 = vsel %vm6068, %v6376, 0
        %v6464 = vsel %vm6068, %v6378, 0
        %v6467 = vsel %vm6068, %v6380, 0
        %6469 = vmatprep.subr.bf16.mxu0 0
        %6470 = vmatpush1.bf16.msra.mxu0 %v6433
        %6471 = vmatprep.subr.bf16.mxu0 0
        %6472 = vmatpush1.bf16.msra.mxu0 %v6434
        %6473 = vmatprep.subr.bf16.mxu0 0
        %6474 = vmatpush1.bf16.msra.mxu0 %v6435
        %6475 = vmatprep.subr.bf16.mxu0 0
        %6476 = vmatpush1.bf16.msra.mxu0 %v6436
        %6477 = vmatprep.subr.bf16.mxu0 0
        %6478 = vmatpush1.bf16.msra.mxu0 %v6437
        %6479 = vmatprep.subr.bf16.mxu0 0
        %6480 = vmatpush1.bf16.msra.mxu0 %v6438
        %6481 = vmatprep.subr.bf16.mxu0 0
        %6482 = vmatpush1.bf16.msra.mxu0 %v6439
        %6483 = vmatprep.subr.bf16.mxu0 0
        %6484 = vmatpush1.bf16.msra.mxu0 %v6440
        %6485 = vmatprep.subr.bf16.mxu0 0
        %6486 = vmatpush1.bf16.msra.mxu0 %v6441
        %6487 = vmatprep.subr.bf16.mxu0 0
        %6488 = vmatpush1.bf16.msra.mxu0 %v6442
        %6489 = vmatprep.subr.bf16.mxu0 0
        %6490 = vmatpush1.bf16.msra.mxu0 %v6443
        %6491 = vmatprep.subr.bf16.mxu0 0
        %6492 = vmatpush1.bf16.msra.mxu0 %v6444
        %6493 = vmatprep.subr.bf16.mxu0 0
        %6494 = vmatpush1.bf16.msra.mxu0 0
        %6495 = vmatprep.subr.bf16.mxu0 0
        %6496 = vmatpush1.bf16.msra.mxu0 0
        %6497 = vmatprep.subr.bf16.mxu0 0
        %6498 = vmatpush1.bf16.msra.mxu0 0
        %6499 = vmatprep.subr.bf16.mxu0 0
        %6500 = vmatpush1.bf16.msra.mxu0 0
        %6501 = vmatprep.mubr.bf16.mxu0 %v6458
        %6502 = vmatmul.mubr.bf16.gmra.mrb[0].mxu0 %v6373
        %v6503 = vpop.f32.mrb[0].mxu0
        %v6504 = vadd.f32 0.0, %v6503
        %v6505 = vpop.f32.mrb[0].mxu0
        %v6506 = vpop.f32.mrb[0].mxu0
        %v6507 = vadd.f32 0.0, %v6506
        %v6508 = vpop.f32.mrb[0].mxu0
        %6509 = vmatprep.mubr.bf16.mxu0 %v6461
        %6510 = vmatmul.mubr.bf16.gmra.mrb[0].mxu0 %v6375
        %v6511 = vpop.f32.mrb[0].mxu0
        %v6512 = vadd.f32 0.0, %v6511
        %v6513 = vpop.f32.mrb[0].mxu0
        %v6514 = vpop.f32.mrb[0].mxu0
        %v6515 = vadd.f32 0.0, %v6514
        %v6516 = vpop.f32.mrb[0].mxu0
        %6517 = vmatprep.mubr.bf16.mxu0 %v6464
        %6518 = vmatmul.mubr.bf16.gmra.mrb[0].mxu0 %v6377
        %v6519 = vpop.f32.mrb[0].mxu0
        %v6520 = vadd.f32 0.0, %v6519
        %v6521 = vpop.f32.mrb[0].mxu0
        %v6522 = vpop.f32.mrb[0].mxu0
        %v6523 = vadd.f32 0.0, %v6522
        %v6524 = vpop.f32.mrb[0].mxu0
        %6525 = vmatprep.mubr.bf16.mxu0 %v6467
        %6526 = vmatmul.mubr.bf16.gmra.mrb[0].mxu0 %v6379
        %v6527 = vpop.f32.mrb[0].mxu0
        %v6528 = vadd.f32 0.0, %v6527
        %v6529 = vpop.f32.mrb[0].mxu0
        %v6530 = vpop.f32.mrb[0].mxu0
        %v6531 = vadd.f32 0.0, %v6530
        %v6532 = vpop.f32.mrb[0].mxu0
        %6533 = vdwg.mxu0
        %v6534 = vadd.f32 %v6277, %v6504
        %v6535 = vadd.f32 %v6280, %v6507
        %v6536 = vadd.f32 %v6285, %v6512
        %v6537 = vadd.f32 %v6288, %v6515
        %v6538 = vadd.f32 %v6293, %v6520
        %v6539 = vadd.f32 %v6296, %v6523
        %v6540 = vadd.f32 %v6301, %v6528
        %v6541 = vadd.f32 %v6304, %v6531
        %v6544 = vunpack.c.l.b16 %v5766
        %v6545 = vunpack.c.l.b16 %v5767
        %v6546 = vld [vmem:[%s10 + $0x120] sm:$0xf]
        %v6547 = vld [vmem:[%s10 + $0x124] sm:$0xf]
        %v6548 = vld [vmem:[%s10 + $0x128] sm:$0xf]
        %v6549 = vld [vmem:[%s10 + $0x12c] sm:$0xf]
        %v6550 = vld [vmem:[%s10 + $0x130] sm:$0xf]
        %v6551 = vld [vmem:[%s10 + $0x134] sm:$0xf]
        %v6552 = vld [vmem:[%s10 + $0x138] sm:$0xf]
        %v6553 = vld [vmem:[%s10 + $0x13c] sm:$0xf]
        %v6554 = vld [vmem:[%s10 + $0x140] sm:$0xf]
        %v6555 = vld [vmem:[%s10 + $0x144] sm:$0xf]
        %v6556 = vld [vmem:[%s10 + $0x148] sm:$0xf]
        %v6557 = vld [vmem:[%s10 + $0x14c] sm:$0xf]
        %v6558 = vld [vmem:[%s10 + $0x150] sm:$0xf]
        %v6559 = vld [vmem:[%s10 + $0x154] sm:$0xf]
        %v6560 = vld [vmem:[%s10 + $0x158] sm:$0xf]
        %v6561 = vld [vmem:[%s10 + $0x15c] sm:$0xf]
        %v6562 = vld [vmem:[%s10 + $0x160] sm:$0xf]
        %v6563 = vld [vmem:[%s10 + $0x164] sm:$0xf]
        %v6564 = vld [vmem:[%s10 + $0x168] sm:$0xf]
        %v6565 = vld [vmem:[%s10 + $0x16c] sm:$0xf]
        %v6566 = vld [vmem:[%s10 + $0x170] sm:$0xf]
        %v6567 = vld [vmem:[%s10 + $0x174] sm:$0xf]
        %v6568 = vld [vmem:[%s10 + $0x178] sm:$0xf]
        %v6569 = vld [vmem:[%s10 + $0x17c] sm:$0xf]
        %v6570 = vpack.c.b16 %v5784, %v5782
        %v6571 = vpack.c.b16 %v5785, %v5783
        %v6572 = vpack.c.b16 %v5788, %v5786
        %v6573 = vpack.c.b16 %v5789, %v5787
        %v6574 = vpack.c.b16 %v5792, %v5790
        %v6575 = vpack.c.b16 %v5793, %v5791
        %v6576 = vpack.c.b16 %v6544, %v5794
        %v6577 = vpack.c.b16 %v6545, %v5795
        %v6606 = vunpack.c.l.b16 %v6546
        %v6607 = vunpack.c.l.b16 %v6547
        %v6608 = vunpack.c.l.b16 %v6548
        %v6609 = vunpack.c.l.b16 %v6549
        %v6610 = vunpack.c.l.b16 %v6550
        %v6611 = vunpack.c.l.b16 %v6551
        %v6612 = vunpack.c.l.b16 %v6552
        %v6613 = vunpack.c.l.b16 %v6553
        %v6614 = vunpack.c.l.b16 %v6554
        %v6615 = vunpack.c.l.b16 %v6555
        %v6616 = vunpack.c.l.b16 %v6556
        %v6617 = vunpack.c.l.b16 %v6557
        %v6618 = vunpack.c.l.b16 %v6558
        %v6619 = vunpack.c.l.b16 %v6559
        %v6620 = vunpack.c.l.b16 %v6560
        %v6621 = vunpack.c.l.b16 %v6561
        %v6622 = vunpack.c.l.b16 %v6562
        %v6623 = vunpack.c.l.b16 %v6563
        %v6624 = vunpack.c.l.b16 %v6564
        %v6625 = vunpack.c.l.b16 %v6565
        %v6626 = vunpack.c.l.b16 %v6566
        %v6627 = vunpack.c.l.b16 %v6567
        %v6628 = vunpack.c.l.b16 %v6568
        %v6629 = vunpack.c.l.b16 %v6569
        %v6630 = vpack.c.b16 %v6607, %v6606
        %v6631 = vpack.c.b16 %v6609, %v6608
        %v6632 = vpack.c.b16 %v6611, %v6610
        %v6633 = vpack.c.b16 %v6613, %v6612
        %v6634 = vpack.c.b16 %v6615, %v6614
        %v6635 = vpack.c.b16 %v6617, %v6616
        %v6636 = vpack.c.b16 %v6619, %v6618
        %v6637 = vpack.c.b16 %v6621, %v6620
        %v6638 = vpack.c.b16 %v6623, %v6622
        %v6639 = vpack.c.b16 %v6625, %v6624
        %v6640 = vpack.c.b16 %v6627, %v6626
        %v6641 = vpack.c.b16 %v6629, %v6628
        %v6655 = vsel %vm6068, %v6571, 0
        %v6658 = vsel %vm6068, %v6573, 0
        %v6661 = vsel %vm6068, %v6575, 0
        %v6664 = vsel %vm6068, %v6577, 0
        %6666 = vmatprep.subr.bf16.mxu0 0
        %6667 = vmatpush1.bf16.msra.mxu0 %v6630
        %6668 = vmatprep.subr.bf16.mxu0 0
        %6669 = vmatpush1.bf16.msra.mxu0 %v6631
        %6670 = vmatprep.subr.bf16.mxu0 0
        %6671 = vmatpush1.bf16.msra.mxu0 %v6632
        %6672 = vmatprep.subr.bf16.mxu0 0
        %6673 = vmatpush1.bf16.msra.mxu0 %v6633
        %6674 = vmatprep.subr.bf16.mxu0 0
        %6675 = vmatpush1.bf16.msra.mxu0 %v6634
        %6676 = vmatprep.subr.bf16.mxu0 0
        %6677 = vmatpush1.bf16.msra.mxu0 %v6635
        %6678 = vmatprep.subr.bf16.mxu0 0
        %6679 = vmatpush1.bf16.msra.mxu0 %v6636
        %6680 = vmatprep.subr.bf16.mxu0 0
        %6681 = vmatpush1.bf16.msra.mxu0 %v6637
        %6682 = vmatprep.subr.bf16.mxu0 0
        %6683 = vmatpush1.bf16.msra.mxu0 %v6638
        %6684 = vmatprep.subr.bf16.mxu0 0
        %6685 = vmatpush1.bf16.msra.mxu0 %v6639
        %6686 = vmatprep.subr.bf16.mxu0 0
        %6687 = vmatpush1.bf16.msra.mxu0 %v6640
        %6688 = vmatprep.subr.bf16.mxu0 0
        %6689 = vmatpush1.bf16.msra.mxu0 %v6641
        %6690 = vmatprep.subr.bf16.mxu0 0
        %6691 = vmatpush1.bf16.msra.mxu0 0
        %6692 = vmatprep.subr.bf16.mxu0 0
        %6693 = vmatpush1.bf16.msra.mxu0 0
        %6694 = vmatprep.subr.bf16.mxu0 0
        %6695 = vmatpush1.bf16.msra.mxu0 0
        %6696 = vmatprep.subr.bf16.mxu0 0
        %6697 = vmatpush1.bf16.msra.mxu0 0
        %6698 = vmatprep.mubr.bf16.mxu0 %v6655
        %6699 = vmatmul.mubr.bf16.gmra.mrb[0].mxu0 %v6570
        %v6700 = vpop.f32.mrb[0].mxu0
        %v6701 = vadd.f32 0.0, %v6700
        %v6702 = vpop.f32.mrb[0].mxu0
        %v6703 = vpop.f32.mrb[0].mxu0
        %v6704 = vadd.f32 0.0, %v6703
        %v6705 = vpop.f32.mrb[0].mxu0
        %6706 = vmatprep.mubr.bf16.mxu0 %v6658
        %6707 = vmatmul.mubr.bf16.gmra.mrb[0].mxu0 %v6572
        %v6708 = vpop.f32.mrb[0].mxu0
        %v6709 = vadd.f32 0.0, %v6708
        %v6710 = vpop.f32.mrb[0].mxu0
        %v6711 = vpop.f32.mrb[0].mxu0
        %v6712 = vadd.f32 0.0, %v6711
        %v6713 = vpop.f32.mrb[0].mxu0
        %6714 = vmatprep.mubr.bf16.mxu0 %v6661
        %6715 = vmatmul.mubr.bf16.gmra.mrb[0].mxu0 %v6574
        %v6716 = vpop.f32.mrb[0].mxu0
        %v6717 = vadd.f32 0.0, %v6716
        %v6718 = vpop.f32.mrb[0].mxu0
        %v6719 = vpop.f32.mrb[0].mxu0
        %v6720 = vadd.f32 0.0, %v6719
        %v6721 = vpop.f32.mrb[0].mxu0
        %6722 = vmatprep.mubr.bf16.mxu0 %v6664
        %6723 = vmatmul.mubr.bf16.gmra.mrb[0].mxu0 %v6576
        %v6724 = vpop.f32.mrb[0].mxu0
        %v6725 = vadd.f32 0.0, %v6724
        %v6726 = vpop.f32.mrb[0].mxu0
        %v6727 = vpop.f32.mrb[0].mxu0
        %v6728 = vadd.f32 0.0, %v6727
        %v6729 = vpop.f32.mrb[0].mxu0
        %6730 = vdwg.mxu0
        %v6731 = vadd.f32 %v6534, %v6701
        %v6732 = vadd.f32 %v6535, %v6704
        %v6733 = vadd.f32 %v6536, %v6709
        %v6734 = vadd.f32 %v6537, %v6712
        %v6735 = vadd.f32 %v6538, %v6717
        %v6736 = vadd.f32 %v6539, %v6720
        %v6737 = vadd.f32 %v6540, %v6725
        %v6738 = vadd.f32 %v6541, %v6728
        %v6739 = vunpack.c.h.b16 %v5766
        %v6740 = vunpack.c.h.b16 %v5767
        %v6741 = vpack.c.b16 %v6545, %v6544
        %v6742 = vpack.c.b16 %v6740, %v6739
        %v6744 = vshrl.u32 %v6741, 16
        %v6746 = vrot.slane %v6744, 4
        %v6747 = vshll.u32 %v6741, 16
        %v6749 = vrot.slane %v6747, 5
        %v6750 = vor.u32 %v6746, %v6749
        %v6751 = vrot.slane %v6750, 4
        %v6753 = vshll.u32 %v6742, 16
        %v6755 = vrot.slane %v6753, 5
        %v6756 = vsel %vm967, %v6751, %v6755
        %v6757 = vld [vmem:[%s10 + $0x180] sm:$0xf]
        %v6758 = vld [vmem:[%s10 + $0x184] sm:$0xf]
        %v6759 = vld [vmem:[%s10 + $0x188] sm:$0xf]
        %v6760 = vld [vmem:[%s10 + $0x18c] sm:$0xf]
        %v6761 = vld [vmem:[%s10 + $0x190] sm:$0xf]
        %v6762 = vld [vmem:[%s10 + $0x194] sm:$0xf]
        %v6763 = vld [vmem:[%s10 + $0x198] sm:$0xf]
        %v6764 = vld [vmem:[%s10 + $0x19c] sm:$0xf]
        %v6765 = vld [vmem:[%s10 + $0x1a0] sm:$0xf]
        %v6766 = vld [vmem:[%s10 + $0x1a4] sm:$0xf]
        %v6767 = vld [vmem:[%s10 + $0x1a8] sm:$0xf]
        %v6768 = vld [vmem:[%s10 + $0x1ac] sm:$0xf]
        %v6769 = vld [vmem:[%s10 + $0x1b0] sm:$0xf]
        %v6770 = vld [vmem:[%s10 + $0x1b4] sm:$0xf]
        %v6771 = vld [vmem:[%s10 + $0x1b8] sm:$0xf]
        %v6772 = vld [vmem:[%s10 + $0x1bc] sm:$0xf]
        %v6773 = vld [vmem:[%s10 + $0x1c0] sm:$0xf]
        %v6774 = vld [vmem:[%s10 + $0x1c4] sm:$0xf]
        %v6775 = vld [vmem:[%s10 + $0x1c8] sm:$0xf]
        %v6776 = vld [vmem:[%s10 + $0x1cc] sm:$0xf]
        %v6777 = vld [vmem:[%s10 + $0x1d0] sm:$0xf]
        %v6778 = vld [vmem:[%s10 + $0x1d4] sm:$0xf]
        %v6779 = vld [vmem:[%s10 + $0x1d8] sm:$0xf]
        %v6780 = vld [vmem:[%s10 + $0x1dc] sm:$0xf]
        %v6781 = vunpack.c.l.b16 %v6756
        %v6782 = vunpack.c.h.b16 %v6756
        %v6783 = vpack.c.b16 %v5972, %v5970
        %v6784 = vpack.c.b16 %v5973, %v5971
        %v6785 = vpack.c.b16 %v5976, %v5974
        %v6786 = vpack.c.b16 %v5977, %v5975
        %v6787 = vpack.c.b16 %v5980, %v5978
        %v6788 = vpack.c.b16 %v5981, %v5979
        %v6789 = vpack.c.b16 %v6781, %v5982
        %v6790 = vpack.c.b16 %v6782, %v5983
        %v6819 = vunpack.c.l.b16 %v6757
        %v6820 = vunpack.c.l.b16 %v6758
        %v6821 = vunpack.c.l.b16 %v6759
        %v6822 = vunpack.c.l.b16 %v6760
        %v6823 = vunpack.c.l.b16 %v6761
        %v6824 = vunpack.c.l.b16 %v6762
        %v6825 = vunpack.c.l.b16 %v6763
        %v6826 = vunpack.c.l.b16 %v6764
        %v6827 = vunpack.c.l.b16 %v6765
        %v6828 = vunpack.c.l.b16 %v6766
        %v6829 = vunpack.c.l.b16 %v6767
        %v6830 = vunpack.c.l.b16 %v6768
        %v6831 = vunpack.c.l.b16 %v6769
        %v6832 = vunpack.c.l.b16 %v6770
        %v6833 = vunpack.c.l.b16 %v6771
        %v6834 = vunpack.c.l.b16 %v6772
        %v6835 = vunpack.c.l.b16 %v6773
        %v6836 = vunpack.c.l.b16 %v6774
        %v6837 = vunpack.c.l.b16 %v6775
        %v6838 = vunpack.c.l.b16 %v6776
        %v6839 = vunpack.c.l.b16 %v6777
        %v6840 = vunpack.c.l.b16 %v6778
        %v6841 = vunpack.c.l.b16 %v6779
        %v6842 = vunpack.c.l.b16 %v6780
        %v6843 = vpack.c.b16 %v6820, %v6819
        %v6844 = vpack.c.b16 %v6822, %v6821
        %v6845 = vpack.c.b16 %v6824, %v6823
        %v6846 = vpack.c.b16 %v6826, %v6825
        %v6847 = vpack.c.b16 %v6828, %v6827
        %v6848 = vpack.c.b16 %v6830, %v6829
        %v6849 = vpack.c.b16 %v6832, %v6831
        %v6850 = vpack.c.b16 %v6834, %v6833
        %v6851 = vpack.c.b16 %v6836, %v6835
        %v6852 = vpack.c.b16 %v6838, %v6837
        %v6853 = vpack.c.b16 %v6840, %v6839
        %v6854 = vpack.c.b16 %v6842, %v6841
        %v6868 = vsel %vm6068, %v6784, 0
        %v6871 = vsel %vm6068, %v6786, 0
        %v6874 = vsel %vm6068, %v6788, 0
        %v6877 = vsel %vm6068, %v6790, 0
        %6879 = vmatprep.subr.bf16.mxu0 0
        %6880 = vmatpush1.bf16.msra.mxu0 %v6843
        %6881 = vmatprep.subr.bf16.mxu0 0
        %6882 = vmatpush1.bf16.msra.mxu0 %v6844
        %6883 = vmatprep.subr.bf16.mxu0 0
        %6884 = vmatpush1.bf16.msra.mxu0 %v6845
        %6885 = vmatprep.subr.bf16.mxu0 0
        %6886 = vmatpush1.bf16.msra.mxu0 %v6846
        %6887 = vmatprep.subr.bf16.mxu0 0
        %6888 = vmatpush1.bf16.msra.mxu0 %v6847
        %6889 = vmatprep.subr.bf16.mxu0 0
        %6890 = vmatpush1.bf16.msra.mxu0 %v6848
        %6891 = vmatprep.subr.bf16.mxu0 0
        %6892 = vmatpush1.bf16.msra.mxu0 %v6849
        %6893 = vmatprep.subr.bf16.mxu0 0
        %6894 = vmatpush1.bf16.msra.mxu0 %v6850
        %6895 = vmatprep.subr.bf16.mxu0 0
        %6896 = vmatpush1.bf16.msra.mxu0 %v6851
        %6897 = vmatprep.subr.bf16.mxu0 0
        %6898 = vmatpush1.bf16.msra.mxu0 %v6852
        %6899 = vmatprep.subr.bf16.mxu0 0
        %6900 = vmatpush1.bf16.msra.mxu0 %v6853
        %6901 = vmatprep.subr.bf16.mxu0 0
        %6902 = vmatpush1.bf16.msra.mxu0 %v6854
        %6903 = vmatprep.subr.bf16.mxu0 0
        %6904 = vmatpush1.bf16.msra.mxu0 0
        %6905 = vmatprep.subr.bf16.mxu0 0
        %6906 = vmatpush1.bf16.msra.mxu0 0
        %6907 = vmatprep.subr.bf16.mxu0 0
        %6908 = vmatpush1.bf16.msra.mxu0 0
        %6909 = vmatprep.subr.bf16.mxu0 0
        %6910 = vmatpush1.bf16.msra.mxu0 0
        %6911 = vmatprep.mubr.bf16.mxu0 %v6868
        %6912 = vmatmul.mubr.bf16.gmra.mrb[0].mxu0 %v6783
        %v6913 = vpop.f32.mrb[0].mxu0
        %v6914 = vadd.f32 0.0, %v6913
        %v6915 = vpop.f32.mrb[0].mxu0
        %v6916 = vpop.f32.mrb[0].mxu0
        %v6917 = vadd.f32 0.0, %v6916
        %v6918 = vpop.f32.mrb[0].mxu0
        %6919 = vmatprep.mubr.bf16.mxu0 %v6871
        %6920 = vmatmul.mubr.bf16.gmra.mrb[0].mxu0 %v6785
        %v6921 = vpop.f32.mrb[0].mxu0
        %v6922 = vadd.f32 0.0, %v6921
        %v6923 = vpop.f32.mrb[0].mxu0
        %v6924 = vpop.f32.mrb[0].mxu0
        %v6925 = vadd.f32 0.0, %v6924
        %v6926 = vpop.f32.mrb[0].mxu0
        %6927 = vmatprep.mubr.bf16.mxu0 %v6874
        %6928 = vmatmul.mubr.bf16.gmra.mrb[0].mxu0 %v6787
        %v6929 = vpop.f32.mrb[0].mxu0
        %v6930 = vadd.f32 0.0, %v6929
        %v6931 = vpop.f32.mrb[0].mxu0
        %v6932 = vpop.f32.mrb[0].mxu0
        %v6933 = vadd.f32 0.0, %v6932
        %v6934 = vpop.f32.mrb[0].mxu0
        %6935 = vmatprep.mubr.bf16.mxu0 %v6877
        %6936 = vmatmul.mubr.bf16.gmra.mrb[0].mxu0 %v6789
        %v6937 = vpop.f32.mrb[0].mxu0
        %v6938 = vadd.f32 0.0, %v6937
        %v6939 = vpop.f32.mrb[0].mxu0
        %v6940 = vpop.f32.mrb[0].mxu0
        %v6941 = vadd.f32 0.0, %v6940
        %v6942 = vpop.f32.mrb[0].mxu0
        %6943 = vdwg.mxu0
        %v6944 = vadd.f32 %v6731, %v6914
        %v6945 = vadd.f32 %v6732, %v6917
        %v6946 = vadd.f32 %v6733, %v6922
        %v6947 = vadd.f32 %v6734, %v6925
        %v6948 = vadd.f32 %v6735, %v6930
        %v6949 = vadd.f32 %v6736, %v6933
        %v6950 = vadd.f32 %v6737, %v6938
        %v6951 = vadd.f32 %v6738, %v6941
        %v6952 = vrot.slane %v6741, 5
        %v6953 = vrot.slane %v6952, 4
        %v6954 = vrot.slane %v6742, 5
        %v6955 = vsel %vm1628, %v6953, %v6954
        %v6956 = vld [vmem:[%s10 + $0x1e0] sm:$0xf]
        %v6957 = vld [vmem:[%s10 + $0x1e4] sm:$0xf]
        %v6958 = vld [vmem:[%s10 + $0x1e8] sm:$0xf]
        %v6959 = vld [vmem:[%s10 + $0x1ec] sm:$0xf]
        %v6960 = vld [vmem:[%s10 + $0x1f0] sm:$0xf]
        %v6961 = vld [vmem:[%s10 + $0x1f4] sm:$0xf]
        %v6962 = vld [vmem:[%s10 + $0x1f8] sm:$0xf]
        %v6963 = vld [vmem:[%s10 + $0x1fc] sm:$0xf]
        %v6964 = vld [vmem:[%s10 + $0x200] sm:$0xf]
        %v6965 = vld [vmem:[%s10 + $0x204] sm:$0xf]
        %v6966 = vld [vmem:[%s10 + $0x208] sm:$0xf]
        %v6967 = vld [vmem:[%s10 + $0x20c] sm:$0xf]
        %v6968 = vld [vmem:[%s10 + $0x210] sm:$0xf]
        %v6969 = vld [vmem:[%s10 + $0x214] sm:$0xf]
        %v6970 = vld [vmem:[%s10 + $0x218] sm:$0xf]
        %v6971 = vld [vmem:[%s10 + $0x21c] sm:$0xf]
        %v6972 = vld [vmem:[%s10 + $0x220] sm:$0xf]
        %v6973 = vld [vmem:[%s10 + $0x224] sm:$0xf]
        %v6974 = vld [vmem:[%s10 + $0x228] sm:$0xf]
        %v6975 = vld [vmem:[%s10 + $0x22c] sm:$0xf]
        %v6976 = vld [vmem:[%s10 + $0x230] sm:$0xf]
        %v6977 = vld [vmem:[%s10 + $0x234] sm:$0xf]
        %v6978 = vld [vmem:[%s10 + $0x238] sm:$0xf]
        %v6979 = vld [vmem:[%s10 + $0x23c] sm:$0xf]
        %v6980 = vunpack.c.l.b16 %v6955
        %v6981 = vunpack.c.h.b16 %v6955
        %v6982 = vpack.c.b16 %v6361, %v6359
        %v6983 = vpack.c.b16 %v6362, %v6360
        %v6984 = vpack.c.b16 %v6365, %v6363
        %v6985 = vpack.c.b16 %v6366, %v6364
        %v6986 = vpack.c.b16 %v6369, %v6367
        %v6987 = vpack.c.b16 %v6370, %v6368
        %v6988 = vpack.c.b16 %v6980, %v6371
        %v6989 = vpack.c.b16 %v6981, %v6372
        %v7018 = vunpack.c.l.b16 %v6956
        %v7019 = vunpack.c.l.b16 %v6957
        %v7020 = vunpack.c.l.b16 %v6958
        %v7021 = vunpack.c.l.b16 %v6959
        %v7022 = vunpack.c.l.b16 %v6960
        %v7023 = vunpack.c.l.b16 %v6961
        %v7024 = vunpack.c.l.b16 %v6962
        %v7025 = vunpack.c.l.b16 %v6963
        %v7026 = vunpack.c.l.b16 %v6964
        %v7027 = vunpack.c.l.b16 %v6965
        %v7028 = vunpack.c.l.b16 %v6966
        %v7029 = vunpack.c.l.b16 %v6967
        %v7030 = vunpack.c.l.b16 %v6968
        %v7031 = vunpack.c.l.b16 %v6969
        %v7032 = vunpack.c.l.b16 %v6970
        %v7033 = vunpack.c.l.b16 %v6971
        %v7034 = vunpack.c.l.b16 %v6972
        %v7035 = vunpack.c.l.b16 %v6973
        %v7036 = vunpack.c.l.b16 %v6974
        %v7037 = vunpack.c.l.b16 %v6975
        %v7038 = vunpack.c.l.b16 %v6976
        %v7039 = vunpack.c.l.b16 %v6977
        %v7040 = vunpack.c.l.b16 %v6978
        %v7041 = vunpack.c.l.b16 %v6979
        %v7042 = vpack.c.b16 %v7019, %v7018
        %v7043 = vpack.c.b16 %v7021, %v7020
        %v7044 = vpack.c.b16 %v7023, %v7022
        %v7045 = vpack.c.b16 %v7025, %v7024
        %v7046 = vpack.c.b16 %v7027, %v7026
        %v7047 = vpack.c.b16 %v7029, %v7028
        %v7048 = vpack.c.b16 %v7031, %v7030
        %v7049 = vpack.c.b16 %v7033, %v7032
        %v7050 = vpack.c.b16 %v7035, %v7034
        %v7051 = vpack.c.b16 %v7037, %v7036
        %v7052 = vpack.c.b16 %v7039, %v7038
        %v7053 = vpack.c.b16 %v7041, %v7040
        %v7067 = vsel %vm6068, %v6983, 0
        %v7070 = vsel %vm6068, %v6985, 0
        %v7073 = vsel %vm6068, %v6987, 0
        %v7076 = vsel %vm6068, %v6989, 0
        %7078 = vmatprep.subr.bf16.mxu0 0
        %7079 = vmatpush1.bf16.msra.mxu0 %v7042
        %7080 = vmatprep.subr.bf16.mxu0 0
        %7081 = vmatpush1.bf16.msra.mxu0 %v7043
        %7082 = vmatprep.subr.bf16.mxu0 0
        %7083 = vmatpush1.bf16.msra.mxu0 %v7044
        %7084 = vmatprep.subr.bf16.mxu0 0
        %7085 = vmatpush1.bf16.msra.mxu0 %v7045
        %7086 = vmatprep.subr.bf16.mxu0 0
        %7087 = vmatpush1.bf16.msra.mxu0 %v7046
        %7088 = vmatprep.subr.bf16.mxu0 0
        %7089 = vmatpush1.bf16.msra.mxu0 %v7047
        %7090 = vmatprep.subr.bf16.mxu0 0
        %7091 = vmatpush1.bf16.msra.mxu0 %v7048
        %7092 = vmatprep.subr.bf16.mxu0 0
        %7093 = vmatpush1.bf16.msra.mxu0 %v7049
        %7094 = vmatprep.subr.bf16.mxu0 0
        %7095 = vmatpush1.bf16.msra.mxu0 %v7050
        %7096 = vmatprep.subr.bf16.mxu0 0
        %7097 = vmatpush1.bf16.msra.mxu0 %v7051
        %7098 = vmatprep.subr.bf16.mxu0 0
        %7099 = vmatpush1.bf16.msra.mxu0 %v7052
        %7100 = vmatprep.subr.bf16.mxu0 0
        %7101 = vmatpush1.bf16.msra.mxu0 %v7053
        %7102 = vmatprep.subr.bf16.mxu0 0
        %7103 = vmatpush1.bf16.msra.mxu0 0
        %7104 = vmatprep.subr.bf16.mxu0 0
        %7105 = vmatpush1.bf16.msra.mxu0 0
        %7106 = vmatprep.subr.bf16.mxu0 0
        %7107 = vmatpush1.bf16.msra.mxu0 0
        %7108 = vmatprep.subr.bf16.mxu0 0
        %7109 = vmatpush1.bf16.msra.mxu0 0
        %7110 = vmatprep.mubr.bf16.mxu0 %v7067
        %7111 = vmatmul.mubr.bf16.gmra.mrb[0].mxu0 %v6982
        %v7112 = vpop.f32.mrb[0].mxu0
        %v7113 = vadd.f32 0.0, %v7112
        %v7114 = vpop.f32.mrb[0].mxu0
        %v7115 = vpop.f32.mrb[0].mxu0
        %v7116 = vadd.f32 0.0, %v7115
        %v7117 = vpop.f32.mrb[0].mxu0
        %7118 = vmatprep.mubr.bf16.mxu0 %v7070
        %7119 = vmatmul.mubr.bf16.gmra.mrb[0].mxu0 %v6984
        %v7120 = vpop.f32.mrb[0].mxu0
        %v7121 = vadd.f32 0.0, %v7120
        %v7122 = vpop.f32.mrb[0].mxu0
        %v7123 = vpop.f32.mrb[0].mxu0
        %v7124 = vadd.f32 0.0, %v7123
        %v7125 = vpop.f32.mrb[0].mxu0
        %7126 = vmatprep.mubr.bf16.mxu0 %v7073
        %7127 = vmatmul.mubr.bf16.gmra.mrb[0].mxu0 %v6986
        %v7128 = vpop.f32.mrb[0].mxu0
        %v7129 = vadd.f32 0.0, %v7128
        %v7130 = vpop.f32.mrb[0].mxu0
        %v7131 = vpop.f32.mrb[0].mxu0
        %v7132 = vadd.f32 0.0, %v7131
        %v7133 = vpop.f32.mrb[0].mxu0
        %7134 = vmatprep.mubr.bf16.mxu0 %v7076
        %7135 = vmatmul.mubr.bf16.gmra.mrb[0].mxu0 %v6988
        %v7136 = vpop.f32.mrb[0].mxu0
        %v7137 = vadd.f32 0.0, %v7136
        %v7138 = vpop.f32.mrb[0].mxu0
        %v7139 = vpop.f32.mrb[0].mxu0
        %v7140 = vadd.f32 0.0, %v7139
        %v7141 = vpop.f32.mrb[0].mxu0
        %7142 = vdwg.mxu0
        %v7143 = vadd.f32 %v6944, %v7113
        %v7144 = vadd.f32 %v6945, %v7116
        %v7145 = vadd.f32 %v6946, %v7121
        %v7146 = vadd.f32 %v6947, %v7124
        %v7147 = vadd.f32 %v6948, %v7129
        %v7148 = vadd.f32 %v6949, %v7132
        %v7149 = vadd.f32 %v6950, %v7137
        %v7150 = vadd.f32 %v6951, %v7140
        %v7151 = vld [vmem:[%s10 + $0x240] sm:$0xf]
        %v7152 = vld [vmem:[%s10 + $0x244] sm:$0xf]
        %v7153 = vld [vmem:[%s10 + $0x248] sm:$0xf]
        %v7154 = vld [vmem:[%s10 + $0x24c] sm:$0xf]
        %v7155 = vld [vmem:[%s10 + $0x250] sm:$0xf]
        %v7156 = vld [vmem:[%s10 + $0x254] sm:$0xf]
        %v7157 = vld [vmem:[%s10 + $0x258] sm:$0xf]
        %v7158 = vld [vmem:[%s10 + $0x25c] sm:$0xf]
        %v7159 = vld [vmem:[%s10 + $0x260] sm:$0xf]
        %v7160 = vld [vmem:[%s10 + $0x264] sm:$0xf]
        %v7161 = vld [vmem:[%s10 + $0x268] sm:$0xf]
        %v7162 = vld [vmem:[%s10 + $0x26c] sm:$0xf]
        %v7163 = vld [vmem:[%s10 + $0x270] sm:$0xf]
        %v7164 = vld [vmem:[%s10 + $0x274] sm:$0xf]
        %v7165 = vld [vmem:[%s10 + $0x278] sm:$0xf]
        %v7166 = vld [vmem:[%s10 + $0x27c] sm:$0xf]
        %v7167 = vld [vmem:[%s10 + $0x280] sm:$0xf]
        %v7168 = vld [vmem:[%s10 + $0x284] sm:$0xf]
        %v7169 = vld [vmem:[%s10 + $0x288] sm:$0xf]
        %v7170 = vld [vmem:[%s10 + $0x28c] sm:$0xf]
        %v7171 = vld [vmem:[%s10 + $0x290] sm:$0xf]
        %v7172 = vld [vmem:[%s10 + $0x294] sm:$0xf]
        %v7173 = vld [vmem:[%s10 + $0x298] sm:$0xf]
        %v7174 = vld [vmem:[%s10 + $0x29c] sm:$0xf]
        %v7175 = vpack.c.b16 %v887, %v6544
        %v7176 = vpack.c.b16 %v887, %v6545
        %v7202 = vunpack.c.l.b16 %v7151
        %v7203 = vunpack.c.l.b16 %v7152
        %v7204 = vunpack.c.l.b16 %v7153
        %v7205 = vunpack.c.l.b16 %v7154
        %v7206 = vunpack.c.l.b16 %v7155
        %v7207 = vunpack.c.l.b16 %v7156
        %v7208 = vunpack.c.l.b16 %v7157
        %v7209 = vunpack.c.l.b16 %v7158
        %v7210 = vunpack.c.l.b16 %v7159
        %v7211 = vunpack.c.l.b16 %v7160
        %v7212 = vunpack.c.l.b16 %v7161
        %v7213 = vunpack.c.l.b16 %v7162
        %v7214 = vunpack.c.l.b16 %v7163
        %v7215 = vunpack.c.l.b16 %v7164
        %v7216 = vunpack.c.l.b16 %v7165
        %v7217 = vunpack.c.l.b16 %v7166
        %v7218 = vunpack.c.l.b16 %v7167
        %v7219 = vunpack.c.l.b16 %v7168
        %v7220 = vunpack.c.l.b16 %v7169
        %v7221 = vunpack.c.l.b16 %v7170
        %v7222 = vunpack.c.l.b16 %v7171
        %v7223 = vunpack.c.l.b16 %v7172
        %v7224 = vunpack.c.l.b16 %v7173
        %v7225 = vunpack.c.l.b16 %v7174
        %v7226 = vpack.c.b16 %v7203, %v7202
        %v7227 = vpack.c.b16 %v7205, %v7204
        %v7228 = vpack.c.b16 %v7207, %v7206
        %v7229 = vpack.c.b16 %v7209, %v7208
        %v7230 = vpack.c.b16 %v7211, %v7210
        %v7231 = vpack.c.b16 %v7213, %v7212
        %v7232 = vpack.c.b16 %v7215, %v7214
        %v7233 = vpack.c.b16 %v7217, %v7216
        %v7234 = vpack.c.b16 %v7219, %v7218
        %v7235 = vpack.c.b16 %v7221, %v7220
        %v7236 = vpack.c.b16 %v7223, %v7222
        %v7237 = vpack.c.b16 %v7225, %v7224
        %v7251 = vsel %vm6068, %v7176, 0
        %7253 = vmatprep.subr.bf16.mxu0 0
        %7254 = vmatpush1.bf16.msra.mxu0 %v7226
        %7255 = vmatprep.subr.bf16.mxu0 0
        %7256 = vmatpush1.bf16.msra.mxu0 %v7227
        %7257 = vmatprep.subr.bf16.mxu0 0
        %7258 = vmatpush1.bf16.msra.mxu0 %v7228
        %7259 = vmatprep.subr.bf16.mxu0 0
        %7260 = vmatpush1.bf16.msra.mxu0 %v7229
        %7261 = vmatprep.subr.bf16.mxu0 0
        %7262 = vmatpush1.bf16.msra.mxu0 %v7230
        %7263 = vmatprep.subr.bf16.mxu0 0
        %7264 = vmatpush1.bf16.msra.mxu0 %v7231
        %7265 = vmatprep.subr.bf16.mxu0 0
        %7266 = vmatpush1.bf16.msra.mxu0 %v7232
        %7267 = vmatprep.subr.bf16.mxu0 0
        %7268 = vmatpush1.bf16.msra.mxu0 %v7233
        %7269 = vmatprep.subr.bf16.mxu0 0
        %7270 = vmatpush1.bf16.msra.mxu0 %v7234
        %7271 = vmatprep.subr.bf16.mxu0 0
        %7272 = vmatpush1.bf16.msra.mxu0 %v7235
        %7273 = vmatprep.subr.bf16.mxu0 0
        %7274 = vmatpush1.bf16.msra.mxu0 %v7236
        %7275 = vmatprep.subr.bf16.mxu0 0
        %7276 = vmatpush1.bf16.msra.mxu0 %v7237
        %7277 = vmatprep.subr.bf16.mxu0 0
        %7278 = vmatpush1.bf16.msra.mxu0 0
        %7279 = vmatprep.subr.bf16.mxu0 0
        %7280 = vmatpush1.bf16.msra.mxu0 0
        %7281 = vmatprep.subr.bf16.mxu0 0
        %7282 = vmatpush1.bf16.msra.mxu0 0
        %7283 = vmatprep.subr.bf16.mxu0 0
        %7284 = vmatpush1.bf16.msra.mxu0 0
        %7285 = vmatprep.mubr.bf16.mxu0 %v6234
        %7286 = vmatmul.mubr.bf16.gmra.mrb[0].mxu0 %v6148
        %v7287 = vpop.f32.mrb[0].mxu0
        %v7288 = vadd.f32 0.0, %v7287
        %v7289 = vpop.f32.mrb[0].mxu0
        %v7290 = vpop.f32.mrb[0].mxu0
        %v7291 = vadd.f32 0.0, %v7290
        %v7292 = vpop.f32.mrb[0].mxu0
        %7293 = vmatprep.mubr.bf16.mxu0 %v6237
        %7294 = vmatmul.mubr.bf16.gmra.mrb[0].mxu0 %v6150
        %v7295 = vpop.f32.mrb[0].mxu0
        %v7296 = vadd.f32 0.0, %v7295
        %v7297 = vpop.f32.mrb[0].mxu0
        %v7298 = vpop.f32.mrb[0].mxu0
        %v7299 = vadd.f32 0.0, %v7298
        %v7300 = vpop.f32.mrb[0].mxu0
        %7301 = vmatprep.mubr.bf16.mxu0 %v6240
        %7302 = vmatmul.mubr.bf16.gmra.mrb[0].mxu0 %v6152
        %v7303 = vpop.f32.mrb[0].mxu0
        %v7304 = vadd.f32 0.0, %v7303
        %v7305 = vpop.f32.mrb[0].mxu0
        %v7306 = vpop.f32.mrb[0].mxu0
        %v7307 = vadd.f32 0.0, %v7306
        %v7308 = vpop.f32.mrb[0].mxu0
        %7309 = vmatprep.mubr.bf16.mxu0 %v7251
        %7310 = vmatmul.mubr.bf16.gmra.mrb[0].mxu0 %v7175
        %v7311 = vpop.f32.mrb[0].mxu0
        %v7312 = vadd.f32 0.0, %v7311
        %v7313 = vpop.f32.mrb[0].mxu0
        %v7314 = vpop.f32.mrb[0].mxu0
        %v7315 = vadd.f32 0.0, %v7314
        %v7316 = vpop.f32.mrb[0].mxu0
        %7317 = vdwg.mxu0
        %v7318 = vadd.f32 %v7143, %v7288
        %v7319 = vadd.f32 %v7144, %v7291
        %v7320 = vadd.f32 %v7145, %v7296
        %v7321 = vadd.f32 %v7146, %v7299
        %v7322 = vadd.f32 %v7147, %v7304
        %v7323 = vadd.f32 %v7148, %v7307
        %v7324 = vadd.f32 %v7149, %v7312
        %v7325 = vadd.f32 %v7150, %v7315
        %v7326 = vld [vmem:[%s10 + $0x2a0] sm:$0xf]
        %v7327 = vld [vmem:[%s10 + $0x2a4] sm:$0xf]
        %v7328 = vld [vmem:[%s10 + $0x2a8] sm:$0xf]
        %v7329 = vld [vmem:[%s10 + $0x2ac] sm:$0xf]
        %v7330 = vld [vmem:[%s10 + $0x2b0] sm:$0xf]
        %v7331 = vld [vmem:[%s10 + $0x2b4] sm:$0xf]
        %v7332 = vld [vmem:[%s10 + $0x2b8] sm:$0xf]
        %v7333 = vld [vmem:[%s10 + $0x2bc] sm:$0xf]
        %v7334 = vld [vmem:[%s10 + $0x2c0] sm:$0xf]
        %v7335 = vld [vmem:[%s10 + $0x2c4] sm:$0xf]
        %v7336 = vld [vmem:[%s10 + $0x2c8] sm:$0xf]
        %v7337 = vld [vmem:[%s10 + $0x2cc] sm:$0xf]
        %v7338 = vld [vmem:[%s10 + $0x2d0] sm:$0xf]
        %v7339 = vld [vmem:[%s10 + $0x2d4] sm:$0xf]
        %v7340 = vld [vmem:[%s10 + $0x2d8] sm:$0xf]
        %v7341 = vld [vmem:[%s10 + $0x2dc] sm:$0xf]
        %v7342 = vld [vmem:[%s10 + $0x2e0] sm:$0xf]
        %v7343 = vld [vmem:[%s10 + $0x2e4] sm:$0xf]
        %v7344 = vld [vmem:[%s10 + $0x2e8] sm:$0xf]
        %v7345 = vld [vmem:[%s10 + $0x2ec] sm:$0xf]
        %v7346 = vld [vmem:[%s10 + $0x2f0] sm:$0xf]
        %v7347 = vld [vmem:[%s10 + $0x2f4] sm:$0xf]
        %v7348 = vld [vmem:[%s10 + $0x2f8] sm:$0xf]
        %v7349 = vld [vmem:[%s10 + $0x2fc] sm:$0xf]
        %v7350 = vpack.c.b16 %v1112, %v6781
        %v7351 = vpack.c.b16 %v1113, %v6782
        %v7377 = vunpack.c.l.b16 %v7326
        %v7378 = vunpack.c.l.b16 %v7327
        %v7379 = vunpack.c.l.b16 %v7328
        %v7380 = vunpack.c.l.b16 %v7329
        %v7381 = vunpack.c.l.b16 %v7330
        %v7382 = vunpack.c.l.b16 %v7331
        %v7383 = vunpack.c.l.b16 %v7332
        %v7384 = vunpack.c.l.b16 %v7333
        %v7385 = vunpack.c.l.b16 %v7334
        %v7386 = vunpack.c.l.b16 %v7335
        %v7387 = vunpack.c.l.b16 %v7336
        %v7388 = vunpack.c.l.b16 %v7337
        %v7389 = vunpack.c.l.b16 %v7338
        %v7390 = vunpack.c.l.b16 %v7339
        %v7391 = vunpack.c.l.b16 %v7340
        %v7392 = vunpack.c.l.b16 %v7341
        %v7393 = vunpack.c.l.b16 %v7342
        %v7394 = vunpack.c.l.b16 %v7343
        %v7395 = vunpack.c.l.b16 %v7344
        %v7396 = vunpack.c.l.b16 %v7345
        %v7397 = vunpack.c.l.b16 %v7346
        %v7398 = vunpack.c.l.b16 %v7347
        %v7399 = vunpack.c.l.b16 %v7348
        %v7400 = vunpack.c.l.b16 %v7349
        %v7401 = vpack.c.b16 %v7378, %v7377
        %v7402 = vpack.c.b16 %v7380, %v7379
        %v7403 = vpack.c.b16 %v7382, %v7381
        %v7404 = vpack.c.b16 %v7384, %v7383
        %v7405 = vpack.c.b16 %v7386, %v7385
        %v7406 = vpack.c.b16 %v7388, %v7387
        %v7407 = vpack.c.b16 %v7390, %v7389
        %v7408 = vpack.c.b16 %v7392, %v7391
        %v7409 = vpack.c.b16 %v7394, %v7393
        %v7410 = vpack.c.b16 %v7396, %v7395
        %v7411 = vpack.c.b16 %v7398, %v7397
        %v7412 = vpack.c.b16 %v7400, %v7399
        %v7426 = vsel %vm6068, %v7351, 0
        %7428 = vmatprep.subr.bf16.mxu0 0
        %7429 = vmatpush1.bf16.msra.mxu0 %v7401
        %7430 = vmatprep.subr.bf16.mxu0 0
        %7431 = vmatpush1.bf16.msra.mxu0 %v7402
        %7432 = vmatprep.subr.bf16.mxu0 0
        %7433 = vmatpush1.bf16.msra.mxu0 %v7403
        %7434 = vmatprep.subr.bf16.mxu0 0
        %7435 = vmatpush1.bf16.msra.mxu0 %v7404
        %7436 = vmatprep.subr.bf16.mxu0 0
        %7437 = vmatpush1.bf16.msra.mxu0 %v7405
        %7438 = vmatprep.subr.bf16.mxu0 0
        %7439 = vmatpush1.bf16.msra.mxu0 %v7406
        %7440 = vmatprep.subr.bf16.mxu0 0
        %7441 = vmatpush1.bf16.msra.mxu0 %v7407
        %7442 = vmatprep.subr.bf16.mxu0 0
        %7443 = vmatpush1.bf16.msra.mxu0 %v7408
        %7444 = vmatprep.subr.bf16.mxu0 0
        %7445 = vmatpush1.bf16.msra.mxu0 %v7409
        %7446 = vmatprep.subr.bf16.mxu0 0
        %7447 = vmatpush1.bf16.msra.mxu0 %v7410
        %7448 = vmatprep.subr.bf16.mxu0 0
        %7449 = vmatpush1.bf16.msra.mxu0 %v7411
        %7450 = vmatprep.subr.bf16.mxu0 0
        %7451 = vmatpush1.bf16.msra.mxu0 %v7412
        %7452 = vmatprep.subr.bf16.mxu0 0
        %7453 = vmatpush1.bf16.msra.mxu0 0
        %7454 = vmatprep.subr.bf16.mxu0 0
        %7455 = vmatpush1.bf16.msra.mxu0 0
        %7456 = vmatprep.subr.bf16.mxu0 0
        %7457 = vmatpush1.bf16.msra.mxu0 0
        %7458 = vmatprep.subr.bf16.mxu0 0
        %7459 = vmatpush1.bf16.msra.mxu0 0
        %7460 = vmatprep.mubr.bf16.mxu0 %v6073
        %7461 = vmatmul.mubr.bf16.gmra.mrb[0].mxu0 %v5986
        %v7462 = vpop.f32.mrb[0].mxu0
        %v7463 = vadd.f32 0.0, %v7462
        %v7464 = vpop.f32.mrb[0].mxu0
        %v7465 = vpop.f32.mrb[0].mxu0
        %v7466 = vadd.f32 0.0, %v7465
        %v7467 = vpop.f32.mrb[0].mxu0
        %7468 = vmatprep.mubr.bf16.mxu0 %v6076
        %7469 = vmatmul.mubr.bf16.gmra.mrb[0].mxu0 %v5988
        %v7470 = vpop.f32.mrb[0].mxu0
        %v7471 = vadd.f32 0.0, %v7470
        %v7472 = vpop.f32.mrb[0].mxu0
        %v7473 = vpop.f32.mrb[0].mxu0
        %v7474 = vadd.f32 0.0, %v7473
        %v7475 = vpop.f32.mrb[0].mxu0
        %7476 = vmatprep.mubr.bf16.mxu0 %v6079
        %7477 = vmatmul.mubr.bf16.gmra.mrb[0].mxu0 %v5990
        %v7478 = vpop.f32.mrb[0].mxu0
        %v7479 = vadd.f32 0.0, %v7478
        %v7480 = vpop.f32.mrb[0].mxu0
        %v7481 = vpop.f32.mrb[0].mxu0
        %v7482 = vadd.f32 0.0, %v7481
        %v7483 = vpop.f32.mrb[0].mxu0
        %7484 = vmatprep.mubr.bf16.mxu0 %v7426
        %7485 = vmatmul.mubr.bf16.gmra.mrb[0].mxu0 %v7350
        %v7486 = vpop.f32.mrb[0].mxu0
        %v7487 = vadd.f32 0.0, %v7486
        %v7488 = vpop.f32.mrb[0].mxu0
        %v7489 = vpop.f32.mrb[0].mxu0
        %v7490 = vadd.f32 0.0, %v7489
        %v7491 = vpop.f32.mrb[0].mxu0
        %7492 = vdwg.mxu0
        %v7493 = vadd.f32 %v7318, %v7463
        %v7494 = vadd.f32 %v7319, %v7466
        %v7495 = vadd.f32 %v7320, %v7471
        %v7496 = vadd.f32 %v7321, %v7474
        %v7497 = vadd.f32 %v7322, %v7479
        %v7498 = vadd.f32 %v7323, %v7482
        %v7499 = vadd.f32 %v7324, %v7487
        %v7500 = vadd.f32 %v7325, %v7490
        %v7501 = vld [vmem:[%s10 + $0x300] sm:$0xf]
        %v7502 = vld [vmem:[%s10 + $0x304] sm:$0xf]
        %v7503 = vld [vmem:[%s10 + $0x308] sm:$0xf]
        %v7504 = vld [vmem:[%s10 + $0x30c] sm:$0xf]
        %v7505 = vld [vmem:[%s10 + $0x310] sm:$0xf]
        %v7506 = vld [vmem:[%s10 + $0x314] sm:$0xf]
        %v7507 = vld [vmem:[%s10 + $0x318] sm:$0xf]
        %v7508 = vld [vmem:[%s10 + $0x31c] sm:$0xf]
        %v7509 = vld [vmem:[%s10 + $0x320] sm:$0xf]
        %v7510 = vld [vmem:[%s10 + $0x324] sm:$0xf]
        %v7511 = vld [vmem:[%s10 + $0x328] sm:$0xf]
        %v7512 = vld [vmem:[%s10 + $0x32c] sm:$0xf]
        %v7513 = vld [vmem:[%s10 + $0x330] sm:$0xf]
        %v7514 = vld [vmem:[%s10 + $0x334] sm:$0xf]
        %v7515 = vld [vmem:[%s10 + $0x338] sm:$0xf]
        %v7516 = vld [vmem:[%s10 + $0x33c] sm:$0xf]
        %v7517 = vld [vmem:[%s10 + $0x340] sm:$0xf]
        %v7518 = vld [vmem:[%s10 + $0x344] sm:$0xf]
        %v7519 = vld [vmem:[%s10 + $0x348] sm:$0xf]
        %v7520 = vld [vmem:[%s10 + $0x34c] sm:$0xf]
        %v7521 = vld [vmem:[%s10 + $0x350] sm:$0xf]
        %v7522 = vld [vmem:[%s10 + $0x354] sm:$0xf]
        %v7523 = vld [vmem:[%s10 + $0x358] sm:$0xf]
        %v7524 = vld [vmem:[%s10 + $0x35c] sm:$0xf]
        %v7525 = vpack.c.b16 %v1693, %v6980
        %v7526 = vpack.c.b16 %v1694, %v6981
        %v7552 = vunpack.c.l.b16 %v7501
        %v7553 = vunpack.c.l.b16 %v7502
        %v7554 = vunpack.c.l.b16 %v7503
        %v7555 = vunpack.c.l.b16 %v7504
        %v7556 = vunpack.c.l.b16 %v7505
        %v7557 = vunpack.c.l.b16 %v7506
        %v7558 = vunpack.c.l.b16 %v7507
        %v7559 = vunpack.c.l.b16 %v7508
        %v7560 = vunpack.c.l.b16 %v7509
        %v7561 = vunpack.c.l.b16 %v7510
        %v7562 = vunpack.c.l.b16 %v7511
        %v7563 = vunpack.c.l.b16 %v7512
        %v7564 = vunpack.c.l.b16 %v7513
        %v7565 = vunpack.c.l.b16 %v7514
        %v7566 = vunpack.c.l.b16 %v7515
        %v7567 = vunpack.c.l.b16 %v7516
        %v7568 = vunpack.c.l.b16 %v7517
        %v7569 = vunpack.c.l.b16 %v7518
        %v7570 = vunpack.c.l.b16 %v7519
        %v7571 = vunpack.c.l.b16 %v7520
        %v7572 = vunpack.c.l.b16 %v7521
        %v7573 = vunpack.c.l.b16 %v7522
        %v7574 = vunpack.c.l.b16 %v7523
        %v7575 = vunpack.c.l.b16 %v7524
        %v7576 = vpack.c.b16 %v7553, %v7552
        %v7577 = vpack.c.b16 %v7555, %v7554
        %v7578 = vpack.c.b16 %v7557, %v7556
        %v7579 = vpack.c.b16 %v7559, %v7558
        %v7580 = vpack.c.b16 %v7561, %v7560
        %v7581 = vpack.c.b16 %v7563, %v7562
        %v7582 = vpack.c.b16 %v7565, %v7564
        %v7583 = vpack.c.b16 %v7567, %v7566
        %v7584 = vpack.c.b16 %v7569, %v7568
        %v7585 = vpack.c.b16 %v7571, %v7570
        %v7586 = vpack.c.b16 %v7573, %v7572
        %v7587 = vpack.c.b16 %v7575, %v7574
        %v7601 = vsel %vm6068, %v7526, 0
        %7603 = vmatprep.subr.bf16.mxu0 0
        %7604 = vmatpush1.bf16.msra.mxu0 %v7576
        %7605 = vmatprep.subr.bf16.mxu0 0
        %7606 = vmatpush1.bf16.msra.mxu0 %v7577
        %7607 = vmatprep.subr.bf16.mxu0 0
        %7608 = vmatpush1.bf16.msra.mxu0 %v7578
        %7609 = vmatprep.subr.bf16.mxu0 0
        %7610 = vmatpush1.bf16.msra.mxu0 %v7579
        %7611 = vmatprep.subr.bf16.mxu0 0
        %7612 = vmatpush1.bf16.msra.mxu0 %v7580
        %7613 = vmatprep.subr.bf16.mxu0 0
        %7614 = vmatpush1.bf16.msra.mxu0 %v7581
        %7615 = vmatprep.subr.bf16.mxu0 0
        %7616 = vmatpush1.bf16.msra.mxu0 %v7582
        %7617 = vmatprep.subr.bf16.mxu0 0
        %7618 = vmatpush1.bf16.msra.mxu0 %v7583
        %7619 = vmatprep.subr.bf16.mxu0 0
        %7620 = vmatpush1.bf16.msra.mxu0 %v7584
        %7621 = vmatprep.subr.bf16.mxu0 0
        %7622 = vmatpush1.bf16.msra.mxu0 %v7585
        %7623 = vmatprep.subr.bf16.mxu0 0
        %7624 = vmatpush1.bf16.msra.mxu0 %v7586
        %7625 = vmatprep.subr.bf16.mxu0 0
        %7626 = vmatpush1.bf16.msra.mxu0 %v7587
        %7627 = vmatprep.subr.bf16.mxu0 0
        %7628 = vmatpush1.bf16.msra.mxu0 0
        %7629 = vmatprep.subr.bf16.mxu0 0
        %7630 = vmatpush1.bf16.msra.mxu0 0
        %7631 = vmatprep.subr.bf16.mxu0 0
        %7632 = vmatpush1.bf16.msra.mxu0 0
        %7633 = vmatprep.subr.bf16.mxu0 0
        %7634 = vmatpush1.bf16.msra.mxu0 0
        %7635 = vmatprep.mubr.bf16.mxu0 %v6461
        %7636 = vmatmul.mubr.bf16.gmra.mrb[0].mxu0 %v6375
        %v7637 = vpop.f32.mrb[0].mxu0
        %v7638 = vadd.f32 0.0, %v7637
        %v7639 = vpop.f32.mrb[0].mxu0
        %v7640 = vpop.f32.mrb[0].mxu0
        %v7641 = vadd.f32 0.0, %v7640
        %v7642 = vpop.f32.mrb[0].mxu0
        %7643 = vmatprep.mubr.bf16.mxu0 %v6464
        %7644 = vmatmul.mubr.bf16.gmra.mrb[0].mxu0 %v6377
        %v7645 = vpop.f32.mrb[0].mxu0
        %v7646 = vadd.f32 0.0, %v7645
        %v7647 = vpop.f32.mrb[0].mxu0
        %v7648 = vpop.f32.mrb[0].mxu0
        %v7649 = vadd.f32 0.0, %v7648
        %v7650 = vpop.f32.mrb[0].mxu0
        %7651 = vmatprep.mubr.bf16.mxu0 %v6467
        %7652 = vmatmul.mubr.bf16.gmra.mrb[0].mxu0 %v6379
        %v7653 = vpop.f32.mrb[0].mxu0
        %v7654 = vadd.f32 0.0, %v7653
        %v7655 = vpop.f32.mrb[0].mxu0
        %v7656 = vpop.f32.mrb[0].mxu0
        %v7657 = vadd.f32 0.0, %v7656
        %v7658 = vpop.f32.mrb[0].mxu0
        %7659 = vmatprep.mubr.bf16.mxu0 %v7601
        %7660 = vmatmul.mubr.bf16.gmra.mrb[0].mxu0 %v7525
        %v7661 = vpop.f32.mrb[0].mxu0
        %v7662 = vadd.f32 0.0, %v7661
        %v7663 = vpop.f32.mrb[0].mxu0
        %v7664 = vpop.f32.mrb[0].mxu0
        %v7665 = vadd.f32 0.0, %v7664
        %v7666 = vpop.f32.mrb[0].mxu0
        %7667 = vdwg.mxu0
        %v7668 = vadd.f32 %v7493, %v7638
        %v7669 = vadd.f32 %v7494, %v7641
        %v7670 = vadd.f32 %v7495, %v7646
        %v7671 = vadd.f32 %v7496, %v7649
        %v7672 = vadd.f32 %v7497, %v7654
        %v7673 = vadd.f32 %v7498, %v7657
        %v7674 = vadd.f32 %v7499, %v7662
        %v7675 = vadd.f32 %v7500, %v7665
        %v7676 = vpack.c.bf16 %v5553, %v5552
        %v7677 = vpack.c.bf16 %v5555, %v5554
        %v7678 = vpack.c.bf16 %v5557, %v5556
        %v7679 = vpack.c.bf16 %v5559, %v5558
        %v7684 = vunpack.c.l.b16 %v7676
        %v7685 = vunpack.c.h.b16 %v7676
        %v7686 = vunpack.c.l.b16 %v7677
        %v7687 = vunpack.c.h.b16 %v7677
        %v7688 = vunpack.c.l.b16 %v7678
        %v7689 = vunpack.c.h.b16 %v7678
        %v7690 = vunpack.c.l.b16 %v7679
        %v7691 = vunpack.c.h.b16 %v7679
        %v7692 = vpack.c.b16 %v7684, %v7684
        %v7693 = vpack.c.b16 %v7685, %v7685
        %v7694 = vpack.c.b16 %v7686, %v7686
        %v7695 = vpack.c.b16 %v7687, %v7687
        %v7696 = vpack.c.b16 %v7688, %v7688
        %v7697 = vpack.c.b16 %v7689, %v7689
        %v7698 = vpack.c.b16 %v7690, %v7690
        %v7699 = vpack.c.b16 %v7691, %v7691
        %v7701 = vshrl.u32 %v7692, 16
        %v7703 = vrot.slane %v7701, 7
        %v7704 = vshll.u32 %v7692, 16
        %v7706 = vor.u32 %v7703, %v7704
        %v7708 = vshrl.u32 %v7693, 16
        %v7710 = vrot.slane %v7708, 7
        %v7711 = vshll.u32 %v7693, 16
        %v7713 = vor.u32 %v7710, %v7711
        %v7715 = vshrl.u32 %v7694, 16
        %v7717 = vrot.slane %v7715, 7
        %v7718 = vshll.u32 %v7694, 16
        %v7720 = vor.u32 %v7717, %v7718
        %v7722 = vshrl.u32 %v7695, 16
        %v7724 = vrot.slane %v7722, 7
        %v7725 = vshll.u32 %v7695, 16
        %v7727 = vor.u32 %v7724, %v7725
        %v7729 = vshrl.u32 %v7696, 16
        %v7731 = vrot.slane %v7729, 7
        %v7732 = vshll.u32 %v7696, 16
        %v7734 = vor.u32 %v7731, %v7732
        %v7736 = vshrl.u32 %v7697, 16
        %v7738 = vrot.slane %v7736, 7
        %v7739 = vshll.u32 %v7697, 16
        %v7741 = vor.u32 %v7738, %v7739
        %v7743 = vshrl.u32 %v7698, 16
        %v7745 = vrot.slane %v7743, 7
        %v7746 = vshll.u32 %v7698, 16
        %v7748 = vor.u32 %v7745, %v7746
        %v7750 = vshrl.u32 %v7699, 16
        %v7752 = vrot.slane %v7750, 7
        %v7753 = vshll.u32 %v7699, 16
        %v7755 = vor.u32 %v7752, %v7753
        %v7764 = vsel %vm836, 0, %v7706
        %v7765 = vsel %vm836, 0, %v7713
        %v7766 = vsel %vm836, 0, %v7720
        %v7767 = vsel %vm836, 0, %v7727
        %v7768 = vsel %vm836, 0, %v7734
        %v7769 = vsel %vm836, 0, %v7741
        %v7770 = vsel %vm836, 0, %v7748
        %v7771 = vsel %vm836, 0, %v7755
        %v7772 = vsel %vm855, %v7764, 0
        %v7773 = vsel %vm855, %v7765, 0
        %v7774 = vsel %vm855, %v7766, 0
        %v7775 = vsel %vm855, %v7767, 0
        %v7776 = vsel %vm855, %v7768, 0
        %v7777 = vsel %vm855, %v7769, 0
        %v7778 = vsel %vm855, %v7770, 0
        %v7779 = vsel %vm855, %v7771, 0
        %v7780 = vld [vmem:[%s11] sm:$0xf]
        %v7781 = vld [vmem:[%s11 + $0x4] sm:$0xf]
        %v7782 = vld [vmem:[%s11 + $0x8] sm:$0xf]
        %v7783 = vld [vmem:[%s11 + $0xc] sm:$0xf]
        %v7784 = vld [vmem:[%s11 + $0x10] sm:$0xf]
        %v7785 = vld [vmem:[%s11 + $0x14] sm:$0xf]
        %v7786 = vld [vmem:[%s11 + $0x18] sm:$0xf]
        %v7787 = vld [vmem:[%s11 + $0x1c] sm:$0xf]
        %v7795 = vunpack.c.l.b16 %v7772
        %v7796 = vunpack.c.h.b16 %v7772
        %v7797 = vunpack.c.l.b16 %v7773
        %v7798 = vunpack.c.h.b16 %v7773
        %v7799 = vunpack.c.l.b16 %v7774
        %v7800 = vunpack.c.h.b16 %v7774
        %v7801 = vunpack.c.l.b16 %v7775
        %v7802 = vunpack.c.h.b16 %v7775
        %v7803 = vunpack.c.l.b16 %v7776
        %v7804 = vunpack.c.h.b16 %v7776
        %v7805 = vunpack.c.l.b16 %v7777
        %v7806 = vunpack.c.h.b16 %v7777
        %v7807 = vunpack.c.l.b16 %v7778
        %v7808 = vunpack.c.h.b16 %v7778
        %v7809 = vpack.c.b16 %v7795, %v7795
        %v7810 = vpack.c.b16 %v7796, %v7796
        %v7811 = vpack.c.b16 %v7797, %v7797
        %v7812 = vpack.c.b16 %v7798, %v7798
        %v7813 = vpack.c.b16 %v7799, %v7799
        %v7814 = vpack.c.b16 %v7800, %v7800
        %v7815 = vpack.c.b16 %v7801, %v7801
        %v7816 = vpack.c.b16 %v7802, %v7802
        %v7817 = vpack.c.b16 %v7803, %v7803
        %v7818 = vpack.c.b16 %v7804, %v7804
        %v7819 = vpack.c.b16 %v7805, %v7805
        %v7820 = vpack.c.b16 %v7806, %v7806
        %v7821 = vpack.c.b16 %v7807, %v7807
        %v7822 = vpack.c.b16 %v7808, %v7808
        %v7824 = vshrl.u32 %v7809, 16
        %v7826 = vrot.slane %v7824, 4
        %v7827 = vshll.u32 %v7809, 16
        %v7829 = vrot.slane %v7827, 5
        %v7830 = vor.u32 %v7826, %v7829
        %v7831 = vrot.slane %v7830, 4
        %v7833 = vshll.u32 %v7810, 16
        %v7835 = vrot.slane %v7833, 5
        %v7836 = vsel %vm967, %v7831, %v7835
        %v7838 = vshrl.u32 %v7811, 16
        %v7840 = vrot.slane %v7838, 4
        %v7841 = vshll.u32 %v7811, 16
        %v7843 = vrot.slane %v7841, 5
        %v7844 = vor.u32 %v7840, %v7843
        %v7845 = vrot.slane %v7844, 4
        %v7847 = vshll.u32 %v7812, 16
        %v7849 = vrot.slane %v7847, 5
        %v7850 = vsel %vm967, %v7845, %v7849
        %v7852 = vshrl.u32 %v7813, 16
        %v7854 = vrot.slane %v7852, 4
        %v7855 = vshll.u32 %v7813, 16
        %v7857 = vrot.slane %v7855, 5
        %v7858 = vor.u32 %v7854, %v7857
        %v7859 = vrot.slane %v7858, 4
        %v7861 = vshll.u32 %v7814, 16
        %v7863 = vrot.slane %v7861, 5
        %v7864 = vsel %vm967, %v7859, %v7863
        %v7866 = vshrl.u32 %v7815, 16
        %v7868 = vrot.slane %v7866, 4
        %v7869 = vshll.u32 %v7815, 16
        %v7871 = vrot.slane %v7869, 5
        %v7872 = vor.u32 %v7868, %v7871
        %v7873 = vrot.slane %v7872, 4
        %v7875 = vshll.u32 %v7816, 16
        %v7877 = vrot.slane %v7875, 5
        %v7878 = vsel %vm967, %v7873, %v7877
        %v7880 = vshrl.u32 %v7817, 16
        %v7882 = vrot.slane %v7880, 4
        %v7883 = vshll.u32 %v7817, 16
        %v7885 = vrot.slane %v7883, 5
        %v7886 = vor.u32 %v7882, %v7885
        %v7887 = vrot.slane %v7886, 4
        %v7889 = vshll.u32 %v7818, 16
        %v7891 = vrot.slane %v7889, 5
        %v7892 = vsel %vm967, %v7887, %v7891
        %v7894 = vshrl.u32 %v7819, 16
        %v7896 = vrot.slane %v7894, 4
        %v7897 = vshll.u32 %v7819, 16
        %v7899 = vrot.slane %v7897, 5
        %v7900 = vor.u32 %v7896, %v7899
        %v7901 = vrot.slane %v7900, 4
        %v7903 = vshll.u32 %v7820, 16
        %v7905 = vrot.slane %v7903, 5
        %v7906 = vsel %vm967, %v7901, %v7905
        %v7908 = vshrl.u32 %v7821, 16
        %v7910 = vrot.slane %v7908, 4
        %v7911 = vshll.u32 %v7821, 16
        %v7913 = vrot.slane %v7911, 5
        %v7914 = vor.u32 %v7910, %v7913
        %v7915 = vrot.slane %v7914, 4
        %v7917 = vshll.u32 %v7822, 16
        %v7919 = vrot.slane %v7917, 5
        %v7920 = vsel %vm967, %v7915, %v7919
        %v7921 = vld [vmem:[%s11 + $0x20] sm:$0xf]
        %v7922 = vld [vmem:[%s11 + $0x24] sm:$0xf]
        %v7923 = vld [vmem:[%s11 + $0x28] sm:$0xf]
        %v7924 = vld [vmem:[%s11 + $0x2c] sm:$0xf]
        %v7925 = vld [vmem:[%s11 + $0x30] sm:$0xf]
        %v7926 = vld [vmem:[%s11 + $0x34] sm:$0xf]
        %v7927 = vld [vmem:[%s11 + $0x38] sm:$0xf]
        %v7928 = vld [vmem:[%s11 + $0x3c] sm:$0xf]
        %v7929 = vunpack.c.l.b16 %v7836
        %v7930 = vunpack.c.l.b16 %v7850
        %v7931 = vunpack.c.l.b16 %v7864
        %v7932 = vunpack.c.l.b16 %v7878
        %v7933 = vunpack.c.l.b16 %v7892
        %v7934 = vunpack.c.l.b16 %v7906
        %v7935 = vunpack.c.l.b16 %v7920
        %v7936 = vpack.c.b16 %v7929, %v1112
        %v7937 = vpack.c.b16 %v7931, %v7930
        %v7938 = vpack.c.b16 %v7933, %v7932
        %v7939 = vpack.c.b16 %v7935, %v7934
        %v7948 = vunpack.c.l.b16 %v7921
        %v7949 = vunpack.c.l.b16 %v7922
        %v7950 = vunpack.c.l.b16 %v7923
        %v7951 = vunpack.c.l.b16 %v7924
        %v7952 = vunpack.c.l.b16 %v7925
        %v7953 = vunpack.c.l.b16 %v7926
        %v7954 = vunpack.c.l.b16 %v7927
        %v7955 = vunpack.c.l.b16 %v7928
        %v7956 = vpack.c.b16 %v7949, %v7948
        %v7957 = vpack.c.b16 %v7951, %v7950
        %v7958 = vpack.c.b16 %v7953, %v7952
        %v7959 = vpack.c.b16 %v7955, %v7954
        %v7965 = vsel %vm6068, %v7936, 0
        %v7968 = vsel %vm6068, %v7937, 0
        %v7971 = vsel %vm6068, %v7938, 0
        %v7974 = vsel %vm6068, %v7939, 0
        %7976 = vmatprep.subr.bf16.mxu0 0
        %7977 = vmatpush1.bf16.msra.mxu0 %v7956
        %7978 = vmatprep.subr.bf16.mxu0 0
        %7979 = vmatpush1.bf16.msra.mxu0 %v7957
        %7980 = vmatprep.subr.bf16.mxu0 0
        %7981 = vmatpush1.bf16.msra.mxu0 %v7958
        %7982 = vmatprep.subr.bf16.mxu0 0
        %7983 = vmatpush1.bf16.msra.mxu0 %v7959
        %7984 = vmatprep.subr.bf16.mxu0 0
        %7985 = vmatpush1.bf16.msra.mxu0 0
        %7986 = vmatprep.subr.bf16.mxu0 0
        %7987 = vmatpush1.bf16.msra.mxu0 0
        %7988 = vmatprep.subr.bf16.mxu0 0
        %7989 = vmatpush1.bf16.msra.mxu0 0
        %7990 = vmatprep.subr.bf16.mxu0 0
        %7991 = vmatpush1.bf16.msra.mxu0 0
        %7992 = vmatprep.subr.bf16.mxu0 0
        %7993 = vmatpush1.bf16.msra.mxu0 0
        %7994 = vmatprep.subr.bf16.mxu0 0
        %7995 = vmatpush1.bf16.msra.mxu0 0
        %7996 = vmatprep.subr.bf16.mxu0 0
        %7997 = vmatpush1.bf16.msra.mxu0 0
        %7998 = vmatprep.subr.bf16.mxu0 0
        %7999 = vmatpush1.bf16.msra.mxu0 0
        %8000 = vmatprep.subr.bf16.mxu0 0
        %8001 = vmatpush1.bf16.msra.mxu0 0
        %8002 = vmatprep.subr.bf16.mxu0 0
        %8003 = vmatpush1.bf16.msra.mxu0 0
        %8004 = vmatprep.subr.bf16.mxu0 0
        %8005 = vmatpush1.bf16.msra.mxu0 0
        %8006 = vmatprep.subr.bf16.mxu0 0
        %8007 = vmatpush1.bf16.msra.mxu0 0
        %8008 = vmatprep.mubr.bf16.mxu0 0
        %8009 = vmatmul.mubr.bf16.gmra.mrb[0].mxu0 %v7965
        %v8010 = vpop.f32.mrb[0].mxu0
        %v8011 = vadd.f32 0.0, %v8010
        %v8012 = vpop.f32.mrb[0].mxu0
        %v8013 = vpop.f32.mrb[0].mxu0
        %v8014 = vadd.f32 0.0, %v8013
        %v8015 = vpop.f32.mrb[0].mxu0
        %8016 = vmatprep.mubr.bf16.mxu0 0
        %8017 = vmatmul.mubr.bf16.gmra.mrb[0].mxu0 %v7968
        %v8018 = vpop.f32.mrb[0].mxu0
        %v8019 = vadd.f32 0.0, %v8018
        %v8020 = vpop.f32.mrb[0].mxu0
        %v8021 = vpop.f32.mrb[0].mxu0
        %v8022 = vadd.f32 0.0, %v8021
        %v8023 = vpop.f32.mrb[0].mxu0
        %8024 = vmatprep.mubr.bf16.mxu0 0
        %8025 = vmatmul.mubr.bf16.gmra.mrb[0].mxu0 %v7971
        %v8026 = vpop.f32.mrb[0].mxu0
        %v8027 = vadd.f32 0.0, %v8026
        %v8028 = vpop.f32.mrb[0].mxu0
        %v8029 = vpop.f32.mrb[0].mxu0
        %v8030 = vadd.f32 0.0, %v8029
        %v8031 = vpop.f32.mrb[0].mxu0
        %8032 = vmatprep.mubr.bf16.mxu0 0
        %8033 = vmatmul.mubr.bf16.gmra.mrb[0].mxu0 %v7974
        %v8034 = vpop.f32.mrb[0].mxu0
        %v8035 = vadd.f32 0.0, %v8034
        %v8036 = vpop.f32.mrb[0].mxu0
        %v8037 = vpop.f32.mrb[0].mxu0
        %v8038 = vadd.f32 0.0, %v8037
        %v8039 = vpop.f32.mrb[0].mxu0
        %8040 = vdwg.mxu0
        %v8041 = vpack.c.b16 %v7795, %v887
        %v8042 = vpack.c.b16 %v7799, %v7797
        %v8043 = vpack.c.b16 %v7803, %v7801
        %v8044 = vpack.c.b16 %v7807, %v7805
        %v8053 = vunpack.c.l.b16 %v7780
        %v8054 = vunpack.c.l.b16 %v7781
        %v8055 = vunpack.c.l.b16 %v7782
        %v8056 = vunpack.c.l.b16 %v7783
        %v8057 = vunpack.c.l.b16 %v7784
        %v8058 = vunpack.c.l.b16 %v7785
        %v8059 = vunpack.c.l.b16 %v7786
        %v8060 = vunpack.c.l.b16 %v7787
        %v8061 = vpack.c.b16 %v8054, %v8053
        %v8062 = vpack.c.b16 %v8056, %v8055
        %v8063 = vpack.c.b16 %v8058, %v8057
        %v8064 = vpack.c.b16 %v8060, %v8059
        %v8070 = vsel %vm6068, %v8041, 0
        %v8073 = vsel %vm6068, %v8042, 0
        %v8076 = vsel %vm6068, %v8043, 0
        %v8079 = vsel %vm6068, %v8044, 0
        %8081 = vmatprep.subr.bf16.mxu0 0
        %8082 = vmatpush1.bf16.msra.mxu0 %v8061
        %8083 = vmatprep.subr.bf16.mxu0 0
        %8084 = vmatpush1.bf16.msra.mxu0 %v8062
        %8085 = vmatprep.subr.bf16.mxu0 0
        %8086 = vmatpush1.bf16.msra.mxu0 %v8063
        %8087 = vmatprep.subr.bf16.mxu0 0
        %8088 = vmatpush1.bf16.msra.mxu0 %v8064
        %8089 = vmatprep.subr.bf16.mxu0 0
        %8090 = vmatpush1.bf16.msra.mxu0 0
        %8091 = vmatprep.subr.bf16.mxu0 0
        %8092 = vmatpush1.bf16.msra.mxu0 0
        %8093 = vmatprep.subr.bf16.mxu0 0
        %8094 = vmatpush1.bf16.msra.mxu0 0
        %8095 = vmatprep.subr.bf16.mxu0 0
        %8096 = vmatpush1.bf16.msra.mxu0 0
        %8097 = vmatprep.subr.bf16.mxu0 0
        %8098 = vmatpush1.bf16.msra.mxu0 0
        %8099 = vmatprep.subr.bf16.mxu0 0
        %8100 = vmatpush1.bf16.msra.mxu0 0
        %8101 = vmatprep.subr.bf16.mxu0 0
        %8102 = vmatpush1.bf16.msra.mxu0 0
        %8103 = vmatprep.subr.bf16.mxu0 0
        %8104 = vmatpush1.bf16.msra.mxu0 0
        %8105 = vmatprep.subr.bf16.mxu0 0
        %8106 = vmatpush1.bf16.msra.mxu0 0
        %8107 = vmatprep.subr.bf16.mxu0 0
        %8108 = vmatpush1.bf16.msra.mxu0 0
        %8109 = vmatprep.subr.bf16.mxu0 0
        %8110 = vmatpush1.bf16.msra.mxu0 0
        %8111 = vmatprep.subr.bf16.mxu0 0
        %8112 = vmatpush1.bf16.msra.mxu0 0
        %8113 = vmatprep.mubr.bf16.mxu0 0
        %8114 = vmatmul.mubr.bf16.gmra.mrb[0].mxu0 %v8070
        %v8115 = vpop.f32.mrb[0].mxu0
        %v8116 = vadd.f32 %v8011, %v8115
        %v8117 = vpop.f32.mrb[0].mxu0
        %v8118 = vpop.f32.mrb[0].mxu0
        %v8119 = vadd.f32 %v8014, %v8118
        %v8120 = vpop.f32.mrb[0].mxu0
        %8121 = vmatprep.mubr.bf16.mxu0 0
        %8122 = vmatmul.mubr.bf16.gmra.mrb[0].mxu0 %v8073
        %v8123 = vpop.f32.mrb[0].mxu0
        %v8124 = vadd.f32 %v8019, %v8123
        %v8125 = vpop.f32.mrb[0].mxu0
        %v8126 = vpop.f32.mrb[0].mxu0
        %v8127 = vadd.f32 %v8022, %v8126
        %v8128 = vpop.f32.mrb[0].mxu0
        %8129 = vmatprep.mubr.bf16.mxu0 0
        %8130 = vmatmul.mubr.bf16.gmra.mrb[0].mxu0 %v8076
        %v8131 = vpop.f32.mrb[0].mxu0
        %v8132 = vadd.f32 %v8027, %v8131
        %v8133 = vpop.f32.mrb[0].mxu0
        %v8134 = vpop.f32.mrb[0].mxu0
        %v8135 = vadd.f32 %v8030, %v8134
        %v8136 = vpop.f32.mrb[0].mxu0
        %8137 = vmatprep.mubr.bf16.mxu0 0
        %8138 = vmatmul.mubr.bf16.gmra.mrb[0].mxu0 %v8079
        %v8139 = vpop.f32.mrb[0].mxu0
        %v8140 = vadd.f32 %v8035, %v8139
        %v8141 = vpop.f32.mrb[0].mxu0
        %v8142 = vpop.f32.mrb[0].mxu0
        %v8143 = vadd.f32 %v8038, %v8142
        %v8144 = vpop.f32.mrb[0].mxu0
        %8145 = vdwg.mxu0
        %v8146 = vrot.slane %v7809, 5
        %v8147 = vrot.slane %v8146, 4
        %v8148 = vrot.slane %v7810, 5
        %v8149 = vsel %vm1628, %v8147, %v8148
        %v8150 = vrot.slane %v7811, 5
        %v8151 = vrot.slane %v8150, 4
        %v8152 = vrot.slane %v7812, 5
        %v8153 = vsel %vm1628, %v8151, %v8152
        %v8154 = vrot.slane %v7813, 5
        %v8155 = vrot.slane %v8154, 4
        %v8156 = vrot.slane %v7814, 5
        %v8157 = vsel %vm1628, %v8155, %v8156
        %v8158 = vrot.slane %v7815, 5
        %v8159 = vrot.slane %v8158, 4
        %v8160 = vrot.slane %v7816, 5
        %v8161 = vsel %vm1628, %v8159, %v8160
        %v8162 = vrot.slane %v7817, 5
        %v8163 = vrot.slane %v8162, 4
        %v8164 = vrot.slane %v7818, 5
        %v8165 = vsel %vm1628, %v8163, %v8164
        %v8166 = vrot.slane %v7819, 5
        %v8167 = vrot.slane %v8166, 4
        %v8168 = vrot.slane %v7820, 5
        %v8169 = vsel %vm1628, %v8167, %v8168
        %v8170 = vrot.slane %v7821, 5
        %v8171 = vrot.slane %v8170, 4
        %v8172 = vrot.slane %v7822, 5
        %v8173 = vsel %vm1628, %v8171, %v8172
        %v8174 = vld [vmem:[%s11 + $0x40] sm:$0xf]
        %v8175 = vld [vmem:[%s11 + $0x44] sm:$0xf]
        %v8176 = vld [vmem:[%s11 + $0x48] sm:$0xf]
        %v8177 = vld [vmem:[%s11 + $0x4c] sm:$0xf]
        %v8178 = vld [vmem:[%s11 + $0x50] sm:$0xf]
        %v8179 = vld [vmem:[%s11 + $0x54] sm:$0xf]
        %v8180 = vld [vmem:[%s11 + $0x58] sm:$0xf]
        %v8181 = vld [vmem:[%s11 + $0x5c] sm:$0xf]
        %v8182 = vunpack.c.l.b16 %v8149
        %v8183 = vunpack.c.l.b16 %v8153
        %v8184 = vunpack.c.l.b16 %v8157
        %v8185 = vunpack.c.l.b16 %v8161
        %v8186 = vunpack.c.l.b16 %v8165
        %v8187 = vunpack.c.l.b16 %v8169
        %v8188 = vunpack.c.l.b16 %v8173
        %v8189 = vpack.c.b16 %v8182, %v1693
        %v8190 = vpack.c.b16 %v8184, %v8183
        %v8191 = vpack.c.b16 %v8186, %v8185
        %v8192 = vpack.c.b16 %v8188, %v8187
        %v8201 = vunpack.c.l.b16 %v8174
        %v8202 = vunpack.c.l.b16 %v8175
        %v8203 = vunpack.c.l.b16 %v8176
        %v8204 = vunpack.c.l.b16 %v8177
        %v8205 = vunpack.c.l.b16 %v8178
        %v8206 = vunpack.c.l.b16 %v8179
        %v8207 = vunpack.c.l.b16 %v8180
        %v8208 = vunpack.c.l.b16 %v8181
        %v8209 = vpack.c.b16 %v8202, %v8201
        %v8210 = vpack.c.b16 %v8204, %v8203
        %v8211 = vpack.c.b16 %v8206, %v8205
        %v8212 = vpack.c.b16 %v8208, %v8207
        %v8218 = vsel %vm6068, %v8189, 0
        %v8221 = vsel %vm6068, %v8190, 0
        %v8224 = vsel %vm6068, %v8191, 0
        %v8227 = vsel %vm6068, %v8192, 0
        %8229 = vmatprep.subr.bf16.mxu0 0
        %8230 = vmatpush1.bf16.msra.mxu0 %v8209
        %8231 = vmatprep.subr.bf16.mxu0 0
        %8232 = vmatpush1.bf16.msra.mxu0 %v8210
        %8233 = vmatprep.subr.bf16.mxu0 0
        %8234 = vmatpush1.bf16.msra.mxu0 %v8211
        %8235 = vmatprep.subr.bf16.mxu0 0
        %8236 = vmatpush1.bf16.msra.mxu0 %v8212
        %8237 = vmatprep.subr.bf16.mxu0 0
        %8238 = vmatpush1.bf16.msra.mxu0 0
        %8239 = vmatprep.subr.bf16.mxu0 0
        %8240 = vmatpush1.bf16.msra.mxu0 0
        %8241 = vmatprep.subr.bf16.mxu0 0
        %8242 = vmatpush1.bf16.msra.mxu0 0
        %8243 = vmatprep.subr.bf16.mxu0 0
        %8244 = vmatpush1.bf16.msra.mxu0 0
        %8245 = vmatprep.subr.bf16.mxu0 0
        %8246 = vmatpush1.bf16.msra.mxu0 0
        %8247 = vmatprep.subr.bf16.mxu0 0
        %8248 = vmatpush1.bf16.msra.mxu0 0
        %8249 = vmatprep.subr.bf16.mxu0 0
        %8250 = vmatpush1.bf16.msra.mxu0 0
        %8251 = vmatprep.subr.bf16.mxu0 0
        %8252 = vmatpush1.bf16.msra.mxu0 0
        %8253 = vmatprep.subr.bf16.mxu0 0
        %8254 = vmatpush1.bf16.msra.mxu0 0
        %8255 = vmatprep.subr.bf16.mxu0 0
        %8256 = vmatpush1.bf16.msra.mxu0 0
        %8257 = vmatprep.subr.bf16.mxu0 0
        %8258 = vmatpush1.bf16.msra.mxu0 0
        %8259 = vmatprep.subr.bf16.mxu0 0
        %8260 = vmatpush1.bf16.msra.mxu0 0
        %8261 = vmatprep.mubr.bf16.mxu0 0
        %8262 = vmatmul.mubr.bf16.gmra.mrb[0].mxu0 %v8218
        %v8263 = vpop.f32.mrb[0].mxu0
        %v8264 = vadd.f32 0.0, %v8263
        %v8265 = vpop.f32.mrb[0].mxu0
        %v8266 = vpop.f32.mrb[0].mxu0
        %v8267 = vadd.f32 0.0, %v8266
        %v8268 = vpop.f32.mrb[0].mxu0
        %8269 = vmatprep.mubr.bf16.mxu0 0
        %8270 = vmatmul.mubr.bf16.gmra.mrb[0].mxu0 %v8221
        %v8271 = vpop.f32.mrb[0].mxu0
        %v8272 = vadd.f32 0.0, %v8271
        %v8273 = vpop.f32.mrb[0].mxu0
        %v8274 = vpop.f32.mrb[0].mxu0
        %v8275 = vadd.f32 0.0, %v8274
        %v8276 = vpop.f32.mrb[0].mxu0
        %8277 = vmatprep.mubr.bf16.mxu0 0
        %8278 = vmatmul.mubr.bf16.gmra.mrb[0].mxu0 %v8224
        %v8279 = vpop.f32.mrb[0].mxu0
        %v8280 = vadd.f32 0.0, %v8279
        %v8281 = vpop.f32.mrb[0].mxu0
        %v8282 = vpop.f32.mrb[0].mxu0
        %v8283 = vadd.f32 0.0, %v8282
        %v8284 = vpop.f32.mrb[0].mxu0
        %8285 = vmatprep.mubr.bf16.mxu0 0
        %8286 = vmatmul.mubr.bf16.gmra.mrb[0].mxu0 %v8227
        %v8287 = vpop.f32.mrb[0].mxu0
        %v8288 = vadd.f32 0.0, %v8287
        %v8289 = vpop.f32.mrb[0].mxu0
        %v8290 = vpop.f32.mrb[0].mxu0
        %v8291 = vadd.f32 0.0, %v8290
        %v8292 = vpop.f32.mrb[0].mxu0
        %8293 = vdwg.mxu0
        %v8294 = vadd.f32 %v8116, %v8264
        %v8295 = vadd.f32 %v8119, %v8267
        %v8296 = vadd.f32 %v8124, %v8272
        %v8297 = vadd.f32 %v8127, %v8275
        %v8298 = vadd.f32 %v8132, %v8280
        %v8299 = vadd.f32 %v8135, %v8283
        %v8300 = vadd.f32 %v8140, %v8288
        %v8301 = vadd.f32 %v8143, %v8291
        %v8302 = vld [vmem:[%s11 + $0x60] sm:$0xf]
        %v8303 = vld [vmem:[%s11 + $0x64] sm:$0xf]
        %v8304 = vld [vmem:[%s11 + $0x68] sm:$0xf]
        %v8305 = vld [vmem:[%s11 + $0x6c] sm:$0xf]
        %v8306 = vld [vmem:[%s11 + $0x70] sm:$0xf]
        %v8307 = vld [vmem:[%s11 + $0x74] sm:$0xf]
        %v8308 = vld [vmem:[%s11 + $0x78] sm:$0xf]
        %v8309 = vld [vmem:[%s11 + $0x7c] sm:$0xf]
        %v8311 = vunpack.c.l.b16 %v7779
        %v8312 = vpack.c.b16 %v7797, %v7795
        %v8313 = vpack.c.b16 %v7801, %v7799
        %v8314 = vpack.c.b16 %v7805, %v7803
        %v8315 = vpack.c.b16 %v8311, %v7807
        %v8324 = vunpack.c.l.b16 %v8302
        %v8325 = vunpack.c.l.b16 %v8303
        %v8326 = vunpack.c.l.b16 %v8304
        %v8327 = vunpack.c.l.b16 %v8305
        %v8328 = vunpack.c.l.b16 %v8306
        %v8329 = vunpack.c.l.b16 %v8307
        %v8330 = vunpack.c.l.b16 %v8308
        %v8331 = vunpack.c.l.b16 %v8309
        %v8332 = vpack.c.b16 %v8325, %v8324
        %v8333 = vpack.c.b16 %v8327, %v8326
        %v8334 = vpack.c.b16 %v8329, %v8328
        %v8335 = vpack.c.b16 %v8331, %v8330
        %v8341 = vsel %vm6068, %v8312, 0
        %v8344 = vsel %vm6068, %v8313, 0
        %v8347 = vsel %vm6068, %v8314, 0
        %v8350 = vsel %vm6068, %v8315, 0
        %8352 = vmatprep.subr.bf16.mxu0 0
        %8353 = vmatpush1.bf16.msra.mxu0 %v8332
        %8354 = vmatprep.subr.bf16.mxu0 0
        %8355 = vmatpush1.bf16.msra.mxu0 %v8333
        %8356 = vmatprep.subr.bf16.mxu0 0
        %8357 = vmatpush1.bf16.msra.mxu0 %v8334
        %8358 = vmatprep.subr.bf16.mxu0 0
        %8359 = vmatpush1.bf16.msra.mxu0 %v8335
        %8360 = vmatprep.subr.bf16.mxu0 0
        %8361 = vmatpush1.bf16.msra.mxu0 0
        %8362 = vmatprep.subr.bf16.mxu0 0
        %8363 = vmatpush1.bf16.msra.mxu0 0
        %8364 = vmatprep.subr.bf16.mxu0 0
        %8365 = vmatpush1.bf16.msra.mxu0 0
        %8366 = vmatprep.subr.bf16.mxu0 0
        %8367 = vmatpush1.bf16.msra.mxu0 0
        %8368 = vmatprep.subr.bf16.mxu0 0
        %8369 = vmatpush1.bf16.msra.mxu0 0
        %8370 = vmatprep.subr.bf16.mxu0 0
        %8371 = vmatpush1.bf16.msra.mxu0 0
        %8372 = vmatprep.subr.bf16.mxu0 0
        %8373 = vmatpush1.bf16.msra.mxu0 0
        %8374 = vmatprep.subr.bf16.mxu0 0
        %8375 = vmatpush1.bf16.msra.mxu0 0
        %8376 = vmatprep.subr.bf16.mxu0 0
        %8377 = vmatpush1.bf16.msra.mxu0 0
        %8378 = vmatprep.subr.bf16.mxu0 0
        %8379 = vmatpush1.bf16.msra.mxu0 0
        %8380 = vmatprep.subr.bf16.mxu0 0
        %8381 = vmatpush1.bf16.msra.mxu0 0
        %8382 = vmatprep.subr.bf16.mxu0 0
        %8383 = vmatpush1.bf16.msra.mxu0 0
        %8384 = vmatprep.mubr.bf16.mxu0 0
        %8385 = vmatmul.mubr.bf16.gmra.mrb[0].mxu0 %v8341
        %v8386 = vpop.f32.mrb[0].mxu0
        %v8387 = vadd.f32 0.0, %v8386
        %v8388 = vpop.f32.mrb[0].mxu0
        %v8389 = vpop.f32.mrb[0].mxu0
        %v8390 = vadd.f32 0.0, %v8389
        %v8391 = vpop.f32.mrb[0].mxu0
        %8392 = vmatprep.mubr.bf16.mxu0 0
        %8393 = vmatmul.mubr.bf16.gmra.mrb[0].mxu0 %v8344
        %v8394 = vpop.f32.mrb[0].mxu0
        %v8395 = vadd.f32 0.0, %v8394
        %v8396 = vpop.f32.mrb[0].mxu0
        %v8397 = vpop.f32.mrb[0].mxu0
        %v8398 = vadd.f32 0.0, %v8397
        %v8399 = vpop.f32.mrb[0].mxu0
        %8400 = vmatprep.mubr.bf16.mxu0 0
        %8401 = vmatmul.mubr.bf16.gmra.mrb[0].mxu0 %v8347
        %v8402 = vpop.f32.mrb[0].mxu0
        %v8403 = vadd.f32 0.0, %v8402
        %v8404 = vpop.f32.mrb[0].mxu0
        %v8405 = vpop.f32.mrb[0].mxu0
        %v8406 = vadd.f32 0.0, %v8405
        %v8407 = vpop.f32.mrb[0].mxu0
        %8408 = vmatprep.mubr.bf16.mxu0 0
        %8409 = vmatmul.mubr.bf16.gmra.mrb[0].mxu0 %v8350
        %v8410 = vpop.f32.mrb[0].mxu0
        %v8411 = vadd.f32 0.0, %v8410
        %v8412 = vpop.f32.mrb[0].mxu0
        %v8413 = vpop.f32.mrb[0].mxu0
        %v8414 = vadd.f32 0.0, %v8413
        %v8415 = vpop.f32.mrb[0].mxu0
        %8416 = vdwg.mxu0
        %v8417 = vadd.f32 %v8294, %v8387
        %v8418 = vadd.f32 %v8295, %v8390
        %v8419 = vadd.f32 %v8296, %v8395
        %v8420 = vadd.f32 %v8297, %v8398
        %v8421 = vadd.f32 %v8298, %v8403
        %v8422 = vadd.f32 %v8299, %v8406
        %v8423 = vadd.f32 %v8300, %v8411
        %v8424 = vadd.f32 %v8301, %v8414
        %v8425 = vunpack.c.h.b16 %v7779
        %v8426 = vpack.c.b16 %v8311, %v8311
        %v8427 = vpack.c.b16 %v8425, %v8425
        %v8429 = vshrl.u32 %v8426, 16
        %v8431 = vrot.slane %v8429, 4
        %v8432 = vshll.u32 %v8426, 16
        %v8434 = vrot.slane %v8432, 5
        %v8435 = vor.u32 %v8431, %v8434
        %v8436 = vrot.slane %v8435, 4
        %v8438 = vshll.u32 %v8427, 16
        %v8440 = vrot.slane %v8438, 5
        %v8441 = vsel %vm967, %v8436, %v8440
        %v8442 = vld [vmem:[%s11 + $0x80] sm:$0xf]
        %v8443 = vld [vmem:[%s11 + $0x84] sm:$0xf]
        %v8444 = vld [vmem:[%s11 + $0x88] sm:$0xf]
        %v8445 = vld [vmem:[%s11 + $0x8c] sm:$0xf]
        %v8446 = vld [vmem:[%s11 + $0x90] sm:$0xf]
        %v8447 = vld [vmem:[%s11 + $0x94] sm:$0xf]
        %v8448 = vld [vmem:[%s11 + $0x98] sm:$0xf]
        %v8449 = vld [vmem:[%s11 + $0x9c] sm:$0xf]
        %v8450 = vunpack.c.l.b16 %v8441
        %v8451 = vpack.c.b16 %v7930, %v7929
        %v8452 = vpack.c.b16 %v7932, %v7931
        %v8453 = vpack.c.b16 %v7934, %v7933
        %v8454 = vpack.c.b16 %v8450, %v7935
        %v8463 = vunpack.c.l.b16 %v8442
        %v8464 = vunpack.c.l.b16 %v8443
        %v8465 = vunpack.c.l.b16 %v8444
        %v8466 = vunpack.c.l.b16 %v8445
        %v8467 = vunpack.c.l.b16 %v8446
        %v8468 = vunpack.c.l.b16 %v8447
        %v8469 = vunpack.c.l.b16 %v8448
        %v8470 = vunpack.c.l.b16 %v8449
        %v8471 = vpack.c.b16 %v8464, %v8463
        %v8472 = vpack.c.b16 %v8466, %v8465
        %v8473 = vpack.c.b16 %v8468, %v8467
        %v8474 = vpack.c.b16 %v8470, %v8469
        %v8480 = vsel %vm6068, %v8451, 0
        %v8483 = vsel %vm6068, %v8452, 0
        %v8486 = vsel %vm6068, %v8453, 0
        %v8489 = vsel %vm6068, %v8454, 0
        %8491 = vmatprep.subr.bf16.mxu0 0
        %8492 = vmatpush1.bf16.msra.mxu0 %v8471
        %8493 = vmatprep.subr.bf16.mxu0 0
        %8494 = vmatpush1.bf16.msra.mxu0 %v8472
        %8495 = vmatprep.subr.bf16.mxu0 0
        %8496 = vmatpush1.bf16.msra.mxu0 %v8473
        %8497 = vmatprep.subr.bf16.mxu0 0
        %8498 = vmatpush1.bf16.msra.mxu0 %v8474
        %8499 = vmatprep.subr.bf16.mxu0 0
        %8500 = vmatpush1.bf16.msra.mxu0 0
        %8501 = vmatprep.subr.bf16.mxu0 0
        %8502 = vmatpush1.bf16.msra.mxu0 0
        %8503 = vmatprep.subr.bf16.mxu0 0
        %8504 = vmatpush1.bf16.msra.mxu0 0
        %8505 = vmatprep.subr.bf16.mxu0 0
        %8506 = vmatpush1.bf16.msra.mxu0 0
        %8507 = vmatprep.subr.bf16.mxu0 0
        %8508 = vmatpush1.bf16.msra.mxu0 0
        %8509 = vmatprep.subr.bf16.mxu0 0
        %8510 = vmatpush1.bf16.msra.mxu0 0
        %8511 = vmatprep.subr.bf16.mxu0 0
        %8512 = vmatpush1.bf16.msra.mxu0 0
        %8513 = vmatprep.subr.bf16.mxu0 0
        %8514 = vmatpush1.bf16.msra.mxu0 0
        %8515 = vmatprep.subr.bf16.mxu0 0
        %8516 = vmatpush1.bf16.msra.mxu0 0
        %8517 = vmatprep.subr.bf16.mxu0 0
        %8518 = vmatpush1.bf16.msra.mxu0 0
        %8519 = vmatprep.subr.bf16.mxu0 0
        %8520 = vmatpush1.bf16.msra.mxu0 0
        %8521 = vmatprep.subr.bf16.mxu0 0
        %8522 = vmatpush1.bf16.msra.mxu0 0
        %8523 = vmatprep.mubr.bf16.mxu0 0
        %8524 = vmatmul.mubr.bf16.gmra.mrb[0].mxu0 %v8480
        %v8525 = vpop.f32.mrb[0].mxu0
        %v8526 = vadd.f32 0.0, %v8525
        %v8527 = vpop.f32.mrb[0].mxu0
        %v8528 = vpop.f32.mrb[0].mxu0
        %v8529 = vadd.f32 0.0, %v8528
        %v8530 = vpop.f32.mrb[0].mxu0
        %8531 = vmatprep.mubr.bf16.mxu0 0
        %8532 = vmatmul.mubr.bf16.gmra.mrb[0].mxu0 %v8483
        %v8533 = vpop.f32.mrb[0].mxu0
        %v8534 = vadd.f32 0.0, %v8533
        %v8535 = vpop.f32.mrb[0].mxu0
        %v8536 = vpop.f32.mrb[0].mxu0
        %v8537 = vadd.f32 0.0, %v8536
        %v8538 = vpop.f32.mrb[0].mxu0
        %8539 = vmatprep.mubr.bf16.mxu0 0
        %8540 = vmatmul.mubr.bf16.gmra.mrb[0].mxu0 %v8486
        %v8541 = vpop.f32.mrb[0].mxu0
        %v8542 = vadd.f32 0.0, %v8541
        %v8543 = vpop.f32.mrb[0].mxu0
        %v8544 = vpop.f32.mrb[0].mxu0
        %v8545 = vadd.f32 0.0, %v8544
        %v8546 = vpop.f32.mrb[0].mxu0
        %8547 = vmatprep.mubr.bf16.mxu0 0
        %8548 = vmatmul.mubr.bf16.gmra.mrb[0].mxu0 %v8489
        %v8549 = vpop.f32.mrb[0].mxu0
        %v8550 = vadd.f32 0.0, %v8549
        %v8551 = vpop.f32.mrb[0].mxu0
        %v8552 = vpop.f32.mrb[0].mxu0
        %v8553 = vadd.f32 0.0, %v8552
        %v8554 = vpop.f32.mrb[0].mxu0
        %8555 = vdwg.mxu0
        %v8556 = vadd.f32 %v8417, %v8526
        %v8557 = vadd.f32 %v8418, %v8529
        %v8558 = vadd.f32 %v8419, %v8534
        %v8559 = vadd.f32 %v8420, %v8537
        %v8560 = vadd.f32 %v8421, %v8542
        %v8561 = vadd.f32 %v8422, %v8545
        %v8562 = vadd.f32 %v8423, %v8550
        %v8563 = vadd.f32 %v8424, %v8553
        %v8564 = vrot.slane %v8426, 5
        %v8565 = vrot.slane %v8564, 4
        %v8566 = vrot.slane %v8427, 5
        %v8567 = vsel %vm1628, %v8565, %v8566
        %v8568 = vld [vmem:[%s11 + $0xa0] sm:$0xf]
        %v8569 = vld [vmem:[%s11 + $0xa4] sm:$0xf]
        %v8570 = vld [vmem:[%s11 + $0xa8] sm:$0xf]
        %v8571 = vld [vmem:[%s11 + $0xac] sm:$0xf]
        %v8572 = vld [vmem:[%s11 + $0xb0] sm:$0xf]
        %v8573 = vld [vmem:[%s11 + $0xb4] sm:$0xf]
        %v8574 = vld [vmem:[%s11 + $0xb8] sm:$0xf]
        %v8575 = vld [vmem:[%s11 + $0xbc] sm:$0xf]
        %v8576 = vunpack.c.l.b16 %v8567
        %v8577 = vpack.c.b16 %v8183, %v8182
        %v8578 = vpack.c.b16 %v8185, %v8184
        %v8579 = vpack.c.b16 %v8187, %v8186
        %v8580 = vpack.c.b16 %v8576, %v8188
        %v8589 = vunpack.c.l.b16 %v8568
        %v8590 = vunpack.c.l.b16 %v8569
        %v8591 = vunpack.c.l.b16 %v8570
        %v8592 = vunpack.c.l.b16 %v8571
        %v8593 = vunpack.c.l.b16 %v8572
        %v8594 = vunpack.c.l.b16 %v8573
        %v8595 = vunpack.c.l.b16 %v8574
        %v8596 = vunpack.c.l.b16 %v8575
        %v8597 = vpack.c.b16 %v8590, %v8589
        %v8598 = vpack.c.b16 %v8592, %v8591
        %v8599 = vpack.c.b16 %v8594, %v8593
        %v8600 = vpack.c.b16 %v8596, %v8595
        %v8606 = vsel %vm6068, %v8577, 0
        %v8609 = vsel %vm6068, %v8578, 0
        %v8612 = vsel %vm6068, %v8579, 0
        %v8615 = vsel %vm6068, %v8580, 0
        %8617 = vmatprep.subr.bf16.mxu0 0
        %8618 = vmatpush1.bf16.msra.mxu0 %v8597
        %8619 = vmatprep.subr.bf16.mxu0 0
        %8620 = vmatpush1.bf16.msra.mxu0 %v8598
        %8621 = vmatprep.subr.bf16.mxu0 0
        %8622 = vmatpush1.bf16.msra.mxu0 %v8599
        %8623 = vmatprep.subr.bf16.mxu0 0
        %8624 = vmatpush1.bf16.msra.mxu0 %v8600
        %8625 = vmatprep.subr.bf16.mxu0 0
        %8626 = vmatpush1.bf16.msra.mxu0 0
        %8627 = vmatprep.subr.bf16.mxu0 0
        %8628 = vmatpush1.bf16.msra.mxu0 0
        %8629 = vmatprep.subr.bf16.mxu0 0
        %8630 = vmatpush1.bf16.msra.mxu0 0
        %8631 = vmatprep.subr.bf16.mxu0 0
        %8632 = vmatpush1.bf16.msra.mxu0 0
        %8633 = vmatprep.subr.bf16.mxu0 0
        %8634 = vmatpush1.bf16.msra.mxu0 0
        %8635 = vmatprep.subr.bf16.mxu0 0
        %8636 = vmatpush1.bf16.msra.mxu0 0
        %8637 = vmatprep.subr.bf16.mxu0 0
        %8638 = vmatpush1.bf16.msra.mxu0 0
        %8639 = vmatprep.subr.bf16.mxu0 0
        %8640 = vmatpush1.bf16.msra.mxu0 0
        %8641 = vmatprep.subr.bf16.mxu0 0
        %8642 = vmatpush1.bf16.msra.mxu0 0
        %8643 = vmatprep.subr.bf16.mxu0 0
        %8644 = vmatpush1.bf16.msra.mxu0 0
        %8645 = vmatprep.subr.bf16.mxu0 0
        %8646 = vmatpush1.bf16.msra.mxu0 0
        %8647 = vmatprep.subr.bf16.mxu0 0
        %8648 = vmatpush1.bf16.msra.mxu0 0
        %8649 = vmatprep.mubr.bf16.mxu0 0
        %8650 = vmatmul.mubr.bf16.gmra.mrb[0].mxu0 %v8606
        %v8651 = vpop.f32.mrb[0].mxu0
        %v8652 = vadd.f32 0.0, %v8651
        %v8653 = vpop.f32.mrb[0].mxu0
        %v8654 = vpop.f32.mrb[0].mxu0
        %v8655 = vadd.f32 0.0, %v8654
        %v8656 = vpop.f32.mrb[0].mxu0
        %8657 = vmatprep.mubr.bf16.mxu0 0
        %8658 = vmatmul.mubr.bf16.gmra.mrb[0].mxu0 %v8609
        %v8659 = vpop.f32.mrb[0].mxu0
        %v8660 = vadd.f32 0.0, %v8659
        %v8661 = vpop.f32.mrb[0].mxu0
        %v8662 = vpop.f32.mrb[0].mxu0
        %v8663 = vadd.f32 0.0, %v8662
        %v8664 = vpop.f32.mrb[0].mxu0
        %8665 = vmatprep.mubr.bf16.mxu0 0
        %8666 = vmatmul.mubr.bf16.gmra.mrb[0].mxu0 %v8612
        %v8667 = vpop.f32.mrb[0].mxu0
        %v8668 = vadd.f32 0.0, %v8667
        %v8669 = vpop.f32.mrb[0].mxu0
        %v8670 = vpop.f32.mrb[0].mxu0
        %v8671 = vadd.f32 0.0, %v8670
        %v8672 = vpop.f32.mrb[0].mxu0
        %8673 = vmatprep.mubr.bf16.mxu0 0
        %8674 = vmatmul.mubr.bf16.gmra.mrb[0].mxu0 %v8615
        %v8675 = vpop.f32.mrb[0].mxu0
        %v8676 = vadd.f32 0.0, %v8675
        %v8677 = vpop.f32.mrb[0].mxu0
        %v8678 = vpop.f32.mrb[0].mxu0
        %v8679 = vadd.f32 0.0, %v8678
        %v8680 = vpop.f32.mrb[0].mxu0
        %8681 = vdwg.mxu0
        %v8682 = vadd.f32 %v8556, %v8652
        %v8683 = vadd.f32 %v8557, %v8655
        %v8684 = vadd.f32 %v8558, %v8660
        %v8685 = vadd.f32 %v8559, %v8663
        %v8686 = vadd.f32 %v8560, %v8668
        %v8687 = vadd.f32 %v8561, %v8671
        %v8688 = vadd.f32 %v8562, %v8676
        %v8689 = vadd.f32 %v8563, %v8679
        %v8690 = vld [vmem:[%s11 + $0xc0] sm:$0xf]
        %v8691 = vld [vmem:[%s11 + $0xc4] sm:$0xf]
        %v8692 = vld [vmem:[%s11 + $0xc8] sm:$0xf]
        %v8693 = vld [vmem:[%s11 + $0xcc] sm:$0xf]
        %v8694 = vld [vmem:[%s11 + $0xd0] sm:$0xf]
        %v8695 = vld [vmem:[%s11 + $0xd4] sm:$0xf]
        %v8696 = vld [vmem:[%s11 + $0xd8] sm:$0xf]
        %v8697 = vld [vmem:[%s11 + $0xdc] sm:$0xf]
        %v8698 = vpack.c.b16 %v887, %v8311
        %v8707 = vunpack.c.l.b16 %v8690
        %v8708 = vunpack.c.l.b16 %v8691
        %v8709 = vunpack.c.l.b16 %v8692
        %v8710 = vunpack.c.l.b16 %v8693
        %v8711 = vunpack.c.l.b16 %v8694
        %v8712 = vunpack.c.l.b16 %v8695
        %v8713 = vunpack.c.l.b16 %v8696
        %v8714 = vunpack.c.l.b16 %v8697
        %v8715 = vpack.c.b16 %v8708, %v8707
        %v8716 = vpack.c.b16 %v8710, %v8709
        %v8717 = vpack.c.b16 %v8712, %v8711
        %v8718 = vpack.c.b16 %v8714, %v8713
        %v8724 = vsel %vm6068, %v8698, 0
        %8726 = vmatprep.subr.bf16.mxu0 0
        %8727 = vmatpush1.bf16.msra.mxu0 %v8715
        %8728 = vmatprep.subr.bf16.mxu0 0
        %8729 = vmatpush1.bf16.msra.mxu0 %v8716
        %8730 = vmatprep.subr.bf16.mxu0 0
        %8731 = vmatpush1.bf16.msra.mxu0 %v8717
        %8732 = vmatprep.subr.bf16.mxu0 0
        %8733 = vmatpush1.bf16.msra.mxu0 %v8718
        %8734 = vmatprep.subr.bf16.mxu0 0
        %8735 = vmatpush1.bf16.msra.mxu0 0
        %8736 = vmatprep.subr.bf16.mxu0 0
        %8737 = vmatpush1.bf16.msra.mxu0 0
        %8738 = vmatprep.subr.bf16.mxu0 0
        %8739 = vmatpush1.bf16.msra.mxu0 0
        %8740 = vmatprep.subr.bf16.mxu0 0
        %8741 = vmatpush1.bf16.msra.mxu0 0
        %8742 = vmatprep.subr.bf16.mxu0 0
        %8743 = vmatpush1.bf16.msra.mxu0 0
        %8744 = vmatprep.subr.bf16.mxu0 0
        %8745 = vmatpush1.bf16.msra.mxu0 0
        %8746 = vmatprep.subr.bf16.mxu0 0
        %8747 = vmatpush1.bf16.msra.mxu0 0
        %8748 = vmatprep.subr.bf16.mxu0 0
        %8749 = vmatpush1.bf16.msra.mxu0 0
        %8750 = vmatprep.subr.bf16.mxu0 0
        %8751 = vmatpush1.bf16.msra.mxu0 0
        %8752 = vmatprep.subr.bf16.mxu0 0
        %8753 = vmatpush1.bf16.msra.mxu0 0
        %8754 = vmatprep.subr.bf16.mxu0 0
        %8755 = vmatpush1.bf16.msra.mxu0 0
        %8756 = vmatprep.subr.bf16.mxu0 0
        %8757 = vmatpush1.bf16.msra.mxu0 0
        %8758 = vmatprep.mubr.bf16.mxu0 0
        %8759 = vmatmul.mubr.bf16.gmra.mrb[0].mxu0 %v8073
        %v8760 = vpop.f32.mrb[0].mxu0
        %v8761 = vadd.f32 0.0, %v8760
        %v8762 = vpop.f32.mrb[0].mxu0
        %v8763 = vpop.f32.mrb[0].mxu0
        %v8764 = vadd.f32 0.0, %v8763
        %v8765 = vpop.f32.mrb[0].mxu0
        %8766 = vmatprep.mubr.bf16.mxu0 0
        %8767 = vmatmul.mubr.bf16.gmra.mrb[0].mxu0 %v8076
        %v8768 = vpop.f32.mrb[0].mxu0
        %v8769 = vadd.f32 0.0, %v8768
        %v8770 = vpop.f32.mrb[0].mxu0
        %v8771 = vpop.f32.mrb[0].mxu0
        %v8772 = vadd.f32 0.0, %v8771
        %v8773 = vpop.f32.mrb[0].mxu0
        %8774 = vmatprep.mubr.bf16.mxu0 0
        %8775 = vmatmul.mubr.bf16.gmra.mrb[0].mxu0 %v8079
        %v8776 = vpop.f32.mrb[0].mxu0
        %v8777 = vadd.f32 0.0, %v8776
        %v8778 = vpop.f32.mrb[0].mxu0
        %v8779 = vpop.f32.mrb[0].mxu0
        %v8780 = vadd.f32 0.0, %v8779
        %v8781 = vpop.f32.mrb[0].mxu0
        %8782 = vmatprep.mubr.bf16.mxu0 0
        %8783 = vmatmul.mubr.bf16.gmra.mrb[0].mxu0 %v8724
        %v8784 = vpop.f32.mrb[0].mxu0
        %v8785 = vadd.f32 0.0, %v8784
        %v8786 = vpop.f32.mrb[0].mxu0
        %v8787 = vpop.f32.mrb[0].mxu0
        %v8788 = vadd.f32 0.0, %v8787
        %v8789 = vpop.f32.mrb[0].mxu0
        %8790 = vdwg.mxu0
        %v8791 = vadd.f32 %v8682, %v8761
        %v8792 = vadd.f32 %v8683, %v8764
        %v8793 = vadd.f32 %v8684, %v8769
        %v8794 = vadd.f32 %v8685, %v8772
        %v8795 = vadd.f32 %v8686, %v8777
        %v8796 = vadd.f32 %v8687, %v8780
        %v8797 = vadd.f32 %v8688, %v8785
        %v8798 = vadd.f32 %v8689, %v8788
        %v8799 = vld [vmem:[%s11 + $0xe0] sm:$0xf]
        %v8800 = vld [vmem:[%s11 + $0xe4] sm:$0xf]
        %v8801 = vld [vmem:[%s11 + $0xe8] sm:$0xf]
        %v8802 = vld [vmem:[%s11 + $0xec] sm:$0xf]
        %v8803 = vld [vmem:[%s11 + $0xf0] sm:$0xf]
        %v8804 = vld [vmem:[%s11 + $0xf4] sm:$0xf]
        %v8805 = vld [vmem:[%s11 + $0xf8] sm:$0xf]
        %v8806 = vld [vmem:[%s11 + $0xfc] sm:$0xf]
        %v8807 = vpack.c.b16 %v1112, %v8450
        %v8816 = vunpack.c.l.b16 %v8799
        %v8817 = vunpack.c.l.b16 %v8800
        %v8818 = vunpack.c.l.b16 %v8801
        %v8819 = vunpack.c.l.b16 %v8802
        %v8820 = vunpack.c.l.b16 %v8803
        %v8821 = vunpack.c.l.b16 %v8804
        %v8822 = vunpack.c.l.b16 %v8805
        %v8823 = vunpack.c.l.b16 %v8806
        %v8824 = vpack.c.b16 %v8817, %v8816
        %v8825 = vpack.c.b16 %v8819, %v8818
        %v8826 = vpack.c.b16 %v8821, %v8820
        %v8827 = vpack.c.b16 %v8823, %v8822
        %v8833 = vsel %vm6068, %v8807, 0
        %8835 = vmatprep.subr.bf16.mxu0 0
        %8836 = vmatpush1.bf16.msra.mxu0 %v8824
        %8837 = vmatprep.subr.bf16.mxu0 0
        %8838 = vmatpush1.bf16.msra.mxu0 %v8825
        %8839 = vmatprep.subr.bf16.mxu0 0
        %8840 = vmatpush1.bf16.msra.mxu0 %v8826
        %8841 = vmatprep.subr.bf16.mxu0 0
        %8842 = vmatpush1.bf16.msra.mxu0 %v8827
        %8843 = vmatprep.subr.bf16.mxu0 0
        %8844 = vmatpush1.bf16.msra.mxu0 0
        %8845 = vmatprep.subr.bf16.mxu0 0
        %8846 = vmatpush1.bf16.msra.mxu0 0
        %8847 = vmatprep.subr.bf16.mxu0 0
        %8848 = vmatpush1.bf16.msra.mxu0 0
        %8849 = vmatprep.subr.bf16.mxu0 0
        %8850 = vmatpush1.bf16.msra.mxu0 0
        %8851 = vmatprep.subr.bf16.mxu0 0
        %8852 = vmatpush1.bf16.msra.mxu0 0
        %8853 = vmatprep.subr.bf16.mxu0 0
        %8854 = vmatpush1.bf16.msra.mxu0 0
        %8855 = vmatprep.subr.bf16.mxu0 0
        %8856 = vmatpush1.bf16.msra.mxu0 0
        %8857 = vmatprep.subr.bf16.mxu0 0
        %8858 = vmatpush1.bf16.msra.mxu0 0
        %8859 = vmatprep.subr.bf16.mxu0 0
        %8860 = vmatpush1.bf16.msra.mxu0 0
        %8861 = vmatprep.subr.bf16.mxu0 0
        %8862 = vmatpush1.bf16.msra.mxu0 0
        %8863 = vmatprep.subr.bf16.mxu0 0
        %8864 = vmatpush1.bf16.msra.mxu0 0
        %8865 = vmatprep.subr.bf16.mxu0 0
        %8866 = vmatpush1.bf16.msra.mxu0 0
        %8867 = vmatprep.mubr.bf16.mxu0 0
        %8868 = vmatmul.mubr.bf16.gmra.mrb[0].mxu0 %v7968
        %v8869 = vpop.f32.mrb[0].mxu0
        %v8870 = vadd.f32 0.0, %v8869
        %v8871 = vpop.f32.mrb[0].mxu0
        %v8872 = vpop.f32.mrb[0].mxu0
        %v8873 = vadd.f32 0.0, %v8872
        %v8874 = vpop.f32.mrb[0].mxu0
        %8875 = vmatprep.mubr.bf16.mxu0 0
        %8876 = vmatmul.mubr.bf16.gmra.mrb[0].mxu0 %v7971
        %v8877 = vpop.f32.mrb[0].mxu0
        %v8878 = vadd.f32 0.0, %v8877
        %v8879 = vpop.f32.mrb[0].mxu0
        %v8880 = vpop.f32.mrb[0].mxu0
        %v8881 = vadd.f32 0.0, %v8880
        %v8882 = vpop.f32.mrb[0].mxu0
        %8883 = vmatprep.mubr.bf16.mxu0 0
        %8884 = vmatmul.mubr.bf16.gmra.mrb[0].mxu0 %v7974
        %v8885 = vpop.f32.mrb[0].mxu0
        %v8886 = vadd.f32 0.0, %v8885
        %v8887 = vpop.f32.mrb[0].mxu0
        %v8888 = vpop.f32.mrb[0].mxu0
        %v8889 = vadd.f32 0.0, %v8888
        %v8890 = vpop.f32.mrb[0].mxu0
        %8891 = vmatprep.mubr.bf16.mxu0 0
        %8892 = vmatmul.mubr.bf16.gmra.mrb[0].mxu0 %v8833
        %v8893 = vpop.f32.mrb[0].mxu0
        %v8894 = vadd.f32 0.0, %v8893
        %v8895 = vpop.f32.mrb[0].mxu0
        %v8896 = vpop.f32.mrb[0].mxu0
        %v8897 = vadd.f32 0.0, %v8896
        %v8898 = vpop.f32.mrb[0].mxu0
        %8899 = vdwg.mxu0
        %v8900 = vadd.f32 %v8791, %v8870
        %v8901 = vadd.f32 %v8792, %v8873
        %v8902 = vadd.f32 %v8793, %v8878
        %v8903 = vadd.f32 %v8794, %v8881
        %v8904 = vadd.f32 %v8795, %v8886
        %v8905 = vadd.f32 %v8796, %v8889
        %v8906 = vadd.f32 %v8797, %v8894
        %v8907 = vadd.f32 %v8798, %v8897
        %v8908 = vld [vmem:[%s11 + $0x100] sm:$0xf]
        %v8909 = vld [vmem:[%s11 + $0x104] sm:$0xf]
        %v8910 = vld [vmem:[%s11 + $0x108] sm:$0xf]
        %v8911 = vld [vmem:[%s11 + $0x10c] sm:$0xf]
        %v8912 = vld [vmem:[%s11 + $0x110] sm:$0xf]
        %v8913 = vld [vmem:[%s11 + $0x114] sm:$0xf]
        %v8914 = vld [vmem:[%s11 + $0x118] sm:$0xf]
        %v8915 = vld [vmem:[%s11 + $0x11c] sm:$0xf]
        %v8916 = vpack.c.b16 %v1693, %v8576
        %v8925 = vunpack.c.l.b16 %v8908
        %v8926 = vunpack.c.l.b16 %v8909
        %v8927 = vunpack.c.l.b16 %v8910
        %v8928 = vunpack.c.l.b16 %v8911
        %v8929 = vunpack.c.l.b16 %v8912
        %v8930 = vunpack.c.l.b16 %v8913
        %v8931 = vunpack.c.l.b16 %v8914
        %v8932 = vunpack.c.l.b16 %v8915
        %v8933 = vpack.c.b16 %v8926, %v8925
        %v8934 = vpack.c.b16 %v8928, %v8927
        %v8935 = vpack.c.b16 %v8930, %v8929
        %v8936 = vpack.c.b16 %v8932, %v8931
        %v8942 = vsel %vm6068, %v8916, 0
        %8944 = vmatprep.subr.bf16.mxu0 0
        %8945 = vmatpush1.bf16.msra.mxu0 %v8933
        %8946 = vmatprep.subr.bf16.mxu0 0
        %8947 = vmatpush1.bf16.msra.mxu0 %v8934
        %8948 = vmatprep.subr.bf16.mxu0 0
        %8949 = vmatpush1.bf16.msra.mxu0 %v8935
        %8950 = vmatprep.subr.bf16.mxu0 0
        %8951 = vmatpush1.bf16.msra.mxu0 %v8936
        %8952 = vmatprep.subr.bf16.mxu0 0
        %8953 = vmatpush1.bf16.msra.mxu0 0
        %8954 = vmatprep.subr.bf16.mxu0 0
        %8955 = vmatpush1.bf16.msra.mxu0 0
        %8956 = vmatprep.subr.bf16.mxu0 0
        %8957 = vmatpush1.bf16.msra.mxu0 0
        %8958 = vmatprep.subr.bf16.mxu0 0
        %8959 = vmatpush1.bf16.msra.mxu0 0
        %8960 = vmatprep.subr.bf16.mxu0 0
        %8961 = vmatpush1.bf16.msra.mxu0 0
        %8962 = vmatprep.subr.bf16.mxu0 0
        %8963 = vmatpush1.bf16.msra.mxu0 0
        %8964 = vmatprep.subr.bf16.mxu0 0
        %8965 = vmatpush1.bf16.msra.mxu0 0
        %8966 = vmatprep.subr.bf16.mxu0 0
        %8967 = vmatpush1.bf16.msra.mxu0 0
        %8968 = vmatprep.subr.bf16.mxu0 0
        %8969 = vmatpush1.bf16.msra.mxu0 0
        %8970 = vmatprep.subr.bf16.mxu0 0
        %8971 = vmatpush1.bf16.msra.mxu0 0
        %8972 = vmatprep.subr.bf16.mxu0 0
        %8973 = vmatpush1.bf16.msra.mxu0 0
        %8974 = vmatprep.subr.bf16.mxu0 0
        %8975 = vmatpush1.bf16.msra.mxu0 0
        %8976 = vmatprep.mubr.bf16.mxu0 0
        %8977 = vmatmul.mubr.bf16.gmra.mrb[0].mxu0 %v8221
        %v8978 = vpop.f32.mrb[0].mxu0
        %v8979 = vadd.f32 0.0, %v8978
        %v8980 = vpop.f32.mrb[0].mxu0
        %v8981 = vpop.f32.mrb[0].mxu0
        %v8982 = vadd.f32 0.0, %v8981
        %v8983 = vpop.f32.mrb[0].mxu0
        %8984 = vmatprep.mubr.bf16.mxu0 0
        %8985 = vmatmul.mubr.bf16.gmra.mrb[0].mxu0 %v8224
        %v8986 = vpop.f32.mrb[0].mxu0
        %v8987 = vadd.f32 0.0, %v8986
        %v8988 = vpop.f32.mrb[0].mxu0
        %v8989 = vpop.f32.mrb[0].mxu0
        %v8990 = vadd.f32 0.0, %v8989
        %v8991 = vpop.f32.mrb[0].mxu0
        %8992 = vmatprep.mubr.bf16.mxu0 0
        %8993 = vmatmul.mubr.bf16.gmra.mrb[0].mxu0 %v8227
        %v8994 = vpop.f32.mrb[0].mxu0
        %v8995 = vadd.f32 0.0, %v8994
        %v8996 = vpop.f32.mrb[0].mxu0
        %v8997 = vpop.f32.mrb[0].mxu0
        %v8998 = vadd.f32 0.0, %v8997
        %v8999 = vpop.f32.mrb[0].mxu0
        %9000 = vmatprep.mubr.bf16.mxu0 0
        %9001 = vmatmul.mubr.bf16.gmra.mrb[0].mxu0 %v8942
        %v9002 = vpop.f32.mrb[0].mxu0
        %v9003 = vadd.f32 0.0, %v9002
        %v9004 = vpop.f32.mrb[0].mxu0
        %v9005 = vpop.f32.mrb[0].mxu0
        %v9006 = vadd.f32 0.0, %v9005
        %v9007 = vpop.f32.mrb[0].mxu0
        %9008 = vdwg.mxu0
        %v9009 = vadd.f32 %v8900, %v8979
        %v9010 = vadd.f32 %v8901, %v8982
        %v9011 = vadd.f32 %v8902, %v8987
        %v9012 = vadd.f32 %v8903, %v8990
        %v9013 = vadd.f32 %v8904, %v8995
        %v9014 = vadd.f32 %v8905, %v8998
        %v9015 = vadd.f32 %v8906, %v9003
        %v9016 = vadd.f32 %v8907, %v9006
        %v9017 = vadd.f32 %v7668, %v9009
        %v9018 = vadd.f32 %v7669, %v9010
        %v9019 = vadd.f32 %v7670, %v9011
        %v9020 = vadd.f32 %v7671, %v9012
        %v9021 = vadd.f32 %v7672, %v9013
        %v9022 = vadd.f32 %v7673, %v9014
        %v9023 = vadd.f32 %v7674, %v9015
        %v9024 = vadd.f32 %v7675, %v9016
        %v9025 = vld [vmem:[%s12] sm:$0x1]
        %v9027 = vlaneseq
        %v9028 = vshrl.u32 %v9027, 7
        %v9029 = vsub.s32 0, %v9028
        %v9030 = vrot.slane %v9025, %v9029
        %v9032 = vadd.f32 %v9017, %v9030
        %v9033 = vadd.f32 %v9018, %v9030
        %v9034 = vadd.f32 %v9019, %v9030
        %v9035 = vadd.f32 %v9020, %v9030
        %v9036 = vadd.f32 %v9021, %v9030
        %v9037 = vadd.f32 %v9022, %v9030
        %v9038 = vadd.f32 %v9023, %v9030
        %v9039 = vadd.f32 %v9024, %v9030
        %v9040 = vmax.f32 %v9032, 0.0
        %v9041 = vmax.f32 %v9033, 0.0
        %v9042 = vmax.f32 %v9034, 0.0
        %v9043 = vmax.f32 %v9035, 0.0
        %v9044 = vmax.f32 %v9036, 0.0
        %v9045 = vmax.f32 %v9037, 0.0
        %v9046 = vmax.f32 %v9038, 0.0
        %v9047 = vmax.f32 %v9039, 0.0
        %v9048 = vld [vmem:[%s13] sm:$0xf]
        %v9049 = vld [vmem:[%s13 + $0x4] sm:$0xf]
        %v9050 = vld [vmem:[%s13 + $0x8] sm:$0xf]
        %v9051 = vld [vmem:[%s13 + $0xc] sm:$0xf]
        %v9052 = vld [vmem:[%s13 + $0x10] sm:$0xf]
        %v9053 = vld [vmem:[%s13 + $0x14] sm:$0xf]
        %v9054 = vld [vmem:[%s13 + $0x18] sm:$0xf]
        %v9055 = vld [vmem:[%s13 + $0x1c] sm:$0xf]
        %v9056 = vld [vmem:[%s13 + $0x20] sm:$0xf]
        %v9057 = vld [vmem:[%s13 + $0x24] sm:$0xf]
        %v9058 = vld [vmem:[%s13 + $0x28] sm:$0xf]
        %v9059 = vld [vmem:[%s13 + $0x2c] sm:$0xf]
        %v9060 = vld [vmem:[%s13 + $0x30] sm:$0x1]
        %v9074 = vunpack.c.l.b16 %v9048
        %v9075 = vunpack.c.l.b16 %v9049
        %v9076 = vunpack.c.l.b16 %v9050
        %v9077 = vunpack.c.l.b16 %v9051
        %v9078 = vunpack.c.l.b16 %v9052
        %v9079 = vunpack.c.l.b16 %v9053
        %v9080 = vunpack.c.l.b16 %v9054
        %v9081 = vunpack.c.l.b16 %v9055
        %v9082 = vunpack.c.l.b16 %v9056
        %v9083 = vunpack.c.l.b16 %v9057
        %v9084 = vunpack.c.l.b16 %v9058
        %v9085 = vunpack.c.l.b16 %v9059
        %v9086 = vunpack.c.l.b16 %v9060
        %v9087 = vpack.c.b16 %v9075, %v9074
        %v9088 = vpack.c.b16 %v9077, %v9076
        %v9089 = vpack.c.b16 %v9079, %v9078
        %v9090 = vpack.c.b16 %v9081, %v9080
        %v9091 = vpack.c.b16 %v9083, %v9082
        %v9092 = vpack.c.b16 %v9085, %v9084
        %v9093 = vpack.c.b16 %v9086, %v9086
        %v9101 = vsel %vm3885, %v9093, 0
        %9103 = vmatprep.subr.bf16.mxu0 0
        %9104 = vmatpush1.bf16.msra.mxu0 %v9087
        %9105 = vmatprep.subr.bf16.mxu0 0
        %9106 = vmatpush1.bf16.msra.mxu0 %v9088
        %9107 = vmatprep.subr.bf16.mxu0 0
        %9108 = vmatpush1.bf16.msra.mxu0 %v9089
        %9109 = vmatprep.subr.bf16.mxu0 0
        %9110 = vmatpush1.bf16.msra.mxu0 %v9090
        %9111 = vmatprep.subr.bf16.mxu0 0
        %9112 = vmatpush1.bf16.msra.mxu0 %v9091
        %9113 = vmatprep.subr.bf16.mxu0 0
        %9114 = vmatpush1.bf16.msra.mxu0 %v9092
        %9115 = vmatprep.subr.bf16.mxu0 0
        %9116 = vmatpush1.bf16.msra.mxu0 %v9101
        %9117 = vmatprep.subr.bf16.mxu0 0
        %9118 = vmatpush1.bf16.msra.mxu0 0
        %9119 = vmatprep.subr.bf16.mxu0 0
        %9120 = vmatpush1.bf16.msra.mxu0 0
        %9121 = vmatprep.subr.bf16.mxu0 0
        %9122 = vmatpush1.bf16.msra.mxu0 0
        %9123 = vmatprep.subr.bf16.mxu0 0
        %9124 = vmatpush1.bf16.msra.mxu0 0
        %9125 = vmatprep.subr.bf16.mxu0 0
        %9126 = vmatpush1.bf16.msra.mxu0 0
        %9127 = vmatprep.subr.bf16.mxu0 0
        %9128 = vmatpush1.bf16.msra.mxu0 0
        %9129 = vmatprep.subr.bf16.mxu0 0
        %9130 = vmatpush1.bf16.msra.mxu0 0
        %9131 = vmatprep.subr.bf16.mxu0 0
        %9132 = vmatpush1.bf16.msra.mxu0 0
        %9133 = vmatprep.subr.bf16.mxu0 0
        %9134 = vmatpush1.bf16.msra.mxu0 0
        %9135 = vmatprep.mubr.bf16.mxu0 0
        %9136 = vmatmul.mubr.bf16.gmra.mrb[0].mxu0 %v3874
        %v9137 = vpop.f32.mrb[0].mxu0
        %v9138 = vadd.f32 0.0, %v9137
        %v9139 = vpop.f32.mrb[0].mxu0
        %v9140 = vpop.f32.mrb[0].mxu0
        %v9141 = vadd.f32 0.0, %v9140
        %v9142 = vpop.f32.mrb[0].mxu0
        %9143 = vmatprep.mubr.bf16.mxu0 0
        %9144 = vmatmul.mubr.bf16.gmra.mrb[0].mxu0 %v3877
        %v9145 = vpop.f32.mrb[0].mxu0
        %v9146 = vadd.f32 0.0, %v9145
        %v9147 = vpop.f32.mrb[0].mxu0
        %v9148 = vpop.f32.mrb[0].mxu0
        %v9149 = vadd.f32 0.0, %v9148
        %v9150 = vpop.f32.mrb[0].mxu0
        %9151 = vmatprep.mubr.bf16.mxu0 0
        %9152 = vmatmul.mubr.bf16.gmra.mrb[0].mxu0 %v3880
        %v9153 = vpop.f32.mrb[0].mxu0
        %v9154 = vadd.f32 0.0, %v9153
        %v9155 = vpop.f32.mrb[0].mxu0
        %v9156 = vpop.f32.mrb[0].mxu0
        %v9157 = vadd.f32 0.0, %v9156
        %v9158 = vpop.f32.mrb[0].mxu0
        %9159 = vmatprep.mubr.bf16.mxu0 0
        %9160 = vmatmul.mubr.bf16.gmra.mrb[0].mxu0 %v3883
        %v9161 = vpop.f32.mrb[0].mxu0
        %v9162 = vadd.f32 0.0, %v9161
        %v9163 = vpop.f32.mrb[0].mxu0
        %v9164 = vpop.f32.mrb[0].mxu0
        %v9165 = vadd.f32 0.0, %v9164
        %v9166 = vpop.f32.mrb[0].mxu0
        %9167 = vdwg.mxu0
        %v9168 = vadd.f32 %v9040, %v9138
        %v9169 = vadd.f32 %v9041, %v9141
        %v9170 = vadd.f32 %v9042, %v9146
        %v9171 = vadd.f32 %v9043, %v9149
        %v9172 = vadd.f32 %v9044, %v9154
        %v9173 = vadd.f32 %v9045, %v9157
        %v9174 = vadd.f32 %v9046, %v9162
        %v9175 = vadd.f32 %v9047, %v9165
        %v9176 = vpack.c.bf16 %v9168, %v9168
        %v9177 = vpack.c.bf16 %v9169, %v9169
        %v9178 = vpack.c.bf16 %v9170, %v9170
        %v9179 = vpack.c.bf16 %v9171, %v9171
        %v9180 = vpack.c.bf16 %v9172, %v9172
        %v9181 = vpack.c.bf16 %v9173, %v9173
        %v9182 = vpack.c.bf16 %v9174, %v9174
        %v9183 = vpack.c.bf16 %v9175, %v9175
        %9184 = vst [vmem:[%s475] sm:$0xf] %v9176
        %9185 = vst [vmem:[%s475 + $0x4] sm:$0xf] %v9177
        %9186 = vst [vmem:[%s475 + $0x8] sm:$0xf] %v9178
        %9187 = vst [vmem:[%s475 + $0xc] sm:$0xf] %v9179
        %9188 = vst [vmem:[%s475 + $0x10] sm:$0xf] %v9180
        %9189 = vst [vmem:[%s475 + $0x14] sm:$0xf] %v9181
        %9190 = vst [vmem:[%s475 + $0x18] sm:$0xf] %v9182
        %9191 = vst [vmem:[%s475 + $0x1c] sm:$0xf] %v9183
        %s9192 = sand.u32 %s340, 1
        %s9193 = scalar_lea.sflag [#allocation3], %s9192
        %s9194 = sand.u32 %s340, 1
        %s9195 = smul.addr %s9194, 32
        %s9196 = scalar_lea.vmem [#allocation2], %s9195
        // Predicated region
        $region77: #{tpu_custom_call.1} parent=75 // pred_check
          %p9197 = pneg %p350
        $region78: #{tpu_custom_call.1} parent=75 // pred_check_branch
          %9199 = sbr.rel (%p9197) target = $region80
        $region79: #{tpu_custom_call.1} parent=75 // pred_region
          %s9201 = ssub.s32 512, 512
          %9202 = vsyncadd %s9193, %s9201
          %s9203 = smul.addr %s28, 8
          %s9204 = smul.addr %s9203, 64
          %s9205 = scalar_lea.hbm %s14, %s9204
          %s9206 = sshll.u32 %s9196, 4
          %s9207 = int_to_ptr.vmem [resolvable:$true] %s9206
          %9212 = dma.vmem_to_hbm [thread:$0]  %s9207, 512, %s9205, %s9193, 64, 64, 4
        $region80: #{tpu_custom_call.1} parent=75 // pred_fallthru
          _
      $region76: #{tpu_custom_call.1} parent=5 // pred_fallthru
        _
      %p9213 = scmp.le.s32.totalorder 2, %s23
      // Predicated region
      $region81: #{tpu_custom_call.1} parent=5 // pred_check
        %p9214 = pneg %p9213
      $region82: #{tpu_custom_call.1} parent=5 // pred_check_branch
        %9216 = sbr.rel (%p9214) target = $region84
      $region83: #{tpu_custom_call.1} parent=5 // pred_region
        %s9217 = ssub.s32 %s23, 2
        // Predicated region
        $region85: #{tpu_custom_call.1} parent=83 // pred_check
          %p9218 = pneg %p356
        $region86: #{tpu_custom_call.1} parent=83 // pred_check_branch
          %9220 = sbr.rel (%p9218) target = $region88
        $region87: #{tpu_custom_call.1} parent=83 // pred_region
          %s9221 = sand.u32 %s341, 1
          %s9222 = scalar_lea.sflag [#allocation3], %s9221
          %s9223 = sand.u32 %s341, 1
          %s9224 = smul.addr %s9223, 32
          %s9225 = scalar_lea.vmem [#allocation2], %s9224
          %9226 = dma.done %s9222, 512
        $region88: #{tpu_custom_call.1} parent=83 // pred_fallthru
          _
      $region84: #{tpu_custom_call.1} parent=5 // pred_fallthru
        _
    $region6: #{tpu_custom_call.1} parent=1 // loop_footer
      %s27 = sadd.s32 1, %s23
    $region7: #{tpu_custom_call.1} parent=1 // loop_footer_branch
      %22 = sbr.rel target = $region3
    $region8: #{tpu_custom_call.1} parent=1 // loop_exit
      _
    %9227 = vsyncpa [#allocation3], 1
    %s9228 = scalar_lea.sflag [#allocation3], 1
    %9229 = vsyncpa %s9228, 1

</llo_original>
